<compile_context>
chip_gen: v6e
topology: v6e:2x2x1
jax: 0.10.0
libtpu: 0.0.40
codegen_flags: <defaults>
</compile_context>

<pallas_src>
import jax
import jax.numpy as jnp
from jax import lax
from jax.experimental import pallas as pl
from jax.experimental.pallas import tpu as pltpu

C_IN = 2
C_MID = 256
C_LAST = 32
KW = 3                      # conv kernel width
L_IN = 34                   # conv sequence length (32*(L_IN-2) == 1024 for fc1)
L_LAST = L_IN - 2           # 32 (valid conv output length)
N_CLASS = 4
NW = L_LAST * N_CLASS       # 128 folded fc columns
K1 = 8                      # conv1 im2col features (3*2=6, zero-padded to 8)


def _make_kernel(b_blk, compute_dtype):
    """Fused conv-stack + fc + softmax kernel for one batch block.

    Rows are stacked TIME-MAJOR (row r = t*b_blk + b), so a time shift is a
    shift by b_blk rows -- always sublane-tile aligned (b_blk is a multiple of
    16) and never mixes batch elements.
    """
    r_same = L_IN * b_blk
    r_last = L_LAST * b_blk
    cdt = jnp.dtype(compute_dtype)
    f32 = jnp.float32
    approx_recip = (cdt != jnp.dtype(jnp.float32))

    def kernel(x_ref, w1_ref, b1_ref, w2_ref, b2_ref, wl_ref, bl_ref,
               wfc_ref, bfc_ref, mask_ref, sel_ref, out_ref, hp_ref):
        # Zero 'same'-padding border row-blocks of the persistent scratch.
        # Done every step (cheap: 2*b_blk rows) so each megacore shard is
        # self-contained -- a pl.when(pid==0) init would be skipped by the
        # second TensorCore under "parallel" sharding.
        zero_blk = jnp.zeros((b_blk, C_MID), cdt)
        hp_ref[0:b_blk] = zero_blk
        hp_ref[b_blk + r_same:2 * b_blk + r_same] = zero_blk

        # ---- conv1 (2->256, 'same'): im2col'd in the wrapper -> one matmul.
        h = jnp.dot(x_ref[0], w1_ref[...], preferred_element_type=f32)
        h = jnp.maximum(h + b1_ref[...], 0.0)                 # (r_same, 256) f32

        # ---- conv2 applied twice (256->256, 'same', k=3): tap-split matmuls.
        # hp row-block j: j=0 left zero pad, j=1..L_IN h time 0..L_IN-1,
        # j=L_IN+1 right zero pad.  Output time t, tap k reads hp block t+k,
        # i.e. the slice starting at k*b_blk.
        for _ in range(2):
            hp_ref[b_blk:b_blk + r_same] = h.astype(cdt)
            h = (jnp.dot(hp_ref[0:r_same], w2_ref[0],
                         preferred_element_type=f32)
                 + jnp.dot(hp_ref[b_blk:b_blk + r_same], w2_ref[1],
                           preferred_element_type=f32)
                 + jnp.dot(hp_ref[2 * b_blk:2 * b_blk + r_same], w2_ref[2],
                           preferred_element_type=f32))
            h = jnp.maximum(h + b2_ref[...], 0.0)

        # ---- conv_last (256->32, 'valid', k=3): tap-split, no padding used.
        hp_ref[b_blk:b_blk + r_same] = h.astype(cdt)
        h4 = (jnp.dot(hp_ref[b_blk:b_blk + r_last], wl_ref[0],
                      preferred_element_type=f32)
              + jnp.dot(hp_ref[2 * b_blk:2 * b_blk + r_last], wl_ref[1],
                        preferred_element_type=f32)
              + jnp.dot(hp_ref[3 * b_blk:3 * b_blk + r_last], wl_ref[2],
                        preferred_element_type=f32))
        h4 = jnp.maximum(h4 + bl_ref[...], 0.0)               # (r_last, 32) f32

        # ---- flatten + fc1 + fc2 (folded in the wrapper to a (1024,4) map).
        # p[r, t*4+o] = time-t contribution of row r; keep only the block
        # diagonal (row time == column time) via the precomputed mask, then
        # tree-fold over time (sublane-aligned adds) and collapse the strided
        # class columns with the precomputed 0/1 selection matmul.
        p = jnp.dot(h4.astype(cdt), wfc_ref[...],
                    preferred_element_type=f32)               # (r_last, 128)
        q = p * mask_ref[...]
        while q.shape[0] > b_blk:                             # L_LAST is 2^k
            half = q.shape[0] // 2
            q = q[:half] + q[half:]                           # ... -> (b_blk, 128)
        z = jnp.dot(q, sel_ref[...], preferred_element_type=f32) + bfc_ref[...]

        # ---- softmax over the 4 classes.
        z = z - jnp.max(z, axis=-1, keepdims=True)
        e = jnp.exp(z)
        s = jnp.sum(e, axis=-1, keepdims=True)
        out_ref[0] = e * pl.reciprocal(s, approx=approx_recip)

    return kernel


def _prep_params(params, compute_dtype):
    """Transpose / fold PyTorch-convention weights for the fused kernel."""
    cdt = jnp.dtype(compute_dtype)
    f32 = jnp.float32
    # conv1 im2col weights: row k*C_IN + i = conv1_w[o, i, k], padded to 8.
    w1 = jnp.transpose(params["conv1_w"], (2, 1, 0)).reshape(KW * C_IN, C_MID)
    w1 = jnp.pad(w1, ((0, K1 - KW * C_IN), (0, 0))).astype(cdt)     # (8, 256)
    b1 = params["conv1_b"][None, :].astype(f32)
    # conv2 / conv_last: per-tap (in, out) blocks -> three accumulating dots.
    w2 = jnp.transpose(params["conv2_w"], (2, 1, 0)).astype(cdt)    # (3,256,256)
    b2 = params["conv2_b"][None, :].astype(f32)
    wl = jnp.transpose(params["conv_last_w"], (2, 1, 0)).astype(cdt)  # (3,256,32)
    bl = params["conv_last_b"][None, :].astype(f32)
    # fc1 -> fc2 has no nonlinearity in between: fold into one affine map.
    wc = params["fc1_w"].T @ params["fc2_w"].T                      # (1024, 4)
    bc = params["fc1_b"] @ params["fc2_w"].T + params["fc2_b"]      # (4,)
    # PyTorch .view flattens (C, T) channel-major: flat idx = c*32 + t.
    wfc = (wc.reshape(C_LAST, L_LAST, N_CLASS)
             .reshape(C_LAST, L_LAST * N_CLASS)).astype(cdt)        # (32, 128)
    return w1, b1, w2, b2, wl, bl, wfc, bc[None, :].astype(f32)


def _choose_b_blk(batch):
    # Multiple of 16 so bf16-packed row shifts stay sublane-tile aligned.
    # Keep >= 2 grid steps when the batch allows so v7x's 2 TensorCores both
    # get work under dimension_semantics=("parallel",).
    if batch <= 32:
        return 16
    if batch <= 512:
        return 32
    return 64


def chow_forward(x, params, compute_dtype=jnp.bfloat16):
    """x: (B, 2, 34) float32, NCW as in PyTorch.  Returns (B, 4) softmax probs."""
    B = x.shape[0]
    assert x.shape[1:] == (C_IN, L_IN), x.shape
    b_blk = _choose_b_blk(B)
    r_same = L_IN * b_blk
    r_last = L_LAST * b_blk

    w1, b1, w2, b2, wl, bl, wfc, bfc = _prep_params(params, compute_dtype)

    # im2col the tiny conv1 input: (B,34,2) zero-padded -> (B,34,6) taps, pad
    # to 8 features, then stack time-major per block of b_blk elements.
    x_lc = jnp.transpose(x, (0, 2, 1))                         # (B, 34, 2)
    x_pad = jnp.pad(x_lc, ((0, 0), (1, 1), (0, 0)))            # (B, 36, 2)
    x_col = jnp.concatenate([x_pad[:, k:k + L_IN, :] for k in range(KW)],
                            axis=-1)                           # (B, 34, 6)
    x_col = jnp.pad(x_col, ((0, 0), (0, 0), (0, K1 - KW * C_IN)))
    n_blk = -(-B // b_blk)
    b_pad = n_blk * b_blk
    x_col = jnp.pad(x_col, ((0, b_pad - B), (0, 0), (0, 0)))
    xs = (x_col.reshape(n_blk, b_blk, L_IN, K1)
                .transpose(0, 2, 1, 3)
                .reshape(n_blk, r_same, K1)).astype(compute_dtype)

    # Constant fc helpers, built once (DMA'd once; resident across grid steps).
    row_t = jnp.arange(r_last, dtype=jnp.int32)[:, None] // b_blk
    col_t = jnp.arange(NW, dtype=jnp.int32)[None, :] // N_CLASS
    mask = (row_t == col_t).astype(jnp.float32)                # (r_last, 128)
    sel = (jnp.arange(NW, dtype=jnp.int32)[:, None] % N_CLASS
           == jnp.arange(N_CLASS, dtype=jnp.int32)[None, :]).astype(jnp.float32)

    kernel = _make_kernel(b_blk, compute_dtype)
    out = pl.pallas_call(
        kernel,
        out_shape=jax.ShapeDtypeStruct((n_blk, b_blk, N_CLASS), jnp.float32),
        grid_spec=pltpu.PrefetchScalarGridSpec(
            num_scalar_prefetch=0,
            grid=(n_blk,),
            in_specs=[
                pl.BlockSpec((1, r_same, K1), lambda g: (g, 0, 0)),
                pl.BlockSpec((K1, C_MID), lambda g: (0, 0)),
                pl.BlockSpec((1, C_MID), lambda g: (0, 0)),
                pl.BlockSpec((KW, C_MID, C_MID), lambda g: (0, 0, 0)),
                pl.BlockSpec((1, C_MID), lambda g: (0, 0)),
                pl.BlockSpec((KW, C_MID, C_LAST), lambda g: (0, 0, 0)),
                pl.BlockSpec((1, C_LAST), lambda g: (0, 0)),
                pl.BlockSpec((C_LAST, NW), lambda g: (0, 0)),
                pl.BlockSpec((1, N_CLASS), lambda g: (0, 0)),
                pl.BlockSpec((r_last, NW), lambda g: (0, 0)),
                pl.BlockSpec((NW, N_CLASS), lambda g: (0, 0)),
            ],
            out_specs=pl.BlockSpec((1, b_blk, N_CLASS), lambda g: (g, 0, 0)),
            scratch_shapes=[
                pltpu.VMEM((r_same + 2 * b_blk, C_MID), compute_dtype),
            ]),
        compiler_params=pltpu.CompilerParams(
            dimension_semantics=("parallel",),
            vmem_limit_bytes=32 * 1024 * 1024),
    )(xs, w1, b1, w2, b2, wl, bl, wfc, bfc, mask, sel)

    return out.reshape(b_pad, N_CLASS)[:B]


def init_params(key):
    """Deterministic synthetic parameters with PyTorch-convention shapes."""
    ks = jax.random.split(key, 10)
    n = lambda k, s, sc: (jax.random.normal(k, s, jnp.float32) * sc)
    return {
        "conv1_w": n(ks[0], (C_MID, C_IN, KW), 0.2),        # (out, in, k)
        "conv1_b": n(ks[1], (C_MID,), 0.05),
        "conv2_w": n(ks[2], (C_MID, C_MID, KW), 0.03),
        "conv2_b": n(ks[3], (C_MID,), 0.05),
        "conv_last_w": n(ks[4], (C_LAST, C_MID, KW), 0.03),
        "conv_last_b": n(ks[5], (C_LAST,), 0.05),
        "fc1_w": n(ks[6], (256, 1024), 0.02),               # (out, in)
        "fc1_b": n(ks[7], (256,), 0.05),
        "fc2_w": n(ks[8], (N_CLASS, 256), 0.05),
        "fc2_b": n(ks[9], (N_CLASS,), 0.05),
    }


def reference_forward(x, params):
    """Pure-JAX reference (XLA convs) used only for a correctness check."""
    def conv1d(h, w, b, padding):
        out = lax.conv_general_dilated(
            h, w, window_strides=(1,), padding=padding,
            dimension_numbers=("NCH", "OIH", "NCH"))
        return out + b[None, :, None]

    h = jax.nn.relu(conv1d(x, params["conv1_w"], params["conv1_b"], "SAME"))
    for _ in range(2):
        h = jax.nn.relu(conv1d(h, params["conv2_w"], params["conv2_b"], "SAME"))
    h = jax.nn.relu(conv1d(h, params["conv_last_w"], params["conv_last_b"],
                           "VALID"))
    flat = h.reshape(h.shape[0], -1)
    z = flat @ params["fc1_w"].T + params["fc1_b"]
    z = z @ params["fc2_w"].T + params["fc2_b"]
    return jax.nn.softmax(z, axis=1)


if __name__ == "__main__":
    B = 2
    key = jax.random.PRNGKey(0)
    kx, kp = jax.random.split(key)
    params = init_params(kp)
    x = jax.random.normal(kx, (B, C_IN, L_IN), jnp.float32)

    ref = jax.block_until_ready(reference_forward(x, params))

    fwd = jax.jit(chow_forward, static_argnames="compute_dtype")

    # f32 path: exact-mode check against the XLA reference.
    out_f32 = jax.block_until_ready(fwd(x, params, compute_dtype=jnp.float32))
    assert out_f32.shape == (B, N_CLASS), out_f32.shape
    assert jnp.allclose(out_f32, ref, atol=1e-4, rtol=1e-4), (out_f32, ref)

    # bf16-operand path (default, fastest on v6e/v7x): f32 accumulation,
    # looser tolerance.
    out_bf16 = jax.block_until_ready(fwd(x, params))
    assert out_bf16.shape == (B, N_CLASS), out_bf16.shape
    assert jnp.allclose(out_bf16, ref, atol=2e-2, rtol=2e-2), (out_bf16, ref)

    print("KERNEL_OK")
</pallas_src>

<mosaic_0001>
module attributes {stable_mosaic.version = 11 : i64} {
  func.func @kernel(%arg0: i32, %arg1: memref<1x544x8xf32, #tpu.memory_space<vmem>>, %arg2: memref<8x256xf32, #tpu.memory_space<vmem>>, %arg3: memref<1x256xf32, #tpu.memory_space<vmem>>, %arg4: memref<3x256x256xf32, #tpu.memory_space<vmem>>, %arg5: memref<1x256xf32, #tpu.memory_space<vmem>>, %arg6: memref<3x256x32xf32, #tpu.memory_space<vmem>>, %arg7: memref<1x32xf32, #tpu.memory_space<vmem>>, %arg8: memref<32x128xf32, #tpu.memory_space<vmem>>, %arg9: memref<1x4xf32, #tpu.memory_space<vmem>>, %arg10: memref<512x128xf32, #tpu.memory_space<vmem>>, %arg11: memref<128x4xf32, #tpu.memory_space<vmem>>, %arg12: memref<1x16x4xf32, #tpu.memory_space<vmem>>, %arg13: memref<576x256xf32, #tpu.memory_space<vmem>>) attributes {dimension_semantics = [#tpu.dimension_semantics<parallel>], iteration_bounds = array<i64: 1>, scalar_prefetch = 0 : i64, scratch_operands = 1 : i64, tpu.core_type = #tpu.core_type<tc>, window_params = [{transform_indices = @transform_0, window_bounds = array<i64: 1, 544, 8>}, {pipeline_mode = #tpu.pipeline_mode<synchronous>, transform_indices = @transform_1, window_bounds = array<i64: 8, 256>}, {pipeline_mode = #tpu.pipeline_mode<synchronous>, transform_indices = @transform_2, window_bounds = array<i64: 1, 256>}, {pipeline_mode = #tpu.pipeline_mode<synchronous>, transform_indices = @transform_3, window_bounds = array<i64: 3, 256, 256>}, {pipeline_mode = #tpu.pipeline_mode<synchronous>, transform_indices = @transform_4, window_bounds = array<i64: 1, 256>}, {pipeline_mode = #tpu.pipeline_mode<synchronous>, transform_indices = @transform_5, window_bounds = array<i64: 3, 256, 32>}, {pipeline_mode = #tpu.pipeline_mode<synchronous>, transform_indices = @transform_6, window_bounds = array<i64: 1, 32>}, {pipeline_mode = #tpu.pipeline_mode<synchronous>, transform_indices = @transform_7, window_bounds = array<i64: 32, 128>}, {pipeline_mode = #tpu.pipeline_mode<synchronous>, transform_indices = @transform_8, window_bounds = array<i64: 1, 4>}, {pipeline_mode = #tpu.pipeline_mode<synchronous>, transform_indices = @transform_9, window_bounds = array<i64: 512, 128>}, {pipeline_mode = #tpu.pipeline_mode<synchronous>, transform_indices = @transform_10, window_bounds = array<i64: 128, 4>}, {transform_indices = @transform_11, window_bounds = array<i64: 1, 16, 4>}]} {
    %cst = arith.constant 0.000000e+00 : f32
    %0 = vector.broadcast %cst : f32 to vector<16x256xf32>
    %c0 = arith.constant 0 : index
    %c0_0 = arith.constant 0 : index
    %1 = vector.load %arg13[%c0, %c0_0] : memref<576x256xf32, #tpu.memory_space<vmem>>, vector<16x256xf32>
    tpu.vector_store %arg13[%c0, %c0_0], %0 {strides = array<i32>} : memref<576x256xf32, #tpu.memory_space<vmem>>, vector<16x256xf32>,
    %c560 = arith.constant 560 : index
    %c0_1 = arith.constant 0 : index
    %2 = vector.load %arg13[%c560, %c0_1] : memref<576x256xf32, #tpu.memory_space<vmem>>, vector<16x256xf32>
    tpu.vector_store %arg13[%c560, %c0_1], %0 {strides = array<i32>} : memref<576x256xf32, #tpu.memory_space<vmem>>, vector<16x256xf32>,
    %c0_2 = arith.constant 0 : index
    %c0_3 = arith.constant 0 : index
    %c0_4 = arith.constant 0 : index
    %3 = vector.load %arg1[%c0_2, %c0_3, %c0_4] : memref<1x544x8xf32, #tpu.memory_space<vmem>>, vector<1x544x8xf32>
    %4 = vector.shape_cast %3 : vector<1x544x8xf32> to vector<544x8xf32>
    %c0_5 = arith.constant 0 : index
    %c0_6 = arith.constant 0 : index
    %5 = vector.load %arg2[%c0_5, %c0_6] : memref<8x256xf32, #tpu.memory_space<vmem>>, vector<8x256xf32>
    %cst_7 = arith.constant dense<0.000000e+00> : vector<544x256xf32>
    %6 = tpu.matmul %4, %5, %cst_7 {dimension_numbers = #tpu.dot_dimension_numbers<[1], [0], [0], [1], [0, 0, 1, 1], [], []>} : vector<544x8xf32>, vector<8x256xf32>, vector<544x256xf32> -> vector<544x256xf32>
    %c0_8 = arith.constant 0 : index
    %c0_9 = arith.constant 0 : index
    %7 = vector.load %arg3[%c0_8, %c0_9] : memref<1x256xf32, #tpu.memory_space<vmem>>, vector<1x256xf32>
    %8 = vector.broadcast %7 : vector<1x256xf32> to vector<544x256xf32>
    %9 = arith.addf %6, %8 : vector<544x256xf32>
    %cst_10 = arith.constant 0.000000e+00 : f32
    %10 = vector.broadcast %cst_10 : f32 to vector<544x256xf32>
    %11 = arith.maximumf %9, %10 : vector<544x256xf32>
    %c16 = arith.constant 16 : index
    %c0_11 = arith.constant 0 : index
    %12 = vector.load %arg13[%c16, %c0_11] : memref<576x256xf32, #tpu.memory_space<vmem>>, vector<544x256xf32>
    tpu.vector_store %arg13[%c16, %c0_11], %11 {strides = array<i32>} : memref<576x256xf32, #tpu.memory_space<vmem>>, vector<544x256xf32>,
    %c0_12 = arith.constant 0 : index
    %c0_13 = arith.constant 0 : index
    %13 = vector.load %arg13[%c0_12, %c0_13] : memref<576x256xf32, #tpu.memory_space<vmem>>, vector<544x256xf32>
    %c0_14 = arith.constant 0 : index
    %c0_15 = arith.constant 0 : index
    %c0_16 = arith.constant 0 : index
    %14 = vector.load %arg4[%c0_14, %c0_15, %c0_16] : memref<3x256x256xf32, #tpu.memory_space<vmem>>, vector<1x256x256xf32>
    %15 = vector.shape_cast %14 : vector<1x256x256xf32> to vector<256x256xf32>
    %cst_17 = arith.constant dense<0.000000e+00> : vector<544x256xf32>
    %16 = tpu.matmul %13, %15, %cst_17 {dimension_numbers = #tpu.dot_dimension_numbers<[1], [0], [0], [1], [0, 0, 1, 1], [], []>} : vector<544x256xf32>, vector<256x256xf32>, vector<544x256xf32> -> vector<544x256xf32>
    %c16_18 = arith.constant 16 : index
    %c0_19 = arith.constant 0 : index
    %17 = vector.load %arg13[%c16_18, %c0_19] : memref<576x256xf32, #tpu.memory_space<vmem>>, vector<544x256xf32>
    %c1 = arith.constant 1 : index
    %c0_20 = arith.constant 0 : index
    %c0_21 = arith.constant 0 : index
    %18 = vector.load %arg4[%c1, %c0_20, %c0_21] : memref<3x256x256xf32, #tpu.memory_space<vmem>>, vector<1x256x256xf32>
    %19 = vector.shape_cast %18 : vector<1x256x256xf32> to vector<256x256xf32>
    %cst_22 = arith.constant dense<0.000000e+00> : vector<544x256xf32>
    %20 = tpu.matmul %17, %19, %cst_22 {dimension_numbers = #tpu.dot_dimension_numbers<[1], [0], [0], [1], [0, 0, 1, 1], [], []>} : vector<544x256xf32>, vector<256x256xf32>, vector<544x256xf32> -> vector<544x256xf32>
    %21 = arith.addf %16, %20 : vector<544x256xf32>
    %c32 = arith.constant 32 : index
    %c0_23 = arith.constant 0 : index
    %22 = vector.load %arg13[%c32, %c0_23] : memref<576x256xf32, #tpu.memory_space<vmem>>, vector<544x256xf32>
    %c2 = arith.constant 2 : index
    %c0_24 = arith.constant 0 : index
    %c0_25 = arith.constant 0 : index
    %23 = vector.load %arg4[%c2, %c0_24, %c0_25] : memref<3x256x256xf32, #tpu.memory_space<vmem>>, vector<1x256x256xf32>
    %24 = vector.shape_cast %23 : vector<1x256x256xf32> to vector<256x256xf32>
    %cst_26 = arith.constant dense<0.000000e+00> : vector<544x256xf32>
    %25 = tpu.matmul %22, %24, %cst_26 {dimension_numbers = #tpu.dot_dimension_numbers<[1], [0], [0], [1], [0, 0, 1, 1], [], []>} : vector<544x256xf32>, vector<256x256xf32>, vector<544x256xf32> -> vector<544x256xf32>
    %26 = arith.addf %21, %25 : vector<544x256xf32>
    %c0_27 = arith.constant 0 : index
    %c0_28 = arith.constant 0 : index
    %27 = vector.load %arg5[%c0_27, %c0_28] : memref<1x256xf32, #tpu.memory_space<vmem>>, vector<1x256xf32>
    %28 = vector.broadcast %27 : vector<1x256xf32> to vector<544x256xf32>
    %29 = arith.addf %26, %28 : vector<544x256xf32>
    %cst_29 = arith.constant 0.000000e+00 : f32
    %30 = vector.broadcast %cst_29 : f32 to vector<544x256xf32>
    %31 = arith.maximumf %29, %30 : vector<544x256xf32>
    %c16_30 = arith.constant 16 : index
    %c0_31 = arith.constant 0 : index
    %32 = vector.load %arg13[%c16_30, %c0_31] : memref<576x256xf32, #tpu.memory_space<vmem>>, vector<544x256xf32>
    tpu.vector_store %arg13[%c16_30, %c0_31], %31 {strides = array<i32>} : memref<576x256xf32, #tpu.memory_space<vmem>>, vector<544x256xf32>,
    %c0_32 = arith.constant 0 : index
    %c0_33 = arith.constant 0 : index
    %33 = vector.load %arg13[%c0_32, %c0_33] : memref<576x256xf32, #tpu.memory_space<vmem>>, vector<544x256xf32>
    %c0_34 = arith.constant 0 : index
    %c0_35 = arith.constant 0 : index
    %c0_36 = arith.constant 0 : index
    %34 = vector.load %arg4[%c0_34, %c0_35, %c0_36] : memref<3x256x256xf32, #tpu.memory_space<vmem>>, vector<1x256x256xf32>
    %35 = vector.shape_cast %34 : vector<1x256x256xf32> to vector<256x256xf32>
    %cst_37 = arith.constant dense<0.000000e+00> : vector<544x256xf32>
    %36 = tpu.matmul %33, %35, %cst_37 {dimension_numbers = #tpu.dot_dimension_numbers<[1], [0], [0], [1], [0, 0, 1, 1], [], []>} : vector<544x256xf32>, vector<256x256xf32>, vector<544x256xf32> -> vector<544x256xf32>
    %c16_38 = arith.constant 16 : index
    %c0_39 = arith.constant 0 : index
    %37 = vector.load %arg13[%c16_38, %c0_39] : memref<576x256xf32, #tpu.memory_space<vmem>>, vector<544x256xf32>
    %c1_40 = arith.constant 1 : index
    %c0_41 = arith.constant 0 : index
    %c0_42 = arith.constant 0 : index
    %38 = vector.load %arg4[%c1_40, %c0_41, %c0_42] : memref<3x256x256xf32, #tpu.memory_space<vmem>>, vector<1x256x256xf32>
    %39 = vector.shape_cast %38 : vector<1x256x256xf32> to vector<256x256xf32>
    %cst_43 = arith.constant dense<0.000000e+00> : vector<544x256xf32>
    %40 = tpu.matmul %37, %39, %cst_43 {dimension_numbers = #tpu.dot_dimension_numbers<[1], [0], [0], [1], [0, 0, 1, 1], [], []>} : vector<544x256xf32>, vector<256x256xf32>, vector<544x256xf32> -> vector<544x256xf32>
    %41 = arith.addf %36, %40 : vector<544x256xf32>
    %c32_44 = arith.constant 32 : index
    %c0_45 = arith.constant 0 : index
    %42 = vector.load %arg13[%c32_44, %c0_45] : memref<576x256xf32, #tpu.memory_space<vmem>>, vector<544x256xf32>
    %c2_46 = arith.constant 2 : index
    %c0_47 = arith.constant 0 : index
    %c0_48 = arith.constant 0 : index
    %43 = vector.load %arg4[%c2_46, %c0_47, %c0_48] : memref<3x256x256xf32, #tpu.memory_space<vmem>>, vector<1x256x256xf32>
    %44 = vector.shape_cast %43 : vector<1x256x256xf32> to vector<256x256xf32>
    %cst_49 = arith.constant dense<0.000000e+00> : vector<544x256xf32>
    %45 = tpu.matmul %42, %44, %cst_49 {dimension_numbers = #tpu.dot_dimension_numbers<[1], [0], [0], [1], [0, 0, 1, 1], [], []>} : vector<544x256xf32>, vector<256x256xf32>, vector<544x256xf32> -> vector<544x256xf32>
    %46 = arith.addf %41, %45 : vector<544x256xf32>
    %c0_50 = arith.constant 0 : index
    %c0_51 = arith.constant 0 : index
    %47 = vector.load %arg5[%c0_50, %c0_51] : memref<1x256xf32, #tpu.memory_space<vmem>>, vector<1x256xf32>
    %48 = vector.broadcast %47 : vector<1x256xf32> to vector<544x256xf32>
    %49 = arith.addf %46, %48 : vector<544x256xf32>
    %cst_52 = arith.constant 0.000000e+00 : f32
    %50 = vector.broadcast %cst_52 : f32 to vector<544x256xf32>
    %51 = arith.maximumf %49, %50 : vector<544x256xf32>
    %c16_53 = arith.constant 16 : index
    %c0_54 = arith.constant 0 : index
    %52 = vector.load %arg13[%c16_53, %c0_54] : memref<576x256xf32, #tpu.memory_space<vmem>>, vector<544x256xf32>
    tpu.vector_store %arg13[%c16_53, %c0_54], %51 {strides = array<i32>} : memref<576x256xf32, #tpu.memory_space<vmem>>, vector<544x256xf32>,
    %c16_55 = arith.constant 16 : index
    %c0_56 = arith.constant 0 : index
    %53 = vector.load %arg13[%c16_55, %c0_56] : memref<576x256xf32, #tpu.memory_space<vmem>>, vector<512x256xf32>
    %c0_57 = arith.constant 0 : index
    %c0_58 = arith.constant 0 : index
    %c0_59 = arith.constant 0 : index
    %54 = vector.load %arg6[%c0_57, %c0_58, %c0_59] : memref<3x256x32xf32, #tpu.memory_space<vmem>>, vector<1x256x32xf32>
    %55 = vector.shape_cast %54 : vector<1x256x32xf32> to vector<256x32xf32>
    %cst_60 = arith.constant dense<0.000000e+00> : vector<512x32xf32>
    %56 = tpu.matmul %53, %55, %cst_60 {dimension_numbers = #tpu.dot_dimension_numbers<[1], [0], [0], [1], [0, 0, 1, 1], [], []>} : vector<512x256xf32>, vector<256x32xf32>, vector<512x32xf32> -> vector<512x32xf32>
    %c32_61 = arith.constant 32 : index
    %c0_62 = arith.constant 0 : index
    %57 = vector.load %arg13[%c32_61, %c0_62] : memref<576x256xf32, #tpu.memory_space<vmem>>, vector<512x256xf32>
    %c1_63 = arith.constant 1 : index
    %c0_64 = arith.constant 0 : index
    %c0_65 = arith.constant 0 : index
    %58 = vector.load %arg6[%c1_63, %c0_64, %c0_65] : memref<3x256x32xf32, #tpu.memory_space<vmem>>, vector<1x256x32xf32>
    %59 = vector.shape_cast %58 : vector<1x256x32xf32> to vector<256x32xf32>
    %cst_66 = arith.constant dense<0.000000e+00> : vector<512x32xf32>
    %60 = tpu.matmul %57, %59, %cst_66 {dimension_numbers = #tpu.dot_dimension_numbers<[1], [0], [0], [1], [0, 0, 1, 1], [], []>} : vector<512x256xf32>, vector<256x32xf32>, vector<512x32xf32> -> vector<512x32xf32>
    %61 = arith.addf %56, %60 : vector<512x32xf32>
    %c48 = arith.constant 48 : index
    %c0_67 = arith.constant 0 : index
    %62 = vector.load %arg13[%c48, %c0_67] : memref<576x256xf32, #tpu.memory_space<vmem>>, vector<512x256xf32>
    %c2_68 = arith.constant 2 : index
    %c0_69 = arith.constant 0 : index
    %c0_70 = arith.constant 0 : index
    %63 = vector.load %arg6[%c2_68, %c0_69, %c0_70] : memref<3x256x32xf32, #tpu.memory_space<vmem>>, vector<1x256x32xf32>
    %64 = vector.shape_cast %63 : vector<1x256x32xf32> to vector<256x32xf32>
    %cst_71 = arith.constant dense<0.000000e+00> : vector<512x32xf32>
    %65 = tpu.matmul %62, %64, %cst_71 {dimension_numbers = #tpu.dot_dimension_numbers<[1], [0], [0], [1], [0, 0, 1, 1], [], []>} : vector<512x256xf32>, vector<256x32xf32>, vector<512x32xf32> -> vector<512x32xf32>
    %66 = arith.addf %61, %65 : vector<512x32xf32>
    %c0_72 = arith.constant 0 : index
    %c0_73 = arith.constant 0 : index
    %67 = vector.load %arg7[%c0_72, %c0_73] : memref<1x32xf32, #tpu.memory_space<vmem>>, vector<1x32xf32>
    %68 = vector.broadcast %67 : vector<1x32xf32> to vector<512x32xf32>
    %69 = arith.addf %66, %68 : vector<512x32xf32>
    %cst_74 = arith.constant 0.000000e+00 : f32
    %70 = vector.broadcast %cst_74 : f32 to vector<512x32xf32>
    %71 = arith.maximumf %69, %70 : vector<512x32xf32>
    %c0_75 = arith.constant 0 : index
    %c0_76 = arith.constant 0 : index
    %72 = vector.load %arg8[%c0_75, %c0_76] : memref<32x128xf32, #tpu.memory_space<vmem>>, vector<32x128xf32>
    %cst_77 = arith.constant dense<0.000000e+00> : vector<512x128xf32>
    %73 = tpu.matmul %71, %72, %cst_77 {dimension_numbers = #tpu.dot_dimension_numbers<[1], [0], [0], [1], [0, 0, 1, 1], [], []>} : vector<512x32xf32>, vector<32x128xf32>, vector<512x128xf32> -> vector<512x128xf32>
    %c0_78 = arith.constant 0 : index
    %c0_79 = arith.constant 0 : index
    %74 = vector.load %arg10[%c0_78, %c0_79] : memref<512x128xf32, #tpu.memory_space<vmem>>, vector<512x128xf32>
    %75 = arith.mulf %73, %74 : vector<512x128xf32>
    %76 = vector.extract_strided_slice %75 {offsets = [0, 0], sizes = [256, 128], strides = [1, 1]} : vector<512x128xf32> to vector<256x128xf32>
    %77 = vector.extract_strided_slice %75 {offsets = [256, 0], sizes = [256, 128], strides = [1, 1]} : vector<512x128xf32> to vector<256x128xf32>
    %78 = arith.addf %76, %77 : vector<256x128xf32>
    %79 = vector.extract_strided_slice %78 {offsets = [0, 0], sizes = [128, 128], strides = [1, 1]} : vector<256x128xf32> to vector<128x128xf32>
    %80 = vector.extract_strided_slice %78 {offsets = [128, 0], sizes = [128, 128], strides = [1, 1]} : vector<256x128xf32> to vector<128x128xf32>
    %81 = arith.addf %79, %80 : vector<128x128xf32>
    %82 = vector.extract_strided_slice %81 {offsets = [0, 0], sizes = [64, 128], strides = [1, 1]} : vector<128x128xf32> to vector<64x128xf32>
    %83 = vector.extract_strided_slice %81 {offsets = [64, 0], sizes = [64, 128], strides = [1, 1]} : vector<128x128xf32> to vector<64x128xf32>
    %84 = arith.addf %82, %83 : vector<64x128xf32>
    %85 = vector.extract_strided_slice %84 {offsets = [0, 0], sizes = [32, 128], strides = [1, 1]} : vector<64x128xf32> to vector<32x128xf32>
    %86 = vector.extract_strided_slice %84 {offsets = [32, 0], sizes = [32, 128], strides = [1, 1]} : vector<64x128xf32> to vector<32x128xf32>
    %87 = arith.addf %85, %86 : vector<32x128xf32>
    %88 = vector.extract_strided_slice %87 {offsets = [0, 0], sizes = [16, 128], strides = [1, 1]} : vector<32x128xf32> to vector<16x128xf32>
    %89 = vector.extract_strided_slice %87 {offsets = [16, 0], sizes = [16, 128], strides = [1, 1]} : vector<32x128xf32> to vector<16x128xf32>
    %90 = arith.addf %88, %89 : vector<16x128xf32>
    %c0_80 = arith.constant 0 : index
    %c0_81 = arith.constant 0 : index
    %91 = vector.load %arg11[%c0_80, %c0_81] : memref<128x4xf32, #tpu.memory_space<vmem>>, vector<128x4xf32>
    %cst_82 = arith.constant dense<0.000000e+00> : vector<16x4xf32>
    %92 = tpu.matmul %90, %91, %cst_82 {dimension_numbers = #tpu.dot_dimension_numbers<[1], [0], [0], [1], [0, 0, 1, 1], [], []>} : vector<16x128xf32>, vector<128x4xf32>, vector<16x4xf32> -> vector<16x4xf32>
    %c0_83 = arith.constant 0 : index
    %c0_84 = arith.constant 0 : index
    %93 = vector.load %arg9[%c0_83, %c0_84] : memref<1x4xf32, #tpu.memory_space<vmem>>, vector<1x4xf32>
    %94 = vector.broadcast %93 : vector<1x4xf32> to vector<16x4xf32>
    %95 = arith.addf %92, %94 : vector<16x4xf32>
    %cst_85 = arith.constant dense<0xFF800000> : vector<16xf32>
    %96 = vector.multi_reduction <maximumf>, %95, %cst_85 [1] : vector<16x4xf32> to vector<16xf32>
    %97 = vector.shape_cast %96 : vector<16xf32> to vector<16x1xf32>
    %98 = vector.broadcast %97 : vector<16x1xf32> to vector<16x4xf32>
    %99 = arith.subf %95, %98 : vector<16x4xf32>
    %100 = math.exp %99 : vector<16x4xf32>
    %cst_86 = arith.constant dense<0.000000e+00> : vector<16xf32>
    %101 = vector.multi_reduction <add>, %100, %cst_86 [1] : vector<16x4xf32> to vector<16xf32>
    %102 = vector.shape_cast %101 : vector<16xf32> to vector<16x1xf32>
    %103 = tpu.reciprocal %102 : vector<16x1xf32> -> vector<16x1xf32>
    %104 = vector.broadcast %103 : vector<16x1xf32> to vector<16x4xf32>
    %105 = arith.mulf %100, %104 : vector<16x4xf32>
    %c0_87 = arith.constant 0 : index
    %c0_88 = arith.constant 0 : index
    %c0_89 = arith.constant 0 : index
    %106 = vector.load %arg12[%c0_87, %c0_88, %c0_89] : memref<1x16x4xf32, #tpu.memory_space<vmem>>, vector<1x16x4xf32>
    %107 = vector.shape_cast %106 : vector<1x16x4xf32> to vector<16x4xf32>
    %108 = vector.shape_cast %105 : vector<16x4xf32> to vector<1x16x4xf32>
    tpu.vector_store %arg12[%c0_87, %c0_88, %c0_89], %108 {strides = array<i32>} : memref<1x16x4xf32, #tpu.memory_space<vmem>>, vector<1x16x4xf32>,
    return
  }
  func.func @transform_0(%arg0: i32) -> (i32, i32, i32) {
    %c0_i32 = arith.constant 0 : i32
    %c0_i32_0 = arith.constant 0 : i32
    %c0_i32_1 = arith.constant 0 : i32
    return %arg0, %c0_i32, %c0_i32_0 : i32, i32, i32
  }
  func.func @transform_1(%arg0: i32) -> (i32, i32) {
    %c0_i32 = arith.constant 0 : i32
    %c0_i32_0 = arith.constant 0 : i32
    %c0_i32_1 = arith.constant 0 : i32
    return %c0_i32, %c0_i32_0 : i32, i32
  }
  func.func @transform_2(%arg0: i32) -> (i32, i32) {
    %c0_i32 = arith.constant 0 : i32
    %c0_i32_0 = arith.constant 0 : i32
    %c0_i32_1 = arith.constant 0 : i32
    return %c0_i32, %c0_i32_0 : i32, i32
  }
  func.func @transform_3(%arg0: i32) -> (i32, i32, i32) {
    %c0_i32 = arith.constant 0 : i32
    %c0_i32_0 = arith.constant 0 : i32
    %c0_i32_1 = arith.constant 0 : i32
    %c0_i32_2 = arith.constant 0 : i32
    return %c0_i32, %c0_i32_0, %c0_i32_1 : i32, i32, i32
  }
  func.func @transform_4(%arg0: i32) -> (i32, i32) {
    %c0_i32 = arith.constant 0 : i32
    %c0_i32_0 = arith.constant 0 : i32
    %c0_i32_1 = arith.constant 0 : i32
    return %c0_i32, %c0_i32_0 : i32, i32
  }
  func.func @transform_5(%arg0: i32) -> (i32, i32, i32) {
    %c0_i32 = arith.constant 0 : i32
    %c0_i32_0 = arith.constant 0 : i32
    %c0_i32_1 = arith.constant 0 : i32
    %c0_i32_2 = arith.constant 0 : i32
    return %c0_i32, %c0_i32_0, %c0_i32_1 : i32, i32, i32
  }
  func.func @transform_6(%arg0: i32) -> (i32, i32) {
    %c0_i32 = arith.constant 0 : i32
    %c0_i32_0 = arith.constant 0 : i32
    %c0_i32_1 = arith.constant 0 : i32
    return %c0_i32, %c0_i32_0 : i32, i32
  }
  func.func @transform_7(%arg0: i32) -> (i32, i32) {
    %c0_i32 = arith.constant 0 : i32
    %c0_i32_0 = arith.constant 0 : i32
    %c0_i32_1 = arith.constant 0 : i32
    return %c0_i32, %c0_i32_0 : i32, i32
  }
  func.func @transform_8(%arg0: i32) -> (i32, i32) {
    %c0_i32 = arith.constant 0 : i32
    %c0_i32_0 = arith.constant 0 : i32
    %c0_i32_1 = arith.constant 0 : i32
    return %c0_i32, %c0_i32_0 : i32, i32
  }
  func.func @transform_9(%arg0: i32) -> (i32, i32) {
    %c0_i32 = arith.constant 0 : i32
    %c0_i32_0 = arith.constant 0 : i32
    %c0_i32_1 = arith.constant 0 : i32
    return %c0_i32, %c0_i32_0 : i32, i32
  }
  func.func @transform_10(%arg0: i32) -> (i32, i32) {
    %c0_i32 = arith.constant 0 : i32
    %c0_i32_0 = arith.constant 0 : i32
    %c0_i32_1 = arith.constant 0 : i32
    return %c0_i32, %c0_i32_0 : i32, i32
  }
  func.func @transform_11(%arg0: i32) -> (i32, i32, i32) {
    %c0_i32 = arith.constant 0 : i32
    %c0_i32_0 = arith.constant 0 : i32
    %c0_i32_1 = arith.constant 0 : i32
    return %arg0, %c0_i32, %c0_i32_0 : i32, i32, i32
  }
}

</mosaic_0001>

<llo_original>
// kernel: chow_forward.1
$region0: #{chow_forward.1}
  #allocation0 [shape = 'u32[]', space=smem, size = 0x4, offset = 0x4, fixed_abs, tag = 'smem constant byte address 0x4 - core index']
  #allocation1 [shape = 'u32[144,128]{1,0:T(1,128)}', space=vmem, size = 0x12000, scoped, tag = 'internal scratch']
  #allocation2 [shape = 'f32[576,256]{1,0:T(8,128)}', space=vmem, size = 0x90000, scoped, tag = 'scratch operand']
  %s0 = inlined_call_operand.vmem [shape: f32[1,544,8], index: 0, kind: input, shape index: {}]
  %s1 = inlined_call_operand.vmem [shape: f32[8,256], index: 1, kind: input, shape index: {}]
  %s2 = inlined_call_operand.vmem [shape: f32[1,256], index: 2, kind: input, shape index: {}]
  %s3 = inlined_call_operand.vmem [shape: f32[3,256,256], index: 3, kind: input, shape index: {}]
  %s4 = inlined_call_operand.vmem [shape: f32[1,256], index: 4, kind: input, shape index: {}]
  %s5 = inlined_call_operand.vmem [shape: f32[3,256,32], index: 5, kind: input, shape index: {}]
  %s6 = inlined_call_operand.vmem [shape: f32[1,32], index: 6, kind: input, shape index: {}]
  %s7 = inlined_call_operand.vmem [shape: f32[32,128], index: 7, kind: input, shape index: {}]
  %s8 = inlined_call_operand.vmem [shape: f32[1,4], index: 8, kind: input, shape index: {}]
  %s9 = inlined_call_operand.vmem [shape: f32[512,128], index: 9, kind: input, shape index: {}]
  %s10 = inlined_call_operand.vmem [shape: f32[128,4], index: 10, kind: input, shape index: {}]
  %s11 = inlined_call_operand.vmem [shape: f32[1,16,4], index: 11, kind: output, shape index: {}]
  %s12 = sld [smem:[#allocation0]]
  $region54: #{chow_forward.1} parent=0
    _
  %s14 = ssub.s32 1, %s12
  %s15 = scalar_select 0, %s14, %s12
  // Predicated region
  $region2: #{chow_forward.1} parent=0 // pred_check
    _
  $region3: #{chow_forward.1} parent=0 // pred_check_branch
    %17 = sbr.rel (0) target = $region5
  $region4: #{chow_forward.1} parent=0 // pred_region
    _
  $region5: #{chow_forward.1} parent=0 // pred_fallthru
    _
  // Predicated region
  $region6: #{chow_forward.1} parent=0 // pred_check
    _
  $region7: #{chow_forward.1} parent=0 // pred_check_branch
    %19 = sbr.rel (0) target = $region9
  $region8: #{chow_forward.1} parent=0 // pred_region
    _
  $region9: #{chow_forward.1} parent=0 // pred_fallthru
    _
  // Predicated region
  $region10: #{chow_forward.1} parent=0 // pred_check
    _
  $region11: #{chow_forward.1} parent=0 // pred_check_branch
    %21 = sbr.rel (0) target = $region13
  $region12: #{chow_forward.1} parent=0 // pred_region
    _
  $region13: #{chow_forward.1} parent=0 // pred_fallthru
    _
  // Predicated region
  $region14: #{chow_forward.1} parent=0 // pred_check
    _
  $region15: #{chow_forward.1} parent=0 // pred_check_branch
    %23 = sbr.rel (0) target = $region17
  $region16: #{chow_forward.1} parent=0 // pred_region
    _
  $region17: #{chow_forward.1} parent=0 // pred_fallthru
    _
  // Predicated region
  $region18: #{chow_forward.1} parent=0 // pred_check
    _
  $region19: #{chow_forward.1} parent=0 // pred_check_branch
    %25 = sbr.rel (0) target = $region21
  $region20: #{chow_forward.1} parent=0 // pred_region
    _
  $region21: #{chow_forward.1} parent=0 // pred_fallthru
    _
  // Predicated region
  $region22: #{chow_forward.1} parent=0 // pred_check
    _
  $region23: #{chow_forward.1} parent=0 // pred_check_branch
    %27 = sbr.rel (0) target = $region25
  $region24: #{chow_forward.1} parent=0 // pred_region
    _
  $region25: #{chow_forward.1} parent=0 // pred_fallthru
    _
  // Predicated region
  $region26: #{chow_forward.1} parent=0 // pred_check
    _
  $region27: #{chow_forward.1} parent=0 // pred_check_branch
    %29 = sbr.rel (0) target = $region29
  $region28: #{chow_forward.1} parent=0 // pred_region
    _
  $region29: #{chow_forward.1} parent=0 // pred_fallthru
    _
  // Predicated region
  $region30: #{chow_forward.1} parent=0 // pred_check
    _
  $region31: #{chow_forward.1} parent=0 // pred_check_branch
    %31 = sbr.rel (0) target = $region33
  $region32: #{chow_forward.1} parent=0 // pred_region
    _
  $region33: #{chow_forward.1} parent=0 // pred_fallthru
    _
  // Predicated region
  $region34: #{chow_forward.1} parent=0 // pred_check
    _
  $region35: #{chow_forward.1} parent=0 // pred_check_branch
    %33 = sbr.rel (0) target = $region37
  $region36: #{chow_forward.1} parent=0 // pred_region
    _
  $region37: #{chow_forward.1} parent=0 // pred_fallthru
    _
  // Predicated region
  $region38: #{chow_forward.1} parent=0 // pred_check
    _
  $region39: #{chow_forward.1} parent=0 // pred_check_branch
    %35 = sbr.rel (0) target = $region41
  $region40: #{chow_forward.1} parent=0 // pred_region
    _
  $region41: #{chow_forward.1} parent=0 // pred_fallthru
    _
  // Predicated region
  $region42: #{chow_forward.1} parent=0 // pred_check
    _
  $region43: #{chow_forward.1} parent=0 // pred_check_branch
    %37 = sbr.rel (0) target = $region45
  $region44: #{chow_forward.1} parent=0 // pred_region
    _
  $region45: #{chow_forward.1} parent=0 // pred_fallthru
    _
  %38 = vst [vmem:[#allocation2] sm:$0xff] 0.0
  %39 = vst [vmem:[#allocation2 + $0x8] sm:$0xff] 0.0
  %40 = vst [vmem:[#allocation2 + $0x10] sm:$0xff] 0.0
  %41 = vst [vmem:[#allocation2 + $0x18] sm:$0xff] 0.0
  %42 = vst [vmem:[#allocation2 + $0x460] sm:$0xff] 0.0
  %43 = vst [vmem:[#allocation2 + $0x468] sm:$0xff] 0.0
  %44 = vst [vmem:[#allocation2 + $0x470] sm:$0xff] 0.0
  %45 = vst [vmem:[#allocation2 + $0x478] sm:$0xff] 0.0
  %v46 = vld [vmem:[%s0] sm:$0xff]
  %v47 = vld [vmem:[%s0 + $0x8] sm:$0xff]
  %v48 = vld [vmem:[%s0 + $0x10] sm:$0xff]
  %v49 = vld [vmem:[%s0 + $0x18] sm:$0xff]
  %v50 = vld [vmem:[%s0 + $0x20] sm:$0xff]
  %v51 = vld [vmem:[%s0 + $0x28] sm:$0xff]
  %v52 = vld [vmem:[%s0 + $0x30] sm:$0xff]
  %v53 = vld [vmem:[%s0 + $0x38] sm:$0xff]
  %v54 = vld [vmem:[%s0 + $0x40] sm:$0xff]
  %v55 = vld [vmem:[%s0 + $0x48] sm:$0xff]
  %v56 = vld [vmem:[%s0 + $0x50] sm:$0xff]
  %v57 = vld [vmem:[%s0 + $0x58] sm:$0xff]
  %v58 = vld [vmem:[%s0 + $0x60] sm:$0xff]
  %v59 = vld [vmem:[%s0 + $0x68] sm:$0xff]
  %v60 = vld [vmem:[%s0 + $0x70] sm:$0xff]
  %v61 = vld [vmem:[%s0 + $0x78] sm:$0xff]
  %v62 = vld [vmem:[%s0 + $0x80] sm:$0xff]
  %v63 = vld [vmem:[%s0 + $0x88] sm:$0xff]
  %v64 = vld [vmem:[%s0 + $0x90] sm:$0xff]
  %v65 = vld [vmem:[%s0 + $0x98] sm:$0xff]
  %v66 = vld [vmem:[%s0 + $0xa0] sm:$0xff]
  %v67 = vld [vmem:[%s0 + $0xa8] sm:$0xff]
  %v68 = vld [vmem:[%s0 + $0xb0] sm:$0xff]
  %v69 = vld [vmem:[%s0 + $0xb8] sm:$0xff]
  %v70 = vld [vmem:[%s0 + $0xc0] sm:$0xff]
  %v71 = vld [vmem:[%s0 + $0xc8] sm:$0xff]
  %v72 = vld [vmem:[%s0 + $0xd0] sm:$0xff]
  %v73 = vld [vmem:[%s0 + $0xd8] sm:$0xff]
  %v74 = vld [vmem:[%s0 + $0xe0] sm:$0xff]
  %v75 = vld [vmem:[%s0 + $0xe8] sm:$0xff]
  %v76 = vld [vmem:[%s0 + $0xf0] sm:$0xff]
  %v77 = vld [vmem:[%s0 + $0xf8] sm:$0xff]
  %v78 = vld [vmem:[%s0 + $0x100] sm:$0xff]
  %v79 = vld [vmem:[%s0 + $0x108] sm:$0xff]
  %v80 = vld [vmem:[%s0 + $0x110] sm:$0xff]
  %v81 = vld [vmem:[%s0 + $0x118] sm:$0xff]
  %v82 = vld [vmem:[%s0 + $0x120] sm:$0xff]
  %v83 = vld [vmem:[%s0 + $0x128] sm:$0xff]
  %v84 = vld [vmem:[%s0 + $0x130] sm:$0xff]
  %v85 = vld [vmem:[%s0 + $0x138] sm:$0xff]
  %v86 = vld [vmem:[%s0 + $0x140] sm:$0xff]
  %v87 = vld [vmem:[%s0 + $0x148] sm:$0xff]
  %v88 = vld [vmem:[%s0 + $0x150] sm:$0xff]
  %v89 = vld [vmem:[%s0 + $0x158] sm:$0xff]
  %v90 = vld [vmem:[%s0 + $0x160] sm:$0xff]
  %v91 = vld [vmem:[%s0 + $0x168] sm:$0xff]
  %v92 = vld [vmem:[%s0 + $0x170] sm:$0xff]
  %v93 = vld [vmem:[%s0 + $0x178] sm:$0xff]
  %v94 = vld [vmem:[%s0 + $0x180] sm:$0xff]
  %v95 = vld [vmem:[%s0 + $0x188] sm:$0xff]
  %v96 = vld [vmem:[%s0 + $0x190] sm:$0xff]
  %v97 = vld [vmem:[%s0 + $0x198] sm:$0xff]
  %v98 = vld [vmem:[%s0 + $0x1a0] sm:$0xff]
  %v99 = vld [vmem:[%s0 + $0x1a8] sm:$0xff]
  %v100 = vld [vmem:[%s0 + $0x1b0] sm:$0xff]
  %v101 = vld [vmem:[%s0 + $0x1b8] sm:$0xff]
  %v102 = vld [vmem:[%s0 + $0x1c0] sm:$0xff]
  %v103 = vld [vmem:[%s0 + $0x1c8] sm:$0xff]
  %v104 = vld [vmem:[%s0 + $0x1d0] sm:$0xff]
  %v105 = vld [vmem:[%s0 + $0x1d8] sm:$0xff]
  %v106 = vld [vmem:[%s0 + $0x1e0] sm:$0xff]
  %v107 = vld [vmem:[%s0 + $0x1e8] sm:$0xff]
  %v108 = vld [vmem:[%s0 + $0x1f0] sm:$0xff]
  %v109 = vld [vmem:[%s0 + $0x1f8] sm:$0xff]
  %v110 = vld [vmem:[%s0 + $0x200] sm:$0xff]
  %v111 = vld [vmem:[%s0 + $0x208] sm:$0xff]
  %v112 = vld [vmem:[%s0 + $0x210] sm:$0xff]
  %v113 = vld [vmem:[%s0 + $0x218] sm:$0xff]
  %v114 = vld [vmem:[%s1] sm:$0xff]
  %v115 = vld [vmem:[%s1 + $0x8] sm:$0xff]
  %v116 = vld [vmem:[%s2] sm:$0x3]
  %v118 = vlaneseq
  %v119 = vshrl.u32 %v118, 7
  %v120 = vsub.s32 0, %v119
  %v121 = vrot.slane %v116, %v120
  %v122 = vlaneseq
  %v123 = vshrl.u32 %v122, 7
  %v124 = vsub.s32 1, %v123
  %v125 = vrot.slane %v116, %v124
  %vm128 = vcmask 64512
  %v130 = vsel %vm128, %v46, 0
  %v133 = vsel %vm128, %v47, 0
  %v136 = vsel %vm128, %v48, 0
  %v139 = vsel %vm128, %v49, 0
  %v142 = vsel %vm128, %v50, 0
  %v145 = vsel %vm128, %v51, 0
  %v148 = vsel %vm128, %v52, 0
  %v151 = vsel %vm128, %v53, 0
  %v154 = vsel %vm128, %v54, 0
  %v157 = vsel %vm128, %v55, 0
  %v160 = vsel %vm128, %v56, 0
  %v163 = vsel %vm128, %v57, 0
  %v166 = vsel %vm128, %v58, 0
  %v169 = vsel %vm128, %v59, 0
  %v172 = vsel %vm128, %v60, 0
  %v175 = vsel %vm128, %v61, 0
  %v178 = vsel %vm128, %v62, 0
  %v181 = vsel %vm128, %v63, 0
  %v184 = vsel %vm128, %v64, 0
  %v187 = vsel %vm128, %v65, 0
  %v190 = vsel %vm128, %v66, 0
  %v193 = vsel %vm128, %v67, 0
  %v196 = vsel %vm128, %v68, 0
  %v199 = vsel %vm128, %v69, 0
  %v202 = vsel %vm128, %v70, 0
  %v205 = vsel %vm128, %v71, 0
  %v208 = vsel %vm128, %v72, 0
  %v211 = vsel %vm128, %v73, 0
  %v214 = vsel %vm128, %v74, 0
  %v217 = vsel %vm128, %v75, 0
  %v220 = vsel %vm128, %v76, 0
  %v223 = vsel %vm128, %v77, 0
  %v226 = vsel %vm128, %v78, 0
  %v229 = vsel %vm128, %v79, 0
  %v232 = vsel %vm128, %v80, 0
  %v235 = vsel %vm128, %v81, 0
  %v238 = vsel %vm128, %v82, 0
  %v241 = vsel %vm128, %v83, 0
  %v244 = vsel %vm128, %v84, 0
  %v247 = vsel %vm128, %v85, 0
  %v250 = vsel %vm128, %v86, 0
  %v253 = vsel %vm128, %v87, 0
  %v256 = vsel %vm128, %v88, 0
  %v259 = vsel %vm128, %v89, 0
  %v262 = vsel %vm128, %v90, 0
  %v265 = vsel %vm128, %v91, 0
  %v268 = vsel %vm128, %v92, 0
  %v271 = vsel %vm128, %v93, 0
  %v274 = vsel %vm128, %v94, 0
  %v277 = vsel %vm128, %v95, 0
  %v280 = vsel %vm128, %v96, 0
  %v283 = vsel %vm128, %v97, 0
  %v286 = vsel %vm128, %v98, 0
  %v289 = vsel %vm128, %v99, 0
  %v292 = vsel %vm128, %v100, 0
  %v295 = vsel %vm128, %v101, 0
  %v298 = vsel %vm128, %v102, 0
  %v301 = vsel %vm128, %v103, 0
  %v304 = vsel %vm128, %v104, 0
  %v307 = vsel %vm128, %v105, 0
  %v310 = vsel %vm128, %v106, 0
  %v313 = vsel %vm128, %v107, 0
  %v316 = vsel %vm128, %v108, 0
  %v319 = vsel %vm128, %v109, 0
  %v322 = vsel %vm128, %v110, 0
  %v325 = vsel %vm128, %v111, 0
  %v328 = vsel %vm128, %v112, 0
  %v331 = vsel %vm128, %v113, 0
  %333 = vmatprep.subr.mxu0 0.0
  %334 = vmatpush1.msra.mxu0 0.0
  %335 = vmatprep.subr.mxu0 0.0
  %336 = vmatpush1.msra.mxu0 0.0
  %337 = vmatprep.subr.mxu0 0.0
  %338 = vmatpush1.msra.mxu0 0.0
  %339 = vmatprep.subr.mxu0 0.0
  %340 = vmatpush1.msra.mxu0 0.0
  %341 = vmatprep.subr.mxu0 0.0
  %342 = vmatpush1.msra.mxu0 0.0
  %343 = vmatprep.subr.mxu0 0.0
  %344 = vmatpush1.msra.mxu0 0.0
  %345 = vmatprep.subr.mxu0 0.0
  %346 = vmatpush1.msra.mxu0 0.0
  %347 = vmatprep.subr.mxu0 0.0
  %348 = vmatpush1.msra.mxu0 0.0
  %349 = vmatprep.subr.mxu0 0.0
  %350 = vmatpush1.msra.mxu0 0.0
  %351 = vmatprep.subr.mxu0 0.0
  %352 = vmatpush1.msra.mxu0 0.0
  %353 = vmatprep.subr.mxu0 0.0
  %354 = vmatpush1.msra.mxu0 0.0
  %355 = vmatprep.subr.mxu0 0.0
  %356 = vmatpush1.msra.mxu0 0.0
  %357 = vmatprep.subr.mxu0 0.0
  %358 = vmatpush1.msra.mxu0 0.0
  %359 = vmatprep.subr.mxu0 0.0
  %360 = vmatpush1.msra.mxu0 0.0
  %361 = vmatprep.subr.mxu0 0.0
  %362 = vmatpush1.msra.mxu0 0.0
  %363 = vmatprep.subr.mxu0 %v115
  %364 = vmatpush1.msra.mxu0 %v114
  %365 = vmatprep.subr.mxu0 0.0
  %366 = vmatpush2.msra.mxu0 0.0
  %367 = vmatprep.subr.mxu0 0.0
  %368 = vmatpush2.msra.mxu0 0.0
  %369 = vmatprep.subr.mxu0 0.0
  %370 = vmatpush2.msra.mxu0 0.0
  %371 = vmatprep.subr.mxu0 0.0
  %372 = vmatpush2.msra.mxu0 0.0
  %373 = vmatprep.subr.mxu0 0.0
  %374 = vmatpush2.msra.mxu0 0.0
  %375 = vmatprep.subr.mxu0 0.0
  %376 = vmatpush2.msra.mxu0 0.0
  %377 = vmatprep.subr.mxu0 0.0
  %378 = vmatpush2.msra.mxu0 0.0
  %379 = vmatprep.subr.mxu0 0.0
  %380 = vmatpush2.msra.mxu0 0.0
  %381 = vmatprep.subr.mxu0 0.0
  %382 = vmatpush2.msra.mxu0 0.0
  %383 = vmatprep.subr.mxu0 0.0
  %384 = vmatpush2.msra.mxu0 0.0
  %385 = vmatprep.subr.mxu0 0.0
  %386 = vmatpush2.msra.mxu0 0.0
  %387 = vmatprep.subr.mxu0 0.0
  %388 = vmatpush2.msra.mxu0 0.0
  %389 = vmatprep.subr.mxu0 0.0
  %390 = vmatpush2.msra.mxu0 0.0
  %391 = vmatprep.subr.mxu0 0.0
  %392 = vmatpush2.msra.mxu0 0.0
  %393 = vmatprep.subr.mxu0 0.0
  %394 = vmatpush2.msra.mxu0 0.0
  %395 = vmatprep.subr.mxu0 0.0
  %396 = vmatpush2.msra.mxu0 0.0
  %397 = vmatprep.mubr.f32.mxu0 0.0
  %398 = vmatmul.mubr.f32.gmra.mxu0 %v130
  %v399 = vpop.f32.mrf.mxu0
  %v400 = vadd.f32 %v121, %v399
  %v401 = vpop.f32.mrf.mxu0
  %v402 = vadd.f32 %v125, %v401
  %403 = vmatprep.mubr.f32.mxu0 0.0
  %404 = vmatmul.mubr.f32.gmra.mxu0 %v133
  %v405 = vpop.f32.mrf.mxu0
  %v406 = vadd.f32 %v121, %v405
  %v407 = vpop.f32.mrf.mxu0
  %v408 = vadd.f32 %v125, %v407
  %409 = vmatprep.mubr.f32.mxu0 0.0
  %410 = vmatmul.mubr.f32.gmra.mxu0 %v136
  %v411 = vpop.f32.mrf.mxu0
  %v412 = vadd.f32 %v121, %v411
  %v413 = vpop.f32.mrf.mxu0
  %v414 = vadd.f32 %v125, %v413
  %415 = vmatprep.mubr.f32.mxu0 0.0
  %416 = vmatmul.mubr.f32.gmra.mxu0 %v139
  %v417 = vpop.f32.mrf.mxu0
  %v418 = vadd.f32 %v121, %v417
  %v419 = vpop.f32.mrf.mxu0
  %v420 = vadd.f32 %v125, %v419
  %421 = vmatprep.mubr.f32.mxu0 0.0
  %422 = vmatmul.mubr.f32.gmra.mxu0 %v142
  %v423 = vpop.f32.mrf.mxu0
  %v424 = vadd.f32 %v121, %v423
  %v425 = vpop.f32.mrf.mxu0
  %v426 = vadd.f32 %v125, %v425
  %427 = vmatprep.mubr.f32.mxu0 0.0
  %428 = vmatmul.mubr.f32.gmra.mxu0 %v145
  %v429 = vpop.f32.mrf.mxu0
  %v430 = vadd.f32 %v121, %v429
  %v431 = vpop.f32.mrf.mxu0
  %v432 = vadd.f32 %v125, %v431
  %433 = vmatprep.mubr.f32.mxu0 0.0
  %434 = vmatmul.mubr.f32.gmra.mxu0 %v148
  %v435 = vpop.f32.mrf.mxu0
  %v436 = vadd.f32 %v121, %v435
  %v437 = vpop.f32.mrf.mxu0
  %v438 = vadd.f32 %v125, %v437
  %439 = vmatprep.mubr.f32.mxu0 0.0
  %440 = vmatmul.mubr.f32.gmra.mxu0 %v151
  %v441 = vpop.f32.mrf.mxu0
  %v442 = vadd.f32 %v121, %v441
  %v443 = vpop.f32.mrf.mxu0
  %v444 = vadd.f32 %v125, %v443
  %445 = vmatprep.mubr.f32.mxu0 0.0
  %446 = vmatmul.mubr.f32.gmra.mxu0 %v154
  %v447 = vpop.f32.mrf.mxu0
  %v448 = vadd.f32 %v121, %v447
  %v449 = vpop.f32.mrf.mxu0
  %v450 = vadd.f32 %v125, %v449
  %451 = vmatprep.mubr.f32.mxu0 0.0
  %452 = vmatmul.mubr.f32.gmra.mxu0 %v157
  %v453 = vpop.f32.mrf.mxu0
  %v454 = vadd.f32 %v121, %v453
  %v455 = vpop.f32.mrf.mxu0
  %v456 = vadd.f32 %v125, %v455
  %457 = vmatprep.mubr.f32.mxu0 0.0
  %458 = vmatmul.mubr.f32.gmra.mxu0 %v160
  %v459 = vpop.f32.mrf.mxu0
  %v460 = vadd.f32 %v121, %v459
  %v461 = vpop.f32.mrf.mxu0
  %v462 = vadd.f32 %v125, %v461
  %463 = vmatprep.mubr.f32.mxu0 0.0
  %464 = vmatmul.mubr.f32.gmra.mxu0 %v163
  %v465 = vpop.f32.mrf.mxu0
  %v466 = vadd.f32 %v121, %v465
  %v467 = vpop.f32.mrf.mxu0
  %v468 = vadd.f32 %v125, %v467
  %469 = vmatprep.mubr.f32.mxu0 0.0
  %470 = vmatmul.mubr.f32.gmra.mxu0 %v166
  %v471 = vpop.f32.mrf.mxu0
  %v472 = vadd.f32 %v121, %v471
  %v473 = vpop.f32.mrf.mxu0
  %v474 = vadd.f32 %v125, %v473
  %475 = vmatprep.mubr.f32.mxu0 0.0
  %476 = vmatmul.mubr.f32.gmra.mxu0 %v169
  %v477 = vpop.f32.mrf.mxu0
  %v478 = vadd.f32 %v121, %v477
  %v479 = vpop.f32.mrf.mxu0
  %v480 = vadd.f32 %v125, %v479
  %481 = vmatprep.mubr.f32.mxu0 0.0
  %482 = vmatmul.mubr.f32.gmra.mxu0 %v172
  %v483 = vpop.f32.mrf.mxu0
  %v484 = vadd.f32 %v121, %v483
  %v485 = vpop.f32.mrf.mxu0
  %v486 = vadd.f32 %v125, %v485
  %487 = vmatprep.mubr.f32.mxu0 0.0
  %488 = vmatmul.mubr.f32.gmra.mxu0 %v175
  %v489 = vpop.f32.mrf.mxu0
  %v490 = vadd.f32 %v121, %v489
  %v491 = vpop.f32.mrf.mxu0
  %v492 = vadd.f32 %v125, %v491
  %493 = vmatprep.mubr.f32.mxu0 0.0
  %494 = vmatmul.mubr.f32.gmra.mxu0 %v178
  %v495 = vpop.f32.mrf.mxu0
  %v496 = vadd.f32 %v121, %v495
  %v497 = vpop.f32.mrf.mxu0
  %v498 = vadd.f32 %v125, %v497
  %499 = vmatprep.mubr.f32.mxu0 0.0
  %500 = vmatmul.mubr.f32.gmra.mxu0 %v181
  %v501 = vpop.f32.mrf.mxu0
  %v502 = vadd.f32 %v121, %v501
  %v503 = vpop.f32.mrf.mxu0
  %v504 = vadd.f32 %v125, %v503
  %505 = vmatprep.mubr.f32.mxu0 0.0
  %506 = vmatmul.mubr.f32.gmra.mxu0 %v184
  %v507 = vpop.f32.mrf.mxu0
  %v508 = vadd.f32 %v121, %v507
  %v509 = vpop.f32.mrf.mxu0
  %v510 = vadd.f32 %v125, %v509
  %511 = vmatprep.mubr.f32.mxu0 0.0
  %512 = vmatmul.mubr.f32.gmra.mxu0 %v187
  %v513 = vpop.f32.mrf.mxu0
  %v514 = vadd.f32 %v121, %v513
  %v515 = vpop.f32.mrf.mxu0
  %v516 = vadd.f32 %v125, %v515
  %517 = vmatprep.mubr.f32.mxu0 0.0
  %518 = vmatmul.mubr.f32.gmra.mxu0 %v190
  %v519 = vpop.f32.mrf.mxu0
  %v520 = vadd.f32 %v121, %v519
  %v521 = vpop.f32.mrf.mxu0
  %v522 = vadd.f32 %v125, %v521
  %523 = vmatprep.mubr.f32.mxu0 0.0
  %524 = vmatmul.mubr.f32.gmra.mxu0 %v193
  %v525 = vpop.f32.mrf.mxu0
  %v526 = vadd.f32 %v121, %v525
  %v527 = vpop.f32.mrf.mxu0
  %v528 = vadd.f32 %v125, %v527
  %529 = vmatprep.mubr.f32.mxu0 0.0
  %530 = vmatmul.mubr.f32.gmra.mxu0 %v196
  %v531 = vpop.f32.mrf.mxu0
  %v532 = vadd.f32 %v121, %v531
  %v533 = vpop.f32.mrf.mxu0
  %v534 = vadd.f32 %v125, %v533
  %535 = vmatprep.mubr.f32.mxu0 0.0
  %536 = vmatmul.mubr.f32.gmra.mxu0 %v199
  %v537 = vpop.f32.mrf.mxu0
  %v538 = vadd.f32 %v121, %v537
  %v539 = vpop.f32.mrf.mxu0
  %v540 = vadd.f32 %v125, %v539
  %541 = vmatprep.mubr.f32.mxu0 0.0
  %542 = vmatmul.mubr.f32.gmra.mxu0 %v202
  %v543 = vpop.f32.mrf.mxu0
  %v544 = vadd.f32 %v121, %v543
  %v545 = vpop.f32.mrf.mxu0
  %v546 = vadd.f32 %v125, %v545
  %547 = vmatprep.mubr.f32.mxu0 0.0
  %548 = vmatmul.mubr.f32.gmra.mxu0 %v205
  %v549 = vpop.f32.mrf.mxu0
  %v550 = vadd.f32 %v121, %v549
  %v551 = vpop.f32.mrf.mxu0
  %v552 = vadd.f32 %v125, %v551
  %553 = vmatprep.mubr.f32.mxu0 0.0
  %554 = vmatmul.mubr.f32.gmra.mxu0 %v208
  %v555 = vpop.f32.mrf.mxu0
  %v556 = vadd.f32 %v121, %v555
  %v557 = vpop.f32.mrf.mxu0
  %v558 = vadd.f32 %v125, %v557
  %559 = vmatprep.mubr.f32.mxu0 0.0
  %560 = vmatmul.mubr.f32.gmra.mxu0 %v211
  %v561 = vpop.f32.mrf.mxu0
  %v562 = vadd.f32 %v121, %v561
  %v563 = vpop.f32.mrf.mxu0
  %v564 = vadd.f32 %v125, %v563
  %565 = vmatprep.mubr.f32.mxu0 0.0
  %566 = vmatmul.mubr.f32.gmra.mxu0 %v214
  %v567 = vpop.f32.mrf.mxu0
  %v568 = vadd.f32 %v121, %v567
  %v569 = vpop.f32.mrf.mxu0
  %v570 = vadd.f32 %v125, %v569
  %571 = vmatprep.mubr.f32.mxu0 0.0
  %572 = vmatmul.mubr.f32.gmra.mxu0 %v217
  %v573 = vpop.f32.mrf.mxu0
  %v574 = vadd.f32 %v121, %v573
  %v575 = vpop.f32.mrf.mxu0
  %v576 = vadd.f32 %v125, %v575
  %577 = vmatprep.mubr.f32.mxu0 0.0
  %578 = vmatmul.mubr.f32.gmra.mxu0 %v220
  %v579 = vpop.f32.mrf.mxu0
  %v580 = vadd.f32 %v121, %v579
  %v581 = vpop.f32.mrf.mxu0
  %v582 = vadd.f32 %v125, %v581
  %583 = vmatprep.mubr.f32.mxu0 0.0
  %584 = vmatmul.mubr.f32.gmra.mxu0 %v223
  %v585 = vpop.f32.mrf.mxu0
  %v586 = vadd.f32 %v121, %v585
  %v587 = vpop.f32.mrf.mxu0
  %v588 = vadd.f32 %v125, %v587
  %589 = vmatprep.mubr.f32.mxu0 0.0
  %590 = vmatmul.mubr.f32.gmra.mxu0 %v226
  %v591 = vpop.f32.mrf.mxu0
  %v592 = vadd.f32 %v121, %v591
  %v593 = vpop.f32.mrf.mxu0
  %v594 = vadd.f32 %v125, %v593
  %595 = vmatprep.mubr.f32.mxu0 0.0
  %596 = vmatmul.mubr.f32.gmra.mxu0 %v229
  %v597 = vpop.f32.mrf.mxu0
  %v598 = vadd.f32 %v121, %v597
  %v599 = vpop.f32.mrf.mxu0
  %v600 = vadd.f32 %v125, %v599
  %601 = vmatprep.mubr.f32.mxu0 0.0
  %602 = vmatmul.mubr.f32.gmra.mxu0 %v232
  %v603 = vpop.f32.mrf.mxu0
  %v604 = vadd.f32 %v121, %v603
  %v605 = vpop.f32.mrf.mxu0
  %v606 = vadd.f32 %v125, %v605
  %607 = vmatprep.mubr.f32.mxu0 0.0
  %608 = vmatmul.mubr.f32.gmra.mxu0 %v235
  %v609 = vpop.f32.mrf.mxu0
  %v610 = vadd.f32 %v121, %v609
  %v611 = vpop.f32.mrf.mxu0
  %v612 = vadd.f32 %v125, %v611
  %613 = vmatprep.mubr.f32.mxu0 0.0
  %614 = vmatmul.mubr.f32.gmra.mxu0 %v238
  %v615 = vpop.f32.mrf.mxu0
  %v616 = vadd.f32 %v121, %v615
  %v617 = vpop.f32.mrf.mxu0
  %v618 = vadd.f32 %v125, %v617
  %619 = vmatprep.mubr.f32.mxu0 0.0
  %620 = vmatmul.mubr.f32.gmra.mxu0 %v241
  %v621 = vpop.f32.mrf.mxu0
  %v622 = vadd.f32 %v121, %v621
  %v623 = vpop.f32.mrf.mxu0
  %v624 = vadd.f32 %v125, %v623
  %625 = vmatprep.mubr.f32.mxu0 0.0
  %626 = vmatmul.mubr.f32.gmra.mxu0 %v244
  %v627 = vpop.f32.mrf.mxu0
  %v628 = vadd.f32 %v121, %v627
  %v629 = vpop.f32.mrf.mxu0
  %v630 = vadd.f32 %v125, %v629
  %631 = vmatprep.mubr.f32.mxu0 0.0
  %632 = vmatmul.mubr.f32.gmra.mxu0 %v247
  %v633 = vpop.f32.mrf.mxu0
  %v634 = vadd.f32 %v121, %v633
  %v635 = vpop.f32.mrf.mxu0
  %v636 = vadd.f32 %v125, %v635
  %637 = vmatprep.mubr.f32.mxu0 0.0
  %638 = vmatmul.mubr.f32.gmra.mxu0 %v250
  %v639 = vpop.f32.mrf.mxu0
  %v640 = vadd.f32 %v121, %v639
  %v641 = vpop.f32.mrf.mxu0
  %v642 = vadd.f32 %v125, %v641
  %643 = vmatprep.mubr.f32.mxu0 0.0
  %644 = vmatmul.mubr.f32.gmra.mxu0 %v253
  %v645 = vpop.f32.mrf.mxu0
  %v646 = vadd.f32 %v121, %v645
  %v647 = vpop.f32.mrf.mxu0
  %v648 = vadd.f32 %v125, %v647
  %649 = vmatprep.mubr.f32.mxu0 0.0
  %650 = vmatmul.mubr.f32.gmra.mxu0 %v256
  %v651 = vpop.f32.mrf.mxu0
  %v652 = vadd.f32 %v121, %v651
  %v653 = vpop.f32.mrf.mxu0
  %v654 = vadd.f32 %v125, %v653
  %655 = vmatprep.mubr.f32.mxu0 0.0
  %656 = vmatmul.mubr.f32.gmra.mxu0 %v259
  %v657 = vpop.f32.mrf.mxu0
  %v658 = vadd.f32 %v121, %v657
  %v659 = vpop.f32.mrf.mxu0
  %v660 = vadd.f32 %v125, %v659
  %661 = vmatprep.mubr.f32.mxu0 0.0
  %662 = vmatmul.mubr.f32.gmra.mxu0 %v262
  %v663 = vpop.f32.mrf.mxu0
  %v664 = vadd.f32 %v121, %v663
  %v665 = vpop.f32.mrf.mxu0
  %v666 = vadd.f32 %v125, %v665
  %667 = vmatprep.mubr.f32.mxu0 0.0
  %668 = vmatmul.mubr.f32.gmra.mxu0 %v265
  %v669 = vpop.f32.mrf.mxu0
  %v670 = vadd.f32 %v121, %v669
  %v671 = vpop.f32.mrf.mxu0
  %v672 = vadd.f32 %v125, %v671
  %673 = vmatprep.mubr.f32.mxu0 0.0
  %674 = vmatmul.mubr.f32.gmra.mxu0 %v268
  %v675 = vpop.f32.mrf.mxu0
  %v676 = vadd.f32 %v121, %v675
  %v677 = vpop.f32.mrf.mxu0
  %v678 = vadd.f32 %v125, %v677
  %679 = vmatprep.mubr.f32.mxu0 0.0
  %680 = vmatmul.mubr.f32.gmra.mxu0 %v271
  %v681 = vpop.f32.mrf.mxu0
  %v682 = vadd.f32 %v121, %v681
  %v683 = vpop.f32.mrf.mxu0
  %v684 = vadd.f32 %v125, %v683
  %685 = vmatprep.mubr.f32.mxu0 0.0
  %686 = vmatmul.mubr.f32.gmra.mxu0 %v274
  %v687 = vpop.f32.mrf.mxu0
  %v688 = vadd.f32 %v121, %v687
  %v689 = vpop.f32.mrf.mxu0
  %v690 = vadd.f32 %v125, %v689
  %691 = vmatprep.mubr.f32.mxu0 0.0
  %692 = vmatmul.mubr.f32.gmra.mxu0 %v277
  %v693 = vpop.f32.mrf.mxu0
  %v694 = vadd.f32 %v121, %v693
  %v695 = vpop.f32.mrf.mxu0
  %v696 = vadd.f32 %v125, %v695
  %697 = vmatprep.mubr.f32.mxu0 0.0
  %698 = vmatmul.mubr.f32.gmra.mxu0 %v280
  %v699 = vpop.f32.mrf.mxu0
  %v700 = vadd.f32 %v121, %v699
  %v701 = vpop.f32.mrf.mxu0
  %v702 = vadd.f32 %v125, %v701
  %703 = vmatprep.mubr.f32.mxu0 0.0
  %704 = vmatmul.mubr.f32.gmra.mxu0 %v283
  %v705 = vpop.f32.mrf.mxu0
  %v706 = vadd.f32 %v121, %v705
  %v707 = vpop.f32.mrf.mxu0
  %v708 = vadd.f32 %v125, %v707
  %709 = vmatprep.mubr.f32.mxu0 0.0
  %710 = vmatmul.mubr.f32.gmra.mxu0 %v286
  %v711 = vpop.f32.mrf.mxu0
  %v712 = vadd.f32 %v121, %v711
  %v713 = vpop.f32.mrf.mxu0
  %v714 = vadd.f32 %v125, %v713
  %715 = vmatprep.mubr.f32.mxu0 0.0
  %716 = vmatmul.mubr.f32.gmra.mxu0 %v289
  %v717 = vpop.f32.mrf.mxu0
  %v718 = vadd.f32 %v121, %v717
  %v719 = vpop.f32.mrf.mxu0
  %v720 = vadd.f32 %v125, %v719
  %721 = vmatprep.mubr.f32.mxu0 0.0
  %722 = vmatmul.mubr.f32.gmra.mxu0 %v292
  %v723 = vpop.f32.mrf.mxu0
  %v724 = vadd.f32 %v121, %v723
  %v725 = vpop.f32.mrf.mxu0
  %v726 = vadd.f32 %v125, %v725
  %727 = vmatprep.mubr.f32.mxu0 0.0
  %728 = vmatmul.mubr.f32.gmra.mxu0 %v295
  %v729 = vpop.f32.mrf.mxu0
  %v730 = vadd.f32 %v121, %v729
  %v731 = vpop.f32.mrf.mxu0
  %v732 = vadd.f32 %v125, %v731
  %733 = vmatprep.mubr.f32.mxu0 0.0
  %734 = vmatmul.mubr.f32.gmra.mxu0 %v298
  %v735 = vpop.f32.mrf.mxu0
  %v736 = vadd.f32 %v121, %v735
  %v737 = vpop.f32.mrf.mxu0
  %v738 = vadd.f32 %v125, %v737
  %739 = vmatprep.mubr.f32.mxu0 0.0
  %740 = vmatmul.mubr.f32.gmra.mxu0 %v301
  %v741 = vpop.f32.mrf.mxu0
  %v742 = vadd.f32 %v121, %v741
  %v743 = vpop.f32.mrf.mxu0
  %v744 = vadd.f32 %v125, %v743
  %745 = vmatprep.mubr.f32.mxu0 0.0
  %746 = vmatmul.mubr.f32.gmra.mxu0 %v304
  %v747 = vpop.f32.mrf.mxu0
  %v748 = vadd.f32 %v121, %v747
  %v749 = vpop.f32.mrf.mxu0
  %v750 = vadd.f32 %v125, %v749
  %751 = vmatprep.mubr.f32.mxu0 0.0
  %752 = vmatmul.mubr.f32.gmra.mxu0 %v307
  %v753 = vpop.f32.mrf.mxu0
  %v754 = vadd.f32 %v121, %v753
  %v755 = vpop.f32.mrf.mxu0
  %v756 = vadd.f32 %v125, %v755
  %757 = vmatprep.mubr.f32.mxu0 0.0
  %758 = vmatmul.mubr.f32.gmra.mxu0 %v310
  %v759 = vpop.f32.mrf.mxu0
  %v760 = vadd.f32 %v121, %v759
  %v761 = vpop.f32.mrf.mxu0
  %v762 = vadd.f32 %v125, %v761
  %763 = vmatprep.mubr.f32.mxu0 0.0
  %764 = vmatmul.mubr.f32.gmra.mxu0 %v313
  %v765 = vpop.f32.mrf.mxu0
  %v766 = vadd.f32 %v121, %v765
  %v767 = vpop.f32.mrf.mxu0
  %v768 = vadd.f32 %v125, %v767
  %769 = vmatprep.mubr.f32.mxu0 0.0
  %770 = vmatmul.mubr.f32.gmra.mxu0 %v316
  %v771 = vpop.f32.mrf.mxu0
  %v772 = vadd.f32 %v121, %v771
  %v773 = vpop.f32.mrf.mxu0
  %v774 = vadd.f32 %v125, %v773
  %775 = vmatprep.mubr.f32.mxu0 0.0
  %776 = vmatmul.mubr.f32.gmra.mxu0 %v319
  %v777 = vpop.f32.mrf.mxu0
  %v778 = vadd.f32 %v121, %v777
  %v779 = vpop.f32.mrf.mxu0
  %v780 = vadd.f32 %v125, %v779
  %781 = vmatprep.mubr.f32.mxu0 0.0
  %782 = vmatmul.mubr.f32.gmra.mxu0 %v322
  %v783 = vpop.f32.mrf.mxu0
  %v784 = vadd.f32 %v121, %v783
  %v785 = vpop.f32.mrf.mxu0
  %v786 = vadd.f32 %v125, %v785
  %787 = vmatprep.mubr.f32.mxu0 0.0
  %788 = vmatmul.mubr.f32.gmra.mxu0 %v325
  %v789 = vpop.f32.mrf.mxu0
  %v790 = vadd.f32 %v121, %v789
  %v791 = vpop.f32.mrf.mxu0
  %v792 = vadd.f32 %v125, %v791
  %793 = vmatprep.mubr.f32.mxu0 0.0
  %794 = vmatmul.mubr.f32.gmra.mxu0 %v328
  %v795 = vpop.f32.mrf.mxu0
  %v796 = vadd.f32 %v121, %v795
  %v797 = vpop.f32.mrf.mxu0
  %v798 = vadd.f32 %v125, %v797
  %799 = vmatprep.mubr.f32.mxu0 0.0
  %800 = vmatmul.mubr.f32.gmra.mxu0 %v331
  %v801 = vpop.f32.mrf.mxu0
  %v802 = vadd.f32 %v121, %v801
  %v803 = vpop.f32.mrf.mxu0
  %v804 = vadd.f32 %v125, %v803
  %805 = vdwg.mxu0
  %v806 = vmax.f32 %v400, 0.0
  %v807 = vmax.f32 %v402, 0.0
  %v808 = vmax.f32 %v406, 0.0
  %v809 = vmax.f32 %v408, 0.0
  %v810 = vmax.f32 %v412, 0.0
  %v811 = vmax.f32 %v414, 0.0
  %v812 = vmax.f32 %v418, 0.0
  %v813 = vmax.f32 %v420, 0.0
  %v814 = vmax.f32 %v424, 0.0
  %v815 = vmax.f32 %v426, 0.0
  %v816 = vmax.f32 %v430, 0.0
  %v817 = vmax.f32 %v432, 0.0
  %v818 = vmax.f32 %v436, 0.0
  %v819 = vmax.f32 %v438, 0.0
  %v820 = vmax.f32 %v442, 0.0
  %v821 = vmax.f32 %v444, 0.0
  %v822 = vmax.f32 %v448, 0.0
  %v823 = vmax.f32 %v450, 0.0
  %v824 = vmax.f32 %v454, 0.0
  %v825 = vmax.f32 %v456, 0.0
  %v826 = vmax.f32 %v460, 0.0
  %v827 = vmax.f32 %v462, 0.0
  %v828 = vmax.f32 %v466, 0.0
  %v829 = vmax.f32 %v468, 0.0
  %v830 = vmax.f32 %v472, 0.0
  %v831 = vmax.f32 %v474, 0.0
  %v832 = vmax.f32 %v478, 0.0
  %v833 = vmax.f32 %v480, 0.0
  %v834 = vmax.f32 %v484, 0.0
  %v835 = vmax.f32 %v486, 0.0
  %v836 = vmax.f32 %v490, 0.0
  %v837 = vmax.f32 %v492, 0.0
  %v838 = vmax.f32 %v496, 0.0
  %v839 = vmax.f32 %v498, 0.0
  %v840 = vmax.f32 %v502, 0.0
  %v841 = vmax.f32 %v504, 0.0
  %v842 = vmax.f32 %v508, 0.0
  %v843 = vmax.f32 %v510, 0.0
  %v844 = vmax.f32 %v514, 0.0
  %v845 = vmax.f32 %v516, 0.0
  %v846 = vmax.f32 %v520, 0.0
  %v847 = vmax.f32 %v522, 0.0
  %v848 = vmax.f32 %v526, 0.0
  %v849 = vmax.f32 %v528, 0.0
  %v850 = vmax.f32 %v532, 0.0
  %v851 = vmax.f32 %v534, 0.0
  %v852 = vmax.f32 %v538, 0.0
  %v853 = vmax.f32 %v540, 0.0
  %v854 = vmax.f32 %v544, 0.0
  %v855 = vmax.f32 %v546, 0.0
  %v856 = vmax.f32 %v550, 0.0
  %v857 = vmax.f32 %v552, 0.0
  %v858 = vmax.f32 %v556, 0.0
  %v859 = vmax.f32 %v558, 0.0
  %v860 = vmax.f32 %v562, 0.0
  %v861 = vmax.f32 %v564, 0.0
  %v862 = vmax.f32 %v568, 0.0
  %v863 = vmax.f32 %v570, 0.0
  %v864 = vmax.f32 %v574, 0.0
  %v865 = vmax.f32 %v576, 0.0
  %v866 = vmax.f32 %v580, 0.0
  %v867 = vmax.f32 %v582, 0.0
  %v868 = vmax.f32 %v586, 0.0
  %v869 = vmax.f32 %v588, 0.0
  %v870 = vmax.f32 %v592, 0.0
  %v871 = vmax.f32 %v594, 0.0
  %v872 = vmax.f32 %v598, 0.0
  %v873 = vmax.f32 %v600, 0.0
  %v874 = vmax.f32 %v604, 0.0
  %v875 = vmax.f32 %v606, 0.0
  %v876 = vmax.f32 %v610, 0.0
  %v877 = vmax.f32 %v612, 0.0
  %v878 = vmax.f32 %v616, 0.0
  %v879 = vmax.f32 %v618, 0.0
  %v880 = vmax.f32 %v622, 0.0
  %v881 = vmax.f32 %v624, 0.0
  %v882 = vmax.f32 %v628, 0.0
  %v883 = vmax.f32 %v630, 0.0
  %v884 = vmax.f32 %v634, 0.0
  %v885 = vmax.f32 %v636, 0.0
  %v886 = vmax.f32 %v640, 0.0
  %v887 = vmax.f32 %v642, 0.0
  %v888 = vmax.f32 %v646, 0.0
  %v889 = vmax.f32 %v648, 0.0
  %v890 = vmax.f32 %v652, 0.0
  %v891 = vmax.f32 %v654, 0.0
  %v892 = vmax.f32 %v658, 0.0
  %v893 = vmax.f32 %v660, 0.0
  %v894 = vmax.f32 %v664, 0.0
  %v895 = vmax.f32 %v666, 0.0
  %v896 = vmax.f32 %v670, 0.0
  %v897 = vmax.f32 %v672, 0.0
  %v898 = vmax.f32 %v676, 0.0
  %v899 = vmax.f32 %v678, 0.0
  %v900 = vmax.f32 %v682, 0.0
  %v901 = vmax.f32 %v684, 0.0
  %v902 = vmax.f32 %v688, 0.0
  %v903 = vmax.f32 %v690, 0.0
  %v904 = vmax.f32 %v694, 0.0
  %v905 = vmax.f32 %v696, 0.0
  %v906 = vmax.f32 %v700, 0.0
  %v907 = vmax.f32 %v702, 0.0
  %v908 = vmax.f32 %v706, 0.0
  %v909 = vmax.f32 %v708, 0.0
  %v910 = vmax.f32 %v712, 0.0
  %v911 = vmax.f32 %v714, 0.0
  %v912 = vmax.f32 %v718, 0.0
  %v913 = vmax.f32 %v720, 0.0
  %v914 = vmax.f32 %v724, 0.0
  %v915 = vmax.f32 %v726, 0.0
  %v916 = vmax.f32 %v730, 0.0
  %v917 = vmax.f32 %v732, 0.0
  %v918 = vmax.f32 %v736, 0.0
  %v919 = vmax.f32 %v738, 0.0
  %v920 = vmax.f32 %v742, 0.0
  %v921 = vmax.f32 %v744, 0.0
  %v922 = vmax.f32 %v748, 0.0
  %v923 = vmax.f32 %v750, 0.0
  %v924 = vmax.f32 %v754, 0.0
  %v925 = vmax.f32 %v756, 0.0
  %v926 = vmax.f32 %v760, 0.0
  %v927 = vmax.f32 %v762, 0.0
  %v928 = vmax.f32 %v766, 0.0
  %v929 = vmax.f32 %v768, 0.0
  %v930 = vmax.f32 %v772, 0.0
  %v931 = vmax.f32 %v774, 0.0
  %v932 = vmax.f32 %v778, 0.0
  %v933 = vmax.f32 %v780, 0.0
  %v934 = vmax.f32 %v784, 0.0
  %v935 = vmax.f32 %v786, 0.0
  %v936 = vmax.f32 %v790, 0.0
  %v937 = vmax.f32 %v792, 0.0
  %v938 = vmax.f32 %v796, 0.0
  %v939 = vmax.f32 %v798, 0.0
  %v940 = vmax.f32 %v802, 0.0
  %v941 = vmax.f32 %v804, 0.0
  %942 = vst [vmem:[#allocation2 + $0x20] sm:$0xff] %v806
  %943 = vst [vmem:[#allocation2 + $0x28] sm:$0xff] %v807
  %944 = vst [vmem:[#allocation2 + $0x30] sm:$0xff] %v808
  %945 = vst [vmem:[#allocation2 + $0x38] sm:$0xff] %v809
  %946 = vst [vmem:[#allocation2 + $0x40] sm:$0xff] %v810
  %947 = vst [vmem:[#allocation2 + $0x48] sm:$0xff] %v811
  %948 = vst [vmem:[#allocation2 + $0x50] sm:$0xff] %v812
  %949 = vst [vmem:[#allocation2 + $0x58] sm:$0xff] %v813
  %950 = vst [vmem:[#allocation2 + $0x60] sm:$0xff] %v814
  %951 = vst [vmem:[#allocation2 + $0x68] sm:$0xff] %v815
  %952 = vst [vmem:[#allocation2 + $0x70] sm:$0xff] %v816
  %953 = vst [vmem:[#allocation2 + $0x78] sm:$0xff] %v817
  %954 = vst [vmem:[#allocation2 + $0x80] sm:$0xff] %v818
  %955 = vst [vmem:[#allocation2 + $0x88] sm:$0xff] %v819
  %956 = vst [vmem:[#allocation2 + $0x90] sm:$0xff] %v820
  %957 = vst [vmem:[#allocation2 + $0x98] sm:$0xff] %v821
  %958 = vst [vmem:[#allocation2 + $0xa0] sm:$0xff] %v822
  %959 = vst [vmem:[#allocation2 + $0xa8] sm:$0xff] %v823
  %960 = vst [vmem:[#allocation2 + $0xb0] sm:$0xff] %v824
  %961 = vst [vmem:[#allocation2 + $0xb8] sm:$0xff] %v825
  %962 = vst [vmem:[#allocation2 + $0xc0] sm:$0xff] %v826
  %963 = vst [vmem:[#allocation2 + $0xc8] sm:$0xff] %v827
  %964 = vst [vmem:[#allocation2 + $0xd0] sm:$0xff] %v828
  %965 = vst [vmem:[#allocation2 + $0xd8] sm:$0xff] %v829
  %966 = vst [vmem:[#allocation2 + $0xe0] sm:$0xff] %v830
  %967 = vst [vmem:[#allocation2 + $0xe8] sm:$0xff] %v831
  %968 = vst [vmem:[#allocation2 + $0xf0] sm:$0xff] %v832
  %969 = vst [vmem:[#allocation2 + $0xf8] sm:$0xff] %v833
  %970 = vst [vmem:[#allocation2 + $0x100] sm:$0xff] %v834
  %971 = vst [vmem:[#allocation2 + $0x108] sm:$0xff] %v835
  %972 = vst [vmem:[#allocation2 + $0x110] sm:$0xff] %v836
  %973 = vst [vmem:[#allocation2 + $0x118] sm:$0xff] %v837
  %974 = vst [vmem:[#allocation2 + $0x120] sm:$0xff] %v838
  %975 = vst [vmem:[#allocation2 + $0x128] sm:$0xff] %v839
  %976 = vst [vmem:[#allocation2 + $0x130] sm:$0xff] %v840
  %977 = vst [vmem:[#allocation2 + $0x138] sm:$0xff] %v841
  %978 = vst [vmem:[#allocation2 + $0x140] sm:$0xff] %v842
  %979 = vst [vmem:[#allocation2 + $0x148] sm:$0xff] %v843
  %980 = vst [vmem:[#allocation2 + $0x150] sm:$0xff] %v844
  %981 = vst [vmem:[#allocation2 + $0x158] sm:$0xff] %v845
  %982 = vst [vmem:[#allocation2 + $0x160] sm:$0xff] %v846
  %983 = vst [vmem:[#allocation2 + $0x168] sm:$0xff] %v847
  %984 = vst [vmem:[#allocation2 + $0x170] sm:$0xff] %v848
  %985 = vst [vmem:[#allocation2 + $0x178] sm:$0xff] %v849
  %986 = vst [vmem:[#allocation2 + $0x180] sm:$0xff] %v850
  %987 = vst [vmem:[#allocation2 + $0x188] sm:$0xff] %v851
  %988 = vst [vmem:[#allocation2 + $0x190] sm:$0xff] %v852
  %989 = vst [vmem:[#allocation2 + $0x198] sm:$0xff] %v853
  %990 = vst [vmem:[#allocation2 + $0x1a0] sm:$0xff] %v854
  %991 = vst [vmem:[#allocation2 + $0x1a8] sm:$0xff] %v855
  %992 = vst [vmem:[#allocation2 + $0x1b0] sm:$0xff] %v856
  %993 = vst [vmem:[#allocation2 + $0x1b8] sm:$0xff] %v857
  %994 = vst [vmem:[#allocation2 + $0x1c0] sm:$0xff] %v858
  %995 = vst [vmem:[#allocation2 + $0x1c8] sm:$0xff] %v859
  %996 = vst [vmem:[#allocation2 + $0x1d0] sm:$0xff] %v860
  %997 = vst [vmem:[#allocation2 + $0x1d8] sm:$0xff] %v861
  %998 = vst [vmem:[#allocation2 + $0x1e0] sm:$0xff] %v862
  %999 = vst [vmem:[#allocation2 + $0x1e8] sm:$0xff] %v863
  %1000 = vst [vmem:[#allocation2 + $0x1f0] sm:$0xff] %v864
  %1001 = vst [vmem:[#allocation2 + $0x1f8] sm:$0xff] %v865
  %1002 = vst [vmem:[#allocation2 + $0x200] sm:$0xff] %v866
  %1003 = vst [vmem:[#allocation2 + $0x208] sm:$0xff] %v867
  %1004 = vst [vmem:[#allocation2 + $0x210] sm:$0xff] %v868
  %1005 = vst [vmem:[#allocation2 + $0x218] sm:$0xff] %v869
  %1006 = vst [vmem:[#allocation2 + $0x220] sm:$0xff] %v870
  %1007 = vst [vmem:[#allocation2 + $0x228] sm:$0xff] %v871
  %1008 = vst [vmem:[#allocation2 + $0x230] sm:$0xff] %v872
  %1009 = vst [vmem:[#allocation2 + $0x238] sm:$0xff] %v873
  %1010 = vst [vmem:[#allocation2 + $0x240] sm:$0xff] %v874
  %1011 = vst [vmem:[#allocation2 + $0x248] sm:$0xff] %v875
  %1012 = vst [vmem:[#allocation2 + $0x250] sm:$0xff] %v876
  %1013 = vst [vmem:[#allocation2 + $0x258] sm:$0xff] %v877
  %1014 = vst [vmem:[#allocation2 + $0x260] sm:$0xff] %v878
  %1015 = vst [vmem:[#allocation2 + $0x268] sm:$0xff] %v879
  %1016 = vst [vmem:[#allocation2 + $0x270] sm:$0xff] %v880
  %1017 = vst [vmem:[#allocation2 + $0x278] sm:$0xff] %v881
  %1018 = vst [vmem:[#allocation2 + $0x280] sm:$0xff] %v882
  %1019 = vst [vmem:[#allocation2 + $0x288] sm:$0xff] %v883
  %1020 = vst [vmem:[#allocation2 + $0x290] sm:$0xff] %v884
  %1021 = vst [vmem:[#allocation2 + $0x298] sm:$0xff] %v885
  %1022 = vst [vmem:[#allocation2 + $0x2a0] sm:$0xff] %v886
  %1023 = vst [vmem:[#allocation2 + $0x2a8] sm:$0xff] %v887
  %1024 = vst [vmem:[#allocation2 + $0x2b0] sm:$0xff] %v888
  %1025 = vst [vmem:[#allocation2 + $0x2b8] sm:$0xff] %v889
  %1026 = vst [vmem:[#allocation2 + $0x2c0] sm:$0xff] %v890
  %1027 = vst [vmem:[#allocation2 + $0x2c8] sm:$0xff] %v891
  %1028 = vst [vmem:[#allocation2 + $0x2d0] sm:$0xff] %v892
  %1029 = vst [vmem:[#allocation2 + $0x2d8] sm:$0xff] %v893
  %1030 = vst [vmem:[#allocation2 + $0x2e0] sm:$0xff] %v894
  %1031 = vst [vmem:[#allocation2 + $0x2e8] sm:$0xff] %v895
  %1032 = vst [vmem:[#allocation2 + $0x2f0] sm:$0xff] %v896
  %1033 = vst [vmem:[#allocation2 + $0x2f8] sm:$0xff] %v897
  %1034 = vst [vmem:[#allocation2 + $0x300] sm:$0xff] %v898
  %1035 = vst [vmem:[#allocation2 + $0x308] sm:$0xff] %v899
  %1036 = vst [vmem:[#allocation2 + $0x310] sm:$0xff] %v900
  %1037 = vst [vmem:[#allocation2 + $0x318] sm:$0xff] %v901
  %1038 = vst [vmem:[#allocation2 + $0x320] sm:$0xff] %v902
  %1039 = vst [vmem:[#allocation2 + $0x328] sm:$0xff] %v903
  %1040 = vst [vmem:[#allocation2 + $0x330] sm:$0xff] %v904
  %1041 = vst [vmem:[#allocation2 + $0x338] sm:$0xff] %v905
  %1042 = vst [vmem:[#allocation2 + $0x340] sm:$0xff] %v906
  %1043 = vst [vmem:[#allocation2 + $0x348] sm:$0xff] %v907
  %1044 = vst [vmem:[#allocation2 + $0x350] sm:$0xff] %v908
  %1045 = vst [vmem:[#allocation2 + $0x358] sm:$0xff] %v909
  %1046 = vst [vmem:[#allocation2 + $0x360] sm:$0xff] %v910
  %1047 = vst [vmem:[#allocation2 + $0x368] sm:$0xff] %v911
  %1048 = vst [vmem:[#allocation2 + $0x370] sm:$0xff] %v912
  %1049 = vst [vmem:[#allocation2 + $0x378] sm:$0xff] %v913
  %1050 = vst [vmem:[#allocation2 + $0x380] sm:$0xff] %v914
  %1051 = vst [vmem:[#allocation2 + $0x388] sm:$0xff] %v915
  %1052 = vst [vmem:[#allocation2 + $0x390] sm:$0xff] %v916
  %1053 = vst [vmem:[#allocation2 + $0x398] sm:$0xff] %v917
  %1054 = vst [vmem:[#allocation2 + $0x3a0] sm:$0xff] %v918
  %1055 = vst [vmem:[#allocation2 + $0x3a8] sm:$0xff] %v919
  %1056 = vst [vmem:[#allocation2 + $0x3b0] sm:$0xff] %v920
  %1057 = vst [vmem:[#allocation2 + $0x3b8] sm:$0xff] %v921
  %1058 = vst [vmem:[#allocation2 + $0x3c0] sm:$0xff] %v922
  %1059 = vst [vmem:[#allocation2 + $0x3c8] sm:$0xff] %v923
  %1060 = vst [vmem:[#allocation2 + $0x3d0] sm:$0xff] %v924
  %1061 = vst [vmem:[#allocation2 + $0x3d8] sm:$0xff] %v925
  %1062 = vst [vmem:[#allocation2 + $0x3e0] sm:$0xff] %v926
  %1063 = vst [vmem:[#allocation2 + $0x3e8] sm:$0xff] %v927
  %1064 = vst [vmem:[#allocation2 + $0x3f0] sm:$0xff] %v928
  %1065 = vst [vmem:[#allocation2 + $0x3f8] sm:$0xff] %v929
  %1066 = vst [vmem:[#allocation2 + $0x400] sm:$0xff] %v930
  %1067 = vst [vmem:[#allocation2 + $0x408] sm:$0xff] %v931
  %1068 = vst [vmem:[#allocation2 + $0x410] sm:$0xff] %v932
  %1069 = vst [vmem:[#allocation2 + $0x418] sm:$0xff] %v933
  %1070 = vst [vmem:[#allocation2 + $0x420] sm:$0xff] %v934
  %1071 = vst [vmem:[#allocation2 + $0x428] sm:$0xff] %v935
  %1072 = vst [vmem:[#allocation2 + $0x430] sm:$0xff] %v936
  %1073 = vst [vmem:[#allocation2 + $0x438] sm:$0xff] %v937
  %1074 = vst [vmem:[#allocation2 + $0x440] sm:$0xff] %v938
  %1075 = vst [vmem:[#allocation2 + $0x448] sm:$0xff] %v939
  %1076 = vst [vmem:[#allocation2 + $0x450] sm:$0xff] %v940
  %1077 = vst [vmem:[#allocation2 + $0x458] sm:$0xff] %v941
  %v1078 = vld [vmem:[#allocation2] sm:$0xff]
  %v1079 = vld [vmem:[#allocation2 + $0x8] sm:$0xff]
  %v1080 = vld [vmem:[#allocation2 + $0x10] sm:$0xff]
  %v1081 = vld [vmem:[#allocation2 + $0x18] sm:$0xff]
  %v1082 = vld [vmem:[#allocation2 + $0x20] sm:$0xff]
  %v1083 = vld [vmem:[#allocation2 + $0x28] sm:$0xff]
  %v1084 = vld [vmem:[#allocation2 + $0x30] sm:$0xff]
  %v1085 = vld [vmem:[#allocation2 + $0x38] sm:$0xff]
  %v1086 = vld [vmem:[#allocation2 + $0x40] sm:$0xff]
  %v1087 = vld [vmem:[#allocation2 + $0x48] sm:$0xff]
  %v1088 = vld [vmem:[#allocation2 + $0x50] sm:$0xff]
  %v1089 = vld [vmem:[#allocation2 + $0x58] sm:$0xff]
  %v1090 = vld [vmem:[#allocation2 + $0x60] sm:$0xff]
  %v1091 = vld [vmem:[#allocation2 + $0x68] sm:$0xff]
  %v1092 = vld [vmem:[#allocation2 + $0x70] sm:$0xff]
  %v1093 = vld [vmem:[#allocation2 + $0x78] sm:$0xff]
  %v1094 = vld [vmem:[#allocation2 + $0x80] sm:$0xff]
  %v1095 = vld [vmem:[#allocation2 + $0x88] sm:$0xff]
  %v1096 = vld [vmem:[#allocation2 + $0x90] sm:$0xff]
  %v1097 = vld [vmem:[#allocation2 + $0x98] sm:$0xff]
  %v1098 = vld [vmem:[#allocation2 + $0xa0] sm:$0xff]
  %v1099 = vld [vmem:[#allocation2 + $0xa8] sm:$0xff]
  %v1100 = vld [vmem:[#allocation2 + $0xb0] sm:$0xff]
  %v1101 = vld [vmem:[#allocation2 + $0xb8] sm:$0xff]
  %v1102 = vld [vmem:[#allocation2 + $0xc0] sm:$0xff]
  %v1103 = vld [vmem:[#allocation2 + $0xc8] sm:$0xff]
  %v1104 = vld [vmem:[#allocation2 + $0xd0] sm:$0xff]
  %v1105 = vld [vmem:[#allocation2 + $0xd8] sm:$0xff]
  %v1106 = vld [vmem:[#allocation2 + $0xe0] sm:$0xff]
  %v1107 = vld [vmem:[#allocation2 + $0xe8] sm:$0xff]
  %v1108 = vld [vmem:[#allocation2 + $0xf0] sm:$0xff]
  %v1109 = vld [vmem:[#allocation2 + $0xf8] sm:$0xff]
  %v1110 = vld [vmem:[#allocation2 + $0x100] sm:$0xff]
  %v1111 = vld [vmem:[#allocation2 + $0x108] sm:$0xff]
  %v1112 = vld [vmem:[#allocation2 + $0x110] sm:$0xff]
  %v1113 = vld [vmem:[#allocation2 + $0x118] sm:$0xff]
  %v1114 = vld [vmem:[#allocation2 + $0x120] sm:$0xff]
  %v1115 = vld [vmem:[#allocation2 + $0x128] sm:$0xff]
  %v1116 = vld [vmem:[#allocation2 + $0x130] sm:$0xff]
  %v1117 = vld [vmem:[#allocation2 + $0x138] sm:$0xff]
  %v1118 = vld [vmem:[#allocation2 + $0x140] sm:$0xff]
  %v1119 = vld [vmem:[#allocation2 + $0x148] sm:$0xff]
  %v1120 = vld [vmem:[#allocation2 + $0x150] sm:$0xff]
  %v1121 = vld [vmem:[#allocation2 + $0x158] sm:$0xff]
  %v1122 = vld [vmem:[#allocation2 + $0x160] sm:$0xff]
  %v1123 = vld [vmem:[#allocation2 + $0x168] sm:$0xff]
  %v1124 = vld [vmem:[#allocation2 + $0x170] sm:$0xff]
  %v1125 = vld [vmem:[#allocation2 + $0x178] sm:$0xff]
  %v1126 = vld [vmem:[#allocation2 + $0x180] sm:$0xff]
  %v1127 = vld [vmem:[#allocation2 + $0x188] sm:$0xff]
  %v1128 = vld [vmem:[#allocation2 + $0x190] sm:$0xff]
  %v1129 = vld [vmem:[#allocation2 + $0x198] sm:$0xff]
  %v1130 = vld [vmem:[#allocation2 + $0x1a0] sm:$0xff]
  %v1131 = vld [vmem:[#allocation2 + $0x1a8] sm:$0xff]
  %v1132 = vld [vmem:[#allocation2 + $0x1b0] sm:$0xff]
  %v1133 = vld [vmem:[#allocation2 + $0x1b8] sm:$0xff]
  %v1134 = vld [vmem:[#allocation2 + $0x1c0] sm:$0xff]
  %v1135 = vld [vmem:[#allocation2 + $0x1c8] sm:$0xff]
  %v1136 = vld [vmem:[#allocation2 + $0x1d0] sm:$0xff]
  %v1137 = vld [vmem:[#allocation2 + $0x1d8] sm:$0xff]
  %v1138 = vld [vmem:[#allocation2 + $0x1e0] sm:$0xff]
  %v1139 = vld [vmem:[#allocation2 + $0x1e8] sm:$0xff]
  %v1140 = vld [vmem:[#allocation2 + $0x1f0] sm:$0xff]
  %v1141 = vld [vmem:[#allocation2 + $0x1f8] sm:$0xff]
  %v1142 = vld [vmem:[#allocation2 + $0x200] sm:$0xff]
  %v1143 = vld [vmem:[#allocation2 + $0x208] sm:$0xff]
  %v1144 = vld [vmem:[#allocation2 + $0x210] sm:$0xff]
  %v1145 = vld [vmem:[#allocation2 + $0x218] sm:$0xff]
  %v1146 = vld [vmem:[#allocation2 + $0x220] sm:$0xff]
  %v1147 = vld [vmem:[#allocation2 + $0x228] sm:$0xff]
  %v1148 = vld [vmem:[#allocation2 + $0x230] sm:$0xff]
  %v1149 = vld [vmem:[#allocation2 + $0x238] sm:$0xff]
  %v1150 = vld [vmem:[#allocation2 + $0x240] sm:$0xff]
  %v1151 = vld [vmem:[#allocation2 + $0x248] sm:$0xff]
  %v1152 = vld [vmem:[#allocation2 + $0x250] sm:$0xff]
  %v1153 = vld [vmem:[#allocation2 + $0x258] sm:$0xff]
  %v1154 = vld [vmem:[#allocation2 + $0x260] sm:$0xff]
  %v1155 = vld [vmem:[#allocation2 + $0x268] sm:$0xff]
  %v1156 = vld [vmem:[#allocation2 + $0x270] sm:$0xff]
  %v1157 = vld [vmem:[#allocation2 + $0x278] sm:$0xff]
  %v1158 = vld [vmem:[#allocation2 + $0x280] sm:$0xff]
  %v1159 = vld [vmem:[#allocation2 + $0x288] sm:$0xff]
  %v1160 = vld [vmem:[#allocation2 + $0x290] sm:$0xff]
  %v1161 = vld [vmem:[#allocation2 + $0x298] sm:$0xff]
  %v1162 = vld [vmem:[#allocation2 + $0x2a0] sm:$0xff]
  %v1163 = vld [vmem:[#allocation2 + $0x2a8] sm:$0xff]
  %v1164 = vld [vmem:[#allocation2 + $0x2b0] sm:$0xff]
  %v1165 = vld [vmem:[#allocation2 + $0x2b8] sm:$0xff]
  %v1166 = vld [vmem:[#allocation2 + $0x2c0] sm:$0xff]
  %v1167 = vld [vmem:[#allocation2 + $0x2c8] sm:$0xff]
  %v1168 = vld [vmem:[#allocation2 + $0x2d0] sm:$0xff]
  %v1169 = vld [vmem:[#allocation2 + $0x2d8] sm:$0xff]
  %v1170 = vld [vmem:[#allocation2 + $0x2e0] sm:$0xff]
  %v1171 = vld [vmem:[#allocation2 + $0x2e8] sm:$0xff]
  %v1172 = vld [vmem:[#allocation2 + $0x2f0] sm:$0xff]
  %v1173 = vld [vmem:[#allocation2 + $0x2f8] sm:$0xff]
  %v1174 = vld [vmem:[#allocation2 + $0x300] sm:$0xff]
  %v1175 = vld [vmem:[#allocation2 + $0x308] sm:$0xff]
  %v1176 = vld [vmem:[#allocation2 + $0x310] sm:$0xff]
  %v1177 = vld [vmem:[#allocation2 + $0x318] sm:$0xff]
  %v1178 = vld [vmem:[#allocation2 + $0x320] sm:$0xff]
  %v1179 = vld [vmem:[#allocation2 + $0x328] sm:$0xff]
  %v1180 = vld [vmem:[#allocation2 + $0x330] sm:$0xff]
  %v1181 = vld [vmem:[#allocation2 + $0x338] sm:$0xff]
  %v1182 = vld [vmem:[#allocation2 + $0x340] sm:$0xff]
  %v1183 = vld [vmem:[#allocation2 + $0x348] sm:$0xff]
  %v1184 = vld [vmem:[#allocation2 + $0x350] sm:$0xff]
  %v1185 = vld [vmem:[#allocation2 + $0x358] sm:$0xff]
  %v1186 = vld [vmem:[#allocation2 + $0x360] sm:$0xff]
  %v1187 = vld [vmem:[#allocation2 + $0x368] sm:$0xff]
  %v1188 = vld [vmem:[#allocation2 + $0x370] sm:$0xff]
  %v1189 = vld [vmem:[#allocation2 + $0x378] sm:$0xff]
  %v1190 = vld [vmem:[#allocation2 + $0x380] sm:$0xff]
  %v1191 = vld [vmem:[#allocation2 + $0x388] sm:$0xff]
  %v1192 = vld [vmem:[#allocation2 + $0x390] sm:$0xff]
  %v1193 = vld [vmem:[#allocation2 + $0x398] sm:$0xff]
  %v1194 = vld [vmem:[#allocation2 + $0x3a0] sm:$0xff]
  %v1195 = vld [vmem:[#allocation2 + $0x3a8] sm:$0xff]
  %v1196 = vld [vmem:[#allocation2 + $0x3b0] sm:$0xff]
  %v1197 = vld [vmem:[#allocation2 + $0x3b8] sm:$0xff]
  %v1198 = vld [vmem:[#allocation2 + $0x3c0] sm:$0xff]
  %v1199 = vld [vmem:[#allocation2 + $0x3c8] sm:$0xff]
  %v1200 = vld [vmem:[#allocation2 + $0x3d0] sm:$0xff]
  %v1201 = vld [vmem:[#allocation2 + $0x3d8] sm:$0xff]
  %v1202 = vld [vmem:[#allocation2 + $0x3e0] sm:$0xff]
  %v1203 = vld [vmem:[#allocation2 + $0x3e8] sm:$0xff]
  %v1204 = vld [vmem:[#allocation2 + $0x3f0] sm:$0xff]
  %v1205 = vld [vmem:[#allocation2 + $0x3f8] sm:$0xff]
  %v1206 = vld [vmem:[#allocation2 + $0x400] sm:$0xff]
  %v1207 = vld [vmem:[#allocation2 + $0x408] sm:$0xff]
  %v1208 = vld [vmem:[#allocation2 + $0x410] sm:$0xff]
  %v1209 = vld [vmem:[#allocation2 + $0x418] sm:$0xff]
  %v1210 = vld [vmem:[#allocation2 + $0x420] sm:$0xff]
  %v1211 = vld [vmem:[#allocation2 + $0x428] sm:$0xff]
  %v1212 = vld [vmem:[#allocation2 + $0x430] sm:$0xff]
  %v1213 = vld [vmem:[#allocation2 + $0x438] sm:$0xff]
  %v1214 = vld [vmem:[%s3] sm:$0xff]
  %v1215 = vld [vmem:[%s3 + $0x8] sm:$0xff]
  %v1216 = vld [vmem:[%s3 + $0x10] sm:$0xff]
  %v1217 = vld [vmem:[%s3 + $0x18] sm:$0xff]
  %v1218 = vld [vmem:[%s3 + $0x20] sm:$0xff]
  %v1219 = vld [vmem:[%s3 + $0x28] sm:$0xff]
  %v1220 = vld [vmem:[%s3 + $0x30] sm:$0xff]
  %v1221 = vld [vmem:[%s3 + $0x38] sm:$0xff]
  %v1222 = vld [vmem:[%s3 + $0x40] sm:$0xff]
  %v1223 = vld [vmem:[%s3 + $0x48] sm:$0xff]
  %v1224 = vld [vmem:[%s3 + $0x50] sm:$0xff]
  %v1225 = vld [vmem:[%s3 + $0x58] sm:$0xff]
  %v1226 = vld [vmem:[%s3 + $0x60] sm:$0xff]
  %v1227 = vld [vmem:[%s3 + $0x68] sm:$0xff]
  %v1228 = vld [vmem:[%s3 + $0x70] sm:$0xff]
  %v1229 = vld [vmem:[%s3 + $0x78] sm:$0xff]
  %v1230 = vld [vmem:[%s3 + $0x80] sm:$0xff]
  %v1231 = vld [vmem:[%s3 + $0x88] sm:$0xff]
  %v1232 = vld [vmem:[%s3 + $0x90] sm:$0xff]
  %v1233 = vld [vmem:[%s3 + $0x98] sm:$0xff]
  %v1234 = vld [vmem:[%s3 + $0xa0] sm:$0xff]
  %v1235 = vld [vmem:[%s3 + $0xa8] sm:$0xff]
  %v1236 = vld [vmem:[%s3 + $0xb0] sm:$0xff]
  %v1237 = vld [vmem:[%s3 + $0xb8] sm:$0xff]
  %v1238 = vld [vmem:[%s3 + $0xc0] sm:$0xff]
  %v1239 = vld [vmem:[%s3 + $0xc8] sm:$0xff]
  %v1240 = vld [vmem:[%s3 + $0xd0] sm:$0xff]
  %v1241 = vld [vmem:[%s3 + $0xd8] sm:$0xff]
  %v1242 = vld [vmem:[%s3 + $0xe0] sm:$0xff]
  %v1243 = vld [vmem:[%s3 + $0xe8] sm:$0xff]
  %v1244 = vld [vmem:[%s3 + $0xf0] sm:$0xff]
  %v1245 = vld [vmem:[%s3 + $0xf8] sm:$0xff]
  %v1246 = vld [vmem:[%s3 + $0x100] sm:$0xff]
  %v1247 = vld [vmem:[%s3 + $0x108] sm:$0xff]
  %v1248 = vld [vmem:[%s3 + $0x110] sm:$0xff]
  %v1249 = vld [vmem:[%s3 + $0x118] sm:$0xff]
  %v1250 = vld [vmem:[%s3 + $0x120] sm:$0xff]
  %v1251 = vld [vmem:[%s3 + $0x128] sm:$0xff]
  %v1252 = vld [vmem:[%s3 + $0x130] sm:$0xff]
  %v1253 = vld [vmem:[%s3 + $0x138] sm:$0xff]
  %v1254 = vld [vmem:[%s3 + $0x140] sm:$0xff]
  %v1255 = vld [vmem:[%s3 + $0x148] sm:$0xff]
  %v1256 = vld [vmem:[%s3 + $0x150] sm:$0xff]
  %v1257 = vld [vmem:[%s3 + $0x158] sm:$0xff]
  %v1258 = vld [vmem:[%s3 + $0x160] sm:$0xff]
  %v1259 = vld [vmem:[%s3 + $0x168] sm:$0xff]
  %v1260 = vld [vmem:[%s3 + $0x170] sm:$0xff]
  %v1261 = vld [vmem:[%s3 + $0x178] sm:$0xff]
  %v1262 = vld [vmem:[%s3 + $0x180] sm:$0xff]
  %v1263 = vld [vmem:[%s3 + $0x188] sm:$0xff]
  %v1264 = vld [vmem:[%s3 + $0x190] sm:$0xff]
  %v1265 = vld [vmem:[%s3 + $0x198] sm:$0xff]
  %v1266 = vld [vmem:[%s3 + $0x1a0] sm:$0xff]
  %v1267 = vld [vmem:[%s3 + $0x1a8] sm:$0xff]
  %v1268 = vld [vmem:[%s3 + $0x1b0] sm:$0xff]
  %v1269 = vld [vmem:[%s3 + $0x1b8] sm:$0xff]
  %v1270 = vld [vmem:[%s3 + $0x1c0] sm:$0xff]
  %v1271 = vld [vmem:[%s3 + $0x1c8] sm:$0xff]
  %v1272 = vld [vmem:[%s3 + $0x1d0] sm:$0xff]
  %v1273 = vld [vmem:[%s3 + $0x1d8] sm:$0xff]
  %v1274 = vld [vmem:[%s3 + $0x1e0] sm:$0xff]
  %v1275 = vld [vmem:[%s3 + $0x1e8] sm:$0xff]
  %v1276 = vld [vmem:[%s3 + $0x1f0] sm:$0xff]
  %v1277 = vld [vmem:[%s3 + $0x1f8] sm:$0xff]
  %v1278 = vld [vmem:[#allocation2 + $0x440] sm:$0xff]
  %v1279 = vld [vmem:[#allocation2 + $0x448] sm:$0xff]
  %v1280 = vld [vmem:[#allocation2 + $0x450] sm:$0xff]
  %v1281 = vld [vmem:[#allocation2 + $0x458] sm:$0xff]
  %s1282 = scalar_lea.vmem %s3, 512
  %v1283 = vld [vmem:[%s1282] sm:$0xff]
  %v1284 = vld [vmem:[%s1282 + $0x8] sm:$0xff]
  %v1285 = vld [vmem:[%s1282 + $0x10] sm:$0xff]
  %v1286 = vld [vmem:[%s1282 + $0x18] sm:$0xff]
  %v1287 = vld [vmem:[%s1282 + $0x20] sm:$0xff]
  %v1288 = vld [vmem:[%s1282 + $0x28] sm:$0xff]
  %v1289 = vld [vmem:[%s1282 + $0x30] sm:$0xff]
  %v1290 = vld [vmem:[%s1282 + $0x38] sm:$0xff]
  %v1291 = vld [vmem:[%s1282 + $0x40] sm:$0xff]
  %v1292 = vld [vmem:[%s1282 + $0x48] sm:$0xff]
  %v1293 = vld [vmem:[%s1282 + $0x50] sm:$0xff]
  %v1294 = vld [vmem:[%s1282 + $0x58] sm:$0xff]
  %v1295 = vld [vmem:[%s1282 + $0x60] sm:$0xff]
  %v1296 = vld [vmem:[%s1282 + $0x68] sm:$0xff]
  %v1297 = vld [vmem:[%s1282 + $0x70] sm:$0xff]
  %v1298 = vld [vmem:[%s1282 + $0x78] sm:$0xff]
  %v1299 = vld [vmem:[%s1282 + $0x80] sm:$0xff]
  %v1300 = vld [vmem:[%s1282 + $0x88] sm:$0xff]
  %v1301 = vld [vmem:[%s1282 + $0x90] sm:$0xff]
  %v1302 = vld [vmem:[%s1282 + $0x98] sm:$0xff]
  %v1303 = vld [vmem:[%s1282 + $0xa0] sm:$0xff]
  %v1304 = vld [vmem:[%s1282 + $0xa8] sm:$0xff]
  %v1305 = vld [vmem:[%s1282 + $0xb0] sm:$0xff]
  %v1306 = vld [vmem:[%s1282 + $0xb8] sm:$0xff]
  %v1307 = vld [vmem:[%s1282 + $0xc0] sm:$0xff]
  %v1308 = vld [vmem:[%s1282 + $0xc8] sm:$0xff]
  %v1309 = vld [vmem:[%s1282 + $0xd0] sm:$0xff]
  %v1310 = vld [vmem:[%s1282 + $0xd8] sm:$0xff]
  %v1311 = vld [vmem:[%s1282 + $0xe0] sm:$0xff]
  %v1312 = vld [vmem:[%s1282 + $0xe8] sm:$0xff]
  %v1313 = vld [vmem:[%s1282 + $0xf0] sm:$0xff]
  %v1314 = vld [vmem:[%s1282 + $0xf8] sm:$0xff]
  %v1315 = vld [vmem:[%s1282 + $0x100] sm:$0xff]
  %v1316 = vld [vmem:[%s1282 + $0x108] sm:$0xff]
  %v1317 = vld [vmem:[%s1282 + $0x110] sm:$0xff]
  %v1318 = vld [vmem:[%s1282 + $0x118] sm:$0xff]
  %v1319 = vld [vmem:[%s1282 + $0x120] sm:$0xff]
  %v1320 = vld [vmem:[%s1282 + $0x128] sm:$0xff]
  %v1321 = vld [vmem:[%s1282 + $0x130] sm:$0xff]
  %v1322 = vld [vmem:[%s1282 + $0x138] sm:$0xff]
  %v1323 = vld [vmem:[%s1282 + $0x140] sm:$0xff]
  %v1324 = vld [vmem:[%s1282 + $0x148] sm:$0xff]
  %v1325 = vld [vmem:[%s1282 + $0x150] sm:$0xff]
  %v1326 = vld [vmem:[%s1282 + $0x158] sm:$0xff]
  %v1327 = vld [vmem:[%s1282 + $0x160] sm:$0xff]
  %v1328 = vld [vmem:[%s1282 + $0x168] sm:$0xff]
  %v1329 = vld [vmem:[%s1282 + $0x170] sm:$0xff]
  %v1330 = vld [vmem:[%s1282 + $0x178] sm:$0xff]
  %v1331 = vld [vmem:[%s1282 + $0x180] sm:$0xff]
  %v1332 = vld [vmem:[%s1282 + $0x188] sm:$0xff]
  %v1333 = vld [vmem:[%s1282 + $0x190] sm:$0xff]
  %v1334 = vld [vmem:[%s1282 + $0x198] sm:$0xff]
  %v1335 = vld [vmem:[%s1282 + $0x1a0] sm:$0xff]
  %v1336 = vld [vmem:[%s1282 + $0x1a8] sm:$0xff]
  %v1337 = vld [vmem:[%s1282 + $0x1b0] sm:$0xff]
  %v1338 = vld [vmem:[%s1282 + $0x1b8] sm:$0xff]
  %v1339 = vld [vmem:[%s1282 + $0x1c0] sm:$0xff]
  %v1340 = vld [vmem:[%s1282 + $0x1c8] sm:$0xff]
  %v1341 = vld [vmem:[%s1282 + $0x1d0] sm:$0xff]
  %v1342 = vld [vmem:[%s1282 + $0x1d8] sm:$0xff]
  %v1343 = vld [vmem:[%s1282 + $0x1e0] sm:$0xff]
  %v1344 = vld [vmem:[%s1282 + $0x1e8] sm:$0xff]
  %v1345 = vld [vmem:[%s1282 + $0x1f0] sm:$0xff]
  %v1346 = vld [vmem:[%s1282 + $0x1f8] sm:$0xff]
  %1347 = vmatprep.subr.mxu0 %v1314
  %1348 = vmatpush1.msra.mxu0 %v1313
  %1349 = vmatprep.subr.mxu0 %v1312
  %1350 = vmatpush1.msra.mxu0 %v1311
  %1351 = vmatprep.subr.mxu0 %v1310
  %1352 = vmatpush1.msra.mxu0 %v1309
  %1353 = vmatprep.subr.mxu0 %v1308
  %1354 = vmatpush1.msra.mxu0 %v1307
  %1355 = vmatprep.subr.mxu0 %v1306
  %1356 = vmatpush1.msra.mxu0 %v1305
  %1357 = vmatprep.subr.mxu0 %v1304
  %1358 = vmatpush1.msra.mxu0 %v1303
  %1359 = vmatprep.subr.mxu0 %v1302
  %1360 = vmatpush1.msra.mxu0 %v1301
  %1361 = vmatprep.subr.mxu0 %v1300
  %1362 = vmatpush1.msra.mxu0 %v1299
  %1363 = vmatprep.subr.mxu0 %v1298
  %1364 = vmatpush1.msra.mxu0 %v1297
  %1365 = vmatprep.subr.mxu0 %v1296
  %1366 = vmatpush1.msra.mxu0 %v1295
  %1367 = vmatprep.subr.mxu0 %v1294
  %1368 = vmatpush1.msra.mxu0 %v1293
  %1369 = vmatprep.subr.mxu0 %v1292
  %1370 = vmatpush1.msra.mxu0 %v1291
  %1371 = vmatprep.subr.mxu0 %v1290
  %1372 = vmatpush1.msra.mxu0 %v1289
  %1373 = vmatprep.subr.mxu0 %v1288
  %1374 = vmatpush1.msra.mxu0 %v1287
  %1375 = vmatprep.subr.mxu0 %v1286
  %1376 = vmatpush1.msra.mxu0 %v1285
  %1377 = vmatprep.subr.mxu0 %v1284
  %1378 = vmatpush1.msra.mxu0 %v1283
  %1379 = vmatprep.subr.mxu0 %v1346
  %1380 = vmatpush2.msra.mxu0 %v1345
  %1381 = vmatprep.subr.mxu0 %v1344
  %1382 = vmatpush2.msra.mxu0 %v1343
  %1383 = vmatprep.subr.mxu0 %v1342
  %1384 = vmatpush2.msra.mxu0 %v1341
  %1385 = vmatprep.subr.mxu0 %v1340
  %1386 = vmatpush2.msra.mxu0 %v1339
  %1387 = vmatprep.subr.mxu0 %v1338
  %1388 = vmatpush2.msra.mxu0 %v1337
  %1389 = vmatprep.subr.mxu0 %v1336
  %1390 = vmatpush2.msra.mxu0 %v1335
  %1391 = vmatprep.subr.mxu0 %v1334
  %1392 = vmatpush2.msra.mxu0 %v1333
  %1393 = vmatprep.subr.mxu0 %v1332
  %1394 = vmatpush2.msra.mxu0 %v1331
  %1395 = vmatprep.subr.mxu0 %v1330
  %1396 = vmatpush2.msra.mxu0 %v1329
  %1397 = vmatprep.subr.mxu0 %v1328
  %1398 = vmatpush2.msra.mxu0 %v1327
  %1399 = vmatprep.subr.mxu0 %v1326
  %1400 = vmatpush2.msra.mxu0 %v1325
  %1401 = vmatprep.subr.mxu0 %v1324
  %1402 = vmatpush2.msra.mxu0 %v1323
  %1403 = vmatprep.subr.mxu0 %v1322
  %1404 = vmatpush2.msra.mxu0 %v1321
  %1405 = vmatprep.subr.mxu0 %v1320
  %1406 = vmatpush2.msra.mxu0 %v1319
  %1407 = vmatprep.subr.mxu0 %v1318
  %1408 = vmatpush2.msra.mxu0 %v1317
  %1409 = vmatprep.subr.mxu0 %v1316
  %1410 = vmatpush2.msra.mxu0 %v1315
  %1411 = vmatprep.mubr.f32.mxu0 %v1083
  %1412 = vmatmul.mubr.f32.gmra.mxu0 %v1082
  %v1413 = vpop.f32.mrf.mxu0
  %v1414 = vadd.f32 0.0, %v1413
  %v1415 = vpop.f32.mrf.mxu0
  %v1416 = vadd.f32 0.0, %v1415
  %1417 = vmatprep.mubr.f32.mxu0 %v1085
  %1418 = vmatmul.mubr.f32.gmra.mxu0 %v1084
  %v1419 = vpop.f32.mrf.mxu0
  %v1420 = vadd.f32 0.0, %v1419
  %v1421 = vpop.f32.mrf.mxu0
  %v1422 = vadd.f32 0.0, %v1421
  %1423 = vmatprep.mubr.f32.mxu0 %v1087
  %1424 = vmatmul.mubr.f32.gmra.mxu0 %v1086
  %v1425 = vpop.f32.mrf.mxu0
  %v1426 = vadd.f32 0.0, %v1425
  %v1427 = vpop.f32.mrf.mxu0
  %v1428 = vadd.f32 0.0, %v1427
  %1429 = vmatprep.mubr.f32.mxu0 %v1089
  %1430 = vmatmul.mubr.f32.gmra.mxu0 %v1088
  %v1431 = vpop.f32.mrf.mxu0
  %v1432 = vadd.f32 0.0, %v1431
  %v1433 = vpop.f32.mrf.mxu0
  %v1434 = vadd.f32 0.0, %v1433
  %1435 = vmatprep.mubr.f32.mxu0 %v1091
  %1436 = vmatmul.mubr.f32.gmra.mxu0 %v1090
  %v1437 = vpop.f32.mrf.mxu0
  %v1438 = vadd.f32 0.0, %v1437
  %v1439 = vpop.f32.mrf.mxu0
  %v1440 = vadd.f32 0.0, %v1439
  %1441 = vmatprep.mubr.f32.mxu0 %v1093
  %1442 = vmatmul.mubr.f32.gmra.mxu0 %v1092
  %v1443 = vpop.f32.mrf.mxu0
  %v1444 = vadd.f32 0.0, %v1443
  %v1445 = vpop.f32.mrf.mxu0
  %v1446 = vadd.f32 0.0, %v1445
  %1447 = vmatprep.mubr.f32.mxu0 %v1095
  %1448 = vmatmul.mubr.f32.gmra.mxu0 %v1094
  %v1449 = vpop.f32.mrf.mxu0
  %v1450 = vadd.f32 0.0, %v1449
  %v1451 = vpop.f32.mrf.mxu0
  %v1452 = vadd.f32 0.0, %v1451
  %1453 = vmatprep.mubr.f32.mxu0 %v1097
  %1454 = vmatmul.mubr.f32.gmra.mxu0 %v1096
  %v1455 = vpop.f32.mrf.mxu0
  %v1456 = vadd.f32 0.0, %v1455
  %v1457 = vpop.f32.mrf.mxu0
  %v1458 = vadd.f32 0.0, %v1457
  %1459 = vmatprep.mubr.f32.mxu0 %v1099
  %1460 = vmatmul.mubr.f32.gmra.mxu0 %v1098
  %v1461 = vpop.f32.mrf.mxu0
  %v1462 = vadd.f32 0.0, %v1461
  %v1463 = vpop.f32.mrf.mxu0
  %v1464 = vadd.f32 0.0, %v1463
  %1465 = vmatprep.mubr.f32.mxu0 %v1101
  %1466 = vmatmul.mubr.f32.gmra.mxu0 %v1100
  %v1467 = vpop.f32.mrf.mxu0
  %v1468 = vadd.f32 0.0, %v1467
  %v1469 = vpop.f32.mrf.mxu0
  %v1470 = vadd.f32 0.0, %v1469
  %1471 = vmatprep.mubr.f32.mxu0 %v1103
  %1472 = vmatmul.mubr.f32.gmra.mxu0 %v1102
  %v1473 = vpop.f32.mrf.mxu0
  %v1474 = vadd.f32 0.0, %v1473
  %v1475 = vpop.f32.mrf.mxu0
  %v1476 = vadd.f32 0.0, %v1475
  %1477 = vmatprep.mubr.f32.mxu0 %v1105
  %1478 = vmatmul.mubr.f32.gmra.mxu0 %v1104
  %v1479 = vpop.f32.mrf.mxu0
  %v1480 = vadd.f32 0.0, %v1479
  %v1481 = vpop.f32.mrf.mxu0
  %v1482 = vadd.f32 0.0, %v1481
  %1483 = vmatprep.mubr.f32.mxu0 %v1107
  %1484 = vmatmul.mubr.f32.gmra.mxu0 %v1106
  %v1485 = vpop.f32.mrf.mxu0
  %v1486 = vadd.f32 0.0, %v1485
  %v1487 = vpop.f32.mrf.mxu0
  %v1488 = vadd.f32 0.0, %v1487
  %1489 = vmatprep.mubr.f32.mxu0 %v1109
  %1490 = vmatmul.mubr.f32.gmra.mxu0 %v1108
  %v1491 = vpop.f32.mrf.mxu0
  %v1492 = vadd.f32 0.0, %v1491
  %v1493 = vpop.f32.mrf.mxu0
  %v1494 = vadd.f32 0.0, %v1493
  %1495 = vmatprep.mubr.f32.mxu0 %v1111
  %1496 = vmatmul.mubr.f32.gmra.mxu0 %v1110
  %v1497 = vpop.f32.mrf.mxu0
  %v1498 = vadd.f32 0.0, %v1497
  %v1499 = vpop.f32.mrf.mxu0
  %v1500 = vadd.f32 0.0, %v1499
  %1501 = vmatprep.mubr.f32.mxu0 %v1113
  %1502 = vmatmul.mubr.f32.gmra.mxu0 %v1112
  %v1503 = vpop.f32.mrf.mxu0
  %v1504 = vadd.f32 0.0, %v1503
  %v1505 = vpop.f32.mrf.mxu0
  %v1506 = vadd.f32 0.0, %v1505
  %1507 = vmatprep.mubr.f32.mxu0 %v1115
  %1508 = vmatmul.mubr.f32.gmra.mxu0 %v1114
  %v1509 = vpop.f32.mrf.mxu0
  %v1510 = vadd.f32 0.0, %v1509
  %v1511 = vpop.f32.mrf.mxu0
  %v1512 = vadd.f32 0.0, %v1511
  %1513 = vmatprep.mubr.f32.mxu0 %v1117
  %1514 = vmatmul.mubr.f32.gmra.mxu0 %v1116
  %v1515 = vpop.f32.mrf.mxu0
  %v1516 = vadd.f32 0.0, %v1515
  %v1517 = vpop.f32.mrf.mxu0
  %v1518 = vadd.f32 0.0, %v1517
  %1519 = vmatprep.mubr.f32.mxu0 %v1119
  %1520 = vmatmul.mubr.f32.gmra.mxu0 %v1118
  %v1521 = vpop.f32.mrf.mxu0
  %v1522 = vadd.f32 0.0, %v1521
  %v1523 = vpop.f32.mrf.mxu0
  %v1524 = vadd.f32 0.0, %v1523
  %1525 = vmatprep.mubr.f32.mxu0 %v1121
  %1526 = vmatmul.mubr.f32.gmra.mxu0 %v1120
  %v1527 = vpop.f32.mrf.mxu0
  %v1528 = vadd.f32 0.0, %v1527
  %v1529 = vpop.f32.mrf.mxu0
  %v1530 = vadd.f32 0.0, %v1529
  %1531 = vmatprep.mubr.f32.mxu0 %v1123
  %1532 = vmatmul.mubr.f32.gmra.mxu0 %v1122
  %v1533 = vpop.f32.mrf.mxu0
  %v1534 = vadd.f32 0.0, %v1533
  %v1535 = vpop.f32.mrf.mxu0
  %v1536 = vadd.f32 0.0, %v1535
  %1537 = vmatprep.mubr.f32.mxu0 %v1125
  %1538 = vmatmul.mubr.f32.gmra.mxu0 %v1124
  %v1539 = vpop.f32.mrf.mxu0
  %v1540 = vadd.f32 0.0, %v1539
  %v1541 = vpop.f32.mrf.mxu0
  %v1542 = vadd.f32 0.0, %v1541
  %1543 = vmatprep.mubr.f32.mxu0 %v1127
  %1544 = vmatmul.mubr.f32.gmra.mxu0 %v1126
  %v1545 = vpop.f32.mrf.mxu0
  %v1546 = vadd.f32 0.0, %v1545
  %v1547 = vpop.f32.mrf.mxu0
  %v1548 = vadd.f32 0.0, %v1547
  %1549 = vmatprep.mubr.f32.mxu0 %v1129
  %1550 = vmatmul.mubr.f32.gmra.mxu0 %v1128
  %v1551 = vpop.f32.mrf.mxu0
  %v1552 = vadd.f32 0.0, %v1551
  %v1553 = vpop.f32.mrf.mxu0
  %v1554 = vadd.f32 0.0, %v1553
  %1555 = vmatprep.mubr.f32.mxu0 %v1131
  %1556 = vmatmul.mubr.f32.gmra.mxu0 %v1130
  %v1557 = vpop.f32.mrf.mxu0
  %v1558 = vadd.f32 0.0, %v1557
  %v1559 = vpop.f32.mrf.mxu0
  %v1560 = vadd.f32 0.0, %v1559
  %1561 = vmatprep.mubr.f32.mxu0 %v1133
  %1562 = vmatmul.mubr.f32.gmra.mxu0 %v1132
  %v1563 = vpop.f32.mrf.mxu0
  %v1564 = vadd.f32 0.0, %v1563
  %v1565 = vpop.f32.mrf.mxu0
  %v1566 = vadd.f32 0.0, %v1565
  %1567 = vmatprep.mubr.f32.mxu0 %v1135
  %1568 = vmatmul.mubr.f32.gmra.mxu0 %v1134
  %v1569 = vpop.f32.mrf.mxu0
  %v1570 = vadd.f32 0.0, %v1569
  %v1571 = vpop.f32.mrf.mxu0
  %v1572 = vadd.f32 0.0, %v1571
  %1573 = vmatprep.mubr.f32.mxu0 %v1137
  %1574 = vmatmul.mubr.f32.gmra.mxu0 %v1136
  %v1575 = vpop.f32.mrf.mxu0
  %v1576 = vadd.f32 0.0, %v1575
  %v1577 = vpop.f32.mrf.mxu0
  %v1578 = vadd.f32 0.0, %v1577
  %1579 = vmatprep.mubr.f32.mxu0 %v1139
  %1580 = vmatmul.mubr.f32.gmra.mxu0 %v1138
  %v1581 = vpop.f32.mrf.mxu0
  %v1582 = vadd.f32 0.0, %v1581
  %v1583 = vpop.f32.mrf.mxu0
  %v1584 = vadd.f32 0.0, %v1583
  %1585 = vmatprep.mubr.f32.mxu0 %v1141
  %1586 = vmatmul.mubr.f32.gmra.mxu0 %v1140
  %v1587 = vpop.f32.mrf.mxu0
  %v1588 = vadd.f32 0.0, %v1587
  %v1589 = vpop.f32.mrf.mxu0
  %v1590 = vadd.f32 0.0, %v1589
  %1591 = vmatprep.mubr.f32.mxu0 %v1143
  %1592 = vmatmul.mubr.f32.gmra.mxu0 %v1142
  %v1593 = vpop.f32.mrf.mxu0
  %v1594 = vadd.f32 0.0, %v1593
  %v1595 = vpop.f32.mrf.mxu0
  %v1596 = vadd.f32 0.0, %v1595
  %1597 = vmatprep.mubr.f32.mxu0 %v1145
  %1598 = vmatmul.mubr.f32.gmra.mxu0 %v1144
  %v1599 = vpop.f32.mrf.mxu0
  %v1600 = vadd.f32 0.0, %v1599
  %v1601 = vpop.f32.mrf.mxu0
  %v1602 = vadd.f32 0.0, %v1601
  %1603 = vmatprep.mubr.f32.mxu0 %v1147
  %1604 = vmatmul.mubr.f32.gmra.mxu0 %v1146
  %v1605 = vpop.f32.mrf.mxu0
  %v1606 = vadd.f32 0.0, %v1605
  %v1607 = vpop.f32.mrf.mxu0
  %v1608 = vadd.f32 0.0, %v1607
  %1609 = vmatprep.mubr.f32.mxu0 %v1149
  %1610 = vmatmul.mubr.f32.gmra.mxu0 %v1148
  %v1611 = vpop.f32.mrf.mxu0
  %v1612 = vadd.f32 0.0, %v1611
  %v1613 = vpop.f32.mrf.mxu0
  %v1614 = vadd.f32 0.0, %v1613
  %1615 = vmatprep.mubr.f32.mxu0 %v1151
  %1616 = vmatmul.mubr.f32.gmra.mxu0 %v1150
  %v1617 = vpop.f32.mrf.mxu0
  %v1618 = vadd.f32 0.0, %v1617
  %v1619 = vpop.f32.mrf.mxu0
  %v1620 = vadd.f32 0.0, %v1619
  %1621 = vmatprep.mubr.f32.mxu0 %v1153
  %1622 = vmatmul.mubr.f32.gmra.mxu0 %v1152
  %v1623 = vpop.f32.mrf.mxu0
  %v1624 = vadd.f32 0.0, %v1623
  %v1625 = vpop.f32.mrf.mxu0
  %v1626 = vadd.f32 0.0, %v1625
  %1627 = vmatprep.mubr.f32.mxu0 %v1155
  %1628 = vmatmul.mubr.f32.gmra.mxu0 %v1154
  %v1629 = vpop.f32.mrf.mxu0
  %v1630 = vadd.f32 0.0, %v1629
  %v1631 = vpop.f32.mrf.mxu0
  %v1632 = vadd.f32 0.0, %v1631
  %1633 = vmatprep.mubr.f32.mxu0 %v1157
  %1634 = vmatmul.mubr.f32.gmra.mxu0 %v1156
  %v1635 = vpop.f32.mrf.mxu0
  %v1636 = vadd.f32 0.0, %v1635
  %v1637 = vpop.f32.mrf.mxu0
  %v1638 = vadd.f32 0.0, %v1637
  %1639 = vmatprep.mubr.f32.mxu0 %v1159
  %1640 = vmatmul.mubr.f32.gmra.mxu0 %v1158
  %v1641 = vpop.f32.mrf.mxu0
  %v1642 = vadd.f32 0.0, %v1641
  %v1643 = vpop.f32.mrf.mxu0
  %v1644 = vadd.f32 0.0, %v1643
  %1645 = vmatprep.mubr.f32.mxu0 %v1161
  %1646 = vmatmul.mubr.f32.gmra.mxu0 %v1160
  %v1647 = vpop.f32.mrf.mxu0
  %v1648 = vadd.f32 0.0, %v1647
  %v1649 = vpop.f32.mrf.mxu0
  %v1650 = vadd.f32 0.0, %v1649
  %1651 = vmatprep.mubr.f32.mxu0 %v1163
  %1652 = vmatmul.mubr.f32.gmra.mxu0 %v1162
  %v1653 = vpop.f32.mrf.mxu0
  %v1654 = vadd.f32 0.0, %v1653
  %v1655 = vpop.f32.mrf.mxu0
  %v1656 = vadd.f32 0.0, %v1655
  %1657 = vmatprep.mubr.f32.mxu0 %v1165
  %1658 = vmatmul.mubr.f32.gmra.mxu0 %v1164
  %v1659 = vpop.f32.mrf.mxu0
  %v1660 = vadd.f32 0.0, %v1659
  %v1661 = vpop.f32.mrf.mxu0
  %v1662 = vadd.f32 0.0, %v1661
  %1663 = vmatprep.mubr.f32.mxu0 %v1167
  %1664 = vmatmul.mubr.f32.gmra.mxu0 %v1166
  %v1665 = vpop.f32.mrf.mxu0
  %v1666 = vadd.f32 0.0, %v1665
  %v1667 = vpop.f32.mrf.mxu0
  %v1668 = vadd.f32 0.0, %v1667
  %1669 = vmatprep.mubr.f32.mxu0 %v1169
  %1670 = vmatmul.mubr.f32.gmra.mxu0 %v1168
  %v1671 = vpop.f32.mrf.mxu0
  %v1672 = vadd.f32 0.0, %v1671
  %v1673 = vpop.f32.mrf.mxu0
  %v1674 = vadd.f32 0.0, %v1673
  %1675 = vmatprep.mubr.f32.mxu0 %v1171
  %1676 = vmatmul.mubr.f32.gmra.mxu0 %v1170
  %v1677 = vpop.f32.mrf.mxu0
  %v1678 = vadd.f32 0.0, %v1677
  %v1679 = vpop.f32.mrf.mxu0
  %v1680 = vadd.f32 0.0, %v1679
  %1681 = vmatprep.mubr.f32.mxu0 %v1173
  %1682 = vmatmul.mubr.f32.gmra.mxu0 %v1172
  %v1683 = vpop.f32.mrf.mxu0
  %v1684 = vadd.f32 0.0, %v1683
  %v1685 = vpop.f32.mrf.mxu0
  %v1686 = vadd.f32 0.0, %v1685
  %1687 = vmatprep.mubr.f32.mxu0 %v1175
  %1688 = vmatmul.mubr.f32.gmra.mxu0 %v1174
  %v1689 = vpop.f32.mrf.mxu0
  %v1690 = vadd.f32 0.0, %v1689
  %v1691 = vpop.f32.mrf.mxu0
  %v1692 = vadd.f32 0.0, %v1691
  %1693 = vmatprep.mubr.f32.mxu0 %v1177
  %1694 = vmatmul.mubr.f32.gmra.mxu0 %v1176
  %v1695 = vpop.f32.mrf.mxu0
  %v1696 = vadd.f32 0.0, %v1695
  %v1697 = vpop.f32.mrf.mxu0
  %v1698 = vadd.f32 0.0, %v1697
  %1699 = vmatprep.mubr.f32.mxu0 %v1179
  %1700 = vmatmul.mubr.f32.gmra.mxu0 %v1178
  %v1701 = vpop.f32.mrf.mxu0
  %v1702 = vadd.f32 0.0, %v1701
  %v1703 = vpop.f32.mrf.mxu0
  %v1704 = vadd.f32 0.0, %v1703
  %1705 = vmatprep.mubr.f32.mxu0 %v1181
  %1706 = vmatmul.mubr.f32.gmra.mxu0 %v1180
  %v1707 = vpop.f32.mrf.mxu0
  %v1708 = vadd.f32 0.0, %v1707
  %v1709 = vpop.f32.mrf.mxu0
  %v1710 = vadd.f32 0.0, %v1709
  %1711 = vmatprep.mubr.f32.mxu0 %v1183
  %1712 = vmatmul.mubr.f32.gmra.mxu0 %v1182
  %v1713 = vpop.f32.mrf.mxu0
  %v1714 = vadd.f32 0.0, %v1713
  %v1715 = vpop.f32.mrf.mxu0
  %v1716 = vadd.f32 0.0, %v1715
  %1717 = vmatprep.mubr.f32.mxu0 %v1185
  %1718 = vmatmul.mubr.f32.gmra.mxu0 %v1184
  %v1719 = vpop.f32.mrf.mxu0
  %v1720 = vadd.f32 0.0, %v1719
  %v1721 = vpop.f32.mrf.mxu0
  %v1722 = vadd.f32 0.0, %v1721
  %1723 = vmatprep.mubr.f32.mxu0 %v1187
  %1724 = vmatmul.mubr.f32.gmra.mxu0 %v1186
  %v1725 = vpop.f32.mrf.mxu0
  %v1726 = vadd.f32 0.0, %v1725
  %v1727 = vpop.f32.mrf.mxu0
  %v1728 = vadd.f32 0.0, %v1727
  %1729 = vmatprep.mubr.f32.mxu0 %v1189
  %1730 = vmatmul.mubr.f32.gmra.mxu0 %v1188
  %v1731 = vpop.f32.mrf.mxu0
  %v1732 = vadd.f32 0.0, %v1731
  %v1733 = vpop.f32.mrf.mxu0
  %v1734 = vadd.f32 0.0, %v1733
  %1735 = vmatprep.mubr.f32.mxu0 %v1191
  %1736 = vmatmul.mubr.f32.gmra.mxu0 %v1190
  %v1737 = vpop.f32.mrf.mxu0
  %v1738 = vadd.f32 0.0, %v1737
  %v1739 = vpop.f32.mrf.mxu0
  %v1740 = vadd.f32 0.0, %v1739
  %1741 = vmatprep.mubr.f32.mxu0 %v1193
  %1742 = vmatmul.mubr.f32.gmra.mxu0 %v1192
  %v1743 = vpop.f32.mrf.mxu0
  %v1744 = vadd.f32 0.0, %v1743
  %v1745 = vpop.f32.mrf.mxu0
  %v1746 = vadd.f32 0.0, %v1745
  %1747 = vmatprep.mubr.f32.mxu0 %v1195
  %1748 = vmatmul.mubr.f32.gmra.mxu0 %v1194
  %v1749 = vpop.f32.mrf.mxu0
  %v1750 = vadd.f32 0.0, %v1749
  %v1751 = vpop.f32.mrf.mxu0
  %v1752 = vadd.f32 0.0, %v1751
  %1753 = vmatprep.mubr.f32.mxu0 %v1197
  %1754 = vmatmul.mubr.f32.gmra.mxu0 %v1196
  %v1755 = vpop.f32.mrf.mxu0
  %v1756 = vadd.f32 0.0, %v1755
  %v1757 = vpop.f32.mrf.mxu0
  %v1758 = vadd.f32 0.0, %v1757
  %1759 = vmatprep.mubr.f32.mxu0 %v1199
  %1760 = vmatmul.mubr.f32.gmra.mxu0 %v1198
  %v1761 = vpop.f32.mrf.mxu0
  %v1762 = vadd.f32 0.0, %v1761
  %v1763 = vpop.f32.mrf.mxu0
  %v1764 = vadd.f32 0.0, %v1763
  %1765 = vmatprep.mubr.f32.mxu0 %v1201
  %1766 = vmatmul.mubr.f32.gmra.mxu0 %v1200
  %v1767 = vpop.f32.mrf.mxu0
  %v1768 = vadd.f32 0.0, %v1767
  %v1769 = vpop.f32.mrf.mxu0
  %v1770 = vadd.f32 0.0, %v1769
  %1771 = vmatprep.mubr.f32.mxu0 %v1203
  %1772 = vmatmul.mubr.f32.gmra.mxu0 %v1202
  %v1773 = vpop.f32.mrf.mxu0
  %v1774 = vadd.f32 0.0, %v1773
  %v1775 = vpop.f32.mrf.mxu0
  %v1776 = vadd.f32 0.0, %v1775
  %1777 = vmatprep.mubr.f32.mxu0 %v1205
  %1778 = vmatmul.mubr.f32.gmra.mxu0 %v1204
  %v1779 = vpop.f32.mrf.mxu0
  %v1780 = vadd.f32 0.0, %v1779
  %v1781 = vpop.f32.mrf.mxu0
  %v1782 = vadd.f32 0.0, %v1781
  %1783 = vmatprep.mubr.f32.mxu0 %v1207
  %1784 = vmatmul.mubr.f32.gmra.mxu0 %v1206
  %v1785 = vpop.f32.mrf.mxu0
  %v1786 = vadd.f32 0.0, %v1785
  %v1787 = vpop.f32.mrf.mxu0
  %v1788 = vadd.f32 0.0, %v1787
  %1789 = vmatprep.mubr.f32.mxu0 %v1209
  %1790 = vmatmul.mubr.f32.gmra.mxu0 %v1208
  %v1791 = vpop.f32.mrf.mxu0
  %v1792 = vadd.f32 0.0, %v1791
  %v1793 = vpop.f32.mrf.mxu0
  %v1794 = vadd.f32 0.0, %v1793
  %1795 = vmatprep.mubr.f32.mxu0 %v1211
  %1796 = vmatmul.mubr.f32.gmra.mxu0 %v1210
  %v1797 = vpop.f32.mrf.mxu0
  %v1798 = vadd.f32 0.0, %v1797
  %v1799 = vpop.f32.mrf.mxu0
  %v1800 = vadd.f32 0.0, %v1799
  %1801 = vmatprep.mubr.f32.mxu0 %v1213
  %1802 = vmatmul.mubr.f32.gmra.mxu0 %v1212
  %v1803 = vpop.f32.mrf.mxu0
  %v1804 = vadd.f32 0.0, %v1803
  %v1805 = vpop.f32.mrf.mxu0
  %v1806 = vadd.f32 0.0, %v1805
  %1807 = vmatprep.mubr.f32.mxu0 %v1279
  %1808 = vmatmul.mubr.f32.gmra.mxu0 %v1278
  %v1809 = vpop.f32.mrf.mxu0
  %v1810 = vadd.f32 0.0, %v1809
  %v1811 = vpop.f32.mrf.mxu0
  %v1812 = vadd.f32 0.0, %v1811
  %1813 = vmatprep.mubr.f32.mxu0 %v1281
  %1814 = vmatmul.mubr.f32.gmra.mxu0 %v1280
  %v1815 = vpop.f32.mrf.mxu0
  %v1816 = vadd.f32 0.0, %v1815
  %v1817 = vpop.f32.mrf.mxu0
  %v1818 = vadd.f32 0.0, %v1817
  %1819 = vdwg.mxu0
  %1820 = vmatprep.subr.mxu0 %v1245
  %1821 = vmatpush1.msra.mxu0 %v1244
  %1822 = vmatprep.subr.mxu0 %v1243
  %1823 = vmatpush1.msra.mxu0 %v1242
  %1824 = vmatprep.subr.mxu0 %v1241
  %1825 = vmatpush1.msra.mxu0 %v1240
  %1826 = vmatprep.subr.mxu0 %v1239
  %1827 = vmatpush1.msra.mxu0 %v1238
  %1828 = vmatprep.subr.mxu0 %v1237
  %1829 = vmatpush1.msra.mxu0 %v1236
  %1830 = vmatprep.subr.mxu0 %v1235
  %1831 = vmatpush1.msra.mxu0 %v1234
  %1832 = vmatprep.subr.mxu0 %v1233
  %1833 = vmatpush1.msra.mxu0 %v1232
  %1834 = vmatprep.subr.mxu0 %v1231
  %1835 = vmatpush1.msra.mxu0 %v1230
  %1836 = vmatprep.subr.mxu0 %v1229
  %1837 = vmatpush1.msra.mxu0 %v1228
  %1838 = vmatprep.subr.mxu0 %v1227
  %1839 = vmatpush1.msra.mxu0 %v1226
  %1840 = vmatprep.subr.mxu0 %v1225
  %1841 = vmatpush1.msra.mxu0 %v1224
  %1842 = vmatprep.subr.mxu0 %v1223
  %1843 = vmatpush1.msra.mxu0 %v1222
  %1844 = vmatprep.subr.mxu0 %v1221
  %1845 = vmatpush1.msra.mxu0 %v1220
  %1846 = vmatprep.subr.mxu0 %v1219
  %1847 = vmatpush1.msra.mxu0 %v1218
  %1848 = vmatprep.subr.mxu0 %v1217
  %1849 = vmatpush1.msra.mxu0 %v1216
  %1850 = vmatprep.subr.mxu0 %v1215
  %1851 = vmatpush1.msra.mxu0 %v1214
  %1852 = vmatprep.subr.mxu0 %v1277
  %1853 = vmatpush2.msra.mxu0 %v1276
  %1854 = vmatprep.subr.mxu0 %v1275
  %1855 = vmatpush2.msra.mxu0 %v1274
  %1856 = vmatprep.subr.mxu0 %v1273
  %1857 = vmatpush2.msra.mxu0 %v1272
  %1858 = vmatprep.subr.mxu0 %v1271
  %1859 = vmatpush2.msra.mxu0 %v1270
  %1860 = vmatprep.subr.mxu0 %v1269
  %1861 = vmatpush2.msra.mxu0 %v1268
  %1862 = vmatprep.subr.mxu0 %v1267
  %1863 = vmatpush2.msra.mxu0 %v1266
  %1864 = vmatprep.subr.mxu0 %v1265
  %1865 = vmatpush2.msra.mxu0 %v1264
  %1866 = vmatprep.subr.mxu0 %v1263
  %1867 = vmatpush2.msra.mxu0 %v1262
  %1868 = vmatprep.subr.mxu0 %v1261
  %1869 = vmatpush2.msra.mxu0 %v1260
  %1870 = vmatprep.subr.mxu0 %v1259
  %1871 = vmatpush2.msra.mxu0 %v1258
  %1872 = vmatprep.subr.mxu0 %v1257
  %1873 = vmatpush2.msra.mxu0 %v1256
  %1874 = vmatprep.subr.mxu0 %v1255
  %1875 = vmatpush2.msra.mxu0 %v1254
  %1876 = vmatprep.subr.mxu0 %v1253
  %1877 = vmatpush2.msra.mxu0 %v1252
  %1878 = vmatprep.subr.mxu0 %v1251
  %1879 = vmatpush2.msra.mxu0 %v1250
  %1880 = vmatprep.subr.mxu0 %v1249
  %1881 = vmatpush2.msra.mxu0 %v1248
  %1882 = vmatprep.subr.mxu0 %v1247
  %1883 = vmatpush2.msra.mxu0 %v1246
  %1884 = vmatprep.mubr.f32.mxu0 %v1079
  %1885 = vmatmul.mubr.f32.gmra.mxu0 %v1078
  %v1886 = vpop.f32.mrf.mxu0
  %v1887 = vadd.f32 %v1414, %v1886
  %v1888 = vpop.f32.mrf.mxu0
  %v1889 = vadd.f32 %v1416, %v1888
  %1890 = vmatprep.mubr.f32.mxu0 %v1081
  %1891 = vmatmul.mubr.f32.gmra.mxu0 %v1080
  %v1892 = vpop.f32.mrf.mxu0
  %v1893 = vadd.f32 %v1420, %v1892
  %v1894 = vpop.f32.mrf.mxu0
  %v1895 = vadd.f32 %v1422, %v1894
  %1896 = vmatprep.mubr.f32.mxu0 %v1083
  %1897 = vmatmul.mubr.f32.gmra.mxu0 %v1082
  %v1898 = vpop.f32.mrf.mxu0
  %v1899 = vadd.f32 %v1426, %v1898
  %v1900 = vpop.f32.mrf.mxu0
  %v1901 = vadd.f32 %v1428, %v1900
  %1902 = vmatprep.mubr.f32.mxu0 %v1085
  %1903 = vmatmul.mubr.f32.gmra.mxu0 %v1084
  %v1904 = vpop.f32.mrf.mxu0
  %v1905 = vadd.f32 %v1432, %v1904
  %v1906 = vpop.f32.mrf.mxu0
  %v1907 = vadd.f32 %v1434, %v1906
  %1908 = vmatprep.mubr.f32.mxu0 %v1087
  %1909 = vmatmul.mubr.f32.gmra.mxu0 %v1086
  %v1910 = vpop.f32.mrf.mxu0
  %v1911 = vadd.f32 %v1438, %v1910
  %v1912 = vpop.f32.mrf.mxu0
  %v1913 = vadd.f32 %v1440, %v1912
  %1914 = vmatprep.mubr.f32.mxu0 %v1089
  %1915 = vmatmul.mubr.f32.gmra.mxu0 %v1088
  %v1916 = vpop.f32.mrf.mxu0
  %v1917 = vadd.f32 %v1444, %v1916
  %v1918 = vpop.f32.mrf.mxu0
  %v1919 = vadd.f32 %v1446, %v1918
  %1920 = vmatprep.mubr.f32.mxu0 %v1091
  %1921 = vmatmul.mubr.f32.gmra.mxu0 %v1090
  %v1922 = vpop.f32.mrf.mxu0
  %v1923 = vadd.f32 %v1450, %v1922
  %v1924 = vpop.f32.mrf.mxu0
  %v1925 = vadd.f32 %v1452, %v1924
  %1926 = vmatprep.mubr.f32.mxu0 %v1093
  %1927 = vmatmul.mubr.f32.gmra.mxu0 %v1092
  %v1928 = vpop.f32.mrf.mxu0
  %v1929 = vadd.f32 %v1456, %v1928
  %v1930 = vpop.f32.mrf.mxu0
  %v1931 = vadd.f32 %v1458, %v1930
  %1932 = vmatprep.mubr.f32.mxu0 %v1095
  %1933 = vmatmul.mubr.f32.gmra.mxu0 %v1094
  %v1934 = vpop.f32.mrf.mxu0
  %v1935 = vadd.f32 %v1462, %v1934
  %v1936 = vpop.f32.mrf.mxu0
  %v1937 = vadd.f32 %v1464, %v1936
  %1938 = vmatprep.mubr.f32.mxu0 %v1097
  %1939 = vmatmul.mubr.f32.gmra.mxu0 %v1096
  %v1940 = vpop.f32.mrf.mxu0
  %v1941 = vadd.f32 %v1468, %v1940
  %v1942 = vpop.f32.mrf.mxu0
  %v1943 = vadd.f32 %v1470, %v1942
  %1944 = vmatprep.mubr.f32.mxu0 %v1099
  %1945 = vmatmul.mubr.f32.gmra.mxu0 %v1098
  %v1946 = vpop.f32.mrf.mxu0
  %v1947 = vadd.f32 %v1474, %v1946
  %v1948 = vpop.f32.mrf.mxu0
  %v1949 = vadd.f32 %v1476, %v1948
  %1950 = vmatprep.mubr.f32.mxu0 %v1101
  %1951 = vmatmul.mubr.f32.gmra.mxu0 %v1100
  %v1952 = vpop.f32.mrf.mxu0
  %v1953 = vadd.f32 %v1480, %v1952
  %v1954 = vpop.f32.mrf.mxu0
  %v1955 = vadd.f32 %v1482, %v1954
  %1956 = vmatprep.mubr.f32.mxu0 %v1103
  %1957 = vmatmul.mubr.f32.gmra.mxu0 %v1102
  %v1958 = vpop.f32.mrf.mxu0
  %v1959 = vadd.f32 %v1486, %v1958
  %v1960 = vpop.f32.mrf.mxu0
  %v1961 = vadd.f32 %v1488, %v1960
  %1962 = vmatprep.mubr.f32.mxu0 %v1105
  %1963 = vmatmul.mubr.f32.gmra.mxu0 %v1104
  %v1964 = vpop.f32.mrf.mxu0
  %v1965 = vadd.f32 %v1492, %v1964
  %v1966 = vpop.f32.mrf.mxu0
  %v1967 = vadd.f32 %v1494, %v1966
  %1968 = vmatprep.mubr.f32.mxu0 %v1107
  %1969 = vmatmul.mubr.f32.gmra.mxu0 %v1106
  %v1970 = vpop.f32.mrf.mxu0
  %v1971 = vadd.f32 %v1498, %v1970
  %v1972 = vpop.f32.mrf.mxu0
  %v1973 = vadd.f32 %v1500, %v1972
  %1974 = vmatprep.mubr.f32.mxu0 %v1109
  %1975 = vmatmul.mubr.f32.gmra.mxu0 %v1108
  %v1976 = vpop.f32.mrf.mxu0
  %v1977 = vadd.f32 %v1504, %v1976
  %v1978 = vpop.f32.mrf.mxu0
  %v1979 = vadd.f32 %v1506, %v1978
  %1980 = vmatprep.mubr.f32.mxu0 %v1111
  %1981 = vmatmul.mubr.f32.gmra.mxu0 %v1110
  %v1982 = vpop.f32.mrf.mxu0
  %v1983 = vadd.f32 %v1510, %v1982
  %v1984 = vpop.f32.mrf.mxu0
  %v1985 = vadd.f32 %v1512, %v1984
  %1986 = vmatprep.mubr.f32.mxu0 %v1113
  %1987 = vmatmul.mubr.f32.gmra.mxu0 %v1112
  %v1988 = vpop.f32.mrf.mxu0
  %v1989 = vadd.f32 %v1516, %v1988
  %v1990 = vpop.f32.mrf.mxu0
  %v1991 = vadd.f32 %v1518, %v1990
  %1992 = vmatprep.mubr.f32.mxu0 %v1115
  %1993 = vmatmul.mubr.f32.gmra.mxu0 %v1114
  %v1994 = vpop.f32.mrf.mxu0
  %v1995 = vadd.f32 %v1522, %v1994
  %v1996 = vpop.f32.mrf.mxu0
  %v1997 = vadd.f32 %v1524, %v1996
  %1998 = vmatprep.mubr.f32.mxu0 %v1117
  %1999 = vmatmul.mubr.f32.gmra.mxu0 %v1116
  %v2000 = vpop.f32.mrf.mxu0
  %v2001 = vadd.f32 %v1528, %v2000
  %v2002 = vpop.f32.mrf.mxu0
  %v2003 = vadd.f32 %v1530, %v2002
  %2004 = vmatprep.mubr.f32.mxu0 %v1119
  %2005 = vmatmul.mubr.f32.gmra.mxu0 %v1118
  %v2006 = vpop.f32.mrf.mxu0
  %v2007 = vadd.f32 %v1534, %v2006
  %v2008 = vpop.f32.mrf.mxu0
  %v2009 = vadd.f32 %v1536, %v2008
  %2010 = vmatprep.mubr.f32.mxu0 %v1121
  %2011 = vmatmul.mubr.f32.gmra.mxu0 %v1120
  %v2012 = vpop.f32.mrf.mxu0
  %v2013 = vadd.f32 %v1540, %v2012
  %v2014 = vpop.f32.mrf.mxu0
  %v2015 = vadd.f32 %v1542, %v2014
  %2016 = vmatprep.mubr.f32.mxu0 %v1123
  %2017 = vmatmul.mubr.f32.gmra.mxu0 %v1122
  %v2018 = vpop.f32.mrf.mxu0
  %v2019 = vadd.f32 %v1546, %v2018
  %v2020 = vpop.f32.mrf.mxu0
  %v2021 = vadd.f32 %v1548, %v2020
  %2022 = vmatprep.mubr.f32.mxu0 %v1125
  %2023 = vmatmul.mubr.f32.gmra.mxu0 %v1124
  %v2024 = vpop.f32.mrf.mxu0
  %v2025 = vadd.f32 %v1552, %v2024
  %v2026 = vpop.f32.mrf.mxu0
  %v2027 = vadd.f32 %v1554, %v2026
  %2028 = vmatprep.mubr.f32.mxu0 %v1127
  %2029 = vmatmul.mubr.f32.gmra.mxu0 %v1126
  %v2030 = vpop.f32.mrf.mxu0
  %v2031 = vadd.f32 %v1558, %v2030
  %v2032 = vpop.f32.mrf.mxu0
  %v2033 = vadd.f32 %v1560, %v2032
  %2034 = vmatprep.mubr.f32.mxu0 %v1129
  %2035 = vmatmul.mubr.f32.gmra.mxu0 %v1128
  %v2036 = vpop.f32.mrf.mxu0
  %v2037 = vadd.f32 %v1564, %v2036
  %v2038 = vpop.f32.mrf.mxu0
  %v2039 = vadd.f32 %v1566, %v2038
  %2040 = vmatprep.mubr.f32.mxu0 %v1131
  %2041 = vmatmul.mubr.f32.gmra.mxu0 %v1130
  %v2042 = vpop.f32.mrf.mxu0
  %v2043 = vadd.f32 %v1570, %v2042
  %v2044 = vpop.f32.mrf.mxu0
  %v2045 = vadd.f32 %v1572, %v2044
  %2046 = vmatprep.mubr.f32.mxu0 %v1133
  %2047 = vmatmul.mubr.f32.gmra.mxu0 %v1132
  %v2048 = vpop.f32.mrf.mxu0
  %v2049 = vadd.f32 %v1576, %v2048
  %v2050 = vpop.f32.mrf.mxu0
  %v2051 = vadd.f32 %v1578, %v2050
  %2052 = vmatprep.mubr.f32.mxu0 %v1135
  %2053 = vmatmul.mubr.f32.gmra.mxu0 %v1134
  %v2054 = vpop.f32.mrf.mxu0
  %v2055 = vadd.f32 %v1582, %v2054
  %v2056 = vpop.f32.mrf.mxu0
  %v2057 = vadd.f32 %v1584, %v2056
  %2058 = vmatprep.mubr.f32.mxu0 %v1137
  %2059 = vmatmul.mubr.f32.gmra.mxu0 %v1136
  %v2060 = vpop.f32.mrf.mxu0
  %v2061 = vadd.f32 %v1588, %v2060
  %v2062 = vpop.f32.mrf.mxu0
  %v2063 = vadd.f32 %v1590, %v2062
  %2064 = vmatprep.mubr.f32.mxu0 %v1139
  %2065 = vmatmul.mubr.f32.gmra.mxu0 %v1138
  %v2066 = vpop.f32.mrf.mxu0
  %v2067 = vadd.f32 %v1594, %v2066
  %v2068 = vpop.f32.mrf.mxu0
  %v2069 = vadd.f32 %v1596, %v2068
  %2070 = vmatprep.mubr.f32.mxu0 %v1141
  %2071 = vmatmul.mubr.f32.gmra.mxu0 %v1140
  %v2072 = vpop.f32.mrf.mxu0
  %v2073 = vadd.f32 %v1600, %v2072
  %v2074 = vpop.f32.mrf.mxu0
  %v2075 = vadd.f32 %v1602, %v2074
  %2076 = vmatprep.mubr.f32.mxu0 %v1143
  %2077 = vmatmul.mubr.f32.gmra.mxu0 %v1142
  %v2078 = vpop.f32.mrf.mxu0
  %v2079 = vadd.f32 %v1606, %v2078
  %v2080 = vpop.f32.mrf.mxu0
  %v2081 = vadd.f32 %v1608, %v2080
  %2082 = vmatprep.mubr.f32.mxu0 %v1145
  %2083 = vmatmul.mubr.f32.gmra.mxu0 %v1144
  %v2084 = vpop.f32.mrf.mxu0
  %v2085 = vadd.f32 %v1612, %v2084
  %v2086 = vpop.f32.mrf.mxu0
  %v2087 = vadd.f32 %v1614, %v2086
  %2088 = vmatprep.mubr.f32.mxu0 %v1147
  %2089 = vmatmul.mubr.f32.gmra.mxu0 %v1146
  %v2090 = vpop.f32.mrf.mxu0
  %v2091 = vadd.f32 %v1618, %v2090
  %v2092 = vpop.f32.mrf.mxu0
  %v2093 = vadd.f32 %v1620, %v2092
  %2094 = vmatprep.mubr.f32.mxu0 %v1149
  %2095 = vmatmul.mubr.f32.gmra.mxu0 %v1148
  %v2096 = vpop.f32.mrf.mxu0
  %v2097 = vadd.f32 %v1624, %v2096
  %v2098 = vpop.f32.mrf.mxu0
  %v2099 = vadd.f32 %v1626, %v2098
  %2100 = vmatprep.mubr.f32.mxu0 %v1151
  %2101 = vmatmul.mubr.f32.gmra.mxu0 %v1150
  %v2102 = vpop.f32.mrf.mxu0
  %v2103 = vadd.f32 %v1630, %v2102
  %v2104 = vpop.f32.mrf.mxu0
  %v2105 = vadd.f32 %v1632, %v2104
  %2106 = vmatprep.mubr.f32.mxu0 %v1153
  %2107 = vmatmul.mubr.f32.gmra.mxu0 %v1152
  %v2108 = vpop.f32.mrf.mxu0
  %v2109 = vadd.f32 %v1636, %v2108
  %v2110 = vpop.f32.mrf.mxu0
  %v2111 = vadd.f32 %v1638, %v2110
  %2112 = vmatprep.mubr.f32.mxu0 %v1155
  %2113 = vmatmul.mubr.f32.gmra.mxu0 %v1154
  %v2114 = vpop.f32.mrf.mxu0
  %v2115 = vadd.f32 %v1642, %v2114
  %v2116 = vpop.f32.mrf.mxu0
  %v2117 = vadd.f32 %v1644, %v2116
  %2118 = vmatprep.mubr.f32.mxu0 %v1157
  %2119 = vmatmul.mubr.f32.gmra.mxu0 %v1156
  %v2120 = vpop.f32.mrf.mxu0
  %v2121 = vadd.f32 %v1648, %v2120
  %v2122 = vpop.f32.mrf.mxu0
  %v2123 = vadd.f32 %v1650, %v2122
  %2124 = vmatprep.mubr.f32.mxu0 %v1159
  %2125 = vmatmul.mubr.f32.gmra.mxu0 %v1158
  %v2126 = vpop.f32.mrf.mxu0
  %v2127 = vadd.f32 %v1654, %v2126
  %v2128 = vpop.f32.mrf.mxu0
  %v2129 = vadd.f32 %v1656, %v2128
  %2130 = vmatprep.mubr.f32.mxu0 %v1161
  %2131 = vmatmul.mubr.f32.gmra.mxu0 %v1160
  %v2132 = vpop.f32.mrf.mxu0
  %v2133 = vadd.f32 %v1660, %v2132
  %v2134 = vpop.f32.mrf.mxu0
  %v2135 = vadd.f32 %v1662, %v2134
  %2136 = vmatprep.mubr.f32.mxu0 %v1163
  %2137 = vmatmul.mubr.f32.gmra.mxu0 %v1162
  %v2138 = vpop.f32.mrf.mxu0
  %v2139 = vadd.f32 %v1666, %v2138
  %v2140 = vpop.f32.mrf.mxu0
  %v2141 = vadd.f32 %v1668, %v2140
  %2142 = vmatprep.mubr.f32.mxu0 %v1165
  %2143 = vmatmul.mubr.f32.gmra.mxu0 %v1164
  %v2144 = vpop.f32.mrf.mxu0
  %v2145 = vadd.f32 %v1672, %v2144
  %v2146 = vpop.f32.mrf.mxu0
  %v2147 = vadd.f32 %v1674, %v2146
  %2148 = vmatprep.mubr.f32.mxu0 %v1167
  %2149 = vmatmul.mubr.f32.gmra.mxu0 %v1166
  %v2150 = vpop.f32.mrf.mxu0
  %v2151 = vadd.f32 %v1678, %v2150
  %v2152 = vpop.f32.mrf.mxu0
  %v2153 = vadd.f32 %v1680, %v2152
  %2154 = vmatprep.mubr.f32.mxu0 %v1169
  %2155 = vmatmul.mubr.f32.gmra.mxu0 %v1168
  %v2156 = vpop.f32.mrf.mxu0
  %v2157 = vadd.f32 %v1684, %v2156
  %v2158 = vpop.f32.mrf.mxu0
  %v2159 = vadd.f32 %v1686, %v2158
  %2160 = vmatprep.mubr.f32.mxu0 %v1171
  %2161 = vmatmul.mubr.f32.gmra.mxu0 %v1170
  %v2162 = vpop.f32.mrf.mxu0
  %v2163 = vadd.f32 %v1690, %v2162
  %v2164 = vpop.f32.mrf.mxu0
  %v2165 = vadd.f32 %v1692, %v2164
  %2166 = vmatprep.mubr.f32.mxu0 %v1173
  %2167 = vmatmul.mubr.f32.gmra.mxu0 %v1172
  %v2168 = vpop.f32.mrf.mxu0
  %v2169 = vadd.f32 %v1696, %v2168
  %v2170 = vpop.f32.mrf.mxu0
  %v2171 = vadd.f32 %v1698, %v2170
  %2172 = vmatprep.mubr.f32.mxu0 %v1175
  %2173 = vmatmul.mubr.f32.gmra.mxu0 %v1174
  %v2174 = vpop.f32.mrf.mxu0
  %v2175 = vadd.f32 %v1702, %v2174
  %v2176 = vpop.f32.mrf.mxu0
  %v2177 = vadd.f32 %v1704, %v2176
  %2178 = vmatprep.mubr.f32.mxu0 %v1177
  %2179 = vmatmul.mubr.f32.gmra.mxu0 %v1176
  %v2180 = vpop.f32.mrf.mxu0
  %v2181 = vadd.f32 %v1708, %v2180
  %v2182 = vpop.f32.mrf.mxu0
  %v2183 = vadd.f32 %v1710, %v2182
  %2184 = vmatprep.mubr.f32.mxu0 %v1179
  %2185 = vmatmul.mubr.f32.gmra.mxu0 %v1178
  %v2186 = vpop.f32.mrf.mxu0
  %v2187 = vadd.f32 %v1714, %v2186
  %v2188 = vpop.f32.mrf.mxu0
  %v2189 = vadd.f32 %v1716, %v2188
  %2190 = vmatprep.mubr.f32.mxu0 %v1181
  %2191 = vmatmul.mubr.f32.gmra.mxu0 %v1180
  %v2192 = vpop.f32.mrf.mxu0
  %v2193 = vadd.f32 %v1720, %v2192
  %v2194 = vpop.f32.mrf.mxu0
  %v2195 = vadd.f32 %v1722, %v2194
  %2196 = vmatprep.mubr.f32.mxu0 %v1183
  %2197 = vmatmul.mubr.f32.gmra.mxu0 %v1182
  %v2198 = vpop.f32.mrf.mxu0
  %v2199 = vadd.f32 %v1726, %v2198
  %v2200 = vpop.f32.mrf.mxu0
  %v2201 = vadd.f32 %v1728, %v2200
  %2202 = vmatprep.mubr.f32.mxu0 %v1185
  %2203 = vmatmul.mubr.f32.gmra.mxu0 %v1184
  %v2204 = vpop.f32.mrf.mxu0
  %v2205 = vadd.f32 %v1732, %v2204
  %v2206 = vpop.f32.mrf.mxu0
  %v2207 = vadd.f32 %v1734, %v2206
  %2208 = vmatprep.mubr.f32.mxu0 %v1187
  %2209 = vmatmul.mubr.f32.gmra.mxu0 %v1186
  %v2210 = vpop.f32.mrf.mxu0
  %v2211 = vadd.f32 %v1738, %v2210
  %v2212 = vpop.f32.mrf.mxu0
  %v2213 = vadd.f32 %v1740, %v2212
  %2214 = vmatprep.mubr.f32.mxu0 %v1189
  %2215 = vmatmul.mubr.f32.gmra.mxu0 %v1188
  %v2216 = vpop.f32.mrf.mxu0
  %v2217 = vadd.f32 %v1744, %v2216
  %v2218 = vpop.f32.mrf.mxu0
  %v2219 = vadd.f32 %v1746, %v2218
  %2220 = vmatprep.mubr.f32.mxu0 %v1191
  %2221 = vmatmul.mubr.f32.gmra.mxu0 %v1190
  %v2222 = vpop.f32.mrf.mxu0
  %v2223 = vadd.f32 %v1750, %v2222
  %v2224 = vpop.f32.mrf.mxu0
  %v2225 = vadd.f32 %v1752, %v2224
  %2226 = vmatprep.mubr.f32.mxu0 %v1193
  %2227 = vmatmul.mubr.f32.gmra.mxu0 %v1192
  %v2228 = vpop.f32.mrf.mxu0
  %v2229 = vadd.f32 %v1756, %v2228
  %v2230 = vpop.f32.mrf.mxu0
  %v2231 = vadd.f32 %v1758, %v2230
  %2232 = vmatprep.mubr.f32.mxu0 %v1195
  %2233 = vmatmul.mubr.f32.gmra.mxu0 %v1194
  %v2234 = vpop.f32.mrf.mxu0
  %v2235 = vadd.f32 %v1762, %v2234
  %v2236 = vpop.f32.mrf.mxu0
  %v2237 = vadd.f32 %v1764, %v2236
  %2238 = vmatprep.mubr.f32.mxu0 %v1197
  %2239 = vmatmul.mubr.f32.gmra.mxu0 %v1196
  %v2240 = vpop.f32.mrf.mxu0
  %v2241 = vadd.f32 %v1768, %v2240
  %v2242 = vpop.f32.mrf.mxu0
  %v2243 = vadd.f32 %v1770, %v2242
  %2244 = vmatprep.mubr.f32.mxu0 %v1199
  %2245 = vmatmul.mubr.f32.gmra.mxu0 %v1198
  %v2246 = vpop.f32.mrf.mxu0
  %v2247 = vadd.f32 %v1774, %v2246
  %v2248 = vpop.f32.mrf.mxu0
  %v2249 = vadd.f32 %v1776, %v2248
  %2250 = vmatprep.mubr.f32.mxu0 %v1201
  %2251 = vmatmul.mubr.f32.gmra.mxu0 %v1200
  %v2252 = vpop.f32.mrf.mxu0
  %v2253 = vadd.f32 %v1780, %v2252
  %v2254 = vpop.f32.mrf.mxu0
  %v2255 = vadd.f32 %v1782, %v2254
  %2256 = vmatprep.mubr.f32.mxu0 %v1203
  %2257 = vmatmul.mubr.f32.gmra.mxu0 %v1202
  %v2258 = vpop.f32.mrf.mxu0
  %v2259 = vadd.f32 %v1786, %v2258
  %v2260 = vpop.f32.mrf.mxu0
  %v2261 = vadd.f32 %v1788, %v2260
  %2262 = vmatprep.mubr.f32.mxu0 %v1205
  %2263 = vmatmul.mubr.f32.gmra.mxu0 %v1204
  %v2264 = vpop.f32.mrf.mxu0
  %v2265 = vadd.f32 %v1792, %v2264
  %v2266 = vpop.f32.mrf.mxu0
  %v2267 = vadd.f32 %v1794, %v2266
  %2268 = vmatprep.mubr.f32.mxu0 %v1207
  %2269 = vmatmul.mubr.f32.gmra.mxu0 %v1206
  %v2270 = vpop.f32.mrf.mxu0
  %v2271 = vadd.f32 %v1798, %v2270
  %v2272 = vpop.f32.mrf.mxu0
  %v2273 = vadd.f32 %v1800, %v2272
  %2274 = vmatprep.mubr.f32.mxu0 %v1209
  %2275 = vmatmul.mubr.f32.gmra.mxu0 %v1208
  %v2276 = vpop.f32.mrf.mxu0
  %v2277 = vadd.f32 %v1804, %v2276
  %v2278 = vpop.f32.mrf.mxu0
  %v2279 = vadd.f32 %v1806, %v2278
  %2280 = vmatprep.mubr.f32.mxu0 %v1211
  %2281 = vmatmul.mubr.f32.gmra.mxu0 %v1210
  %v2282 = vpop.f32.mrf.mxu0
  %v2283 = vadd.f32 %v1810, %v2282
  %v2284 = vpop.f32.mrf.mxu0
  %v2285 = vadd.f32 %v1812, %v2284
  %2286 = vmatprep.mubr.f32.mxu0 %v1213
  %2287 = vmatmul.mubr.f32.gmra.mxu0 %v1212
  %v2288 = vpop.f32.mrf.mxu0
  %v2289 = vadd.f32 %v1816, %v2288
  %v2290 = vpop.f32.mrf.mxu0
  %v2291 = vadd.f32 %v1818, %v2290
  %2292 = vdwg.mxu0
  %v2293 = vld [vmem:[#allocation2 + $0x40] sm:$0xff]
  %v2294 = vld [vmem:[#allocation2 + $0x48] sm:$0xff]
  %v2295 = vld [vmem:[#allocation2 + $0x50] sm:$0xff]
  %v2296 = vld [vmem:[#allocation2 + $0x58] sm:$0xff]
  %v2297 = vld [vmem:[#allocation2 + $0x60] sm:$0xff]
  %v2298 = vld [vmem:[#allocation2 + $0x68] sm:$0xff]
  %v2299 = vld [vmem:[#allocation2 + $0x70] sm:$0xff]
  %v2300 = vld [vmem:[#allocation2 + $0x78] sm:$0xff]
  %v2301 = vld [vmem:[#allocation2 + $0x80] sm:$0xff]
  %v2302 = vld [vmem:[#allocation2 + $0x88] sm:$0xff]
  %v2303 = vld [vmem:[#allocation2 + $0x90] sm:$0xff]
  %v2304 = vld [vmem:[#allocation2 + $0x98] sm:$0xff]
  %v2305 = vld [vmem:[#allocation2 + $0xa0] sm:$0xff]
  %v2306 = vld [vmem:[#allocation2 + $0xa8] sm:$0xff]
  %v2307 = vld [vmem:[#allocation2 + $0xb0] sm:$0xff]
  %v2308 = vld [vmem:[#allocation2 + $0xb8] sm:$0xff]
  %v2309 = vld [vmem:[#allocation2 + $0xc0] sm:$0xff]
  %v2310 = vld [vmem:[#allocation2 + $0xc8] sm:$0xff]
  %v2311 = vld [vmem:[#allocation2 + $0xd0] sm:$0xff]
  %v2312 = vld [vmem:[#allocation2 + $0xd8] sm:$0xff]
  %v2313 = vld [vmem:[#allocation2 + $0xe0] sm:$0xff]
  %v2314 = vld [vmem:[#allocation2 + $0xe8] sm:$0xff]
  %v2315 = vld [vmem:[#allocation2 + $0xf0] sm:$0xff]
  %v2316 = vld [vmem:[#allocation2 + $0xf8] sm:$0xff]
  %v2317 = vld [vmem:[#allocation2 + $0x100] sm:$0xff]
  %v2318 = vld [vmem:[#allocation2 + $0x108] sm:$0xff]
  %v2319 = vld [vmem:[#allocation2 + $0x110] sm:$0xff]
  %v2320 = vld [vmem:[#allocation2 + $0x118] sm:$0xff]
  %v2321 = vld [vmem:[#allocation2 + $0x120] sm:$0xff]
  %v2322 = vld [vmem:[#allocation2 + $0x128] sm:$0xff]
  %v2323 = vld [vmem:[#allocation2 + $0x130] sm:$0xff]
  %v2324 = vld [vmem:[#allocation2 + $0x138] sm:$0xff]
  %v2325 = vld [vmem:[#allocation2 + $0x140] sm:$0xff]
  %v2326 = vld [vmem:[#allocation2 + $0x148] sm:$0xff]
  %v2327 = vld [vmem:[#allocation2 + $0x150] sm:$0xff]
  %v2328 = vld [vmem:[#allocation2 + $0x158] sm:$0xff]
  %v2329 = vld [vmem:[#allocation2 + $0x160] sm:$0xff]
  %v2330 = vld [vmem:[#allocation2 + $0x168] sm:$0xff]
  %v2331 = vld [vmem:[#allocation2 + $0x170] sm:$0xff]
  %v2332 = vld [vmem:[#allocation2 + $0x178] sm:$0xff]
  %v2333 = vld [vmem:[#allocation2 + $0x180] sm:$0xff]
  %v2334 = vld [vmem:[#allocation2 + $0x188] sm:$0xff]
  %v2335 = vld [vmem:[#allocation2 + $0x190] sm:$0xff]
  %v2336 = vld [vmem:[#allocation2 + $0x198] sm:$0xff]
  %v2337 = vld [vmem:[#allocation2 + $0x1a0] sm:$0xff]
  %v2338 = vld [vmem:[#allocation2 + $0x1a8] sm:$0xff]
  %v2339 = vld [vmem:[#allocation2 + $0x1b0] sm:$0xff]
  %v2340 = vld [vmem:[#allocation2 + $0x1b8] sm:$0xff]
  %v2341 = vld [vmem:[#allocation2 + $0x1c0] sm:$0xff]
  %v2342 = vld [vmem:[#allocation2 + $0x1c8] sm:$0xff]
  %v2343 = vld [vmem:[#allocation2 + $0x1d0] sm:$0xff]
  %v2344 = vld [vmem:[#allocation2 + $0x1d8] sm:$0xff]
  %v2345 = vld [vmem:[#allocation2 + $0x1e0] sm:$0xff]
  %v2346 = vld [vmem:[#allocation2 + $0x1e8] sm:$0xff]
  %v2347 = vld [vmem:[#allocation2 + $0x1f0] sm:$0xff]
  %v2348 = vld [vmem:[#allocation2 + $0x1f8] sm:$0xff]
  %v2349 = vld [vmem:[#allocation2 + $0x200] sm:$0xff]
  %v2350 = vld [vmem:[#allocation2 + $0x208] sm:$0xff]
  %v2351 = vld [vmem:[#allocation2 + $0x210] sm:$0xff]
  %v2352 = vld [vmem:[#allocation2 + $0x218] sm:$0xff]
  %v2353 = vld [vmem:[#allocation2 + $0x220] sm:$0xff]
  %v2354 = vld [vmem:[#allocation2 + $0x228] sm:$0xff]
  %v2355 = vld [vmem:[#allocation2 + $0x230] sm:$0xff]
  %v2356 = vld [vmem:[#allocation2 + $0x238] sm:$0xff]
  %v2357 = vld [vmem:[#allocation2 + $0x240] sm:$0xff]
  %v2358 = vld [vmem:[#allocation2 + $0x248] sm:$0xff]
  %v2359 = vld [vmem:[#allocation2 + $0x250] sm:$0xff]
  %v2360 = vld [vmem:[#allocation2 + $0x258] sm:$0xff]
  %v2361 = vld [vmem:[#allocation2 + $0x260] sm:$0xff]
  %v2362 = vld [vmem:[#allocation2 + $0x268] sm:$0xff]
  %v2363 = vld [vmem:[#allocation2 + $0x270] sm:$0xff]
  %v2364 = vld [vmem:[#allocation2 + $0x278] sm:$0xff]
  %v2365 = vld [vmem:[#allocation2 + $0x280] sm:$0xff]
  %v2366 = vld [vmem:[#allocation2 + $0x288] sm:$0xff]
  %v2367 = vld [vmem:[#allocation2 + $0x290] sm:$0xff]
  %v2368 = vld [vmem:[#allocation2 + $0x298] sm:$0xff]
  %v2369 = vld [vmem:[#allocation2 + $0x2a0] sm:$0xff]
  %v2370 = vld [vmem:[#allocation2 + $0x2a8] sm:$0xff]
  %v2371 = vld [vmem:[#allocation2 + $0x2b0] sm:$0xff]
  %v2372 = vld [vmem:[#allocation2 + $0x2b8] sm:$0xff]
  %v2373 = vld [vmem:[#allocation2 + $0x2c0] sm:$0xff]
  %v2374 = vld [vmem:[#allocation2 + $0x2c8] sm:$0xff]
  %v2375 = vld [vmem:[#allocation2 + $0x2d0] sm:$0xff]
  %v2376 = vld [vmem:[#allocation2 + $0x2d8] sm:$0xff]
  %v2377 = vld [vmem:[#allocation2 + $0x2e0] sm:$0xff]
  %v2378 = vld [vmem:[#allocation2 + $0x2e8] sm:$0xff]
  %v2379 = vld [vmem:[#allocation2 + $0x2f0] sm:$0xff]
  %v2380 = vld [vmem:[#allocation2 + $0x2f8] sm:$0xff]
  %v2381 = vld [vmem:[#allocation2 + $0x300] sm:$0xff]
  %v2382 = vld [vmem:[#allocation2 + $0x308] sm:$0xff]
  %v2383 = vld [vmem:[#allocation2 + $0x310] sm:$0xff]
  %v2384 = vld [vmem:[#allocation2 + $0x318] sm:$0xff]
  %v2385 = vld [vmem:[#allocation2 + $0x320] sm:$0xff]
  %v2386 = vld [vmem:[#allocation2 + $0x328] sm:$0xff]
  %v2387 = vld [vmem:[#allocation2 + $0x330] sm:$0xff]
  %v2388 = vld [vmem:[#allocation2 + $0x338] sm:$0xff]
  %v2389 = vld [vmem:[#allocation2 + $0x340] sm:$0xff]
  %v2390 = vld [vmem:[#allocation2 + $0x348] sm:$0xff]
  %v2391 = vld [vmem:[#allocation2 + $0x350] sm:$0xff]
  %v2392 = vld [vmem:[#allocation2 + $0x358] sm:$0xff]
  %v2393 = vld [vmem:[#allocation2 + $0x360] sm:$0xff]
  %v2394 = vld [vmem:[#allocation2 + $0x368] sm:$0xff]
  %v2395 = vld [vmem:[#allocation2 + $0x370] sm:$0xff]
  %v2396 = vld [vmem:[#allocation2 + $0x378] sm:$0xff]
  %v2397 = vld [vmem:[#allocation2 + $0x380] sm:$0xff]
  %v2398 = vld [vmem:[#allocation2 + $0x388] sm:$0xff]
  %v2399 = vld [vmem:[#allocation2 + $0x390] sm:$0xff]
  %v2400 = vld [vmem:[#allocation2 + $0x398] sm:$0xff]
  %v2401 = vld [vmem:[#allocation2 + $0x3a0] sm:$0xff]
  %v2402 = vld [vmem:[#allocation2 + $0x3a8] sm:$0xff]
  %v2403 = vld [vmem:[#allocation2 + $0x3b0] sm:$0xff]
  %v2404 = vld [vmem:[#allocation2 + $0x3b8] sm:$0xff]
  %v2405 = vld [vmem:[#allocation2 + $0x3c0] sm:$0xff]
  %v2406 = vld [vmem:[#allocation2 + $0x3c8] sm:$0xff]
  %v2407 = vld [vmem:[#allocation2 + $0x3d0] sm:$0xff]
  %v2408 = vld [vmem:[#allocation2 + $0x3d8] sm:$0xff]
  %v2409 = vld [vmem:[#allocation2 + $0x3e0] sm:$0xff]
  %v2410 = vld [vmem:[#allocation2 + $0x3e8] sm:$0xff]
  %v2411 = vld [vmem:[#allocation2 + $0x3f0] sm:$0xff]
  %v2412 = vld [vmem:[#allocation2 + $0x3f8] sm:$0xff]
  %v2413 = vld [vmem:[#allocation2 + $0x400] sm:$0xff]
  %v2414 = vld [vmem:[#allocation2 + $0x408] sm:$0xff]
  %v2415 = vld [vmem:[#allocation2 + $0x410] sm:$0xff]
  %v2416 = vld [vmem:[#allocation2 + $0x418] sm:$0xff]
  %v2417 = vld [vmem:[#allocation2 + $0x420] sm:$0xff]
  %v2418 = vld [vmem:[#allocation2 + $0x428] sm:$0xff]
  %v2419 = vld [vmem:[#allocation2 + $0x430] sm:$0xff]
  %v2420 = vld [vmem:[#allocation2 + $0x438] sm:$0xff]
  %v2421 = vld [vmem:[#allocation2 + $0x440] sm:$0xff]
  %v2422 = vld [vmem:[#allocation2 + $0x448] sm:$0xff]
  %v2423 = vld [vmem:[#allocation2 + $0x450] sm:$0xff]
  %v2424 = vld [vmem:[#allocation2 + $0x458] sm:$0xff]
  %v2425 = vld [vmem:[#allocation2 + $0x460] sm:$0xff]
  %v2426 = vld [vmem:[#allocation2 + $0x468] sm:$0xff]
  %v2427 = vld [vmem:[#allocation2 + $0x470] sm:$0xff]
  %v2428 = vld [vmem:[#allocation2 + $0x478] sm:$0xff]
  %s2429 = scalar_lea.vmem %s3, 1024
  %v2430 = vld [vmem:[%s2429] sm:$0xff]
  %v2431 = vld [vmem:[%s2429 + $0x8] sm:$0xff]
  %v2432 = vld [vmem:[%s2429 + $0x10] sm:$0xff]
  %v2433 = vld [vmem:[%s2429 + $0x18] sm:$0xff]
  %v2434 = vld [vmem:[%s2429 + $0x20] sm:$0xff]
  %v2435 = vld [vmem:[%s2429 + $0x28] sm:$0xff]
  %v2436 = vld [vmem:[%s2429 + $0x30] sm:$0xff]
  %v2437 = vld [vmem:[%s2429 + $0x38] sm:$0xff]
  %v2438 = vld [vmem:[%s2429 + $0x40] sm:$0xff]
  %v2439 = vld [vmem:[%s2429 + $0x48] sm:$0xff]
  %v2440 = vld [vmem:[%s2429 + $0x50] sm:$0xff]
  %v2441 = vld [vmem:[%s2429 + $0x58] sm:$0xff]
  %v2442 = vld [vmem:[%s2429 + $0x60] sm:$0xff]
  %v2443 = vld [vmem:[%s2429 + $0x68] sm:$0xff]
  %v2444 = vld [vmem:[%s2429 + $0x70] sm:$0xff]
  %v2445 = vld [vmem:[%s2429 + $0x78] sm:$0xff]
  %v2446 = vld [vmem:[%s2429 + $0x80] sm:$0xff]
  %v2447 = vld [vmem:[%s2429 + $0x88] sm:$0xff]
  %v2448 = vld [vmem:[%s2429 + $0x90] sm:$0xff]
  %v2449 = vld [vmem:[%s2429 + $0x98] sm:$0xff]
  %v2450 = vld [vmem:[%s2429 + $0xa0] sm:$0xff]
  %v2451 = vld [vmem:[%s2429 + $0xa8] sm:$0xff]
  %v2452 = vld [vmem:[%s2429 + $0xb0] sm:$0xff]
  %v2453 = vld [vmem:[%s2429 + $0xb8] sm:$0xff]
  %v2454 = vld [vmem:[%s2429 + $0xc0] sm:$0xff]
  %v2455 = vld [vmem:[%s2429 + $0xc8] sm:$0xff]
  %v2456 = vld [vmem:[%s2429 + $0xd0] sm:$0xff]
  %v2457 = vld [vmem:[%s2429 + $0xd8] sm:$0xff]
  %v2458 = vld [vmem:[%s2429 + $0xe0] sm:$0xff]
  %v2459 = vld [vmem:[%s2429 + $0xe8] sm:$0xff]
  %v2460 = vld [vmem:[%s2429 + $0xf0] sm:$0xff]
  %v2461 = vld [vmem:[%s2429 + $0xf8] sm:$0xff]
  %v2462 = vld [vmem:[%s2429 + $0x100] sm:$0xff]
  %v2463 = vld [vmem:[%s2429 + $0x108] sm:$0xff]
  %v2464 = vld [vmem:[%s2429 + $0x110] sm:$0xff]
  %v2465 = vld [vmem:[%s2429 + $0x118] sm:$0xff]
  %v2466 = vld [vmem:[%s2429 + $0x120] sm:$0xff]
  %v2467 = vld [vmem:[%s2429 + $0x128] sm:$0xff]
  %v2468 = vld [vmem:[%s2429 + $0x130] sm:$0xff]
  %v2469 = vld [vmem:[%s2429 + $0x138] sm:$0xff]
  %v2470 = vld [vmem:[%s2429 + $0x140] sm:$0xff]
  %v2471 = vld [vmem:[%s2429 + $0x148] sm:$0xff]
  %v2472 = vld [vmem:[%s2429 + $0x150] sm:$0xff]
  %v2473 = vld [vmem:[%s2429 + $0x158] sm:$0xff]
  %v2474 = vld [vmem:[%s2429 + $0x160] sm:$0xff]
  %v2475 = vld [vmem:[%s2429 + $0x168] sm:$0xff]
  %v2476 = vld [vmem:[%s2429 + $0x170] sm:$0xff]
  %v2477 = vld [vmem:[%s2429 + $0x178] sm:$0xff]
  %v2478 = vld [vmem:[%s2429 + $0x180] sm:$0xff]
  %v2479 = vld [vmem:[%s2429 + $0x188] sm:$0xff]
  %v2480 = vld [vmem:[%s2429 + $0x190] sm:$0xff]
  %v2481 = vld [vmem:[%s2429 + $0x198] sm:$0xff]
  %v2482 = vld [vmem:[%s2429 + $0x1a0] sm:$0xff]
  %v2483 = vld [vmem:[%s2429 + $0x1a8] sm:$0xff]
  %v2484 = vld [vmem:[%s2429 + $0x1b0] sm:$0xff]
  %v2485 = vld [vmem:[%s2429 + $0x1b8] sm:$0xff]
  %v2486 = vld [vmem:[%s2429 + $0x1c0] sm:$0xff]
  %v2487 = vld [vmem:[%s2429 + $0x1c8] sm:$0xff]
  %v2488 = vld [vmem:[%s2429 + $0x1d0] sm:$0xff]
  %v2489 = vld [vmem:[%s2429 + $0x1d8] sm:$0xff]
  %v2490 = vld [vmem:[%s2429 + $0x1e0] sm:$0xff]
  %v2491 = vld [vmem:[%s2429 + $0x1e8] sm:$0xff]
  %v2492 = vld [vmem:[%s2429 + $0x1f0] sm:$0xff]
  %v2493 = vld [vmem:[%s2429 + $0x1f8] sm:$0xff]
  %2494 = vmatprep.subr.mxu0 %v2461
  %2495 = vmatpush1.msra.mxu0 %v2460
  %2496 = vmatprep.subr.mxu0 %v2459
  %2497 = vmatpush1.msra.mxu0 %v2458
  %2498 = vmatprep.subr.mxu0 %v2457
  %2499 = vmatpush1.msra.mxu0 %v2456
  %2500 = vmatprep.subr.mxu0 %v2455
  %2501 = vmatpush1.msra.mxu0 %v2454
  %2502 = vmatprep.subr.mxu0 %v2453
  %2503 = vmatpush1.msra.mxu0 %v2452
  %2504 = vmatprep.subr.mxu0 %v2451
  %2505 = vmatpush1.msra.mxu0 %v2450
  %2506 = vmatprep.subr.mxu0 %v2449
  %2507 = vmatpush1.msra.mxu0 %v2448
  %2508 = vmatprep.subr.mxu0 %v2447
  %2509 = vmatpush1.msra.mxu0 %v2446
  %2510 = vmatprep.subr.mxu0 %v2445
  %2511 = vmatpush1.msra.mxu0 %v2444
  %2512 = vmatprep.subr.mxu0 %v2443
  %2513 = vmatpush1.msra.mxu0 %v2442
  %2514 = vmatprep.subr.mxu0 %v2441
  %2515 = vmatpush1.msra.mxu0 %v2440
  %2516 = vmatprep.subr.mxu0 %v2439
  %2517 = vmatpush1.msra.mxu0 %v2438
  %2518 = vmatprep.subr.mxu0 %v2437
  %2519 = vmatpush1.msra.mxu0 %v2436
  %2520 = vmatprep.subr.mxu0 %v2435
  %2521 = vmatpush1.msra.mxu0 %v2434
  %2522 = vmatprep.subr.mxu0 %v2433
  %2523 = vmatpush1.msra.mxu0 %v2432
  %2524 = vmatprep.subr.mxu0 %v2431
  %2525 = vmatpush1.msra.mxu0 %v2430
  %2526 = vmatprep.subr.mxu0 %v2493
  %2527 = vmatpush2.msra.mxu0 %v2492
  %2528 = vmatprep.subr.mxu0 %v2491
  %2529 = vmatpush2.msra.mxu0 %v2490
  %2530 = vmatprep.subr.mxu0 %v2489
  %2531 = vmatpush2.msra.mxu0 %v2488
  %2532 = vmatprep.subr.mxu0 %v2487
  %2533 = vmatpush2.msra.mxu0 %v2486
  %2534 = vmatprep.subr.mxu0 %v2485
  %2535 = vmatpush2.msra.mxu0 %v2484
  %2536 = vmatprep.subr.mxu0 %v2483
  %2537 = vmatpush2.msra.mxu0 %v2482
  %2538 = vmatprep.subr.mxu0 %v2481
  %2539 = vmatpush2.msra.mxu0 %v2480
  %2540 = vmatprep.subr.mxu0 %v2479
  %2541 = vmatpush2.msra.mxu0 %v2478
  %2542 = vmatprep.subr.mxu0 %v2477
  %2543 = vmatpush2.msra.mxu0 %v2476
  %2544 = vmatprep.subr.mxu0 %v2475
  %2545 = vmatpush2.msra.mxu0 %v2474
  %2546 = vmatprep.subr.mxu0 %v2473
  %2547 = vmatpush2.msra.mxu0 %v2472
  %2548 = vmatprep.subr.mxu0 %v2471
  %2549 = vmatpush2.msra.mxu0 %v2470
  %2550 = vmatprep.subr.mxu0 %v2469
  %2551 = vmatpush2.msra.mxu0 %v2468
  %2552 = vmatprep.subr.mxu0 %v2467
  %2553 = vmatpush2.msra.mxu0 %v2466
  %2554 = vmatprep.subr.mxu0 %v2465
  %2555 = vmatpush2.msra.mxu0 %v2464
  %2556 = vmatprep.subr.mxu0 %v2463
  %2557 = vmatpush2.msra.mxu0 %v2462
  %2558 = vmatprep.mubr.f32.mxu0 %v2294
  %2559 = vmatmul.mubr.f32.gmra.mxu0 %v2293
  %v2560 = vpop.f32.mrf.mxu0
  %v2561 = vadd.f32 0.0, %v2560
  %v2562 = vpop.f32.mrf.mxu0
  %v2563 = vadd.f32 0.0, %v2562
  %2564 = vmatprep.mubr.f32.mxu0 %v2296
  %2565 = vmatmul.mubr.f32.gmra.mxu0 %v2295
  %v2566 = vpop.f32.mrf.mxu0
  %v2567 = vadd.f32 0.0, %v2566
  %v2568 = vpop.f32.mrf.mxu0
  %v2569 = vadd.f32 0.0, %v2568
  %2570 = vmatprep.mubr.f32.mxu0 %v2298
  %2571 = vmatmul.mubr.f32.gmra.mxu0 %v2297
  %v2572 = vpop.f32.mrf.mxu0
  %v2573 = vadd.f32 0.0, %v2572
  %v2574 = vpop.f32.mrf.mxu0
  %v2575 = vadd.f32 0.0, %v2574
  %2576 = vmatprep.mubr.f32.mxu0 %v2300
  %2577 = vmatmul.mubr.f32.gmra.mxu0 %v2299
  %v2578 = vpop.f32.mrf.mxu0
  %v2579 = vadd.f32 0.0, %v2578
  %v2580 = vpop.f32.mrf.mxu0
  %v2581 = vadd.f32 0.0, %v2580
  %2582 = vmatprep.mubr.f32.mxu0 %v2302
  %2583 = vmatmul.mubr.f32.gmra.mxu0 %v2301
  %v2584 = vpop.f32.mrf.mxu0
  %v2585 = vadd.f32 0.0, %v2584
  %v2586 = vpop.f32.mrf.mxu0
  %v2587 = vadd.f32 0.0, %v2586
  %2588 = vmatprep.mubr.f32.mxu0 %v2304
  %2589 = vmatmul.mubr.f32.gmra.mxu0 %v2303
  %v2590 = vpop.f32.mrf.mxu0
  %v2591 = vadd.f32 0.0, %v2590
  %v2592 = vpop.f32.mrf.mxu0
  %v2593 = vadd.f32 0.0, %v2592
  %2594 = vmatprep.mubr.f32.mxu0 %v2306
  %2595 = vmatmul.mubr.f32.gmra.mxu0 %v2305
  %v2596 = vpop.f32.mrf.mxu0
  %v2597 = vadd.f32 0.0, %v2596
  %v2598 = vpop.f32.mrf.mxu0
  %v2599 = vadd.f32 0.0, %v2598
  %2600 = vmatprep.mubr.f32.mxu0 %v2308
  %2601 = vmatmul.mubr.f32.gmra.mxu0 %v2307
  %v2602 = vpop.f32.mrf.mxu0
  %v2603 = vadd.f32 0.0, %v2602
  %v2604 = vpop.f32.mrf.mxu0
  %v2605 = vadd.f32 0.0, %v2604
  %2606 = vmatprep.mubr.f32.mxu0 %v2310
  %2607 = vmatmul.mubr.f32.gmra.mxu0 %v2309
  %v2608 = vpop.f32.mrf.mxu0
  %v2609 = vadd.f32 0.0, %v2608
  %v2610 = vpop.f32.mrf.mxu0
  %v2611 = vadd.f32 0.0, %v2610
  %2612 = vmatprep.mubr.f32.mxu0 %v2312
  %2613 = vmatmul.mubr.f32.gmra.mxu0 %v2311
  %v2614 = vpop.f32.mrf.mxu0
  %v2615 = vadd.f32 0.0, %v2614
  %v2616 = vpop.f32.mrf.mxu0
  %v2617 = vadd.f32 0.0, %v2616
  %2618 = vmatprep.mubr.f32.mxu0 %v2314
  %2619 = vmatmul.mubr.f32.gmra.mxu0 %v2313
  %v2620 = vpop.f32.mrf.mxu0
  %v2621 = vadd.f32 0.0, %v2620
  %v2622 = vpop.f32.mrf.mxu0
  %v2623 = vadd.f32 0.0, %v2622
  %2624 = vmatprep.mubr.f32.mxu0 %v2316
  %2625 = vmatmul.mubr.f32.gmra.mxu0 %v2315
  %v2626 = vpop.f32.mrf.mxu0
  %v2627 = vadd.f32 0.0, %v2626
  %v2628 = vpop.f32.mrf.mxu0
  %v2629 = vadd.f32 0.0, %v2628
  %2630 = vmatprep.mubr.f32.mxu0 %v2318
  %2631 = vmatmul.mubr.f32.gmra.mxu0 %v2317
  %v2632 = vpop.f32.mrf.mxu0
  %v2633 = vadd.f32 0.0, %v2632
  %v2634 = vpop.f32.mrf.mxu0
  %v2635 = vadd.f32 0.0, %v2634
  %2636 = vmatprep.mubr.f32.mxu0 %v2320
  %2637 = vmatmul.mubr.f32.gmra.mxu0 %v2319
  %v2638 = vpop.f32.mrf.mxu0
  %v2639 = vadd.f32 0.0, %v2638
  %v2640 = vpop.f32.mrf.mxu0
  %v2641 = vadd.f32 0.0, %v2640
  %2642 = vmatprep.mubr.f32.mxu0 %v2322
  %2643 = vmatmul.mubr.f32.gmra.mxu0 %v2321
  %v2644 = vpop.f32.mrf.mxu0
  %v2645 = vadd.f32 0.0, %v2644
  %v2646 = vpop.f32.mrf.mxu0
  %v2647 = vadd.f32 0.0, %v2646
  %2648 = vmatprep.mubr.f32.mxu0 %v2324
  %2649 = vmatmul.mubr.f32.gmra.mxu0 %v2323
  %v2650 = vpop.f32.mrf.mxu0
  %v2651 = vadd.f32 0.0, %v2650
  %v2652 = vpop.f32.mrf.mxu0
  %v2653 = vadd.f32 0.0, %v2652
  %2654 = vmatprep.mubr.f32.mxu0 %v2326
  %2655 = vmatmul.mubr.f32.gmra.mxu0 %v2325
  %v2656 = vpop.f32.mrf.mxu0
  %v2657 = vadd.f32 0.0, %v2656
  %v2658 = vpop.f32.mrf.mxu0
  %v2659 = vadd.f32 0.0, %v2658
  %2660 = vmatprep.mubr.f32.mxu0 %v2328
  %2661 = vmatmul.mubr.f32.gmra.mxu0 %v2327
  %v2662 = vpop.f32.mrf.mxu0
  %v2663 = vadd.f32 0.0, %v2662
  %v2664 = vpop.f32.mrf.mxu0
  %v2665 = vadd.f32 0.0, %v2664
  %2666 = vmatprep.mubr.f32.mxu0 %v2330
  %2667 = vmatmul.mubr.f32.gmra.mxu0 %v2329
  %v2668 = vpop.f32.mrf.mxu0
  %v2669 = vadd.f32 0.0, %v2668
  %v2670 = vpop.f32.mrf.mxu0
  %v2671 = vadd.f32 0.0, %v2670
  %2672 = vmatprep.mubr.f32.mxu0 %v2332
  %2673 = vmatmul.mubr.f32.gmra.mxu0 %v2331
  %v2674 = vpop.f32.mrf.mxu0
  %v2675 = vadd.f32 0.0, %v2674
  %v2676 = vpop.f32.mrf.mxu0
  %v2677 = vadd.f32 0.0, %v2676
  %2678 = vmatprep.mubr.f32.mxu0 %v2334
  %2679 = vmatmul.mubr.f32.gmra.mxu0 %v2333
  %v2680 = vpop.f32.mrf.mxu0
  %v2681 = vadd.f32 0.0, %v2680
  %v2682 = vpop.f32.mrf.mxu0
  %v2683 = vadd.f32 0.0, %v2682
  %2684 = vmatprep.mubr.f32.mxu0 %v2336
  %2685 = vmatmul.mubr.f32.gmra.mxu0 %v2335
  %v2686 = vpop.f32.mrf.mxu0
  %v2687 = vadd.f32 0.0, %v2686
  %v2688 = vpop.f32.mrf.mxu0
  %v2689 = vadd.f32 0.0, %v2688
  %2690 = vmatprep.mubr.f32.mxu0 %v2338
  %2691 = vmatmul.mubr.f32.gmra.mxu0 %v2337
  %v2692 = vpop.f32.mrf.mxu0
  %v2693 = vadd.f32 0.0, %v2692
  %v2694 = vpop.f32.mrf.mxu0
  %v2695 = vadd.f32 0.0, %v2694
  %2696 = vmatprep.mubr.f32.mxu0 %v2340
  %2697 = vmatmul.mubr.f32.gmra.mxu0 %v2339
  %v2698 = vpop.f32.mrf.mxu0
  %v2699 = vadd.f32 0.0, %v2698
  %v2700 = vpop.f32.mrf.mxu0
  %v2701 = vadd.f32 0.0, %v2700
  %2702 = vmatprep.mubr.f32.mxu0 %v2342
  %2703 = vmatmul.mubr.f32.gmra.mxu0 %v2341
  %v2704 = vpop.f32.mrf.mxu0
  %v2705 = vadd.f32 0.0, %v2704
  %v2706 = vpop.f32.mrf.mxu0
  %v2707 = vadd.f32 0.0, %v2706
  %2708 = vmatprep.mubr.f32.mxu0 %v2344
  %2709 = vmatmul.mubr.f32.gmra.mxu0 %v2343
  %v2710 = vpop.f32.mrf.mxu0
  %v2711 = vadd.f32 0.0, %v2710
  %v2712 = vpop.f32.mrf.mxu0
  %v2713 = vadd.f32 0.0, %v2712
  %2714 = vmatprep.mubr.f32.mxu0 %v2346
  %2715 = vmatmul.mubr.f32.gmra.mxu0 %v2345
  %v2716 = vpop.f32.mrf.mxu0
  %v2717 = vadd.f32 0.0, %v2716
  %v2718 = vpop.f32.mrf.mxu0
  %v2719 = vadd.f32 0.0, %v2718
  %2720 = vmatprep.mubr.f32.mxu0 %v2348
  %2721 = vmatmul.mubr.f32.gmra.mxu0 %v2347
  %v2722 = vpop.f32.mrf.mxu0
  %v2723 = vadd.f32 0.0, %v2722
  %v2724 = vpop.f32.mrf.mxu0
  %v2725 = vadd.f32 0.0, %v2724
  %2726 = vmatprep.mubr.f32.mxu0 %v2350
  %2727 = vmatmul.mubr.f32.gmra.mxu0 %v2349
  %v2728 = vpop.f32.mrf.mxu0
  %v2729 = vadd.f32 0.0, %v2728
  %v2730 = vpop.f32.mrf.mxu0
  %v2731 = vadd.f32 0.0, %v2730
  %2732 = vmatprep.mubr.f32.mxu0 %v2352
  %2733 = vmatmul.mubr.f32.gmra.mxu0 %v2351
  %v2734 = vpop.f32.mrf.mxu0
  %v2735 = vadd.f32 0.0, %v2734
  %v2736 = vpop.f32.mrf.mxu0
  %v2737 = vadd.f32 0.0, %v2736
  %2738 = vmatprep.mubr.f32.mxu0 %v2354
  %2739 = vmatmul.mubr.f32.gmra.mxu0 %v2353
  %v2740 = vpop.f32.mrf.mxu0
  %v2741 = vadd.f32 0.0, %v2740
  %v2742 = vpop.f32.mrf.mxu0
  %v2743 = vadd.f32 0.0, %v2742
  %2744 = vmatprep.mubr.f32.mxu0 %v2356
  %2745 = vmatmul.mubr.f32.gmra.mxu0 %v2355
  %v2746 = vpop.f32.mrf.mxu0
  %v2747 = vadd.f32 0.0, %v2746
  %v2748 = vpop.f32.mrf.mxu0
  %v2749 = vadd.f32 0.0, %v2748
  %2750 = vmatprep.mubr.f32.mxu0 %v2358
  %2751 = vmatmul.mubr.f32.gmra.mxu0 %v2357
  %v2752 = vpop.f32.mrf.mxu0
  %v2753 = vadd.f32 0.0, %v2752
  %v2754 = vpop.f32.mrf.mxu0
  %v2755 = vadd.f32 0.0, %v2754
  %2756 = vmatprep.mubr.f32.mxu0 %v2360
  %2757 = vmatmul.mubr.f32.gmra.mxu0 %v2359
  %v2758 = vpop.f32.mrf.mxu0
  %v2759 = vadd.f32 0.0, %v2758
  %v2760 = vpop.f32.mrf.mxu0
  %v2761 = vadd.f32 0.0, %v2760
  %2762 = vmatprep.mubr.f32.mxu0 %v2362
  %2763 = vmatmul.mubr.f32.gmra.mxu0 %v2361
  %v2764 = vpop.f32.mrf.mxu0
  %v2765 = vadd.f32 0.0, %v2764
  %v2766 = vpop.f32.mrf.mxu0
  %v2767 = vadd.f32 0.0, %v2766
  %2768 = vmatprep.mubr.f32.mxu0 %v2364
  %2769 = vmatmul.mubr.f32.gmra.mxu0 %v2363
  %v2770 = vpop.f32.mrf.mxu0
  %v2771 = vadd.f32 0.0, %v2770
  %v2772 = vpop.f32.mrf.mxu0
  %v2773 = vadd.f32 0.0, %v2772
  %2774 = vmatprep.mubr.f32.mxu0 %v2366
  %2775 = vmatmul.mubr.f32.gmra.mxu0 %v2365
  %v2776 = vpop.f32.mrf.mxu0
  %v2777 = vadd.f32 0.0, %v2776
  %v2778 = vpop.f32.mrf.mxu0
  %v2779 = vadd.f32 0.0, %v2778
  %2780 = vmatprep.mubr.f32.mxu0 %v2368
  %2781 = vmatmul.mubr.f32.gmra.mxu0 %v2367
  %v2782 = vpop.f32.mrf.mxu0
  %v2783 = vadd.f32 0.0, %v2782
  %v2784 = vpop.f32.mrf.mxu0
  %v2785 = vadd.f32 0.0, %v2784
  %2786 = vmatprep.mubr.f32.mxu0 %v2370
  %2787 = vmatmul.mubr.f32.gmra.mxu0 %v2369
  %v2788 = vpop.f32.mrf.mxu0
  %v2789 = vadd.f32 0.0, %v2788
  %v2790 = vpop.f32.mrf.mxu0
  %v2791 = vadd.f32 0.0, %v2790
  %2792 = vmatprep.mubr.f32.mxu0 %v2372
  %2793 = vmatmul.mubr.f32.gmra.mxu0 %v2371
  %v2794 = vpop.f32.mrf.mxu0
  %v2795 = vadd.f32 0.0, %v2794
  %v2796 = vpop.f32.mrf.mxu0
  %v2797 = vadd.f32 0.0, %v2796
  %2798 = vmatprep.mubr.f32.mxu0 %v2374
  %2799 = vmatmul.mubr.f32.gmra.mxu0 %v2373
  %v2800 = vpop.f32.mrf.mxu0
  %v2801 = vadd.f32 0.0, %v2800
  %v2802 = vpop.f32.mrf.mxu0
  %v2803 = vadd.f32 0.0, %v2802
  %2804 = vmatprep.mubr.f32.mxu0 %v2376
  %2805 = vmatmul.mubr.f32.gmra.mxu0 %v2375
  %v2806 = vpop.f32.mrf.mxu0
  %v2807 = vadd.f32 0.0, %v2806
  %v2808 = vpop.f32.mrf.mxu0
  %v2809 = vadd.f32 0.0, %v2808
  %2810 = vmatprep.mubr.f32.mxu0 %v2378
  %2811 = vmatmul.mubr.f32.gmra.mxu0 %v2377
  %v2812 = vpop.f32.mrf.mxu0
  %v2813 = vadd.f32 0.0, %v2812
  %v2814 = vpop.f32.mrf.mxu0
  %v2815 = vadd.f32 0.0, %v2814
  %2816 = vmatprep.mubr.f32.mxu0 %v2380
  %2817 = vmatmul.mubr.f32.gmra.mxu0 %v2379
  %v2818 = vpop.f32.mrf.mxu0
  %v2819 = vadd.f32 0.0, %v2818
  %v2820 = vpop.f32.mrf.mxu0
  %v2821 = vadd.f32 0.0, %v2820
  %2822 = vmatprep.mubr.f32.mxu0 %v2382
  %2823 = vmatmul.mubr.f32.gmra.mxu0 %v2381
  %v2824 = vpop.f32.mrf.mxu0
  %v2825 = vadd.f32 0.0, %v2824
  %v2826 = vpop.f32.mrf.mxu0
  %v2827 = vadd.f32 0.0, %v2826
  %2828 = vmatprep.mubr.f32.mxu0 %v2384
  %2829 = vmatmul.mubr.f32.gmra.mxu0 %v2383
  %v2830 = vpop.f32.mrf.mxu0
  %v2831 = vadd.f32 0.0, %v2830
  %v2832 = vpop.f32.mrf.mxu0
  %v2833 = vadd.f32 0.0, %v2832
  %2834 = vmatprep.mubr.f32.mxu0 %v2386
  %2835 = vmatmul.mubr.f32.gmra.mxu0 %v2385
  %v2836 = vpop.f32.mrf.mxu0
  %v2837 = vadd.f32 0.0, %v2836
  %v2838 = vpop.f32.mrf.mxu0
  %v2839 = vadd.f32 0.0, %v2838
  %2840 = vmatprep.mubr.f32.mxu0 %v2388
  %2841 = vmatmul.mubr.f32.gmra.mxu0 %v2387
  %v2842 = vpop.f32.mrf.mxu0
  %v2843 = vadd.f32 0.0, %v2842
  %v2844 = vpop.f32.mrf.mxu0
  %v2845 = vadd.f32 0.0, %v2844
  %2846 = vmatprep.mubr.f32.mxu0 %v2390
  %2847 = vmatmul.mubr.f32.gmra.mxu0 %v2389
  %v2848 = vpop.f32.mrf.mxu0
  %v2849 = vadd.f32 0.0, %v2848
  %v2850 = vpop.f32.mrf.mxu0
  %v2851 = vadd.f32 0.0, %v2850
  %2852 = vmatprep.mubr.f32.mxu0 %v2392
  %2853 = vmatmul.mubr.f32.gmra.mxu0 %v2391
  %v2854 = vpop.f32.mrf.mxu0
  %v2855 = vadd.f32 0.0, %v2854
  %v2856 = vpop.f32.mrf.mxu0
  %v2857 = vadd.f32 0.0, %v2856
  %2858 = vmatprep.mubr.f32.mxu0 %v2394
  %2859 = vmatmul.mubr.f32.gmra.mxu0 %v2393
  %v2860 = vpop.f32.mrf.mxu0
  %v2861 = vadd.f32 0.0, %v2860
  %v2862 = vpop.f32.mrf.mxu0
  %v2863 = vadd.f32 0.0, %v2862
  %2864 = vmatprep.mubr.f32.mxu0 %v2396
  %2865 = vmatmul.mubr.f32.gmra.mxu0 %v2395
  %v2866 = vpop.f32.mrf.mxu0
  %v2867 = vadd.f32 0.0, %v2866
  %v2868 = vpop.f32.mrf.mxu0
  %v2869 = vadd.f32 0.0, %v2868
  %2870 = vmatprep.mubr.f32.mxu0 %v2398
  %2871 = vmatmul.mubr.f32.gmra.mxu0 %v2397
  %v2872 = vpop.f32.mrf.mxu0
  %v2873 = vadd.f32 0.0, %v2872
  %v2874 = vpop.f32.mrf.mxu0
  %v2875 = vadd.f32 0.0, %v2874
  %2876 = vmatprep.mubr.f32.mxu0 %v2400
  %2877 = vmatmul.mubr.f32.gmra.mxu0 %v2399
  %v2878 = vpop.f32.mrf.mxu0
  %v2879 = vadd.f32 0.0, %v2878
  %v2880 = vpop.f32.mrf.mxu0
  %v2881 = vadd.f32 0.0, %v2880
  %2882 = vmatprep.mubr.f32.mxu0 %v2402
  %2883 = vmatmul.mubr.f32.gmra.mxu0 %v2401
  %v2884 = vpop.f32.mrf.mxu0
  %v2885 = vadd.f32 0.0, %v2884
  %v2886 = vpop.f32.mrf.mxu0
  %v2887 = vadd.f32 0.0, %v2886
  %2888 = vmatprep.mubr.f32.mxu0 %v2404
  %2889 = vmatmul.mubr.f32.gmra.mxu0 %v2403
  %v2890 = vpop.f32.mrf.mxu0
  %v2891 = vadd.f32 0.0, %v2890
  %v2892 = vpop.f32.mrf.mxu0
  %v2893 = vadd.f32 0.0, %v2892
  %2894 = vmatprep.mubr.f32.mxu0 %v2406
  %2895 = vmatmul.mubr.f32.gmra.mxu0 %v2405
  %v2896 = vpop.f32.mrf.mxu0
  %v2897 = vadd.f32 0.0, %v2896
  %v2898 = vpop.f32.mrf.mxu0
  %v2899 = vadd.f32 0.0, %v2898
  %2900 = vmatprep.mubr.f32.mxu0 %v2408
  %2901 = vmatmul.mubr.f32.gmra.mxu0 %v2407
  %v2902 = vpop.f32.mrf.mxu0
  %v2903 = vadd.f32 0.0, %v2902
  %v2904 = vpop.f32.mrf.mxu0
  %v2905 = vadd.f32 0.0, %v2904
  %2906 = vmatprep.mubr.f32.mxu0 %v2410
  %2907 = vmatmul.mubr.f32.gmra.mxu0 %v2409
  %v2908 = vpop.f32.mrf.mxu0
  %v2909 = vadd.f32 0.0, %v2908
  %v2910 = vpop.f32.mrf.mxu0
  %v2911 = vadd.f32 0.0, %v2910
  %2912 = vmatprep.mubr.f32.mxu0 %v2412
  %2913 = vmatmul.mubr.f32.gmra.mxu0 %v2411
  %v2914 = vpop.f32.mrf.mxu0
  %v2915 = vadd.f32 0.0, %v2914
  %v2916 = vpop.f32.mrf.mxu0
  %v2917 = vadd.f32 0.0, %v2916
  %2918 = vmatprep.mubr.f32.mxu0 %v2414
  %2919 = vmatmul.mubr.f32.gmra.mxu0 %v2413
  %v2920 = vpop.f32.mrf.mxu0
  %v2921 = vadd.f32 0.0, %v2920
  %v2922 = vpop.f32.mrf.mxu0
  %v2923 = vadd.f32 0.0, %v2922
  %2924 = vmatprep.mubr.f32.mxu0 %v2416
  %2925 = vmatmul.mubr.f32.gmra.mxu0 %v2415
  %v2926 = vpop.f32.mrf.mxu0
  %v2927 = vadd.f32 0.0, %v2926
  %v2928 = vpop.f32.mrf.mxu0
  %v2929 = vadd.f32 0.0, %v2928
  %2930 = vmatprep.mubr.f32.mxu0 %v2418
  %2931 = vmatmul.mubr.f32.gmra.mxu0 %v2417
  %v2932 = vpop.f32.mrf.mxu0
  %v2933 = vadd.f32 0.0, %v2932
  %v2934 = vpop.f32.mrf.mxu0
  %v2935 = vadd.f32 0.0, %v2934
  %2936 = vmatprep.mubr.f32.mxu0 %v2420
  %2937 = vmatmul.mubr.f32.gmra.mxu0 %v2419
  %v2938 = vpop.f32.mrf.mxu0
  %v2939 = vadd.f32 0.0, %v2938
  %v2940 = vpop.f32.mrf.mxu0
  %v2941 = vadd.f32 0.0, %v2940
  %2942 = vmatprep.mubr.f32.mxu0 %v2422
  %2943 = vmatmul.mubr.f32.gmra.mxu0 %v2421
  %v2944 = vpop.f32.mrf.mxu0
  %v2945 = vadd.f32 0.0, %v2944
  %v2946 = vpop.f32.mrf.mxu0
  %v2947 = vadd.f32 0.0, %v2946
  %2948 = vmatprep.mubr.f32.mxu0 %v2424
  %2949 = vmatmul.mubr.f32.gmra.mxu0 %v2423
  %v2950 = vpop.f32.mrf.mxu0
  %v2951 = vadd.f32 0.0, %v2950
  %v2952 = vpop.f32.mrf.mxu0
  %v2953 = vadd.f32 0.0, %v2952
  %2954 = vmatprep.mubr.f32.mxu0 %v2426
  %2955 = vmatmul.mubr.f32.gmra.mxu0 %v2425
  %v2956 = vpop.f32.mrf.mxu0
  %v2957 = vadd.f32 0.0, %v2956
  %v2958 = vpop.f32.mrf.mxu0
  %v2959 = vadd.f32 0.0, %v2958
  %2960 = vmatprep.mubr.f32.mxu0 %v2428
  %2961 = vmatmul.mubr.f32.gmra.mxu0 %v2427
  %v2962 = vpop.f32.mrf.mxu0
  %v2963 = vadd.f32 0.0, %v2962
  %v2964 = vpop.f32.mrf.mxu0
  %v2965 = vadd.f32 0.0, %v2964
  %2966 = vdwg.mxu0
  %v2967 = vadd.f32 %v1887, %v2561
  %v2968 = vadd.f32 %v1889, %v2563
  %v2969 = vadd.f32 %v1893, %v2567
  %v2970 = vadd.f32 %v1895, %v2569
  %v2971 = vadd.f32 %v1899, %v2573
  %v2972 = vadd.f32 %v1901, %v2575
  %v2973 = vadd.f32 %v1905, %v2579
  %v2974 = vadd.f32 %v1907, %v2581
  %v2975 = vadd.f32 %v1911, %v2585
  %v2976 = vadd.f32 %v1913, %v2587
  %v2977 = vadd.f32 %v1917, %v2591
  %v2978 = vadd.f32 %v1919, %v2593
  %v2979 = vadd.f32 %v1923, %v2597
  %v2980 = vadd.f32 %v1925, %v2599
  %v2981 = vadd.f32 %v1929, %v2603
  %v2982 = vadd.f32 %v1931, %v2605
  %v2983 = vadd.f32 %v1935, %v2609
  %v2984 = vadd.f32 %v1937, %v2611
  %v2985 = vadd.f32 %v1941, %v2615
  %v2986 = vadd.f32 %v1943, %v2617
  %v2987 = vadd.f32 %v1947, %v2621
  %v2988 = vadd.f32 %v1949, %v2623
  %v2989 = vadd.f32 %v1953, %v2627
  %v2990 = vadd.f32 %v1955, %v2629
  %v2991 = vadd.f32 %v1959, %v2633
  %v2992 = vadd.f32 %v1961, %v2635
  %v2993 = vadd.f32 %v1965, %v2639
  %v2994 = vadd.f32 %v1967, %v2641
  %v2995 = vadd.f32 %v1971, %v2645
  %v2996 = vadd.f32 %v1973, %v2647
  %v2997 = vadd.f32 %v1977, %v2651
  %v2998 = vadd.f32 %v1979, %v2653
  %v2999 = vadd.f32 %v1983, %v2657
  %v3000 = vadd.f32 %v1985, %v2659
  %v3001 = vadd.f32 %v1989, %v2663
  %v3002 = vadd.f32 %v1991, %v2665
  %v3003 = vadd.f32 %v1995, %v2669
  %v3004 = vadd.f32 %v1997, %v2671
  %v3005 = vadd.f32 %v2001, %v2675
  %v3006 = vadd.f32 %v2003, %v2677
  %v3007 = vadd.f32 %v2007, %v2681
  %v3008 = vadd.f32 %v2009, %v2683
  %v3009 = vadd.f32 %v2013, %v2687
  %v3010 = vadd.f32 %v2015, %v2689
  %v3011 = vadd.f32 %v2019, %v2693
  %v3012 = vadd.f32 %v2021, %v2695
  %v3013 = vadd.f32 %v2025, %v2699
  %v3014 = vadd.f32 %v2027, %v2701
  %v3015 = vadd.f32 %v2031, %v2705
  %v3016 = vadd.f32 %v2033, %v2707
  %v3017 = vadd.f32 %v2037, %v2711
  %v3018 = vadd.f32 %v2039, %v2713
  %v3019 = vadd.f32 %v2043, %v2717
  %v3020 = vadd.f32 %v2045, %v2719
  %v3021 = vadd.f32 %v2049, %v2723
  %v3022 = vadd.f32 %v2051, %v2725
  %v3023 = vadd.f32 %v2055, %v2729
  %v3024 = vadd.f32 %v2057, %v2731
  %v3025 = vadd.f32 %v2061, %v2735
  %v3026 = vadd.f32 %v2063, %v2737
  %v3027 = vadd.f32 %v2067, %v2741
  %v3028 = vadd.f32 %v2069, %v2743
  %v3029 = vadd.f32 %v2073, %v2747
  %v3030 = vadd.f32 %v2075, %v2749
  %v3031 = vadd.f32 %v2079, %v2753
  %v3032 = vadd.f32 %v2081, %v2755
  %v3033 = vadd.f32 %v2085, %v2759
  %v3034 = vadd.f32 %v2087, %v2761
  %v3035 = vadd.f32 %v2091, %v2765
  %v3036 = vadd.f32 %v2093, %v2767
  %v3037 = vadd.f32 %v2097, %v2771
  %v3038 = vadd.f32 %v2099, %v2773
  %v3039 = vadd.f32 %v2103, %v2777
  %v3040 = vadd.f32 %v2105, %v2779
  %v3041 = vadd.f32 %v2109, %v2783
  %v3042 = vadd.f32 %v2111, %v2785
  %v3043 = vadd.f32 %v2115, %v2789
  %v3044 = vadd.f32 %v2117, %v2791
  %v3045 = vadd.f32 %v2121, %v2795
  %v3046 = vadd.f32 %v2123, %v2797
  %v3047 = vadd.f32 %v2127, %v2801
  %v3048 = vadd.f32 %v2129, %v2803
  %v3049 = vadd.f32 %v2133, %v2807
  %v3050 = vadd.f32 %v2135, %v2809
  %v3051 = vadd.f32 %v2139, %v2813
  %v3052 = vadd.f32 %v2141, %v2815
  %v3053 = vadd.f32 %v2145, %v2819
  %v3054 = vadd.f32 %v2147, %v2821
  %v3055 = vadd.f32 %v2151, %v2825
  %v3056 = vadd.f32 %v2153, %v2827
  %v3057 = vadd.f32 %v2157, %v2831
  %v3058 = vadd.f32 %v2159, %v2833
  %v3059 = vadd.f32 %v2163, %v2837
  %v3060 = vadd.f32 %v2165, %v2839
  %v3061 = vadd.f32 %v2169, %v2843
  %v3062 = vadd.f32 %v2171, %v2845
  %v3063 = vadd.f32 %v2175, %v2849
  %v3064 = vadd.f32 %v2177, %v2851
  %v3065 = vadd.f32 %v2181, %v2855
  %v3066 = vadd.f32 %v2183, %v2857
  %v3067 = vadd.f32 %v2187, %v2861
  %v3068 = vadd.f32 %v2189, %v2863
  %v3069 = vadd.f32 %v2193, %v2867
  %v3070 = vadd.f32 %v2195, %v2869
  %v3071 = vadd.f32 %v2199, %v2873
  %v3072 = vadd.f32 %v2201, %v2875
  %v3073 = vadd.f32 %v2205, %v2879
  %v3074 = vadd.f32 %v2207, %v2881
  %v3075 = vadd.f32 %v2211, %v2885
  %v3076 = vadd.f32 %v2213, %v2887
  %v3077 = vadd.f32 %v2217, %v2891
  %v3078 = vadd.f32 %v2219, %v2893
  %v3079 = vadd.f32 %v2223, %v2897
  %v3080 = vadd.f32 %v2225, %v2899
  %v3081 = vadd.f32 %v2229, %v2903
  %v3082 = vadd.f32 %v2231, %v2905
  %v3083 = vadd.f32 %v2235, %v2909
  %v3084 = vadd.f32 %v2237, %v2911
  %v3085 = vadd.f32 %v2241, %v2915
  %v3086 = vadd.f32 %v2243, %v2917
  %v3087 = vadd.f32 %v2247, %v2921
  %v3088 = vadd.f32 %v2249, %v2923
  %v3089 = vadd.f32 %v2253, %v2927
  %v3090 = vadd.f32 %v2255, %v2929
  %v3091 = vadd.f32 %v2259, %v2933
  %v3092 = vadd.f32 %v2261, %v2935
  %v3093 = vadd.f32 %v2265, %v2939
  %v3094 = vadd.f32 %v2267, %v2941
  %v3095 = vadd.f32 %v2271, %v2945
  %v3096 = vadd.f32 %v2273, %v2947
  %v3097 = vadd.f32 %v2277, %v2951
  %v3098 = vadd.f32 %v2279, %v2953
  %v3099 = vadd.f32 %v2283, %v2957
  %v3100 = vadd.f32 %v2285, %v2959
  %v3101 = vadd.f32 %v2289, %v2963
  %v3102 = vadd.f32 %v2291, %v2965
  %v3103 = vld [vmem:[%s4] sm:$0x3]
  %v3105 = vlaneseq
  %v3106 = vshrl.u32 %v3105, 7
  %v3107 = vsub.s32 0, %v3106
  %v3108 = vrot.slane %v3103, %v3107
  %v3109 = vlaneseq
  %v3110 = vshrl.u32 %v3109, 7
  %v3111 = vsub.s32 1, %v3110
  %v3112 = vrot.slane %v3103, %v3111
  %v3115 = vadd.f32 %v2967, %v3108
  %v3116 = vadd.f32 %v2968, %v3112
  %v3117 = vadd.f32 %v2969, %v3108
  %v3118 = vadd.f32 %v2970, %v3112
  %v3119 = vadd.f32 %v2971, %v3108
  %v3120 = vadd.f32 %v2972, %v3112
  %v3121 = vadd.f32 %v2973, %v3108
  %v3122 = vadd.f32 %v2974, %v3112
  %v3123 = vadd.f32 %v2975, %v3108
  %v3124 = vadd.f32 %v2976, %v3112
  %v3125 = vadd.f32 %v2977, %v3108
  %v3126 = vadd.f32 %v2978, %v3112
  %v3127 = vadd.f32 %v2979, %v3108
  %v3128 = vadd.f32 %v2980, %v3112
  %v3129 = vadd.f32 %v2981, %v3108
  %v3130 = vadd.f32 %v2982, %v3112
  %v3131 = vadd.f32 %v2983, %v3108
  %v3132 = vadd.f32 %v2984, %v3112
  %v3133 = vadd.f32 %v2985, %v3108
  %v3134 = vadd.f32 %v2986, %v3112
  %v3135 = vadd.f32 %v2987, %v3108
  %v3136 = vadd.f32 %v2988, %v3112
  %v3137 = vadd.f32 %v2989, %v3108
  %v3138 = vadd.f32 %v2990, %v3112
  %v3139 = vadd.f32 %v2991, %v3108
  %v3140 = vadd.f32 %v2992, %v3112
  %v3141 = vadd.f32 %v2993, %v3108
  %v3142 = vadd.f32 %v2994, %v3112
  %v3143 = vadd.f32 %v2995, %v3108
  %v3144 = vadd.f32 %v2996, %v3112
  %v3145 = vadd.f32 %v2997, %v3108
  %v3146 = vadd.f32 %v2998, %v3112
  %v3147 = vadd.f32 %v2999, %v3108
  %v3148 = vadd.f32 %v3000, %v3112
  %v3149 = vadd.f32 %v3001, %v3108
  %v3150 = vadd.f32 %v3002, %v3112
  %v3151 = vadd.f32 %v3003, %v3108
  %v3152 = vadd.f32 %v3004, %v3112
  %v3153 = vadd.f32 %v3005, %v3108
  %v3154 = vadd.f32 %v3006, %v3112
  %v3155 = vadd.f32 %v3007, %v3108
  %v3156 = vadd.f32 %v3008, %v3112
  %v3157 = vadd.f32 %v3009, %v3108
  %v3158 = vadd.f32 %v3010, %v3112
  %v3159 = vadd.f32 %v3011, %v3108
  %v3160 = vadd.f32 %v3012, %v3112
  %v3161 = vadd.f32 %v3013, %v3108
  %v3162 = vadd.f32 %v3014, %v3112
  %v3163 = vadd.f32 %v3015, %v3108
  %v3164 = vadd.f32 %v3016, %v3112
  %v3165 = vadd.f32 %v3017, %v3108
  %v3166 = vadd.f32 %v3018, %v3112
  %v3167 = vadd.f32 %v3019, %v3108
  %v3168 = vadd.f32 %v3020, %v3112
  %v3169 = vadd.f32 %v3021, %v3108
  %v3170 = vadd.f32 %v3022, %v3112
  %v3171 = vadd.f32 %v3023, %v3108
  %v3172 = vadd.f32 %v3024, %v3112
  %v3173 = vadd.f32 %v3025, %v3108
  %v3174 = vadd.f32 %v3026, %v3112
  %v3175 = vadd.f32 %v3027, %v3108
  %v3176 = vadd.f32 %v3028, %v3112
  %v3177 = vadd.f32 %v3029, %v3108
  %v3178 = vadd.f32 %v3030, %v3112
  %v3179 = vadd.f32 %v3031, %v3108
  %v3180 = vadd.f32 %v3032, %v3112
  %v3181 = vadd.f32 %v3033, %v3108
  %v3182 = vadd.f32 %v3034, %v3112
  %v3183 = vadd.f32 %v3035, %v3108
  %v3184 = vadd.f32 %v3036, %v3112
  %v3185 = vadd.f32 %v3037, %v3108
  %v3186 = vadd.f32 %v3038, %v3112
  %v3187 = vadd.f32 %v3039, %v3108
  %v3188 = vadd.f32 %v3040, %v3112
  %v3189 = vadd.f32 %v3041, %v3108
  %v3190 = vadd.f32 %v3042, %v3112
  %v3191 = vadd.f32 %v3043, %v3108
  %v3192 = vadd.f32 %v3044, %v3112
  %v3193 = vadd.f32 %v3045, %v3108
  %v3194 = vadd.f32 %v3046, %v3112
  %v3195 = vadd.f32 %v3047, %v3108
  %v3196 = vadd.f32 %v3048, %v3112
  %v3197 = vadd.f32 %v3049, %v3108
  %v3198 = vadd.f32 %v3050, %v3112
  %v3199 = vadd.f32 %v3051, %v3108
  %v3200 = vadd.f32 %v3052, %v3112
  %v3201 = vadd.f32 %v3053, %v3108
  %v3202 = vadd.f32 %v3054, %v3112
  %v3203 = vadd.f32 %v3055, %v3108
  %v3204 = vadd.f32 %v3056, %v3112
  %v3205 = vadd.f32 %v3057, %v3108
  %v3206 = vadd.f32 %v3058, %v3112
  %v3207 = vadd.f32 %v3059, %v3108
  %v3208 = vadd.f32 %v3060, %v3112
  %v3209 = vadd.f32 %v3061, %v3108
  %v3210 = vadd.f32 %v3062, %v3112
  %v3211 = vadd.f32 %v3063, %v3108
  %v3212 = vadd.f32 %v3064, %v3112
  %v3213 = vadd.f32 %v3065, %v3108
  %v3214 = vadd.f32 %v3066, %v3112
  %v3215 = vadd.f32 %v3067, %v3108
  %v3216 = vadd.f32 %v3068, %v3112
  %v3217 = vadd.f32 %v3069, %v3108
  %v3218 = vadd.f32 %v3070, %v3112
  %v3219 = vadd.f32 %v3071, %v3108
  %v3220 = vadd.f32 %v3072, %v3112
  %v3221 = vadd.f32 %v3073, %v3108
  %v3222 = vadd.f32 %v3074, %v3112
  %v3223 = vadd.f32 %v3075, %v3108
  %v3224 = vadd.f32 %v3076, %v3112
  %v3225 = vadd.f32 %v3077, %v3108
  %v3226 = vadd.f32 %v3078, %v3112
  %v3227 = vadd.f32 %v3079, %v3108
  %v3228 = vadd.f32 %v3080, %v3112
  %v3229 = vadd.f32 %v3081, %v3108
  %v3230 = vadd.f32 %v3082, %v3112
  %v3231 = vadd.f32 %v3083, %v3108
  %v3232 = vadd.f32 %v3084, %v3112
  %v3233 = vadd.f32 %v3085, %v3108
  %v3234 = vadd.f32 %v3086, %v3112
  %v3235 = vadd.f32 %v3087, %v3108
  %v3236 = vadd.f32 %v3088, %v3112
  %v3237 = vadd.f32 %v3089, %v3108
  %v3238 = vadd.f32 %v3090, %v3112
  %v3239 = vadd.f32 %v3091, %v3108
  %v3240 = vadd.f32 %v3092, %v3112
  %v3241 = vadd.f32 %v3093, %v3108
  %v3242 = vadd.f32 %v3094, %v3112
  %v3243 = vadd.f32 %v3095, %v3108
  %v3244 = vadd.f32 %v3096, %v3112
  %v3245 = vadd.f32 %v3097, %v3108
  %v3246 = vadd.f32 %v3098, %v3112
  %v3247 = vadd.f32 %v3099, %v3108
  %v3248 = vadd.f32 %v3100, %v3112
  %v3249 = vadd.f32 %v3101, %v3108
  %v3250 = vadd.f32 %v3102, %v3112
  %v3251 = vmax.f32 %v3115, 0.0
  %v3252 = vmax.f32 %v3116, 0.0
  %v3253 = vmax.f32 %v3117, 0.0
  %v3254 = vmax.f32 %v3118, 0.0
  %v3255 = vmax.f32 %v3119, 0.0
  %v3256 = vmax.f32 %v3120, 0.0
  %v3257 = vmax.f32 %v3121, 0.0
  %v3258 = vmax.f32 %v3122, 0.0
  %v3259 = vmax.f32 %v3123, 0.0
  %v3260 = vmax.f32 %v3124, 0.0
  %v3261 = vmax.f32 %v3125, 0.0
  %v3262 = vmax.f32 %v3126, 0.0
  %v3263 = vmax.f32 %v3127, 0.0
  %v3264 = vmax.f32 %v3128, 0.0
  %v3265 = vmax.f32 %v3129, 0.0
  %v3266 = vmax.f32 %v3130, 0.0
  %v3267 = vmax.f32 %v3131, 0.0
  %v3268 = vmax.f32 %v3132, 0.0
  %v3269 = vmax.f32 %v3133, 0.0
  %v3270 = vmax.f32 %v3134, 0.0
  %v3271 = vmax.f32 %v3135, 0.0
  %v3272 = vmax.f32 %v3136, 0.0
  %v3273 = vmax.f32 %v3137, 0.0
  %v3274 = vmax.f32 %v3138, 0.0
  %v3275 = vmax.f32 %v3139, 0.0
  %v3276 = vmax.f32 %v3140, 0.0
  %v3277 = vmax.f32 %v3141, 0.0
  %v3278 = vmax.f32 %v3142, 0.0
  %v3279 = vmax.f32 %v3143, 0.0
  %v3280 = vmax.f32 %v3144, 0.0
  %v3281 = vmax.f32 %v3145, 0.0
  %v3282 = vmax.f32 %v3146, 0.0
  %v3283 = vmax.f32 %v3147, 0.0
  %v3284 = vmax.f32 %v3148, 0.0
  %v3285 = vmax.f32 %v3149, 0.0
  %v3286 = vmax.f32 %v3150, 0.0
  %v3287 = vmax.f32 %v3151, 0.0
  %v3288 = vmax.f32 %v3152, 0.0
  %v3289 = vmax.f32 %v3153, 0.0
  %v3290 = vmax.f32 %v3154, 0.0
  %v3291 = vmax.f32 %v3155, 0.0
  %v3292 = vmax.f32 %v3156, 0.0
  %v3293 = vmax.f32 %v3157, 0.0
  %v3294 = vmax.f32 %v3158, 0.0
  %v3295 = vmax.f32 %v3159, 0.0
  %v3296 = vmax.f32 %v3160, 0.0
  %v3297 = vmax.f32 %v3161, 0.0
  %v3298 = vmax.f32 %v3162, 0.0
  %v3299 = vmax.f32 %v3163, 0.0
  %v3300 = vmax.f32 %v3164, 0.0
  %v3301 = vmax.f32 %v3165, 0.0
  %v3302 = vmax.f32 %v3166, 0.0
  %v3303 = vmax.f32 %v3167, 0.0
  %v3304 = vmax.f32 %v3168, 0.0
  %v3305 = vmax.f32 %v3169, 0.0
  %v3306 = vmax.f32 %v3170, 0.0
  %v3307 = vmax.f32 %v3171, 0.0
  %v3308 = vmax.f32 %v3172, 0.0
  %v3309 = vmax.f32 %v3173, 0.0
  %v3310 = vmax.f32 %v3174, 0.0
  %v3311 = vmax.f32 %v3175, 0.0
  %v3312 = vmax.f32 %v3176, 0.0
  %v3313 = vmax.f32 %v3177, 0.0
  %v3314 = vmax.f32 %v3178, 0.0
  %v3315 = vmax.f32 %v3179, 0.0
  %v3316 = vmax.f32 %v3180, 0.0
  %v3317 = vmax.f32 %v3181, 0.0
  %v3318 = vmax.f32 %v3182, 0.0
  %v3319 = vmax.f32 %v3183, 0.0
  %v3320 = vmax.f32 %v3184, 0.0
  %v3321 = vmax.f32 %v3185, 0.0
  %v3322 = vmax.f32 %v3186, 0.0
  %v3323 = vmax.f32 %v3187, 0.0
  %v3324 = vmax.f32 %v3188, 0.0
  %v3325 = vmax.f32 %v3189, 0.0
  %v3326 = vmax.f32 %v3190, 0.0
  %v3327 = vmax.f32 %v3191, 0.0
  %v3328 = vmax.f32 %v3192, 0.0
  %v3329 = vmax.f32 %v3193, 0.0
  %v3330 = vmax.f32 %v3194, 0.0
  %v3331 = vmax.f32 %v3195, 0.0
  %v3332 = vmax.f32 %v3196, 0.0
  %v3333 = vmax.f32 %v3197, 0.0
  %v3334 = vmax.f32 %v3198, 0.0
  %v3335 = vmax.f32 %v3199, 0.0
  %v3336 = vmax.f32 %v3200, 0.0
  %v3337 = vmax.f32 %v3201, 0.0
  %v3338 = vmax.f32 %v3202, 0.0
  %v3339 = vmax.f32 %v3203, 0.0
  %v3340 = vmax.f32 %v3204, 0.0
  %v3341 = vmax.f32 %v3205, 0.0
  %v3342 = vmax.f32 %v3206, 0.0
  %v3343 = vmax.f32 %v3207, 0.0
  %v3344 = vmax.f32 %v3208, 0.0
  %v3345 = vmax.f32 %v3209, 0.0
  %v3346 = vmax.f32 %v3210, 0.0
  %v3347 = vmax.f32 %v3211, 0.0
  %v3348 = vmax.f32 %v3212, 0.0
  %v3349 = vmax.f32 %v3213, 0.0
  %v3350 = vmax.f32 %v3214, 0.0
  %v3351 = vmax.f32 %v3215, 0.0
  %v3352 = vmax.f32 %v3216, 0.0
  %v3353 = vmax.f32 %v3217, 0.0
  %v3354 = vmax.f32 %v3218, 0.0
  %v3355 = vmax.f32 %v3219, 0.0
  %v3356 = vmax.f32 %v3220, 0.0
  %v3357 = vmax.f32 %v3221, 0.0
  %v3358 = vmax.f32 %v3222, 0.0
  %v3359 = vmax.f32 %v3223, 0.0
  %v3360 = vmax.f32 %v3224, 0.0
  %v3361 = vmax.f32 %v3225, 0.0
  %v3362 = vmax.f32 %v3226, 0.0
  %v3363 = vmax.f32 %v3227, 0.0
  %v3364 = vmax.f32 %v3228, 0.0
  %v3365 = vmax.f32 %v3229, 0.0
  %v3366 = vmax.f32 %v3230, 0.0
  %v3367 = vmax.f32 %v3231, 0.0
  %v3368 = vmax.f32 %v3232, 0.0
  %v3369 = vmax.f32 %v3233, 0.0
  %v3370 = vmax.f32 %v3234, 0.0
  %v3371 = vmax.f32 %v3235, 0.0
  %v3372 = vmax.f32 %v3236, 0.0
  %v3373 = vmax.f32 %v3237, 0.0
  %v3374 = vmax.f32 %v3238, 0.0
  %v3375 = vmax.f32 %v3239, 0.0
  %v3376 = vmax.f32 %v3240, 0.0
  %v3377 = vmax.f32 %v3241, 0.0
  %v3378 = vmax.f32 %v3242, 0.0
  %v3379 = vmax.f32 %v3243, 0.0
  %v3380 = vmax.f32 %v3244, 0.0
  %v3381 = vmax.f32 %v3245, 0.0
  %v3382 = vmax.f32 %v3246, 0.0
  %v3383 = vmax.f32 %v3247, 0.0
  %v3384 = vmax.f32 %v3248, 0.0
  %v3385 = vmax.f32 %v3249, 0.0
  %v3386 = vmax.f32 %v3250, 0.0
  %3387 = vst [vmem:[#allocation2 + $0x20] sm:$0xff] %v3251
  %3388 = vst [vmem:[#allocation2 + $0x28] sm:$0xff] %v3252
  %3389 = vst [vmem:[#allocation2 + $0x30] sm:$0xff] %v3253
  %3390 = vst [vmem:[#allocation2 + $0x38] sm:$0xff] %v3254
  %3391 = vst [vmem:[#allocation2 + $0x40] sm:$0xff] %v3255
  %3392 = vst [vmem:[#allocation2 + $0x48] sm:$0xff] %v3256
  %3393 = vst [vmem:[#allocation2 + $0x50] sm:$0xff] %v3257
  %3394 = vst [vmem:[#allocation2 + $0x58] sm:$0xff] %v3258
  %3395 = vst [vmem:[#allocation2 + $0x60] sm:$0xff] %v3259
  %3396 = vst [vmem:[#allocation2 + $0x68] sm:$0xff] %v3260
  %3397 = vst [vmem:[#allocation2 + $0x70] sm:$0xff] %v3261
  %3398 = vst [vmem:[#allocation2 + $0x78] sm:$0xff] %v3262
  %3399 = vst [vmem:[#allocation2 + $0x80] sm:$0xff] %v3263
  %3400 = vst [vmem:[#allocation2 + $0x88] sm:$0xff] %v3264
  %3401 = vst [vmem:[#allocation2 + $0x90] sm:$0xff] %v3265
  %3402 = vst [vmem:[#allocation2 + $0x98] sm:$0xff] %v3266
  %3403 = vst [vmem:[#allocation2 + $0xa0] sm:$0xff] %v3267
  %3404 = vst [vmem:[#allocation2 + $0xa8] sm:$0xff] %v3268
  %3405 = vst [vmem:[#allocation2 + $0xb0] sm:$0xff] %v3269
  %3406 = vst [vmem:[#allocation2 + $0xb8] sm:$0xff] %v3270
  %3407 = vst [vmem:[#allocation2 + $0xc0] sm:$0xff] %v3271
  %3408 = vst [vmem:[#allocation2 + $0xc8] sm:$0xff] %v3272
  %3409 = vst [vmem:[#allocation2 + $0xd0] sm:$0xff] %v3273
  %3410 = vst [vmem:[#allocation2 + $0xd8] sm:$0xff] %v3274
  %3411 = vst [vmem:[#allocation2 + $0xe0] sm:$0xff] %v3275
  %3412 = vst [vmem:[#allocation2 + $0xe8] sm:$0xff] %v3276
  %3413 = vst [vmem:[#allocation2 + $0xf0] sm:$0xff] %v3277
  %3414 = vst [vmem:[#allocation2 + $0xf8] sm:$0xff] %v3278
  %3415 = vst [vmem:[#allocation2 + $0x100] sm:$0xff] %v3279
  %3416 = vst [vmem:[#allocation2 + $0x108] sm:$0xff] %v3280
  %3417 = vst [vmem:[#allocation2 + $0x110] sm:$0xff] %v3281
  %3418 = vst [vmem:[#allocation2 + $0x118] sm:$0xff] %v3282
  %3419 = vst [vmem:[#allocation2 + $0x120] sm:$0xff] %v3283
  %3420 = vst [vmem:[#allocation2 + $0x128] sm:$0xff] %v3284
  %3421 = vst [vmem:[#allocation2 + $0x130] sm:$0xff] %v3285
  %3422 = vst [vmem:[#allocation2 + $0x138] sm:$0xff] %v3286
  %3423 = vst [vmem:[#allocation2 + $0x140] sm:$0xff] %v3287
  %3424 = vst [vmem:[#allocation2 + $0x148] sm:$0xff] %v3288
  %3425 = vst [vmem:[#allocation2 + $0x150] sm:$0xff] %v3289
  %3426 = vst [vmem:[#allocation2 + $0x158] sm:$0xff] %v3290
  %3427 = vst [vmem:[#allocation2 + $0x160] sm:$0xff] %v3291
  %3428 = vst [vmem:[#allocation2 + $0x168] sm:$0xff] %v3292
  %3429 = vst [vmem:[#allocation2 + $0x170] sm:$0xff] %v3293
  %3430 = vst [vmem:[#allocation2 + $0x178] sm:$0xff] %v3294
  %3431 = vst [vmem:[#allocation2 + $0x180] sm:$0xff] %v3295
  %3432 = vst [vmem:[#allocation2 + $0x188] sm:$0xff] %v3296
  %3433 = vst [vmem:[#allocation2 + $0x190] sm:$0xff] %v3297
  %3434 = vst [vmem:[#allocation2 + $0x198] sm:$0xff] %v3298
  %3435 = vst [vmem:[#allocation2 + $0x1a0] sm:$0xff] %v3299
  %3436 = vst [vmem:[#allocation2 + $0x1a8] sm:$0xff] %v3300
  %3437 = vst [vmem:[#allocation2 + $0x1b0] sm:$0xff] %v3301
  %3438 = vst [vmem:[#allocation2 + $0x1b8] sm:$0xff] %v3302
  %3439 = vst [vmem:[#allocation2 + $0x1c0] sm:$0xff] %v3303
  %3440 = vst [vmem:[#allocation2 + $0x1c8] sm:$0xff] %v3304
  %3441 = vst [vmem:[#allocation2 + $0x1d0] sm:$0xff] %v3305
  %3442 = vst [vmem:[#allocation2 + $0x1d8] sm:$0xff] %v3306
  %3443 = vst [vmem:[#allocation2 + $0x1e0] sm:$0xff] %v3307
  %3444 = vst [vmem:[#allocation2 + $0x1e8] sm:$0xff] %v3308
  %3445 = vst [vmem:[#allocation2 + $0x1f0] sm:$0xff] %v3309
  %3446 = vst [vmem:[#allocation2 + $0x1f8] sm:$0xff] %v3310
  %3447 = vst [vmem:[#allocation2 + $0x200] sm:$0xff] %v3311
  %3448 = vst [vmem:[#allocation2 + $0x208] sm:$0xff] %v3312
  %3449 = vst [vmem:[#allocation2 + $0x210] sm:$0xff] %v3313
  %3450 = vst [vmem:[#allocation2 + $0x218] sm:$0xff] %v3314
  %3451 = vst [vmem:[#allocation2 + $0x220] sm:$0xff] %v3315
  %3452 = vst [vmem:[#allocation2 + $0x228] sm:$0xff] %v3316
  %3453 = vst [vmem:[#allocation2 + $0x230] sm:$0xff] %v3317
  %3454 = vst [vmem:[#allocation2 + $0x238] sm:$0xff] %v3318
  %3455 = vst [vmem:[#allocation2 + $0x240] sm:$0xff] %v3319
  %3456 = vst [vmem:[#allocation2 + $0x248] sm:$0xff] %v3320
  %3457 = vst [vmem:[#allocation2 + $0x250] sm:$0xff] %v3321
  %3458 = vst [vmem:[#allocation2 + $0x258] sm:$0xff] %v3322
  %3459 = vst [vmem:[#allocation2 + $0x260] sm:$0xff] %v3323
  %3460 = vst [vmem:[#allocation2 + $0x268] sm:$0xff] %v3324
  %3461 = vst [vmem:[#allocation2 + $0x270] sm:$0xff] %v3325
  %3462 = vst [vmem:[#allocation2 + $0x278] sm:$0xff] %v3326
  %3463 = vst [vmem:[#allocation2 + $0x280] sm:$0xff] %v3327
  %3464 = vst [vmem:[#allocation2 + $0x288] sm:$0xff] %v3328
  %3465 = vst [vmem:[#allocation2 + $0x290] sm:$0xff] %v3329
  %3466 = vst [vmem:[#allocation2 + $0x298] sm:$0xff] %v3330
  %3467 = vst [vmem:[#allocation2 + $0x2a0] sm:$0xff] %v3331
  %3468 = vst [vmem:[#allocation2 + $0x2a8] sm:$0xff] %v3332
  %3469 = vst [vmem:[#allocation2 + $0x2b0] sm:$0xff] %v3333
  %3470 = vst [vmem:[#allocation2 + $0x2b8] sm:$0xff] %v3334
  %3471 = vst [vmem:[#allocation2 + $0x2c0] sm:$0xff] %v3335
  %3472 = vst [vmem:[#allocation2 + $0x2c8] sm:$0xff] %v3336
  %3473 = vst [vmem:[#allocation2 + $0x2d0] sm:$0xff] %v3337
  %3474 = vst [vmem:[#allocation2 + $0x2d8] sm:$0xff] %v3338
  %3475 = vst [vmem:[#allocation2 + $0x2e0] sm:$0xff] %v3339
  %3476 = vst [vmem:[#allocation2 + $0x2e8] sm:$0xff] %v3340
  %3477 = vst [vmem:[#allocation2 + $0x2f0] sm:$0xff] %v3341
  %3478 = vst [vmem:[#allocation2 + $0x2f8] sm:$0xff] %v3342
  %3479 = vst [vmem:[#allocation2 + $0x300] sm:$0xff] %v3343
  %3480 = vst [vmem:[#allocation2 + $0x308] sm:$0xff] %v3344
  %3481 = vst [vmem:[#allocation2 + $0x310] sm:$0xff] %v3345
  %3482 = vst [vmem:[#allocation2 + $0x318] sm:$0xff] %v3346
  %3483 = vst [vmem:[#allocation2 + $0x320] sm:$0xff] %v3347
  %3484 = vst [vmem:[#allocation2 + $0x328] sm:$0xff] %v3348
  %3485 = vst [vmem:[#allocation2 + $0x330] sm:$0xff] %v3349
  %3486 = vst [vmem:[#allocation2 + $0x338] sm:$0xff] %v3350
  %3487 = vst [vmem:[#allocation2 + $0x340] sm:$0xff] %v3351
  %3488 = vst [vmem:[#allocation2 + $0x348] sm:$0xff] %v3352
  %3489 = vst [vmem:[#allocation2 + $0x350] sm:$0xff] %v3353
  %3490 = vst [vmem:[#allocation2 + $0x358] sm:$0xff] %v3354
  %3491 = vst [vmem:[#allocation2 + $0x360] sm:$0xff] %v3355
  %3492 = vst [vmem:[#allocation2 + $0x368] sm:$0xff] %v3356
  %3493 = vst [vmem:[#allocation2 + $0x370] sm:$0xff] %v3357
  %3494 = vst [vmem:[#allocation2 + $0x378] sm:$0xff] %v3358
  %3495 = vst [vmem:[#allocation2 + $0x380] sm:$0xff] %v3359
  %3496 = vst [vmem:[#allocation2 + $0x388] sm:$0xff] %v3360
  %3497 = vst [vmem:[#allocation2 + $0x390] sm:$0xff] %v3361
  %3498 = vst [vmem:[#allocation2 + $0x398] sm:$0xff] %v3362
  %3499 = vst [vmem:[#allocation2 + $0x3a0] sm:$0xff] %v3363
  %3500 = vst [vmem:[#allocation2 + $0x3a8] sm:$0xff] %v3364
  %3501 = vst [vmem:[#allocation2 + $0x3b0] sm:$0xff] %v3365
  %3502 = vst [vmem:[#allocation2 + $0x3b8] sm:$0xff] %v3366
  %3503 = vst [vmem:[#allocation2 + $0x3c0] sm:$0xff] %v3367
  %3504 = vst [vmem:[#allocation2 + $0x3c8] sm:$0xff] %v3368
  %3505 = vst [vmem:[#allocation2 + $0x3d0] sm:$0xff] %v3369
  %3506 = vst [vmem:[#allocation2 + $0x3d8] sm:$0xff] %v3370
  %3507 = vst [vmem:[#allocation2 + $0x3e0] sm:$0xff] %v3371
  %3508 = vst [vmem:[#allocation2 + $0x3e8] sm:$0xff] %v3372
  %3509 = vst [vmem:[#allocation2 + $0x3f0] sm:$0xff] %v3373
  %3510 = vst [vmem:[#allocation2 + $0x3f8] sm:$0xff] %v3374
  %3511 = vst [vmem:[#allocation2 + $0x400] sm:$0xff] %v3375
  %3512 = vst [vmem:[#allocation2 + $0x408] sm:$0xff] %v3376
  %3513 = vst [vmem:[#allocation2 + $0x410] sm:$0xff] %v3377
  %3514 = vst [vmem:[#allocation2 + $0x418] sm:$0xff] %v3378
  %3515 = vst [vmem:[#allocation2 + $0x420] sm:$0xff] %v3379
  %3516 = vst [vmem:[#allocation2 + $0x428] sm:$0xff] %v3380
  %3517 = vst [vmem:[#allocation2 + $0x430] sm:$0xff] %v3381
  %3518 = vst [vmem:[#allocation2 + $0x438] sm:$0xff] %v3382
  %3519 = vst [vmem:[#allocation2 + $0x440] sm:$0xff] %v3383
  %3520 = vst [vmem:[#allocation2 + $0x448] sm:$0xff] %v3384
  %3521 = vst [vmem:[#allocation2 + $0x450] sm:$0xff] %v3385
  %3522 = vst [vmem:[#allocation2 + $0x458] sm:$0xff] %v3386
  %v3523 = vld [vmem:[#allocation2] sm:$0xff]
  %v3524 = vld [vmem:[#allocation2 + $0x8] sm:$0xff]
  %v3525 = vld [vmem:[#allocation2 + $0x10] sm:$0xff]
  %v3526 = vld [vmem:[#allocation2 + $0x18] sm:$0xff]
  %v3527 = vld [vmem:[#allocation2 + $0x20] sm:$0xff]
  %v3528 = vld [vmem:[#allocation2 + $0x28] sm:$0xff]
  %v3529 = vld [vmem:[#allocation2 + $0x30] sm:$0xff]
  %v3530 = vld [vmem:[#allocation2 + $0x38] sm:$0xff]
  %v3531 = vld [vmem:[#allocation2 + $0x40] sm:$0xff]
  %v3532 = vld [vmem:[#allocation2 + $0x48] sm:$0xff]
  %v3533 = vld [vmem:[#allocation2 + $0x50] sm:$0xff]
  %v3534 = vld [vmem:[#allocation2 + $0x58] sm:$0xff]
  %v3535 = vld [vmem:[#allocation2 + $0x60] sm:$0xff]
  %v3536 = vld [vmem:[#allocation2 + $0x68] sm:$0xff]
  %v3537 = vld [vmem:[#allocation2 + $0x70] sm:$0xff]
  %v3538 = vld [vmem:[#allocation2 + $0x78] sm:$0xff]
  %v3539 = vld [vmem:[#allocation2 + $0x80] sm:$0xff]
  %v3540 = vld [vmem:[#allocation2 + $0x88] sm:$0xff]
  %v3541 = vld [vmem:[#allocation2 + $0x90] sm:$0xff]
  %v3542 = vld [vmem:[#allocation2 + $0x98] sm:$0xff]
  %v3543 = vld [vmem:[#allocation2 + $0xa0] sm:$0xff]
  %v3544 = vld [vmem:[#allocation2 + $0xa8] sm:$0xff]
  %v3545 = vld [vmem:[#allocation2 + $0xb0] sm:$0xff]
  %v3546 = vld [vmem:[#allocation2 + $0xb8] sm:$0xff]
  %v3547 = vld [vmem:[#allocation2 + $0xc0] sm:$0xff]
  %v3548 = vld [vmem:[#allocation2 + $0xc8] sm:$0xff]
  %v3549 = vld [vmem:[#allocation2 + $0xd0] sm:$0xff]
  %v3550 = vld [vmem:[#allocation2 + $0xd8] sm:$0xff]
  %v3551 = vld [vmem:[#allocation2 + $0xe0] sm:$0xff]
  %v3552 = vld [vmem:[#allocation2 + $0xe8] sm:$0xff]
  %v3553 = vld [vmem:[#allocation2 + $0xf0] sm:$0xff]
  %v3554 = vld [vmem:[#allocation2 + $0xf8] sm:$0xff]
  %v3555 = vld [vmem:[#allocation2 + $0x100] sm:$0xff]
  %v3556 = vld [vmem:[#allocation2 + $0x108] sm:$0xff]
  %v3557 = vld [vmem:[#allocation2 + $0x110] sm:$0xff]
  %v3558 = vld [vmem:[#allocation2 + $0x118] sm:$0xff]
  %v3559 = vld [vmem:[#allocation2 + $0x120] sm:$0xff]
  %v3560 = vld [vmem:[#allocation2 + $0x128] sm:$0xff]
  %v3561 = vld [vmem:[#allocation2 + $0x130] sm:$0xff]
  %v3562 = vld [vmem:[#allocation2 + $0x138] sm:$0xff]
  %v3563 = vld [vmem:[#allocation2 + $0x140] sm:$0xff]
  %v3564 = vld [vmem:[#allocation2 + $0x148] sm:$0xff]
  %v3565 = vld [vmem:[#allocation2 + $0x150] sm:$0xff]
  %v3566 = vld [vmem:[#allocation2 + $0x158] sm:$0xff]
  %v3567 = vld [vmem:[#allocation2 + $0x160] sm:$0xff]
  %v3568 = vld [vmem:[#allocation2 + $0x168] sm:$0xff]
  %v3569 = vld [vmem:[#allocation2 + $0x170] sm:$0xff]
  %v3570 = vld [vmem:[#allocation2 + $0x178] sm:$0xff]
  %v3571 = vld [vmem:[#allocation2 + $0x180] sm:$0xff]
  %v3572 = vld [vmem:[#allocation2 + $0x188] sm:$0xff]
  %v3573 = vld [vmem:[#allocation2 + $0x190] sm:$0xff]
  %v3574 = vld [vmem:[#allocation2 + $0x198] sm:$0xff]
  %v3575 = vld [vmem:[#allocation2 + $0x1a0] sm:$0xff]
  %v3576 = vld [vmem:[#allocation2 + $0x1a8] sm:$0xff]
  %v3577 = vld [vmem:[#allocation2 + $0x1b0] sm:$0xff]
  %v3578 = vld [vmem:[#allocation2 + $0x1b8] sm:$0xff]
  %v3579 = vld [vmem:[#allocation2 + $0x1c0] sm:$0xff]
  %v3580 = vld [vmem:[#allocation2 + $0x1c8] sm:$0xff]
  %v3581 = vld [vmem:[#allocation2 + $0x1d0] sm:$0xff]
  %v3582 = vld [vmem:[#allocation2 + $0x1d8] sm:$0xff]
  %v3583 = vld [vmem:[#allocation2 + $0x1e0] sm:$0xff]
  %v3584 = vld [vmem:[#allocation2 + $0x1e8] sm:$0xff]
  %v3585 = vld [vmem:[#allocation2 + $0x1f0] sm:$0xff]
  %v3586 = vld [vmem:[#allocation2 + $0x1f8] sm:$0xff]
  %v3587 = vld [vmem:[#allocation2 + $0x200] sm:$0xff]
  %v3588 = vld [vmem:[#allocation2 + $0x208] sm:$0xff]
  %v3589 = vld [vmem:[#allocation2 + $0x210] sm:$0xff]
  %v3590 = vld [vmem:[#allocation2 + $0x218] sm:$0xff]
  %v3591 = vld [vmem:[#allocation2 + $0x220] sm:$0xff]
  %v3592 = vld [vmem:[#allocation2 + $0x228] sm:$0xff]
  %v3593 = vld [vmem:[#allocation2 + $0x230] sm:$0xff]
  %v3594 = vld [vmem:[#allocation2 + $0x238] sm:$0xff]
  %v3595 = vld [vmem:[#allocation2 + $0x240] sm:$0xff]
  %v3596 = vld [vmem:[#allocation2 + $0x248] sm:$0xff]
  %v3597 = vld [vmem:[#allocation2 + $0x250] sm:$0xff]
  %v3598 = vld [vmem:[#allocation2 + $0x258] sm:$0xff]
  %v3599 = vld [vmem:[#allocation2 + $0x260] sm:$0xff]
  %v3600 = vld [vmem:[#allocation2 + $0x268] sm:$0xff]
  %v3601 = vld [vmem:[#allocation2 + $0x270] sm:$0xff]
  %v3602 = vld [vmem:[#allocation2 + $0x278] sm:$0xff]
  %v3603 = vld [vmem:[#allocation2 + $0x280] sm:$0xff]
  %v3604 = vld [vmem:[#allocation2 + $0x288] sm:$0xff]
  %v3605 = vld [vmem:[#allocation2 + $0x290] sm:$0xff]
  %v3606 = vld [vmem:[#allocation2 + $0x298] sm:$0xff]
  %v3607 = vld [vmem:[#allocation2 + $0x2a0] sm:$0xff]
  %v3608 = vld [vmem:[#allocation2 + $0x2a8] sm:$0xff]
  %v3609 = vld [vmem:[#allocation2 + $0x2b0] sm:$0xff]
  %v3610 = vld [vmem:[#allocation2 + $0x2b8] sm:$0xff]
  %v3611 = vld [vmem:[#allocation2 + $0x2c0] sm:$0xff]
  %v3612 = vld [vmem:[#allocation2 + $0x2c8] sm:$0xff]
  %v3613 = vld [vmem:[#allocation2 + $0x2d0] sm:$0xff]
  %v3614 = vld [vmem:[#allocation2 + $0x2d8] sm:$0xff]
  %v3615 = vld [vmem:[#allocation2 + $0x2e0] sm:$0xff]
  %v3616 = vld [vmem:[#allocation2 + $0x2e8] sm:$0xff]
  %v3617 = vld [vmem:[#allocation2 + $0x2f0] sm:$0xff]
  %v3618 = vld [vmem:[#allocation2 + $0x2f8] sm:$0xff]
  %v3619 = vld [vmem:[#allocation2 + $0x300] sm:$0xff]
  %v3620 = vld [vmem:[#allocation2 + $0x308] sm:$0xff]
  %v3621 = vld [vmem:[#allocation2 + $0x310] sm:$0xff]
  %v3622 = vld [vmem:[#allocation2 + $0x318] sm:$0xff]
  %v3623 = vld [vmem:[#allocation2 + $0x320] sm:$0xff]
  %v3624 = vld [vmem:[#allocation2 + $0x328] sm:$0xff]
  %v3625 = vld [vmem:[#allocation2 + $0x330] sm:$0xff]
  %v3626 = vld [vmem:[#allocation2 + $0x338] sm:$0xff]
  %v3627 = vld [vmem:[#allocation2 + $0x340] sm:$0xff]
  %v3628 = vld [vmem:[#allocation2 + $0x348] sm:$0xff]
  %v3629 = vld [vmem:[#allocation2 + $0x350] sm:$0xff]
  %v3630 = vld [vmem:[#allocation2 + $0x358] sm:$0xff]
  %v3631 = vld [vmem:[#allocation2 + $0x360] sm:$0xff]
  %v3632 = vld [vmem:[#allocation2 + $0x368] sm:$0xff]
  %v3633 = vld [vmem:[#allocation2 + $0x370] sm:$0xff]
  %v3634 = vld [vmem:[#allocation2 + $0x378] sm:$0xff]
  %v3635 = vld [vmem:[#allocation2 + $0x380] sm:$0xff]
  %v3636 = vld [vmem:[#allocation2 + $0x388] sm:$0xff]
  %v3637 = vld [vmem:[#allocation2 + $0x390] sm:$0xff]
  %v3638 = vld [vmem:[#allocation2 + $0x398] sm:$0xff]
  %v3639 = vld [vmem:[#allocation2 + $0x3a0] sm:$0xff]
  %v3640 = vld [vmem:[#allocation2 + $0x3a8] sm:$0xff]
  %v3641 = vld [vmem:[#allocation2 + $0x3b0] sm:$0xff]
  %v3642 = vld [vmem:[#allocation2 + $0x3b8] sm:$0xff]
  %v3643 = vld [vmem:[#allocation2 + $0x3c0] sm:$0xff]
  %v3644 = vld [vmem:[#allocation2 + $0x3c8] sm:$0xff]
  %v3645 = vld [vmem:[#allocation2 + $0x3d0] sm:$0xff]
  %v3646 = vld [vmem:[#allocation2 + $0x3d8] sm:$0xff]
  %v3647 = vld [vmem:[#allocation2 + $0x3e0] sm:$0xff]
  %v3648 = vld [vmem:[#allocation2 + $0x3e8] sm:$0xff]
  %v3649 = vld [vmem:[#allocation2 + $0x3f0] sm:$0xff]
  %v3650 = vld [vmem:[#allocation2 + $0x3f8] sm:$0xff]
  %v3651 = vld [vmem:[#allocation2 + $0x400] sm:$0xff]
  %v3652 = vld [vmem:[#allocation2 + $0x408] sm:$0xff]
  %v3653 = vld [vmem:[#allocation2 + $0x410] sm:$0xff]
  %v3654 = vld [vmem:[#allocation2 + $0x418] sm:$0xff]
  %v3655 = vld [vmem:[#allocation2 + $0x420] sm:$0xff]
  %v3656 = vld [vmem:[#allocation2 + $0x428] sm:$0xff]
  %v3657 = vld [vmem:[#allocation2 + $0x430] sm:$0xff]
  %v3658 = vld [vmem:[#allocation2 + $0x438] sm:$0xff]
  %v3659 = vld [vmem:[%s3] sm:$0xff]
  %v3660 = vld [vmem:[%s3 + $0x8] sm:$0xff]
  %v3661 = vld [vmem:[%s3 + $0x10] sm:$0xff]
  %v3662 = vld [vmem:[%s3 + $0x18] sm:$0xff]
  %v3663 = vld [vmem:[%s3 + $0x20] sm:$0xff]
  %v3664 = vld [vmem:[%s3 + $0x28] sm:$0xff]
  %v3665 = vld [vmem:[%s3 + $0x30] sm:$0xff]
  %v3666 = vld [vmem:[%s3 + $0x38] sm:$0xff]
  %v3667 = vld [vmem:[%s3 + $0x40] sm:$0xff]
  %v3668 = vld [vmem:[%s3 + $0x48] sm:$0xff]
  %v3669 = vld [vmem:[%s3 + $0x50] sm:$0xff]
  %v3670 = vld [vmem:[%s3 + $0x58] sm:$0xff]
  %v3671 = vld [vmem:[%s3 + $0x60] sm:$0xff]
  %v3672 = vld [vmem:[%s3 + $0x68] sm:$0xff]
  %v3673 = vld [vmem:[%s3 + $0x70] sm:$0xff]
  %v3674 = vld [vmem:[%s3 + $0x78] sm:$0xff]
  %v3675 = vld [vmem:[%s3 + $0x80] sm:$0xff]
  %v3676 = vld [vmem:[%s3 + $0x88] sm:$0xff]
  %v3677 = vld [vmem:[%s3 + $0x90] sm:$0xff]
  %v3678 = vld [vmem:[%s3 + $0x98] sm:$0xff]
  %v3679 = vld [vmem:[%s3 + $0xa0] sm:$0xff]
  %v3680 = vld [vmem:[%s3 + $0xa8] sm:$0xff]
  %v3681 = vld [vmem:[%s3 + $0xb0] sm:$0xff]
  %v3682 = vld [vmem:[%s3 + $0xb8] sm:$0xff]
  %v3683 = vld [vmem:[%s3 + $0xc0] sm:$0xff]
  %v3684 = vld [vmem:[%s3 + $0xc8] sm:$0xff]
  %v3685 = vld [vmem:[%s3 + $0xd0] sm:$0xff]
  %v3686 = vld [vmem:[%s3 + $0xd8] sm:$0xff]
  %v3687 = vld [vmem:[%s3 + $0xe0] sm:$0xff]
  %v3688 = vld [vmem:[%s3 + $0xe8] sm:$0xff]
  %v3689 = vld [vmem:[%s3 + $0xf0] sm:$0xff]
  %v3690 = vld [vmem:[%s3 + $0xf8] sm:$0xff]
  %v3691 = vld [vmem:[%s3 + $0x100] sm:$0xff]
  %v3692 = vld [vmem:[%s3 + $0x108] sm:$0xff]
  %v3693 = vld [vmem:[%s3 + $0x110] sm:$0xff]
  %v3694 = vld [vmem:[%s3 + $0x118] sm:$0xff]
  %v3695 = vld [vmem:[%s3 + $0x120] sm:$0xff]
  %v3696 = vld [vmem:[%s3 + $0x128] sm:$0xff]
  %v3697 = vld [vmem:[%s3 + $0x130] sm:$0xff]
  %v3698 = vld [vmem:[%s3 + $0x138] sm:$0xff]
  %v3699 = vld [vmem:[%s3 + $0x140] sm:$0xff]
  %v3700 = vld [vmem:[%s3 + $0x148] sm:$0xff]
  %v3701 = vld [vmem:[%s3 + $0x150] sm:$0xff]
  %v3702 = vld [vmem:[%s3 + $0x158] sm:$0xff]
  %v3703 = vld [vmem:[%s3 + $0x160] sm:$0xff]
  %v3704 = vld [vmem:[%s3 + $0x168] sm:$0xff]
  %v3705 = vld [vmem:[%s3 + $0x170] sm:$0xff]
  %v3706 = vld [vmem:[%s3 + $0x178] sm:$0xff]
  %v3707 = vld [vmem:[%s3 + $0x180] sm:$0xff]
  %v3708 = vld [vmem:[%s3 + $0x188] sm:$0xff]
  %v3709 = vld [vmem:[%s3 + $0x190] sm:$0xff]
  %v3710 = vld [vmem:[%s3 + $0x198] sm:$0xff]
  %v3711 = vld [vmem:[%s3 + $0x1a0] sm:$0xff]
  %v3712 = vld [vmem:[%s3 + $0x1a8] sm:$0xff]
  %v3713 = vld [vmem:[%s3 + $0x1b0] sm:$0xff]
  %v3714 = vld [vmem:[%s3 + $0x1b8] sm:$0xff]
  %v3715 = vld [vmem:[%s3 + $0x1c0] sm:$0xff]
  %v3716 = vld [vmem:[%s3 + $0x1c8] sm:$0xff]
  %v3717 = vld [vmem:[%s3 + $0x1d0] sm:$0xff]
  %v3718 = vld [vmem:[%s3 + $0x1d8] sm:$0xff]
  %v3719 = vld [vmem:[%s3 + $0x1e0] sm:$0xff]
  %v3720 = vld [vmem:[%s3 + $0x1e8] sm:$0xff]
  %v3721 = vld [vmem:[%s3 + $0x1f0] sm:$0xff]
  %v3722 = vld [vmem:[%s3 + $0x1f8] sm:$0xff]
  %v3723 = vld [vmem:[#allocation2 + $0x440] sm:$0xff]
  %v3724 = vld [vmem:[#allocation2 + $0x448] sm:$0xff]
  %v3725 = vld [vmem:[#allocation2 + $0x450] sm:$0xff]
  %v3726 = vld [vmem:[#allocation2 + $0x458] sm:$0xff]
  %v3727 = vld [vmem:[%s1282] sm:$0xff]
  %v3728 = vld [vmem:[%s1282 + $0x8] sm:$0xff]
  %v3729 = vld [vmem:[%s1282 + $0x10] sm:$0xff]
  %v3730 = vld [vmem:[%s1282 + $0x18] sm:$0xff]
  %v3731 = vld [vmem:[%s1282 + $0x20] sm:$0xff]
  %v3732 = vld [vmem:[%s1282 + $0x28] sm:$0xff]
  %v3733 = vld [vmem:[%s1282 + $0x30] sm:$0xff]
  %v3734 = vld [vmem:[%s1282 + $0x38] sm:$0xff]
  %v3735 = vld [vmem:[%s1282 + $0x40] sm:$0xff]
  %v3736 = vld [vmem:[%s1282 + $0x48] sm:$0xff]
  %v3737 = vld [vmem:[%s1282 + $0x50] sm:$0xff]
  %v3738 = vld [vmem:[%s1282 + $0x58] sm:$0xff]
  %v3739 = vld [vmem:[%s1282 + $0x60] sm:$0xff]
  %v3740 = vld [vmem:[%s1282 + $0x68] sm:$0xff]
  %v3741 = vld [vmem:[%s1282 + $0x70] sm:$0xff]
  %v3742 = vld [vmem:[%s1282 + $0x78] sm:$0xff]
  %v3743 = vld [vmem:[%s1282 + $0x80] sm:$0xff]
  %v3744 = vld [vmem:[%s1282 + $0x88] sm:$0xff]
  %v3745 = vld [vmem:[%s1282 + $0x90] sm:$0xff]
  %v3746 = vld [vmem:[%s1282 + $0x98] sm:$0xff]
  %v3747 = vld [vmem:[%s1282 + $0xa0] sm:$0xff]
  %v3748 = vld [vmem:[%s1282 + $0xa8] sm:$0xff]
  %v3749 = vld [vmem:[%s1282 + $0xb0] sm:$0xff]
  %v3750 = vld [vmem:[%s1282 + $0xb8] sm:$0xff]
  %v3751 = vld [vmem:[%s1282 + $0xc0] sm:$0xff]
  %v3752 = vld [vmem:[%s1282 + $0xc8] sm:$0xff]
  %v3753 = vld [vmem:[%s1282 + $0xd0] sm:$0xff]
  %v3754 = vld [vmem:[%s1282 + $0xd8] sm:$0xff]
  %v3755 = vld [vmem:[%s1282 + $0xe0] sm:$0xff]
  %v3756 = vld [vmem:[%s1282 + $0xe8] sm:$0xff]
  %v3757 = vld [vmem:[%s1282 + $0xf0] sm:$0xff]
  %v3758 = vld [vmem:[%s1282 + $0xf8] sm:$0xff]
  %v3759 = vld [vmem:[%s1282 + $0x100] sm:$0xff]
  %v3760 = vld [vmem:[%s1282 + $0x108] sm:$0xff]
  %v3761 = vld [vmem:[%s1282 + $0x110] sm:$0xff]
  %v3762 = vld [vmem:[%s1282 + $0x118] sm:$0xff]
  %v3763 = vld [vmem:[%s1282 + $0x120] sm:$0xff]
  %v3764 = vld [vmem:[%s1282 + $0x128] sm:$0xff]
  %v3765 = vld [vmem:[%s1282 + $0x130] sm:$0xff]
  %v3766 = vld [vmem:[%s1282 + $0x138] sm:$0xff]
  %v3767 = vld [vmem:[%s1282 + $0x140] sm:$0xff]
  %v3768 = vld [vmem:[%s1282 + $0x148] sm:$0xff]
  %v3769 = vld [vmem:[%s1282 + $0x150] sm:$0xff]
  %v3770 = vld [vmem:[%s1282 + $0x158] sm:$0xff]
  %v3771 = vld [vmem:[%s1282 + $0x160] sm:$0xff]
  %v3772 = vld [vmem:[%s1282 + $0x168] sm:$0xff]
  %v3773 = vld [vmem:[%s1282 + $0x170] sm:$0xff]
  %v3774 = vld [vmem:[%s1282 + $0x178] sm:$0xff]
  %v3775 = vld [vmem:[%s1282 + $0x180] sm:$0xff]
  %v3776 = vld [vmem:[%s1282 + $0x188] sm:$0xff]
  %v3777 = vld [vmem:[%s1282 + $0x190] sm:$0xff]
  %v3778 = vld [vmem:[%s1282 + $0x198] sm:$0xff]
  %v3779 = vld [vmem:[%s1282 + $0x1a0] sm:$0xff]
  %v3780 = vld [vmem:[%s1282 + $0x1a8] sm:$0xff]
  %v3781 = vld [vmem:[%s1282 + $0x1b0] sm:$0xff]
  %v3782 = vld [vmem:[%s1282 + $0x1b8] sm:$0xff]
  %v3783 = vld [vmem:[%s1282 + $0x1c0] sm:$0xff]
  %v3784 = vld [vmem:[%s1282 + $0x1c8] sm:$0xff]
  %v3785 = vld [vmem:[%s1282 + $0x1d0] sm:$0xff]
  %v3786 = vld [vmem:[%s1282 + $0x1d8] sm:$0xff]
  %v3787 = vld [vmem:[%s1282 + $0x1e0] sm:$0xff]
  %v3788 = vld [vmem:[%s1282 + $0x1e8] sm:$0xff]
  %v3789 = vld [vmem:[%s1282 + $0x1f0] sm:$0xff]
  %v3790 = vld [vmem:[%s1282 + $0x1f8] sm:$0xff]
  %3791 = vmatprep.subr.mxu0 %v3758
  %3792 = vmatpush1.msra.mxu0 %v3757
  %3793 = vmatprep.subr.mxu0 %v3756
  %3794 = vmatpush1.msra.mxu0 %v3755
  %3795 = vmatprep.subr.mxu0 %v3754
  %3796 = vmatpush1.msra.mxu0 %v3753
  %3797 = vmatprep.subr.mxu0 %v3752
  %3798 = vmatpush1.msra.mxu0 %v3751
  %3799 = vmatprep.subr.mxu0 %v3750
  %3800 = vmatpush1.msra.mxu0 %v3749
  %3801 = vmatprep.subr.mxu0 %v3748
  %3802 = vmatpush1.msra.mxu0 %v3747
  %3803 = vmatprep.subr.mxu0 %v3746
  %3804 = vmatpush1.msra.mxu0 %v3745
  %3805 = vmatprep.subr.mxu0 %v3744
  %3806 = vmatpush1.msra.mxu0 %v3743
  %3807 = vmatprep.subr.mxu0 %v3742
  %3808 = vmatpush1.msra.mxu0 %v3741
  %3809 = vmatprep.subr.mxu0 %v3740
  %3810 = vmatpush1.msra.mxu0 %v3739
  %3811 = vmatprep.subr.mxu0 %v3738
  %3812 = vmatpush1.msra.mxu0 %v3737
  %3813 = vmatprep.subr.mxu0 %v3736
  %3814 = vmatpush1.msra.mxu0 %v3735
  %3815 = vmatprep.subr.mxu0 %v3734
  %3816 = vmatpush1.msra.mxu0 %v3733
  %3817 = vmatprep.subr.mxu0 %v3732
  %3818 = vmatpush1.msra.mxu0 %v3731
  %3819 = vmatprep.subr.mxu0 %v3730
  %3820 = vmatpush1.msra.mxu0 %v3729
  %3821 = vmatprep.subr.mxu0 %v3728
  %3822 = vmatpush1.msra.mxu0 %v3727
  %3823 = vmatprep.subr.mxu0 %v3790
  %3824 = vmatpush2.msra.mxu0 %v3789
  %3825 = vmatprep.subr.mxu0 %v3788
  %3826 = vmatpush2.msra.mxu0 %v3787
  %3827 = vmatprep.subr.mxu0 %v3786
  %3828 = vmatpush2.msra.mxu0 %v3785
  %3829 = vmatprep.subr.mxu0 %v3784
  %3830 = vmatpush2.msra.mxu0 %v3783
  %3831 = vmatprep.subr.mxu0 %v3782
  %3832 = vmatpush2.msra.mxu0 %v3781
  %3833 = vmatprep.subr.mxu0 %v3780
  %3834 = vmatpush2.msra.mxu0 %v3779
  %3835 = vmatprep.subr.mxu0 %v3778
  %3836 = vmatpush2.msra.mxu0 %v3777
  %3837 = vmatprep.subr.mxu0 %v3776
  %3838 = vmatpush2.msra.mxu0 %v3775
  %3839 = vmatprep.subr.mxu0 %v3774
  %3840 = vmatpush2.msra.mxu0 %v3773
  %3841 = vmatprep.subr.mxu0 %v3772
  %3842 = vmatpush2.msra.mxu0 %v3771
  %3843 = vmatprep.subr.mxu0 %v3770
  %3844 = vmatpush2.msra.mxu0 %v3769
  %3845 = vmatprep.subr.mxu0 %v3768
  %3846 = vmatpush2.msra.mxu0 %v3767
  %3847 = vmatprep.subr.mxu0 %v3766
  %3848 = vmatpush2.msra.mxu0 %v3765
  %3849 = vmatprep.subr.mxu0 %v3764
  %3850 = vmatpush2.msra.mxu0 %v3763
  %3851 = vmatprep.subr.mxu0 %v3762
  %3852 = vmatpush2.msra.mxu0 %v3761
  %3853 = vmatprep.subr.mxu0 %v3760
  %3854 = vmatpush2.msra.mxu0 %v3759
  %3855 = vmatprep.mubr.f32.mxu0 %v3528
  %3856 = vmatmul.mubr.f32.gmra.mxu0 %v3527
  %v3857 = vpop.f32.mrf.mxu0
  %v3858 = vadd.f32 0.0, %v3857
  %v3859 = vpop.f32.mrf.mxu0
  %v3860 = vadd.f32 0.0, %v3859
  %3861 = vmatprep.mubr.f32.mxu0 %v3530
  %3862 = vmatmul.mubr.f32.gmra.mxu0 %v3529
  %v3863 = vpop.f32.mrf.mxu0
  %v3864 = vadd.f32 0.0, %v3863
  %v3865 = vpop.f32.mrf.mxu0
  %v3866 = vadd.f32 0.0, %v3865
  %3867 = vmatprep.mubr.f32.mxu0 %v3532
  %3868 = vmatmul.mubr.f32.gmra.mxu0 %v3531
  %v3869 = vpop.f32.mrf.mxu0
  %v3870 = vadd.f32 0.0, %v3869
  %v3871 = vpop.f32.mrf.mxu0
  %v3872 = vadd.f32 0.0, %v3871
  %3873 = vmatprep.mubr.f32.mxu0 %v3534
  %3874 = vmatmul.mubr.f32.gmra.mxu0 %v3533
  %v3875 = vpop.f32.mrf.mxu0
  %v3876 = vadd.f32 0.0, %v3875
  %v3877 = vpop.f32.mrf.mxu0
  %v3878 = vadd.f32 0.0, %v3877
  %3879 = vmatprep.mubr.f32.mxu0 %v3536
  %3880 = vmatmul.mubr.f32.gmra.mxu0 %v3535
  %v3881 = vpop.f32.mrf.mxu0
  %v3882 = vadd.f32 0.0, %v3881
  %v3883 = vpop.f32.mrf.mxu0
  %v3884 = vadd.f32 0.0, %v3883
  %3885 = vmatprep.mubr.f32.mxu0 %v3538
  %3886 = vmatmul.mubr.f32.gmra.mxu0 %v3537
  %v3887 = vpop.f32.mrf.mxu0
  %v3888 = vadd.f32 0.0, %v3887
  %v3889 = vpop.f32.mrf.mxu0
  %v3890 = vadd.f32 0.0, %v3889
  %3891 = vmatprep.mubr.f32.mxu0 %v3540
  %3892 = vmatmul.mubr.f32.gmra.mxu0 %v3539
  %v3893 = vpop.f32.mrf.mxu0
  %v3894 = vadd.f32 0.0, %v3893
  %v3895 = vpop.f32.mrf.mxu0
  %v3896 = vadd.f32 0.0, %v3895
  %3897 = vmatprep.mubr.f32.mxu0 %v3542
  %3898 = vmatmul.mubr.f32.gmra.mxu0 %v3541
  %v3899 = vpop.f32.mrf.mxu0
  %v3900 = vadd.f32 0.0, %v3899
  %v3901 = vpop.f32.mrf.mxu0
  %v3902 = vadd.f32 0.0, %v3901
  %3903 = vmatprep.mubr.f32.mxu0 %v3544
  %3904 = vmatmul.mubr.f32.gmra.mxu0 %v3543
  %v3905 = vpop.f32.mrf.mxu0
  %v3906 = vadd.f32 0.0, %v3905
  %v3907 = vpop.f32.mrf.mxu0
  %v3908 = vadd.f32 0.0, %v3907
  %3909 = vmatprep.mubr.f32.mxu0 %v3546
  %3910 = vmatmul.mubr.f32.gmra.mxu0 %v3545
  %v3911 = vpop.f32.mrf.mxu0
  %v3912 = vadd.f32 0.0, %v3911
  %v3913 = vpop.f32.mrf.mxu0
  %v3914 = vadd.f32 0.0, %v3913
  %3915 = vmatprep.mubr.f32.mxu0 %v3548
  %3916 = vmatmul.mubr.f32.gmra.mxu0 %v3547
  %v3917 = vpop.f32.mrf.mxu0
  %v3918 = vadd.f32 0.0, %v3917
  %v3919 = vpop.f32.mrf.mxu0
  %v3920 = vadd.f32 0.0, %v3919
  %3921 = vmatprep.mubr.f32.mxu0 %v3550
  %3922 = vmatmul.mubr.f32.gmra.mxu0 %v3549
  %v3923 = vpop.f32.mrf.mxu0
  %v3924 = vadd.f32 0.0, %v3923
  %v3925 = vpop.f32.mrf.mxu0
  %v3926 = vadd.f32 0.0, %v3925
  %3927 = vmatprep.mubr.f32.mxu0 %v3552
  %3928 = vmatmul.mubr.f32.gmra.mxu0 %v3551
  %v3929 = vpop.f32.mrf.mxu0
  %v3930 = vadd.f32 0.0, %v3929
  %v3931 = vpop.f32.mrf.mxu0
  %v3932 = vadd.f32 0.0, %v3931
  %3933 = vmatprep.mubr.f32.mxu0 %v3554
  %3934 = vmatmul.mubr.f32.gmra.mxu0 %v3553
  %v3935 = vpop.f32.mrf.mxu0
  %v3936 = vadd.f32 0.0, %v3935
  %v3937 = vpop.f32.mrf.mxu0
  %v3938 = vadd.f32 0.0, %v3937
  %3939 = vmatprep.mubr.f32.mxu0 %v3556
  %3940 = vmatmul.mubr.f32.gmra.mxu0 %v3555
  %v3941 = vpop.f32.mrf.mxu0
  %v3942 = vadd.f32 0.0, %v3941
  %v3943 = vpop.f32.mrf.mxu0
  %v3944 = vadd.f32 0.0, %v3943
  %3945 = vmatprep.mubr.f32.mxu0 %v3558
  %3946 = vmatmul.mubr.f32.gmra.mxu0 %v3557
  %v3947 = vpop.f32.mrf.mxu0
  %v3948 = vadd.f32 0.0, %v3947
  %v3949 = vpop.f32.mrf.mxu0
  %v3950 = vadd.f32 0.0, %v3949
  %3951 = vmatprep.mubr.f32.mxu0 %v3560
  %3952 = vmatmul.mubr.f32.gmra.mxu0 %v3559
  %v3953 = vpop.f32.mrf.mxu0
  %v3954 = vadd.f32 0.0, %v3953
  %v3955 = vpop.f32.mrf.mxu0
  %v3956 = vadd.f32 0.0, %v3955
  %3957 = vmatprep.mubr.f32.mxu0 %v3562
  %3958 = vmatmul.mubr.f32.gmra.mxu0 %v3561
  %v3959 = vpop.f32.mrf.mxu0
  %v3960 = vadd.f32 0.0, %v3959
  %v3961 = vpop.f32.mrf.mxu0
  %v3962 = vadd.f32 0.0, %v3961
  %3963 = vmatprep.mubr.f32.mxu0 %v3564
  %3964 = vmatmul.mubr.f32.gmra.mxu0 %v3563
  %v3965 = vpop.f32.mrf.mxu0
  %v3966 = vadd.f32 0.0, %v3965
  %v3967 = vpop.f32.mrf.mxu0
  %v3968 = vadd.f32 0.0, %v3967
  %3969 = vmatprep.mubr.f32.mxu0 %v3566
  %3970 = vmatmul.mubr.f32.gmra.mxu0 %v3565
  %v3971 = vpop.f32.mrf.mxu0
  %v3972 = vadd.f32 0.0, %v3971
  %v3973 = vpop.f32.mrf.mxu0
  %v3974 = vadd.f32 0.0, %v3973
  %3975 = vmatprep.mubr.f32.mxu0 %v3568
  %3976 = vmatmul.mubr.f32.gmra.mxu0 %v3567
  %v3977 = vpop.f32.mrf.mxu0
  %v3978 = vadd.f32 0.0, %v3977
  %v3979 = vpop.f32.mrf.mxu0
  %v3980 = vadd.f32 0.0, %v3979
  %3981 = vmatprep.mubr.f32.mxu0 %v3570
  %3982 = vmatmul.mubr.f32.gmra.mxu0 %v3569
  %v3983 = vpop.f32.mrf.mxu0
  %v3984 = vadd.f32 0.0, %v3983
  %v3985 = vpop.f32.mrf.mxu0
  %v3986 = vadd.f32 0.0, %v3985
  %3987 = vmatprep.mubr.f32.mxu0 %v3572
  %3988 = vmatmul.mubr.f32.gmra.mxu0 %v3571
  %v3989 = vpop.f32.mrf.mxu0
  %v3990 = vadd.f32 0.0, %v3989
  %v3991 = vpop.f32.mrf.mxu0
  %v3992 = vadd.f32 0.0, %v3991
  %3993 = vmatprep.mubr.f32.mxu0 %v3574
  %3994 = vmatmul.mubr.f32.gmra.mxu0 %v3573
  %v3995 = vpop.f32.mrf.mxu0
  %v3996 = vadd.f32 0.0, %v3995
  %v3997 = vpop.f32.mrf.mxu0
  %v3998 = vadd.f32 0.0, %v3997
  %3999 = vmatprep.mubr.f32.mxu0 %v3576
  %4000 = vmatmul.mubr.f32.gmra.mxu0 %v3575
  %v4001 = vpop.f32.mrf.mxu0
  %v4002 = vadd.f32 0.0, %v4001
  %v4003 = vpop.f32.mrf.mxu0
  %v4004 = vadd.f32 0.0, %v4003
  %4005 = vmatprep.mubr.f32.mxu0 %v3578
  %4006 = vmatmul.mubr.f32.gmra.mxu0 %v3577
  %v4007 = vpop.f32.mrf.mxu0
  %v4008 = vadd.f32 0.0, %v4007
  %v4009 = vpop.f32.mrf.mxu0
  %v4010 = vadd.f32 0.0, %v4009
  %4011 = vmatprep.mubr.f32.mxu0 %v3580
  %4012 = vmatmul.mubr.f32.gmra.mxu0 %v3579
  %v4013 = vpop.f32.mrf.mxu0
  %v4014 = vadd.f32 0.0, %v4013
  %v4015 = vpop.f32.mrf.mxu0
  %v4016 = vadd.f32 0.0, %v4015
  %4017 = vmatprep.mubr.f32.mxu0 %v3582
  %4018 = vmatmul.mubr.f32.gmra.mxu0 %v3581
  %v4019 = vpop.f32.mrf.mxu0
  %v4020 = vadd.f32 0.0, %v4019
  %v4021 = vpop.f32.mrf.mxu0
  %v4022 = vadd.f32 0.0, %v4021
  %4023 = vmatprep.mubr.f32.mxu0 %v3584
  %4024 = vmatmul.mubr.f32.gmra.mxu0 %v3583
  %v4025 = vpop.f32.mrf.mxu0
  %v4026 = vadd.f32 0.0, %v4025
  %v4027 = vpop.f32.mrf.mxu0
  %v4028 = vadd.f32 0.0, %v4027
  %4029 = vmatprep.mubr.f32.mxu0 %v3586
  %4030 = vmatmul.mubr.f32.gmra.mxu0 %v3585
  %v4031 = vpop.f32.mrf.mxu0
  %v4032 = vadd.f32 0.0, %v4031
  %v4033 = vpop.f32.mrf.mxu0
  %v4034 = vadd.f32 0.0, %v4033
  %4035 = vmatprep.mubr.f32.mxu0 %v3588
  %4036 = vmatmul.mubr.f32.gmra.mxu0 %v3587
  %v4037 = vpop.f32.mrf.mxu0
  %v4038 = vadd.f32 0.0, %v4037
  %v4039 = vpop.f32.mrf.mxu0
  %v4040 = vadd.f32 0.0, %v4039
  %4041 = vmatprep.mubr.f32.mxu0 %v3590
  %4042 = vmatmul.mubr.f32.gmra.mxu0 %v3589
  %v4043 = vpop.f32.mrf.mxu0
  %v4044 = vadd.f32 0.0, %v4043
  %v4045 = vpop.f32.mrf.mxu0
  %v4046 = vadd.f32 0.0, %v4045
  %4047 = vmatprep.mubr.f32.mxu0 %v3592
  %4048 = vmatmul.mubr.f32.gmra.mxu0 %v3591
  %v4049 = vpop.f32.mrf.mxu0
  %v4050 = vadd.f32 0.0, %v4049
  %v4051 = vpop.f32.mrf.mxu0
  %v4052 = vadd.f32 0.0, %v4051
  %4053 = vmatprep.mubr.f32.mxu0 %v3594
  %4054 = vmatmul.mubr.f32.gmra.mxu0 %v3593
  %v4055 = vpop.f32.mrf.mxu0
  %v4056 = vadd.f32 0.0, %v4055
  %v4057 = vpop.f32.mrf.mxu0
  %v4058 = vadd.f32 0.0, %v4057
  %4059 = vmatprep.mubr.f32.mxu0 %v3596
  %4060 = vmatmul.mubr.f32.gmra.mxu0 %v3595
  %v4061 = vpop.f32.mrf.mxu0
  %v4062 = vadd.f32 0.0, %v4061
  %v4063 = vpop.f32.mrf.mxu0
  %v4064 = vadd.f32 0.0, %v4063
  %4065 = vmatprep.mubr.f32.mxu0 %v3598
  %4066 = vmatmul.mubr.f32.gmra.mxu0 %v3597
  %v4067 = vpop.f32.mrf.mxu0
  %v4068 = vadd.f32 0.0, %v4067
  %v4069 = vpop.f32.mrf.mxu0
  %v4070 = vadd.f32 0.0, %v4069
  %4071 = vmatprep.mubr.f32.mxu0 %v3600
  %4072 = vmatmul.mubr.f32.gmra.mxu0 %v3599
  %v4073 = vpop.f32.mrf.mxu0
  %v4074 = vadd.f32 0.0, %v4073
  %v4075 = vpop.f32.mrf.mxu0
  %v4076 = vadd.f32 0.0, %v4075
  %4077 = vmatprep.mubr.f32.mxu0 %v3602
  %4078 = vmatmul.mubr.f32.gmra.mxu0 %v3601
  %v4079 = vpop.f32.mrf.mxu0
  %v4080 = vadd.f32 0.0, %v4079
  %v4081 = vpop.f32.mrf.mxu0
  %v4082 = vadd.f32 0.0, %v4081
  %4083 = vmatprep.mubr.f32.mxu0 %v3604
  %4084 = vmatmul.mubr.f32.gmra.mxu0 %v3603
  %v4085 = vpop.f32.mrf.mxu0
  %v4086 = vadd.f32 0.0, %v4085
  %v4087 = vpop.f32.mrf.mxu0
  %v4088 = vadd.f32 0.0, %v4087
  %4089 = vmatprep.mubr.f32.mxu0 %v3606
  %4090 = vmatmul.mubr.f32.gmra.mxu0 %v3605
  %v4091 = vpop.f32.mrf.mxu0
  %v4092 = vadd.f32 0.0, %v4091
  %v4093 = vpop.f32.mrf.mxu0
  %v4094 = vadd.f32 0.0, %v4093
  %4095 = vmatprep.mubr.f32.mxu0 %v3608
  %4096 = vmatmul.mubr.f32.gmra.mxu0 %v3607
  %v4097 = vpop.f32.mrf.mxu0
  %v4098 = vadd.f32 0.0, %v4097
  %v4099 = vpop.f32.mrf.mxu0
  %v4100 = vadd.f32 0.0, %v4099
  %4101 = vmatprep.mubr.f32.mxu0 %v3610
  %4102 = vmatmul.mubr.f32.gmra.mxu0 %v3609
  %v4103 = vpop.f32.mrf.mxu0
  %v4104 = vadd.f32 0.0, %v4103
  %v4105 = vpop.f32.mrf.mxu0
  %v4106 = vadd.f32 0.0, %v4105
  %4107 = vmatprep.mubr.f32.mxu0 %v3612
  %4108 = vmatmul.mubr.f32.gmra.mxu0 %v3611
  %v4109 = vpop.f32.mrf.mxu0
  %v4110 = vadd.f32 0.0, %v4109
  %v4111 = vpop.f32.mrf.mxu0
  %v4112 = vadd.f32 0.0, %v4111
  %4113 = vmatprep.mubr.f32.mxu0 %v3614
  %4114 = vmatmul.mubr.f32.gmra.mxu0 %v3613
  %v4115 = vpop.f32.mrf.mxu0
  %v4116 = vadd.f32 0.0, %v4115
  %v4117 = vpop.f32.mrf.mxu0
  %v4118 = vadd.f32 0.0, %v4117
  %4119 = vmatprep.mubr.f32.mxu0 %v3616
  %4120 = vmatmul.mubr.f32.gmra.mxu0 %v3615
  %v4121 = vpop.f32.mrf.mxu0
  %v4122 = vadd.f32 0.0, %v4121
  %v4123 = vpop.f32.mrf.mxu0
  %v4124 = vadd.f32 0.0, %v4123
  %4125 = vmatprep.mubr.f32.mxu0 %v3618
  %4126 = vmatmul.mubr.f32.gmra.mxu0 %v3617
  %v4127 = vpop.f32.mrf.mxu0
  %v4128 = vadd.f32 0.0, %v4127
  %v4129 = vpop.f32.mrf.mxu0
  %v4130 = vadd.f32 0.0, %v4129
  %4131 = vmatprep.mubr.f32.mxu0 %v3620
  %4132 = vmatmul.mubr.f32.gmra.mxu0 %v3619
  %v4133 = vpop.f32.mrf.mxu0
  %v4134 = vadd.f32 0.0, %v4133
  %v4135 = vpop.f32.mrf.mxu0
  %v4136 = vadd.f32 0.0, %v4135
  %4137 = vmatprep.mubr.f32.mxu0 %v3622
  %4138 = vmatmul.mubr.f32.gmra.mxu0 %v3621
  %v4139 = vpop.f32.mrf.mxu0
  %v4140 = vadd.f32 0.0, %v4139
  %v4141 = vpop.f32.mrf.mxu0
  %v4142 = vadd.f32 0.0, %v4141
  %4143 = vmatprep.mubr.f32.mxu0 %v3624
  %4144 = vmatmul.mubr.f32.gmra.mxu0 %v3623
  %v4145 = vpop.f32.mrf.mxu0
  %v4146 = vadd.f32 0.0, %v4145
  %v4147 = vpop.f32.mrf.mxu0
  %v4148 = vadd.f32 0.0, %v4147
  %4149 = vmatprep.mubr.f32.mxu0 %v3626
  %4150 = vmatmul.mubr.f32.gmra.mxu0 %v3625
  %v4151 = vpop.f32.mrf.mxu0
  %v4152 = vadd.f32 0.0, %v4151
  %v4153 = vpop.f32.mrf.mxu0
  %v4154 = vadd.f32 0.0, %v4153
  %4155 = vmatprep.mubr.f32.mxu0 %v3628
  %4156 = vmatmul.mubr.f32.gmra.mxu0 %v3627
  %v4157 = vpop.f32.mrf.mxu0
  %v4158 = vadd.f32 0.0, %v4157
  %v4159 = vpop.f32.mrf.mxu0
  %v4160 = vadd.f32 0.0, %v4159
  %4161 = vmatprep.mubr.f32.mxu0 %v3630
  %4162 = vmatmul.mubr.f32.gmra.mxu0 %v3629
  %v4163 = vpop.f32.mrf.mxu0
  %v4164 = vadd.f32 0.0, %v4163
  %v4165 = vpop.f32.mrf.mxu0
  %v4166 = vadd.f32 0.0, %v4165
  %4167 = vmatprep.mubr.f32.mxu0 %v3632
  %4168 = vmatmul.mubr.f32.gmra.mxu0 %v3631
  %v4169 = vpop.f32.mrf.mxu0
  %v4170 = vadd.f32 0.0, %v4169
  %v4171 = vpop.f32.mrf.mxu0
  %v4172 = vadd.f32 0.0, %v4171
  %4173 = vmatprep.mubr.f32.mxu0 %v3634
  %4174 = vmatmul.mubr.f32.gmra.mxu0 %v3633
  %v4175 = vpop.f32.mrf.mxu0
  %v4176 = vadd.f32 0.0, %v4175
  %v4177 = vpop.f32.mrf.mxu0
  %v4178 = vadd.f32 0.0, %v4177
  %4179 = vmatprep.mubr.f32.mxu0 %v3636
  %4180 = vmatmul.mubr.f32.gmra.mxu0 %v3635
  %v4181 = vpop.f32.mrf.mxu0
  %v4182 = vadd.f32 0.0, %v4181
  %v4183 = vpop.f32.mrf.mxu0
  %v4184 = vadd.f32 0.0, %v4183
  %4185 = vmatprep.mubr.f32.mxu0 %v3638
  %4186 = vmatmul.mubr.f32.gmra.mxu0 %v3637
  %v4187 = vpop.f32.mrf.mxu0
  %v4188 = vadd.f32 0.0, %v4187
  %v4189 = vpop.f32.mrf.mxu0
  %v4190 = vadd.f32 0.0, %v4189
  %4191 = vmatprep.mubr.f32.mxu0 %v3640
  %4192 = vmatmul.mubr.f32.gmra.mxu0 %v3639
  %v4193 = vpop.f32.mrf.mxu0
  %v4194 = vadd.f32 0.0, %v4193
  %v4195 = vpop.f32.mrf.mxu0
  %v4196 = vadd.f32 0.0, %v4195
  %4197 = vmatprep.mubr.f32.mxu0 %v3642
  %4198 = vmatmul.mubr.f32.gmra.mxu0 %v3641
  %v4199 = vpop.f32.mrf.mxu0
  %v4200 = vadd.f32 0.0, %v4199
  %v4201 = vpop.f32.mrf.mxu0
  %v4202 = vadd.f32 0.0, %v4201
  %4203 = vmatprep.mubr.f32.mxu0 %v3644
  %4204 = vmatmul.mubr.f32.gmra.mxu0 %v3643
  %v4205 = vpop.f32.mrf.mxu0
  %v4206 = vadd.f32 0.0, %v4205
  %v4207 = vpop.f32.mrf.mxu0
  %v4208 = vadd.f32 0.0, %v4207
  %4209 = vmatprep.mubr.f32.mxu0 %v3646
  %4210 = vmatmul.mubr.f32.gmra.mxu0 %v3645
  %v4211 = vpop.f32.mrf.mxu0
  %v4212 = vadd.f32 0.0, %v4211
  %v4213 = vpop.f32.mrf.mxu0
  %v4214 = vadd.f32 0.0, %v4213
  %4215 = vmatprep.mubr.f32.mxu0 %v3648
  %4216 = vmatmul.mubr.f32.gmra.mxu0 %v3647
  %v4217 = vpop.f32.mrf.mxu0
  %v4218 = vadd.f32 0.0, %v4217
  %v4219 = vpop.f32.mrf.mxu0
  %v4220 = vadd.f32 0.0, %v4219
  %4221 = vmatprep.mubr.f32.mxu0 %v3650
  %4222 = vmatmul.mubr.f32.gmra.mxu0 %v3649
  %v4223 = vpop.f32.mrf.mxu0
  %v4224 = vadd.f32 0.0, %v4223
  %v4225 = vpop.f32.mrf.mxu0
  %v4226 = vadd.f32 0.0, %v4225
  %4227 = vmatprep.mubr.f32.mxu0 %v3652
  %4228 = vmatmul.mubr.f32.gmra.mxu0 %v3651
  %v4229 = vpop.f32.mrf.mxu0
  %v4230 = vadd.f32 0.0, %v4229
  %v4231 = vpop.f32.mrf.mxu0
  %v4232 = vadd.f32 0.0, %v4231
  %4233 = vmatprep.mubr.f32.mxu0 %v3654
  %4234 = vmatmul.mubr.f32.gmra.mxu0 %v3653
  %v4235 = vpop.f32.mrf.mxu0
  %v4236 = vadd.f32 0.0, %v4235
  %v4237 = vpop.f32.mrf.mxu0
  %v4238 = vadd.f32 0.0, %v4237
  %4239 = vmatprep.mubr.f32.mxu0 %v3656
  %4240 = vmatmul.mubr.f32.gmra.mxu0 %v3655
  %v4241 = vpop.f32.mrf.mxu0
  %v4242 = vadd.f32 0.0, %v4241
  %v4243 = vpop.f32.mrf.mxu0
  %v4244 = vadd.f32 0.0, %v4243
  %4245 = vmatprep.mubr.f32.mxu0 %v3658
  %4246 = vmatmul.mubr.f32.gmra.mxu0 %v3657
  %v4247 = vpop.f32.mrf.mxu0
  %v4248 = vadd.f32 0.0, %v4247
  %v4249 = vpop.f32.mrf.mxu0
  %v4250 = vadd.f32 0.0, %v4249
  %4251 = vmatprep.mubr.f32.mxu0 %v3724
  %4252 = vmatmul.mubr.f32.gmra.mxu0 %v3723
  %v4253 = vpop.f32.mrf.mxu0
  %v4254 = vadd.f32 0.0, %v4253
  %v4255 = vpop.f32.mrf.mxu0
  %v4256 = vadd.f32 0.0, %v4255
  %4257 = vmatprep.mubr.f32.mxu0 %v3726
  %4258 = vmatmul.mubr.f32.gmra.mxu0 %v3725
  %v4259 = vpop.f32.mrf.mxu0
  %v4260 = vadd.f32 0.0, %v4259
  %v4261 = vpop.f32.mrf.mxu0
  %v4262 = vadd.f32 0.0, %v4261
  %4263 = vdwg.mxu0
  %4264 = vmatprep.subr.mxu0 %v3690
  %4265 = vmatpush1.msra.mxu0 %v3689
  %4266 = vmatprep.subr.mxu0 %v3688
  %4267 = vmatpush1.msra.mxu0 %v3687
  %4268 = vmatprep.subr.mxu0 %v3686
  %4269 = vmatpush1.msra.mxu0 %v3685
  %4270 = vmatprep.subr.mxu0 %v3684
  %4271 = vmatpush1.msra.mxu0 %v3683
  %4272 = vmatprep.subr.mxu0 %v3682
  %4273 = vmatpush1.msra.mxu0 %v3681
  %4274 = vmatprep.subr.mxu0 %v3680
  %4275 = vmatpush1.msra.mxu0 %v3679
  %4276 = vmatprep.subr.mxu0 %v3678
  %4277 = vmatpush1.msra.mxu0 %v3677
  %4278 = vmatprep.subr.mxu0 %v3676
  %4279 = vmatpush1.msra.mxu0 %v3675
  %4280 = vmatprep.subr.mxu0 %v3674
  %4281 = vmatpush1.msra.mxu0 %v3673
  %4282 = vmatprep.subr.mxu0 %v3672
  %4283 = vmatpush1.msra.mxu0 %v3671
  %4284 = vmatprep.subr.mxu0 %v3670
  %4285 = vmatpush1.msra.mxu0 %v3669
  %4286 = vmatprep.subr.mxu0 %v3668
  %4287 = vmatpush1.msra.mxu0 %v3667
  %4288 = vmatprep.subr.mxu0 %v3666
  %4289 = vmatpush1.msra.mxu0 %v3665
  %4290 = vmatprep.subr.mxu0 %v3664
  %4291 = vmatpush1.msra.mxu0 %v3663
  %4292 = vmatprep.subr.mxu0 %v3662
  %4293 = vmatpush1.msra.mxu0 %v3661
  %4294 = vmatprep.subr.mxu0 %v3660
  %4295 = vmatpush1.msra.mxu0 %v3659
  %4296 = vmatprep.subr.mxu0 %v3722
  %4297 = vmatpush2.msra.mxu0 %v3721
  %4298 = vmatprep.subr.mxu0 %v3720
  %4299 = vmatpush2.msra.mxu0 %v3719
  %4300 = vmatprep.subr.mxu0 %v3718
  %4301 = vmatpush2.msra.mxu0 %v3717
  %4302 = vmatprep.subr.mxu0 %v3716
  %4303 = vmatpush2.msra.mxu0 %v3715
  %4304 = vmatprep.subr.mxu0 %v3714
  %4305 = vmatpush2.msra.mxu0 %v3713
  %4306 = vmatprep.subr.mxu0 %v3712
  %4307 = vmatpush2.msra.mxu0 %v3711
  %4308 = vmatprep.subr.mxu0 %v3710
  %4309 = vmatpush2.msra.mxu0 %v3709
  %4310 = vmatprep.subr.mxu0 %v3708
  %4311 = vmatpush2.msra.mxu0 %v3707
  %4312 = vmatprep.subr.mxu0 %v3706
  %4313 = vmatpush2.msra.mxu0 %v3705
  %4314 = vmatprep.subr.mxu0 %v3704
  %4315 = vmatpush2.msra.mxu0 %v3703
  %4316 = vmatprep.subr.mxu0 %v3702
  %4317 = vmatpush2.msra.mxu0 %v3701
  %4318 = vmatprep.subr.mxu0 %v3700
  %4319 = vmatpush2.msra.mxu0 %v3699
  %4320 = vmatprep.subr.mxu0 %v3698
  %4321 = vmatpush2.msra.mxu0 %v3697
  %4322 = vmatprep.subr.mxu0 %v3696
  %4323 = vmatpush2.msra.mxu0 %v3695
  %4324 = vmatprep.subr.mxu0 %v3694
  %4325 = vmatpush2.msra.mxu0 %v3693
  %4326 = vmatprep.subr.mxu0 %v3692
  %4327 = vmatpush2.msra.mxu0 %v3691
  %4328 = vmatprep.mubr.f32.mxu0 %v3524
  %4329 = vmatmul.mubr.f32.gmra.mxu0 %v3523
  %v4330 = vpop.f32.mrf.mxu0
  %v4331 = vadd.f32 %v3858, %v4330
  %v4332 = vpop.f32.mrf.mxu0
  %v4333 = vadd.f32 %v3860, %v4332
  %4334 = vmatprep.mubr.f32.mxu0 %v3526
  %4335 = vmatmul.mubr.f32.gmra.mxu0 %v3525
  %v4336 = vpop.f32.mrf.mxu0
  %v4337 = vadd.f32 %v3864, %v4336
  %v4338 = vpop.f32.mrf.mxu0
  %v4339 = vadd.f32 %v3866, %v4338
  %4340 = vmatprep.mubr.f32.mxu0 %v3528
  %4341 = vmatmul.mubr.f32.gmra.mxu0 %v3527
  %v4342 = vpop.f32.mrf.mxu0
  %v4343 = vadd.f32 %v3870, %v4342
  %v4344 = vpop.f32.mrf.mxu0
  %v4345 = vadd.f32 %v3872, %v4344
  %4346 = vmatprep.mubr.f32.mxu0 %v3530
  %4347 = vmatmul.mubr.f32.gmra.mxu0 %v3529
  %v4348 = vpop.f32.mrf.mxu0
  %v4349 = vadd.f32 %v3876, %v4348
  %v4350 = vpop.f32.mrf.mxu0
  %v4351 = vadd.f32 %v3878, %v4350
  %4352 = vmatprep.mubr.f32.mxu0 %v3532
  %4353 = vmatmul.mubr.f32.gmra.mxu0 %v3531
  %v4354 = vpop.f32.mrf.mxu0
  %v4355 = vadd.f32 %v3882, %v4354
  %v4356 = vpop.f32.mrf.mxu0
  %v4357 = vadd.f32 %v3884, %v4356
  %4358 = vmatprep.mubr.f32.mxu0 %v3534
  %4359 = vmatmul.mubr.f32.gmra.mxu0 %v3533
  %v4360 = vpop.f32.mrf.mxu0
  %v4361 = vadd.f32 %v3888, %v4360
  %v4362 = vpop.f32.mrf.mxu0
  %v4363 = vadd.f32 %v3890, %v4362
  %4364 = vmatprep.mubr.f32.mxu0 %v3536
  %4365 = vmatmul.mubr.f32.gmra.mxu0 %v3535
  %v4366 = vpop.f32.mrf.mxu0
  %v4367 = vadd.f32 %v3894, %v4366
  %v4368 = vpop.f32.mrf.mxu0
  %v4369 = vadd.f32 %v3896, %v4368
  %4370 = vmatprep.mubr.f32.mxu0 %v3538
  %4371 = vmatmul.mubr.f32.gmra.mxu0 %v3537
  %v4372 = vpop.f32.mrf.mxu0
  %v4373 = vadd.f32 %v3900, %v4372
  %v4374 = vpop.f32.mrf.mxu0
  %v4375 = vadd.f32 %v3902, %v4374
  %4376 = vmatprep.mubr.f32.mxu0 %v3540
  %4377 = vmatmul.mubr.f32.gmra.mxu0 %v3539
  %v4378 = vpop.f32.mrf.mxu0
  %v4379 = vadd.f32 %v3906, %v4378
  %v4380 = vpop.f32.mrf.mxu0
  %v4381 = vadd.f32 %v3908, %v4380
  %4382 = vmatprep.mubr.f32.mxu0 %v3542
  %4383 = vmatmul.mubr.f32.gmra.mxu0 %v3541
  %v4384 = vpop.f32.mrf.mxu0
  %v4385 = vadd.f32 %v3912, %v4384
  %v4386 = vpop.f32.mrf.mxu0
  %v4387 = vadd.f32 %v3914, %v4386
  %4388 = vmatprep.mubr.f32.mxu0 %v3544
  %4389 = vmatmul.mubr.f32.gmra.mxu0 %v3543
  %v4390 = vpop.f32.mrf.mxu0
  %v4391 = vadd.f32 %v3918, %v4390
  %v4392 = vpop.f32.mrf.mxu0
  %v4393 = vadd.f32 %v3920, %v4392
  %4394 = vmatprep.mubr.f32.mxu0 %v3546
  %4395 = vmatmul.mubr.f32.gmra.mxu0 %v3545
  %v4396 = vpop.f32.mrf.mxu0
  %v4397 = vadd.f32 %v3924, %v4396
  %v4398 = vpop.f32.mrf.mxu0
  %v4399 = vadd.f32 %v3926, %v4398
  %4400 = vmatprep.mubr.f32.mxu0 %v3548
  %4401 = vmatmul.mubr.f32.gmra.mxu0 %v3547
  %v4402 = vpop.f32.mrf.mxu0
  %v4403 = vadd.f32 %v3930, %v4402
  %v4404 = vpop.f32.mrf.mxu0
  %v4405 = vadd.f32 %v3932, %v4404
  %4406 = vmatprep.mubr.f32.mxu0 %v3550
  %4407 = vmatmul.mubr.f32.gmra.mxu0 %v3549
  %v4408 = vpop.f32.mrf.mxu0
  %v4409 = vadd.f32 %v3936, %v4408
  %v4410 = vpop.f32.mrf.mxu0
  %v4411 = vadd.f32 %v3938, %v4410
  %4412 = vmatprep.mubr.f32.mxu0 %v3552
  %4413 = vmatmul.mubr.f32.gmra.mxu0 %v3551
  %v4414 = vpop.f32.mrf.mxu0
  %v4415 = vadd.f32 %v3942, %v4414
  %v4416 = vpop.f32.mrf.mxu0
  %v4417 = vadd.f32 %v3944, %v4416
  %4418 = vmatprep.mubr.f32.mxu0 %v3554
  %4419 = vmatmul.mubr.f32.gmra.mxu0 %v3553
  %v4420 = vpop.f32.mrf.mxu0
  %v4421 = vadd.f32 %v3948, %v4420
  %v4422 = vpop.f32.mrf.mxu0
  %v4423 = vadd.f32 %v3950, %v4422
  %4424 = vmatprep.mubr.f32.mxu0 %v3556
  %4425 = vmatmul.mubr.f32.gmra.mxu0 %v3555
  %v4426 = vpop.f32.mrf.mxu0
  %v4427 = vadd.f32 %v3954, %v4426
  %v4428 = vpop.f32.mrf.mxu0
  %v4429 = vadd.f32 %v3956, %v4428
  %4430 = vmatprep.mubr.f32.mxu0 %v3558
  %4431 = vmatmul.mubr.f32.gmra.mxu0 %v3557
  %v4432 = vpop.f32.mrf.mxu0
  %v4433 = vadd.f32 %v3960, %v4432
  %v4434 = vpop.f32.mrf.mxu0
  %v4435 = vadd.f32 %v3962, %v4434
  %4436 = vmatprep.mubr.f32.mxu0 %v3560
  %4437 = vmatmul.mubr.f32.gmra.mxu0 %v3559
  %v4438 = vpop.f32.mrf.mxu0
  %v4439 = vadd.f32 %v3966, %v4438
  %v4440 = vpop.f32.mrf.mxu0
  %v4441 = vadd.f32 %v3968, %v4440
  %4442 = vmatprep.mubr.f32.mxu0 %v3562
  %4443 = vmatmul.mubr.f32.gmra.mxu0 %v3561
  %v4444 = vpop.f32.mrf.mxu0
  %v4445 = vadd.f32 %v3972, %v4444
  %v4446 = vpop.f32.mrf.mxu0
  %v4447 = vadd.f32 %v3974, %v4446
  %4448 = vmatprep.mubr.f32.mxu0 %v3564
  %4449 = vmatmul.mubr.f32.gmra.mxu0 %v3563
  %v4450 = vpop.f32.mrf.mxu0
  %v4451 = vadd.f32 %v3978, %v4450
  %v4452 = vpop.f32.mrf.mxu0
  %v4453 = vadd.f32 %v3980, %v4452
  %4454 = vmatprep.mubr.f32.mxu0 %v3566
  %4455 = vmatmul.mubr.f32.gmra.mxu0 %v3565
  %v4456 = vpop.f32.mrf.mxu0
  %v4457 = vadd.f32 %v3984, %v4456
  %v4458 = vpop.f32.mrf.mxu0
  %v4459 = vadd.f32 %v3986, %v4458
  %4460 = vmatprep.mubr.f32.mxu0 %v3568
  %4461 = vmatmul.mubr.f32.gmra.mxu0 %v3567
  %v4462 = vpop.f32.mrf.mxu0
  %v4463 = vadd.f32 %v3990, %v4462
  %v4464 = vpop.f32.mrf.mxu0
  %v4465 = vadd.f32 %v3992, %v4464
  %4466 = vmatprep.mubr.f32.mxu0 %v3570
  %4467 = vmatmul.mubr.f32.gmra.mxu0 %v3569
  %v4468 = vpop.f32.mrf.mxu0
  %v4469 = vadd.f32 %v3996, %v4468
  %v4470 = vpop.f32.mrf.mxu0
  %v4471 = vadd.f32 %v3998, %v4470
  %4472 = vmatprep.mubr.f32.mxu0 %v3572
  %4473 = vmatmul.mubr.f32.gmra.mxu0 %v3571
  %v4474 = vpop.f32.mrf.mxu0
  %v4475 = vadd.f32 %v4002, %v4474
  %v4476 = vpop.f32.mrf.mxu0
  %v4477 = vadd.f32 %v4004, %v4476
  %4478 = vmatprep.mubr.f32.mxu0 %v3574
  %4479 = vmatmul.mubr.f32.gmra.mxu0 %v3573
  %v4480 = vpop.f32.mrf.mxu0
  %v4481 = vadd.f32 %v4008, %v4480
  %v4482 = vpop.f32.mrf.mxu0
  %v4483 = vadd.f32 %v4010, %v4482
  %4484 = vmatprep.mubr.f32.mxu0 %v3576
  %4485 = vmatmul.mubr.f32.gmra.mxu0 %v3575
  %v4486 = vpop.f32.mrf.mxu0
  %v4487 = vadd.f32 %v4014, %v4486
  %v4488 = vpop.f32.mrf.mxu0
  %v4489 = vadd.f32 %v4016, %v4488
  %4490 = vmatprep.mubr.f32.mxu0 %v3578
  %4491 = vmatmul.mubr.f32.gmra.mxu0 %v3577
  %v4492 = vpop.f32.mrf.mxu0
  %v4493 = vadd.f32 %v4020, %v4492
  %v4494 = vpop.f32.mrf.mxu0
  %v4495 = vadd.f32 %v4022, %v4494
  %4496 = vmatprep.mubr.f32.mxu0 %v3580
  %4497 = vmatmul.mubr.f32.gmra.mxu0 %v3579
  %v4498 = vpop.f32.mrf.mxu0
  %v4499 = vadd.f32 %v4026, %v4498
  %v4500 = vpop.f32.mrf.mxu0
  %v4501 = vadd.f32 %v4028, %v4500
  %4502 = vmatprep.mubr.f32.mxu0 %v3582
  %4503 = vmatmul.mubr.f32.gmra.mxu0 %v3581
  %v4504 = vpop.f32.mrf.mxu0
  %v4505 = vadd.f32 %v4032, %v4504
  %v4506 = vpop.f32.mrf.mxu0
  %v4507 = vadd.f32 %v4034, %v4506
  %4508 = vmatprep.mubr.f32.mxu0 %v3584
  %4509 = vmatmul.mubr.f32.gmra.mxu0 %v3583
  %v4510 = vpop.f32.mrf.mxu0
  %v4511 = vadd.f32 %v4038, %v4510
  %v4512 = vpop.f32.mrf.mxu0
  %v4513 = vadd.f32 %v4040, %v4512
  %4514 = vmatprep.mubr.f32.mxu0 %v3586
  %4515 = vmatmul.mubr.f32.gmra.mxu0 %v3585
  %v4516 = vpop.f32.mrf.mxu0
  %v4517 = vadd.f32 %v4044, %v4516
  %v4518 = vpop.f32.mrf.mxu0
  %v4519 = vadd.f32 %v4046, %v4518
  %4520 = vmatprep.mubr.f32.mxu0 %v3588
  %4521 = vmatmul.mubr.f32.gmra.mxu0 %v3587
  %v4522 = vpop.f32.mrf.mxu0
  %v4523 = vadd.f32 %v4050, %v4522
  %v4524 = vpop.f32.mrf.mxu0
  %v4525 = vadd.f32 %v4052, %v4524
  %4526 = vmatprep.mubr.f32.mxu0 %v3590
  %4527 = vmatmul.mubr.f32.gmra.mxu0 %v3589
  %v4528 = vpop.f32.mrf.mxu0
  %v4529 = vadd.f32 %v4056, %v4528
  %v4530 = vpop.f32.mrf.mxu0
  %v4531 = vadd.f32 %v4058, %v4530
  %4532 = vmatprep.mubr.f32.mxu0 %v3592
  %4533 = vmatmul.mubr.f32.gmra.mxu0 %v3591
  %v4534 = vpop.f32.mrf.mxu0
  %v4535 = vadd.f32 %v4062, %v4534
  %v4536 = vpop.f32.mrf.mxu0
  %v4537 = vadd.f32 %v4064, %v4536
  %4538 = vmatprep.mubr.f32.mxu0 %v3594
  %4539 = vmatmul.mubr.f32.gmra.mxu0 %v3593
  %v4540 = vpop.f32.mrf.mxu0
  %v4541 = vadd.f32 %v4068, %v4540
  %v4542 = vpop.f32.mrf.mxu0
  %v4543 = vadd.f32 %v4070, %v4542
  %4544 = vmatprep.mubr.f32.mxu0 %v3596
  %4545 = vmatmul.mubr.f32.gmra.mxu0 %v3595
  %v4546 = vpop.f32.mrf.mxu0
  %v4547 = vadd.f32 %v4074, %v4546
  %v4548 = vpop.f32.mrf.mxu0
  %v4549 = vadd.f32 %v4076, %v4548
  %4550 = vmatprep.mubr.f32.mxu0 %v3598
  %4551 = vmatmul.mubr.f32.gmra.mxu0 %v3597
  %v4552 = vpop.f32.mrf.mxu0
  %v4553 = vadd.f32 %v4080, %v4552
  %v4554 = vpop.f32.mrf.mxu0
  %v4555 = vadd.f32 %v4082, %v4554
  %4556 = vmatprep.mubr.f32.mxu0 %v3600
  %4557 = vmatmul.mubr.f32.gmra.mxu0 %v3599
  %v4558 = vpop.f32.mrf.mxu0
  %v4559 = vadd.f32 %v4086, %v4558
  %v4560 = vpop.f32.mrf.mxu0
  %v4561 = vadd.f32 %v4088, %v4560
  %4562 = vmatprep.mubr.f32.mxu0 %v3602
  %4563 = vmatmul.mubr.f32.gmra.mxu0 %v3601
  %v4564 = vpop.f32.mrf.mxu0
  %v4565 = vadd.f32 %v4092, %v4564
  %v4566 = vpop.f32.mrf.mxu0
  %v4567 = vadd.f32 %v4094, %v4566
  %4568 = vmatprep.mubr.f32.mxu0 %v3604
  %4569 = vmatmul.mubr.f32.gmra.mxu0 %v3603
  %v4570 = vpop.f32.mrf.mxu0
  %v4571 = vadd.f32 %v4098, %v4570
  %v4572 = vpop.f32.mrf.mxu0
  %v4573 = vadd.f32 %v4100, %v4572
  %4574 = vmatprep.mubr.f32.mxu0 %v3606
  %4575 = vmatmul.mubr.f32.gmra.mxu0 %v3605
  %v4576 = vpop.f32.mrf.mxu0
  %v4577 = vadd.f32 %v4104, %v4576
  %v4578 = vpop.f32.mrf.mxu0
  %v4579 = vadd.f32 %v4106, %v4578
  %4580 = vmatprep.mubr.f32.mxu0 %v3608
  %4581 = vmatmul.mubr.f32.gmra.mxu0 %v3607
  %v4582 = vpop.f32.mrf.mxu0
  %v4583 = vadd.f32 %v4110, %v4582
  %v4584 = vpop.f32.mrf.mxu0
  %v4585 = vadd.f32 %v4112, %v4584
  %4586 = vmatprep.mubr.f32.mxu0 %v3610
  %4587 = vmatmul.mubr.f32.gmra.mxu0 %v3609
  %v4588 = vpop.f32.mrf.mxu0
  %v4589 = vadd.f32 %v4116, %v4588
  %v4590 = vpop.f32.mrf.mxu0
  %v4591 = vadd.f32 %v4118, %v4590
  %4592 = vmatprep.mubr.f32.mxu0 %v3612
  %4593 = vmatmul.mubr.f32.gmra.mxu0 %v3611
  %v4594 = vpop.f32.mrf.mxu0
  %v4595 = vadd.f32 %v4122, %v4594
  %v4596 = vpop.f32.mrf.mxu0
  %v4597 = vadd.f32 %v4124, %v4596
  %4598 = vmatprep.mubr.f32.mxu0 %v3614
  %4599 = vmatmul.mubr.f32.gmra.mxu0 %v3613
  %v4600 = vpop.f32.mrf.mxu0
  %v4601 = vadd.f32 %v4128, %v4600
  %v4602 = vpop.f32.mrf.mxu0
  %v4603 = vadd.f32 %v4130, %v4602
  %4604 = vmatprep.mubr.f32.mxu0 %v3616
  %4605 = vmatmul.mubr.f32.gmra.mxu0 %v3615
  %v4606 = vpop.f32.mrf.mxu0
  %v4607 = vadd.f32 %v4134, %v4606
  %v4608 = vpop.f32.mrf.mxu0
  %v4609 = vadd.f32 %v4136, %v4608
  %4610 = vmatprep.mubr.f32.mxu0 %v3618
  %4611 = vmatmul.mubr.f32.gmra.mxu0 %v3617
  %v4612 = vpop.f32.mrf.mxu0
  %v4613 = vadd.f32 %v4140, %v4612
  %v4614 = vpop.f32.mrf.mxu0
  %v4615 = vadd.f32 %v4142, %v4614
  %4616 = vmatprep.mubr.f32.mxu0 %v3620
  %4617 = vmatmul.mubr.f32.gmra.mxu0 %v3619
  %v4618 = vpop.f32.mrf.mxu0
  %v4619 = vadd.f32 %v4146, %v4618
  %v4620 = vpop.f32.mrf.mxu0
  %v4621 = vadd.f32 %v4148, %v4620
  %4622 = vmatprep.mubr.f32.mxu0 %v3622
  %4623 = vmatmul.mubr.f32.gmra.mxu0 %v3621
  %v4624 = vpop.f32.mrf.mxu0
  %v4625 = vadd.f32 %v4152, %v4624
  %v4626 = vpop.f32.mrf.mxu0
  %v4627 = vadd.f32 %v4154, %v4626
  %4628 = vmatprep.mubr.f32.mxu0 %v3624
  %4629 = vmatmul.mubr.f32.gmra.mxu0 %v3623
  %v4630 = vpop.f32.mrf.mxu0
  %v4631 = vadd.f32 %v4158, %v4630
  %v4632 = vpop.f32.mrf.mxu0
  %v4633 = vadd.f32 %v4160, %v4632
  %4634 = vmatprep.mubr.f32.mxu0 %v3626
  %4635 = vmatmul.mubr.f32.gmra.mxu0 %v3625
  %v4636 = vpop.f32.mrf.mxu0
  %v4637 = vadd.f32 %v4164, %v4636
  %v4638 = vpop.f32.mrf.mxu0
  %v4639 = vadd.f32 %v4166, %v4638
  %4640 = vmatprep.mubr.f32.mxu0 %v3628
  %4641 = vmatmul.mubr.f32.gmra.mxu0 %v3627
  %v4642 = vpop.f32.mrf.mxu0
  %v4643 = vadd.f32 %v4170, %v4642
  %v4644 = vpop.f32.mrf.mxu0
  %v4645 = vadd.f32 %v4172, %v4644
  %4646 = vmatprep.mubr.f32.mxu0 %v3630
  %4647 = vmatmul.mubr.f32.gmra.mxu0 %v3629
  %v4648 = vpop.f32.mrf.mxu0
  %v4649 = vadd.f32 %v4176, %v4648
  %v4650 = vpop.f32.mrf.mxu0
  %v4651 = vadd.f32 %v4178, %v4650
  %4652 = vmatprep.mubr.f32.mxu0 %v3632
  %4653 = vmatmul.mubr.f32.gmra.mxu0 %v3631
  %v4654 = vpop.f32.mrf.mxu0
  %v4655 = vadd.f32 %v4182, %v4654
  %v4656 = vpop.f32.mrf.mxu0
  %v4657 = vadd.f32 %v4184, %v4656
  %4658 = vmatprep.mubr.f32.mxu0 %v3634
  %4659 = vmatmul.mubr.f32.gmra.mxu0 %v3633
  %v4660 = vpop.f32.mrf.mxu0
  %v4661 = vadd.f32 %v4188, %v4660
  %v4662 = vpop.f32.mrf.mxu0
  %v4663 = vadd.f32 %v4190, %v4662
  %4664 = vmatprep.mubr.f32.mxu0 %v3636
  %4665 = vmatmul.mubr.f32.gmra.mxu0 %v3635
  %v4666 = vpop.f32.mrf.mxu0
  %v4667 = vadd.f32 %v4194, %v4666
  %v4668 = vpop.f32.mrf.mxu0
  %v4669 = vadd.f32 %v4196, %v4668
  %4670 = vmatprep.mubr.f32.mxu0 %v3638
  %4671 = vmatmul.mubr.f32.gmra.mxu0 %v3637
  %v4672 = vpop.f32.mrf.mxu0
  %v4673 = vadd.f32 %v4200, %v4672
  %v4674 = vpop.f32.mrf.mxu0
  %v4675 = vadd.f32 %v4202, %v4674
  %4676 = vmatprep.mubr.f32.mxu0 %v3640
  %4677 = vmatmul.mubr.f32.gmra.mxu0 %v3639
  %v4678 = vpop.f32.mrf.mxu0
  %v4679 = vadd.f32 %v4206, %v4678
  %v4680 = vpop.f32.mrf.mxu0
  %v4681 = vadd.f32 %v4208, %v4680
  %4682 = vmatprep.mubr.f32.mxu0 %v3642
  %4683 = vmatmul.mubr.f32.gmra.mxu0 %v3641
  %v4684 = vpop.f32.mrf.mxu0
  %v4685 = vadd.f32 %v4212, %v4684
  %v4686 = vpop.f32.mrf.mxu0
  %v4687 = vadd.f32 %v4214, %v4686
  %4688 = vmatprep.mubr.f32.mxu0 %v3644
  %4689 = vmatmul.mubr.f32.gmra.mxu0 %v3643
  %v4690 = vpop.f32.mrf.mxu0
  %v4691 = vadd.f32 %v4218, %v4690
  %v4692 = vpop.f32.mrf.mxu0
  %v4693 = vadd.f32 %v4220, %v4692
  %4694 = vmatprep.mubr.f32.mxu0 %v3646
  %4695 = vmatmul.mubr.f32.gmra.mxu0 %v3645
  %v4696 = vpop.f32.mrf.mxu0
  %v4697 = vadd.f32 %v4224, %v4696
  %v4698 = vpop.f32.mrf.mxu0
  %v4699 = vadd.f32 %v4226, %v4698
  %4700 = vmatprep.mubr.f32.mxu0 %v3648
  %4701 = vmatmul.mubr.f32.gmra.mxu0 %v3647
  %v4702 = vpop.f32.mrf.mxu0
  %v4703 = vadd.f32 %v4230, %v4702
  %v4704 = vpop.f32.mrf.mxu0
  %v4705 = vadd.f32 %v4232, %v4704
  %4706 = vmatprep.mubr.f32.mxu0 %v3650
  %4707 = vmatmul.mubr.f32.gmra.mxu0 %v3649
  %v4708 = vpop.f32.mrf.mxu0
  %v4709 = vadd.f32 %v4236, %v4708
  %v4710 = vpop.f32.mrf.mxu0
  %v4711 = vadd.f32 %v4238, %v4710
  %4712 = vmatprep.mubr.f32.mxu0 %v3652
  %4713 = vmatmul.mubr.f32.gmra.mxu0 %v3651
  %v4714 = vpop.f32.mrf.mxu0
  %v4715 = vadd.f32 %v4242, %v4714
  %v4716 = vpop.f32.mrf.mxu0
  %v4717 = vadd.f32 %v4244, %v4716
  %4718 = vmatprep.mubr.f32.mxu0 %v3654
  %4719 = vmatmul.mubr.f32.gmra.mxu0 %v3653
  %v4720 = vpop.f32.mrf.mxu0
  %v4721 = vadd.f32 %v4248, %v4720
  %v4722 = vpop.f32.mrf.mxu0
  %v4723 = vadd.f32 %v4250, %v4722
  %4724 = vmatprep.mubr.f32.mxu0 %v3656
  %4725 = vmatmul.mubr.f32.gmra.mxu0 %v3655
  %v4726 = vpop.f32.mrf.mxu0
  %v4727 = vadd.f32 %v4254, %v4726
  %v4728 = vpop.f32.mrf.mxu0
  %v4729 = vadd.f32 %v4256, %v4728
  %4730 = vmatprep.mubr.f32.mxu0 %v3658
  %4731 = vmatmul.mubr.f32.gmra.mxu0 %v3657
  %v4732 = vpop.f32.mrf.mxu0
  %v4733 = vadd.f32 %v4260, %v4732
  %v4734 = vpop.f32.mrf.mxu0
  %v4735 = vadd.f32 %v4262, %v4734
  %4736 = vdwg.mxu0
  %v4737 = vld [vmem:[#allocation2 + $0x40] sm:$0xff]
  %v4738 = vld [vmem:[#allocation2 + $0x48] sm:$0xff]
  %v4739 = vld [vmem:[#allocation2 + $0x50] sm:$0xff]
  %v4740 = vld [vmem:[#allocation2 + $0x58] sm:$0xff]
  %v4741 = vld [vmem:[#allocation2 + $0x60] sm:$0xff]
  %v4742 = vld [vmem:[#allocation2 + $0x68] sm:$0xff]
  %v4743 = vld [vmem:[#allocation2 + $0x70] sm:$0xff]
  %v4744 = vld [vmem:[#allocation2 + $0x78] sm:$0xff]
  %v4745 = vld [vmem:[#allocation2 + $0x80] sm:$0xff]
  %v4746 = vld [vmem:[#allocation2 + $0x88] sm:$0xff]
  %v4747 = vld [vmem:[#allocation2 + $0x90] sm:$0xff]
  %v4748 = vld [vmem:[#allocation2 + $0x98] sm:$0xff]
  %v4749 = vld [vmem:[#allocation2 + $0xa0] sm:$0xff]
  %v4750 = vld [vmem:[#allocation2 + $0xa8] sm:$0xff]
  %v4751 = vld [vmem:[#allocation2 + $0xb0] sm:$0xff]
  %v4752 = vld [vmem:[#allocation2 + $0xb8] sm:$0xff]
  %v4753 = vld [vmem:[#allocation2 + $0xc0] sm:$0xff]
  %v4754 = vld [vmem:[#allocation2 + $0xc8] sm:$0xff]
  %v4755 = vld [vmem:[#allocation2 + $0xd0] sm:$0xff]
  %v4756 = vld [vmem:[#allocation2 + $0xd8] sm:$0xff]
  %v4757 = vld [vmem:[#allocation2 + $0xe0] sm:$0xff]
  %v4758 = vld [vmem:[#allocation2 + $0xe8] sm:$0xff]
  %v4759 = vld [vmem:[#allocation2 + $0xf0] sm:$0xff]
  %v4760 = vld [vmem:[#allocation2 + $0xf8] sm:$0xff]
  %v4761 = vld [vmem:[#allocation2 + $0x100] sm:$0xff]
  %v4762 = vld [vmem:[#allocation2 + $0x108] sm:$0xff]
  %v4763 = vld [vmem:[#allocation2 + $0x110] sm:$0xff]
  %v4764 = vld [vmem:[#allocation2 + $0x118] sm:$0xff]
  %v4765 = vld [vmem:[#allocation2 + $0x120] sm:$0xff]
  %v4766 = vld [vmem:[#allocation2 + $0x128] sm:$0xff]
  %v4767 = vld [vmem:[#allocation2 + $0x130] sm:$0xff]
  %v4768 = vld [vmem:[#allocation2 + $0x138] sm:$0xff]
  %v4769 = vld [vmem:[#allocation2 + $0x140] sm:$0xff]
  %v4770 = vld [vmem:[#allocation2 + $0x148] sm:$0xff]
  %v4771 = vld [vmem:[#allocation2 + $0x150] sm:$0xff]
  %v4772 = vld [vmem:[#allocation2 + $0x158] sm:$0xff]
  %v4773 = vld [vmem:[#allocation2 + $0x160] sm:$0xff]
  %v4774 = vld [vmem:[#allocation2 + $0x168] sm:$0xff]
  %v4775 = vld [vmem:[#allocation2 + $0x170] sm:$0xff]
  %v4776 = vld [vmem:[#allocation2 + $0x178] sm:$0xff]
  %v4777 = vld [vmem:[#allocation2 + $0x180] sm:$0xff]
  %v4778 = vld [vmem:[#allocation2 + $0x188] sm:$0xff]
  %v4779 = vld [vmem:[#allocation2 + $0x190] sm:$0xff]
  %v4780 = vld [vmem:[#allocation2 + $0x198] sm:$0xff]
  %v4781 = vld [vmem:[#allocation2 + $0x1a0] sm:$0xff]
  %v4782 = vld [vmem:[#allocation2 + $0x1a8] sm:$0xff]
  %v4783 = vld [vmem:[#allocation2 + $0x1b0] sm:$0xff]
  %v4784 = vld [vmem:[#allocation2 + $0x1b8] sm:$0xff]
  %v4785 = vld [vmem:[#allocation2 + $0x1c0] sm:$0xff]
  %v4786 = vld [vmem:[#allocation2 + $0x1c8] sm:$0xff]
  %v4787 = vld [vmem:[#allocation2 + $0x1d0] sm:$0xff]
  %v4788 = vld [vmem:[#allocation2 + $0x1d8] sm:$0xff]
  %v4789 = vld [vmem:[#allocation2 + $0x1e0] sm:$0xff]
  %v4790 = vld [vmem:[#allocation2 + $0x1e8] sm:$0xff]
  %v4791 = vld [vmem:[#allocation2 + $0x1f0] sm:$0xff]
  %v4792 = vld [vmem:[#allocation2 + $0x1f8] sm:$0xff]
  %v4793 = vld [vmem:[#allocation2 + $0x200] sm:$0xff]
  %v4794 = vld [vmem:[#allocation2 + $0x208] sm:$0xff]
  %v4795 = vld [vmem:[#allocation2 + $0x210] sm:$0xff]
  %v4796 = vld [vmem:[#allocation2 + $0x218] sm:$0xff]
  %v4797 = vld [vmem:[#allocation2 + $0x220] sm:$0xff]
  %v4798 = vld [vmem:[#allocation2 + $0x228] sm:$0xff]
  %v4799 = vld [vmem:[#allocation2 + $0x230] sm:$0xff]
  %v4800 = vld [vmem:[#allocation2 + $0x238] sm:$0xff]
  %v4801 = vld [vmem:[#allocation2 + $0x240] sm:$0xff]
  %v4802 = vld [vmem:[#allocation2 + $0x248] sm:$0xff]
  %v4803 = vld [vmem:[#allocation2 + $0x250] sm:$0xff]
  %v4804 = vld [vmem:[#allocation2 + $0x258] sm:$0xff]
  %v4805 = vld [vmem:[#allocation2 + $0x260] sm:$0xff]
  %v4806 = vld [vmem:[#allocation2 + $0x268] sm:$0xff]
  %v4807 = vld [vmem:[#allocation2 + $0x270] sm:$0xff]
  %v4808 = vld [vmem:[#allocation2 + $0x278] sm:$0xff]
  %v4809 = vld [vmem:[#allocation2 + $0x280] sm:$0xff]
  %v4810 = vld [vmem:[#allocation2 + $0x288] sm:$0xff]
  %v4811 = vld [vmem:[#allocation2 + $0x290] sm:$0xff]
  %v4812 = vld [vmem:[#allocation2 + $0x298] sm:$0xff]
  %v4813 = vld [vmem:[#allocation2 + $0x2a0] sm:$0xff]
  %v4814 = vld [vmem:[#allocation2 + $0x2a8] sm:$0xff]
  %v4815 = vld [vmem:[#allocation2 + $0x2b0] sm:$0xff]
  %v4816 = vld [vmem:[#allocation2 + $0x2b8] sm:$0xff]
  %v4817 = vld [vmem:[#allocation2 + $0x2c0] sm:$0xff]
  %v4818 = vld [vmem:[#allocation2 + $0x2c8] sm:$0xff]
  %v4819 = vld [vmem:[#allocation2 + $0x2d0] sm:$0xff]
  %v4820 = vld [vmem:[#allocation2 + $0x2d8] sm:$0xff]
  %v4821 = vld [vmem:[#allocation2 + $0x2e0] sm:$0xff]
  %v4822 = vld [vmem:[#allocation2 + $0x2e8] sm:$0xff]
  %v4823 = vld [vmem:[#allocation2 + $0x2f0] sm:$0xff]
  %v4824 = vld [vmem:[#allocation2 + $0x2f8] sm:$0xff]
  %v4825 = vld [vmem:[#allocation2 + $0x300] sm:$0xff]
  %v4826 = vld [vmem:[#allocation2 + $0x308] sm:$0xff]
  %v4827 = vld [vmem:[#allocation2 + $0x310] sm:$0xff]
  %v4828 = vld [vmem:[#allocation2 + $0x318] sm:$0xff]
  %v4829 = vld [vmem:[#allocation2 + $0x320] sm:$0xff]
  %v4830 = vld [vmem:[#allocation2 + $0x328] sm:$0xff]
  %v4831 = vld [vmem:[#allocation2 + $0x330] sm:$0xff]
  %v4832 = vld [vmem:[#allocation2 + $0x338] sm:$0xff]
  %v4833 = vld [vmem:[#allocation2 + $0x340] sm:$0xff]
  %v4834 = vld [vmem:[#allocation2 + $0x348] sm:$0xff]
  %v4835 = vld [vmem:[#allocation2 + $0x350] sm:$0xff]
  %v4836 = vld [vmem:[#allocation2 + $0x358] sm:$0xff]
  %v4837 = vld [vmem:[#allocation2 + $0x360] sm:$0xff]
  %v4838 = vld [vmem:[#allocation2 + $0x368] sm:$0xff]
  %v4839 = vld [vmem:[#allocation2 + $0x370] sm:$0xff]
  %v4840 = vld [vmem:[#allocation2 + $0x378] sm:$0xff]
  %v4841 = vld [vmem:[#allocation2 + $0x380] sm:$0xff]
  %v4842 = vld [vmem:[#allocation2 + $0x388] sm:$0xff]
  %v4843 = vld [vmem:[#allocation2 + $0x390] sm:$0xff]
  %v4844 = vld [vmem:[#allocation2 + $0x398] sm:$0xff]
  %v4845 = vld [vmem:[#allocation2 + $0x3a0] sm:$0xff]
  %v4846 = vld [vmem:[#allocation2 + $0x3a8] sm:$0xff]
  %v4847 = vld [vmem:[#allocation2 + $0x3b0] sm:$0xff]
  %v4848 = vld [vmem:[#allocation2 + $0x3b8] sm:$0xff]
  %v4849 = vld [vmem:[#allocation2 + $0x3c0] sm:$0xff]
  %v4850 = vld [vmem:[#allocation2 + $0x3c8] sm:$0xff]
  %v4851 = vld [vmem:[#allocation2 + $0x3d0] sm:$0xff]
  %v4852 = vld [vmem:[#allocation2 + $0x3d8] sm:$0xff]
  %v4853 = vld [vmem:[#allocation2 + $0x3e0] sm:$0xff]
  %v4854 = vld [vmem:[#allocation2 + $0x3e8] sm:$0xff]
  %v4855 = vld [vmem:[#allocation2 + $0x3f0] sm:$0xff]
  %v4856 = vld [vmem:[#allocation2 + $0x3f8] sm:$0xff]
  %v4857 = vld [vmem:[#allocation2 + $0x400] sm:$0xff]
  %v4858 = vld [vmem:[#allocation2 + $0x408] sm:$0xff]
  %v4859 = vld [vmem:[#allocation2 + $0x410] sm:$0xff]
  %v4860 = vld [vmem:[#allocation2 + $0x418] sm:$0xff]
  %v4861 = vld [vmem:[#allocation2 + $0x420] sm:$0xff]
  %v4862 = vld [vmem:[#allocation2 + $0x428] sm:$0xff]
  %v4863 = vld [vmem:[#allocation2 + $0x430] sm:$0xff]
  %v4864 = vld [vmem:[#allocation2 + $0x438] sm:$0xff]
  %v4865 = vld [vmem:[#allocation2 + $0x440] sm:$0xff]
  %v4866 = vld [vmem:[#allocation2 + $0x448] sm:$0xff]
  %v4867 = vld [vmem:[#allocation2 + $0x450] sm:$0xff]
  %v4868 = vld [vmem:[#allocation2 + $0x458] sm:$0xff]
  %v4869 = vld [vmem:[#allocation2 + $0x460] sm:$0xff]
  %v4870 = vld [vmem:[#allocation2 + $0x468] sm:$0xff]
  %v4871 = vld [vmem:[#allocation2 + $0x470] sm:$0xff]
  %v4872 = vld [vmem:[#allocation2 + $0x478] sm:$0xff]
  %v4873 = vld [vmem:[%s2429] sm:$0xff]
  %v4874 = vld [vmem:[%s2429 + $0x8] sm:$0xff]
  %v4875 = vld [vmem:[%s2429 + $0x10] sm:$0xff]
  %v4876 = vld [vmem:[%s2429 + $0x18] sm:$0xff]
  %v4877 = vld [vmem:[%s2429 + $0x20] sm:$0xff]
  %v4878 = vld [vmem:[%s2429 + $0x28] sm:$0xff]
  %v4879 = vld [vmem:[%s2429 + $0x30] sm:$0xff]
  %v4880 = vld [vmem:[%s2429 + $0x38] sm:$0xff]
  %v4881 = vld [vmem:[%s2429 + $0x40] sm:$0xff]
  %v4882 = vld [vmem:[%s2429 + $0x48] sm:$0xff]
  %v4883 = vld [vmem:[%s2429 + $0x50] sm:$0xff]
  %v4884 = vld [vmem:[%s2429 + $0x58] sm:$0xff]
  %v4885 = vld [vmem:[%s2429 + $0x60] sm:$0xff]
  %v4886 = vld [vmem:[%s2429 + $0x68] sm:$0xff]
  %v4887 = vld [vmem:[%s2429 + $0x70] sm:$0xff]
  %v4888 = vld [vmem:[%s2429 + $0x78] sm:$0xff]
  %v4889 = vld [vmem:[%s2429 + $0x80] sm:$0xff]
  %v4890 = vld [vmem:[%s2429 + $0x88] sm:$0xff]
  %v4891 = vld [vmem:[%s2429 + $0x90] sm:$0xff]
  %v4892 = vld [vmem:[%s2429 + $0x98] sm:$0xff]
  %v4893 = vld [vmem:[%s2429 + $0xa0] sm:$0xff]
  %v4894 = vld [vmem:[%s2429 + $0xa8] sm:$0xff]
  %v4895 = vld [vmem:[%s2429 + $0xb0] sm:$0xff]
  %v4896 = vld [vmem:[%s2429 + $0xb8] sm:$0xff]
  %v4897 = vld [vmem:[%s2429 + $0xc0] sm:$0xff]
  %v4898 = vld [vmem:[%s2429 + $0xc8] sm:$0xff]
  %v4899 = vld [vmem:[%s2429 + $0xd0] sm:$0xff]
  %v4900 = vld [vmem:[%s2429 + $0xd8] sm:$0xff]
  %v4901 = vld [vmem:[%s2429 + $0xe0] sm:$0xff]
  %v4902 = vld [vmem:[%s2429 + $0xe8] sm:$0xff]
  %v4903 = vld [vmem:[%s2429 + $0xf0] sm:$0xff]
  %v4904 = vld [vmem:[%s2429 + $0xf8] sm:$0xff]
  %v4905 = vld [vmem:[%s2429 + $0x100] sm:$0xff]
  %v4906 = vld [vmem:[%s2429 + $0x108] sm:$0xff]
  %v4907 = vld [vmem:[%s2429 + $0x110] sm:$0xff]
  %v4908 = vld [vmem:[%s2429 + $0x118] sm:$0xff]
  %v4909 = vld [vmem:[%s2429 + $0x120] sm:$0xff]
  %v4910 = vld [vmem:[%s2429 + $0x128] sm:$0xff]
  %v4911 = vld [vmem:[%s2429 + $0x130] sm:$0xff]
  %v4912 = vld [vmem:[%s2429 + $0x138] sm:$0xff]
  %v4913 = vld [vmem:[%s2429 + $0x140] sm:$0xff]
  %v4914 = vld [vmem:[%s2429 + $0x148] sm:$0xff]
  %v4915 = vld [vmem:[%s2429 + $0x150] sm:$0xff]
  %v4916 = vld [vmem:[%s2429 + $0x158] sm:$0xff]
  %v4917 = vld [vmem:[%s2429 + $0x160] sm:$0xff]
  %v4918 = vld [vmem:[%s2429 + $0x168] sm:$0xff]
  %v4919 = vld [vmem:[%s2429 + $0x170] sm:$0xff]
  %v4920 = vld [vmem:[%s2429 + $0x178] sm:$0xff]
  %v4921 = vld [vmem:[%s2429 + $0x180] sm:$0xff]
  %v4922 = vld [vmem:[%s2429 + $0x188] sm:$0xff]
  %v4923 = vld [vmem:[%s2429 + $0x190] sm:$0xff]
  %v4924 = vld [vmem:[%s2429 + $0x198] sm:$0xff]
  %v4925 = vld [vmem:[%s2429 + $0x1a0] sm:$0xff]
  %v4926 = vld [vmem:[%s2429 + $0x1a8] sm:$0xff]
  %v4927 = vld [vmem:[%s2429 + $0x1b0] sm:$0xff]
  %v4928 = vld [vmem:[%s2429 + $0x1b8] sm:$0xff]
  %v4929 = vld [vmem:[%s2429 + $0x1c0] sm:$0xff]
  %v4930 = vld [vmem:[%s2429 + $0x1c8] sm:$0xff]
  %v4931 = vld [vmem:[%s2429 + $0x1d0] sm:$0xff]
  %v4932 = vld [vmem:[%s2429 + $0x1d8] sm:$0xff]
  %v4933 = vld [vmem:[%s2429 + $0x1e0] sm:$0xff]
  %v4934 = vld [vmem:[%s2429 + $0x1e8] sm:$0xff]
  %v4935 = vld [vmem:[%s2429 + $0x1f0] sm:$0xff]
  %v4936 = vld [vmem:[%s2429 + $0x1f8] sm:$0xff]
  %4937 = vmatprep.subr.mxu0 %v4904
  %4938 = vmatpush1.msra.mxu0 %v4903
  %4939 = vmatprep.subr.mxu0 %v4902
  %4940 = vmatpush1.msra.mxu0 %v4901
  %4941 = vmatprep.subr.mxu0 %v4900
  %4942 = vmatpush1.msra.mxu0 %v4899
  %4943 = vmatprep.subr.mxu0 %v4898
  %4944 = vmatpush1.msra.mxu0 %v4897
  %4945 = vmatprep.subr.mxu0 %v4896
  %4946 = vmatpush1.msra.mxu0 %v4895
  %4947 = vmatprep.subr.mxu0 %v4894
  %4948 = vmatpush1.msra.mxu0 %v4893
  %4949 = vmatprep.subr.mxu0 %v4892
  %4950 = vmatpush1.msra.mxu0 %v4891
  %4951 = vmatprep.subr.mxu0 %v4890
  %4952 = vmatpush1.msra.mxu0 %v4889
  %4953 = vmatprep.subr.mxu0 %v4888
  %4954 = vmatpush1.msra.mxu0 %v4887
  %4955 = vmatprep.subr.mxu0 %v4886
  %4956 = vmatpush1.msra.mxu0 %v4885
  %4957 = vmatprep.subr.mxu0 %v4884
  %4958 = vmatpush1.msra.mxu0 %v4883
  %4959 = vmatprep.subr.mxu0 %v4882
  %4960 = vmatpush1.msra.mxu0 %v4881
  %4961 = vmatprep.subr.mxu0 %v4880
  %4962 = vmatpush1.msra.mxu0 %v4879
  %4963 = vmatprep.subr.mxu0 %v4878
  %4964 = vmatpush1.msra.mxu0 %v4877
  %4965 = vmatprep.subr.mxu0 %v4876
  %4966 = vmatpush1.msra.mxu0 %v4875
  %4967 = vmatprep.subr.mxu0 %v4874
  %4968 = vmatpush1.msra.mxu0 %v4873
  %4969 = vmatprep.subr.mxu0 %v4936
  %4970 = vmatpush2.msra.mxu0 %v4935
  %4971 = vmatprep.subr.mxu0 %v4934
  %4972 = vmatpush2.msra.mxu0 %v4933
  %4973 = vmatprep.subr.mxu0 %v4932
  %4974 = vmatpush2.msra.mxu0 %v4931
  %4975 = vmatprep.subr.mxu0 %v4930
  %4976 = vmatpush2.msra.mxu0 %v4929
  %4977 = vmatprep.subr.mxu0 %v4928
  %4978 = vmatpush2.msra.mxu0 %v4927
  %4979 = vmatprep.subr.mxu0 %v4926
  %4980 = vmatpush2.msra.mxu0 %v4925
  %4981 = vmatprep.subr.mxu0 %v4924
  %4982 = vmatpush2.msra.mxu0 %v4923
  %4983 = vmatprep.subr.mxu0 %v4922
  %4984 = vmatpush2.msra.mxu0 %v4921
  %4985 = vmatprep.subr.mxu0 %v4920
  %4986 = vmatpush2.msra.mxu0 %v4919
  %4987 = vmatprep.subr.mxu0 %v4918
  %4988 = vmatpush2.msra.mxu0 %v4917
  %4989 = vmatprep.subr.mxu0 %v4916
  %4990 = vmatpush2.msra.mxu0 %v4915
  %4991 = vmatprep.subr.mxu0 %v4914
  %4992 = vmatpush2.msra.mxu0 %v4913
  %4993 = vmatprep.subr.mxu0 %v4912
  %4994 = vmatpush2.msra.mxu0 %v4911
  %4995 = vmatprep.subr.mxu0 %v4910
  %4996 = vmatpush2.msra.mxu0 %v4909
  %4997 = vmatprep.subr.mxu0 %v4908
  %4998 = vmatpush2.msra.mxu0 %v4907
  %4999 = vmatprep.subr.mxu0 %v4906
  %5000 = vmatpush2.msra.mxu0 %v4905
  %5001 = vmatprep.mubr.f32.mxu0 %v4738
  %5002 = vmatmul.mubr.f32.gmra.mxu0 %v4737
  %v5003 = vpop.f32.mrf.mxu0
  %v5004 = vadd.f32 0.0, %v5003
  %v5005 = vpop.f32.mrf.mxu0
  %v5006 = vadd.f32 0.0, %v5005
  %5007 = vmatprep.mubr.f32.mxu0 %v4740
  %5008 = vmatmul.mubr.f32.gmra.mxu0 %v4739
  %v5009 = vpop.f32.mrf.mxu0
  %v5010 = vadd.f32 0.0, %v5009
  %v5011 = vpop.f32.mrf.mxu0
  %v5012 = vadd.f32 0.0, %v5011
  %5013 = vmatprep.mubr.f32.mxu0 %v4742
  %5014 = vmatmul.mubr.f32.gmra.mxu0 %v4741
  %v5015 = vpop.f32.mrf.mxu0
  %v5016 = vadd.f32 0.0, %v5015
  %v5017 = vpop.f32.mrf.mxu0
  %v5018 = vadd.f32 0.0, %v5017
  %5019 = vmatprep.mubr.f32.mxu0 %v4744
  %5020 = vmatmul.mubr.f32.gmra.mxu0 %v4743
  %v5021 = vpop.f32.mrf.mxu0
  %v5022 = vadd.f32 0.0, %v5021
  %v5023 = vpop.f32.mrf.mxu0
  %v5024 = vadd.f32 0.0, %v5023
  %5025 = vmatprep.mubr.f32.mxu0 %v4746
  %5026 = vmatmul.mubr.f32.gmra.mxu0 %v4745
  %v5027 = vpop.f32.mrf.mxu0
  %v5028 = vadd.f32 0.0, %v5027
  %v5029 = vpop.f32.mrf.mxu0
  %v5030 = vadd.f32 0.0, %v5029
  %5031 = vmatprep.mubr.f32.mxu0 %v4748
  %5032 = vmatmul.mubr.f32.gmra.mxu0 %v4747
  %v5033 = vpop.f32.mrf.mxu0
  %v5034 = vadd.f32 0.0, %v5033
  %v5035 = vpop.f32.mrf.mxu0
  %v5036 = vadd.f32 0.0, %v5035
  %5037 = vmatprep.mubr.f32.mxu0 %v4750
  %5038 = vmatmul.mubr.f32.gmra.mxu0 %v4749
  %v5039 = vpop.f32.mrf.mxu0
  %v5040 = vadd.f32 0.0, %v5039
  %v5041 = vpop.f32.mrf.mxu0
  %v5042 = vadd.f32 0.0, %v5041
  %5043 = vmatprep.mubr.f32.mxu0 %v4752
  %5044 = vmatmul.mubr.f32.gmra.mxu0 %v4751
  %v5045 = vpop.f32.mrf.mxu0
  %v5046 = vadd.f32 0.0, %v5045
  %v5047 = vpop.f32.mrf.mxu0
  %v5048 = vadd.f32 0.0, %v5047
  %5049 = vmatprep.mubr.f32.mxu0 %v4754
  %5050 = vmatmul.mubr.f32.gmra.mxu0 %v4753
  %v5051 = vpop.f32.mrf.mxu0
  %v5052 = vadd.f32 0.0, %v5051
  %v5053 = vpop.f32.mrf.mxu0
  %v5054 = vadd.f32 0.0, %v5053
  %5055 = vmatprep.mubr.f32.mxu0 %v4756
  %5056 = vmatmul.mubr.f32.gmra.mxu0 %v4755
  %v5057 = vpop.f32.mrf.mxu0
  %v5058 = vadd.f32 0.0, %v5057
  %v5059 = vpop.f32.mrf.mxu0
  %v5060 = vadd.f32 0.0, %v5059
  %5061 = vmatprep.mubr.f32.mxu0 %v4758
  %5062 = vmatmul.mubr.f32.gmra.mxu0 %v4757
  %v5063 = vpop.f32.mrf.mxu0
  %v5064 = vadd.f32 0.0, %v5063
  %v5065 = vpop.f32.mrf.mxu0
  %v5066 = vadd.f32 0.0, %v5065
  %5067 = vmatprep.mubr.f32.mxu0 %v4760
  %5068 = vmatmul.mubr.f32.gmra.mxu0 %v4759
  %v5069 = vpop.f32.mrf.mxu0
  %v5070 = vadd.f32 0.0, %v5069
  %v5071 = vpop.f32.mrf.mxu0
  %v5072 = vadd.f32 0.0, %v5071
  %5073 = vmatprep.mubr.f32.mxu0 %v4762
  %5074 = vmatmul.mubr.f32.gmra.mxu0 %v4761
  %v5075 = vpop.f32.mrf.mxu0
  %v5076 = vadd.f32 0.0, %v5075
  %v5077 = vpop.f32.mrf.mxu0
  %v5078 = vadd.f32 0.0, %v5077
  %5079 = vmatprep.mubr.f32.mxu0 %v4764
  %5080 = vmatmul.mubr.f32.gmra.mxu0 %v4763
  %v5081 = vpop.f32.mrf.mxu0
  %v5082 = vadd.f32 0.0, %v5081
  %v5083 = vpop.f32.mrf.mxu0
  %v5084 = vadd.f32 0.0, %v5083
  %5085 = vmatprep.mubr.f32.mxu0 %v4766
  %5086 = vmatmul.mubr.f32.gmra.mxu0 %v4765
  %v5087 = vpop.f32.mrf.mxu0
  %v5088 = vadd.f32 0.0, %v5087
  %v5089 = vpop.f32.mrf.mxu0
  %v5090 = vadd.f32 0.0, %v5089
  %5091 = vmatprep.mubr.f32.mxu0 %v4768
  %5092 = vmatmul.mubr.f32.gmra.mxu0 %v4767
  %v5093 = vpop.f32.mrf.mxu0
  %v5094 = vadd.f32 0.0, %v5093
  %v5095 = vpop.f32.mrf.mxu0
  %v5096 = vadd.f32 0.0, %v5095
  %5097 = vmatprep.mubr.f32.mxu0 %v4770
  %5098 = vmatmul.mubr.f32.gmra.mxu0 %v4769
  %v5099 = vpop.f32.mrf.mxu0
  %v5100 = vadd.f32 0.0, %v5099
  %v5101 = vpop.f32.mrf.mxu0
  %v5102 = vadd.f32 0.0, %v5101
  %5103 = vmatprep.mubr.f32.mxu0 %v4772
  %5104 = vmatmul.mubr.f32.gmra.mxu0 %v4771
  %v5105 = vpop.f32.mrf.mxu0
  %v5106 = vadd.f32 0.0, %v5105
  %v5107 = vpop.f32.mrf.mxu0
  %v5108 = vadd.f32 0.0, %v5107
  %5109 = vmatprep.mubr.f32.mxu0 %v4774
  %5110 = vmatmul.mubr.f32.gmra.mxu0 %v4773
  %v5111 = vpop.f32.mrf.mxu0
  %v5112 = vadd.f32 0.0, %v5111
  %v5113 = vpop.f32.mrf.mxu0
  %v5114 = vadd.f32 0.0, %v5113
  %5115 = vmatprep.mubr.f32.mxu0 %v4776
  %5116 = vmatmul.mubr.f32.gmra.mxu0 %v4775
  %v5117 = vpop.f32.mrf.mxu0
  %v5118 = vadd.f32 0.0, %v5117
  %v5119 = vpop.f32.mrf.mxu0
  %v5120 = vadd.f32 0.0, %v5119
  %5121 = vmatprep.mubr.f32.mxu0 %v4778
  %5122 = vmatmul.mubr.f32.gmra.mxu0 %v4777
  %v5123 = vpop.f32.mrf.mxu0
  %v5124 = vadd.f32 0.0, %v5123
  %v5125 = vpop.f32.mrf.mxu0
  %v5126 = vadd.f32 0.0, %v5125
  %5127 = vmatprep.mubr.f32.mxu0 %v4780
  %5128 = vmatmul.mubr.f32.gmra.mxu0 %v4779
  %v5129 = vpop.f32.mrf.mxu0
  %v5130 = vadd.f32 0.0, %v5129
  %v5131 = vpop.f32.mrf.mxu0
  %v5132 = vadd.f32 0.0, %v5131
  %5133 = vmatprep.mubr.f32.mxu0 %v4782
  %5134 = vmatmul.mubr.f32.gmra.mxu0 %v4781
  %v5135 = vpop.f32.mrf.mxu0
  %v5136 = vadd.f32 0.0, %v5135
  %v5137 = vpop.f32.mrf.mxu0
  %v5138 = vadd.f32 0.0, %v5137
  %5139 = vmatprep.mubr.f32.mxu0 %v4784
  %5140 = vmatmul.mubr.f32.gmra.mxu0 %v4783
  %v5141 = vpop.f32.mrf.mxu0
  %v5142 = vadd.f32 0.0, %v5141
  %v5143 = vpop.f32.mrf.mxu0
  %v5144 = vadd.f32 0.0, %v5143
  %5145 = vmatprep.mubr.f32.mxu0 %v4786
  %5146 = vmatmul.mubr.f32.gmra.mxu0 %v4785
  %v5147 = vpop.f32.mrf.mxu0
  %v5148 = vadd.f32 0.0, %v5147
  %v5149 = vpop.f32.mrf.mxu0
  %v5150 = vadd.f32 0.0, %v5149
  %5151 = vmatprep.mubr.f32.mxu0 %v4788
  %5152 = vmatmul.mubr.f32.gmra.mxu0 %v4787
  %v5153 = vpop.f32.mrf.mxu0
  %v5154 = vadd.f32 0.0, %v5153
  %v5155 = vpop.f32.mrf.mxu0
  %v5156 = vadd.f32 0.0, %v5155
  %5157 = vmatprep.mubr.f32.mxu0 %v4790
  %5158 = vmatmul.mubr.f32.gmra.mxu0 %v4789
  %v5159 = vpop.f32.mrf.mxu0
  %v5160 = vadd.f32 0.0, %v5159
  %v5161 = vpop.f32.mrf.mxu0
  %v5162 = vadd.f32 0.0, %v5161
  %5163 = vmatprep.mubr.f32.mxu0 %v4792
  %5164 = vmatmul.mubr.f32.gmra.mxu0 %v4791
  %v5165 = vpop.f32.mrf.mxu0
  %v5166 = vadd.f32 0.0, %v5165
  %v5167 = vpop.f32.mrf.mxu0
  %v5168 = vadd.f32 0.0, %v5167
  %5169 = vmatprep.mubr.f32.mxu0 %v4794
  %5170 = vmatmul.mubr.f32.gmra.mxu0 %v4793
  %v5171 = vpop.f32.mrf.mxu0
  %v5172 = vadd.f32 0.0, %v5171
  %v5173 = vpop.f32.mrf.mxu0
  %v5174 = vadd.f32 0.0, %v5173
  %5175 = vmatprep.mubr.f32.mxu0 %v4796
  %5176 = vmatmul.mubr.f32.gmra.mxu0 %v4795
  %v5177 = vpop.f32.mrf.mxu0
  %v5178 = vadd.f32 0.0, %v5177
  %v5179 = vpop.f32.mrf.mxu0
  %v5180 = vadd.f32 0.0, %v5179
  %5181 = vmatprep.mubr.f32.mxu0 %v4798
  %5182 = vmatmul.mubr.f32.gmra.mxu0 %v4797
  %v5183 = vpop.f32.mrf.mxu0
  %v5184 = vadd.f32 0.0, %v5183
  %v5185 = vpop.f32.mrf.mxu0
  %v5186 = vadd.f32 0.0, %v5185
  %5187 = vmatprep.mubr.f32.mxu0 %v4800
  %5188 = vmatmul.mubr.f32.gmra.mxu0 %v4799
  %v5189 = vpop.f32.mrf.mxu0
  %v5190 = vadd.f32 0.0, %v5189
  %v5191 = vpop.f32.mrf.mxu0
  %v5192 = vadd.f32 0.0, %v5191
  %5193 = vmatprep.mubr.f32.mxu0 %v4802
  %5194 = vmatmul.mubr.f32.gmra.mxu0 %v4801
  %v5195 = vpop.f32.mrf.mxu0
  %v5196 = vadd.f32 0.0, %v5195
  %v5197 = vpop.f32.mrf.mxu0
  %v5198 = vadd.f32 0.0, %v5197
  %5199 = vmatprep.mubr.f32.mxu0 %v4804
  %5200 = vmatmul.mubr.f32.gmra.mxu0 %v4803
  %v5201 = vpop.f32.mrf.mxu0
  %v5202 = vadd.f32 0.0, %v5201
  %v5203 = vpop.f32.mrf.mxu0
  %v5204 = vadd.f32 0.0, %v5203
  %5205 = vmatprep.mubr.f32.mxu0 %v4806
  %5206 = vmatmul.mubr.f32.gmra.mxu0 %v4805
  %v5207 = vpop.f32.mrf.mxu0
  %v5208 = vadd.f32 0.0, %v5207
  %v5209 = vpop.f32.mrf.mxu0
  %v5210 = vadd.f32 0.0, %v5209
  %5211 = vmatprep.mubr.f32.mxu0 %v4808
  %5212 = vmatmul.mubr.f32.gmra.mxu0 %v4807
  %v5213 = vpop.f32.mrf.mxu0
  %v5214 = vadd.f32 0.0, %v5213
  %v5215 = vpop.f32.mrf.mxu0
  %v5216 = vadd.f32 0.0, %v5215
  %5217 = vmatprep.mubr.f32.mxu0 %v4810
  %5218 = vmatmul.mubr.f32.gmra.mxu0 %v4809
  %v5219 = vpop.f32.mrf.mxu0
  %v5220 = vadd.f32 0.0, %v5219
  %v5221 = vpop.f32.mrf.mxu0
  %v5222 = vadd.f32 0.0, %v5221
  %5223 = vmatprep.mubr.f32.mxu0 %v4812
  %5224 = vmatmul.mubr.f32.gmra.mxu0 %v4811
  %v5225 = vpop.f32.mrf.mxu0
  %v5226 = vadd.f32 0.0, %v5225
  %v5227 = vpop.f32.mrf.mxu0
  %v5228 = vadd.f32 0.0, %v5227
  %5229 = vmatprep.mubr.f32.mxu0 %v4814
  %5230 = vmatmul.mubr.f32.gmra.mxu0 %v4813
  %v5231 = vpop.f32.mrf.mxu0
  %v5232 = vadd.f32 0.0, %v5231
  %v5233 = vpop.f32.mrf.mxu0
  %v5234 = vadd.f32 0.0, %v5233
  %5235 = vmatprep.mubr.f32.mxu0 %v4816
  %5236 = vmatmul.mubr.f32.gmra.mxu0 %v4815
  %v5237 = vpop.f32.mrf.mxu0
  %v5238 = vadd.f32 0.0, %v5237
  %v5239 = vpop.f32.mrf.mxu0
  %v5240 = vadd.f32 0.0, %v5239
  %5241 = vmatprep.mubr.f32.mxu0 %v4818
  %5242 = vmatmul.mubr.f32.gmra.mxu0 %v4817
  %v5243 = vpop.f32.mrf.mxu0
  %v5244 = vadd.f32 0.0, %v5243
  %v5245 = vpop.f32.mrf.mxu0
  %v5246 = vadd.f32 0.0, %v5245
  %5247 = vmatprep.mubr.f32.mxu0 %v4820
  %5248 = vmatmul.mubr.f32.gmra.mxu0 %v4819
  %v5249 = vpop.f32.mrf.mxu0
  %v5250 = vadd.f32 0.0, %v5249
  %v5251 = vpop.f32.mrf.mxu0
  %v5252 = vadd.f32 0.0, %v5251
  %5253 = vmatprep.mubr.f32.mxu0 %v4822
  %5254 = vmatmul.mubr.f32.gmra.mxu0 %v4821
  %v5255 = vpop.f32.mrf.mxu0
  %v5256 = vadd.f32 0.0, %v5255
  %v5257 = vpop.f32.mrf.mxu0
  %v5258 = vadd.f32 0.0, %v5257
  %5259 = vmatprep.mubr.f32.mxu0 %v4824
  %5260 = vmatmul.mubr.f32.gmra.mxu0 %v4823
  %v5261 = vpop.f32.mrf.mxu0
  %v5262 = vadd.f32 0.0, %v5261
  %v5263 = vpop.f32.mrf.mxu0
  %v5264 = vadd.f32 0.0, %v5263
  %5265 = vmatprep.mubr.f32.mxu0 %v4826
  %5266 = vmatmul.mubr.f32.gmra.mxu0 %v4825
  %v5267 = vpop.f32.mrf.mxu0
  %v5268 = vadd.f32 0.0, %v5267
  %v5269 = vpop.f32.mrf.mxu0
  %v5270 = vadd.f32 0.0, %v5269
  %5271 = vmatprep.mubr.f32.mxu0 %v4828
  %5272 = vmatmul.mubr.f32.gmra.mxu0 %v4827
  %v5273 = vpop.f32.mrf.mxu0
  %v5274 = vadd.f32 0.0, %v5273
  %v5275 = vpop.f32.mrf.mxu0
  %v5276 = vadd.f32 0.0, %v5275
  %5277 = vmatprep.mubr.f32.mxu0 %v4830
  %5278 = vmatmul.mubr.f32.gmra.mxu0 %v4829
  %v5279 = vpop.f32.mrf.mxu0
  %v5280 = vadd.f32 0.0, %v5279
  %v5281 = vpop.f32.mrf.mxu0
  %v5282 = vadd.f32 0.0, %v5281
  %5283 = vmatprep.mubr.f32.mxu0 %v4832
  %5284 = vmatmul.mubr.f32.gmra.mxu0 %v4831
  %v5285 = vpop.f32.mrf.mxu0
  %v5286 = vadd.f32 0.0, %v5285
  %v5287 = vpop.f32.mrf.mxu0
  %v5288 = vadd.f32 0.0, %v5287
  %5289 = vmatprep.mubr.f32.mxu0 %v4834
  %5290 = vmatmul.mubr.f32.gmra.mxu0 %v4833
  %v5291 = vpop.f32.mrf.mxu0
  %v5292 = vadd.f32 0.0, %v5291
  %v5293 = vpop.f32.mrf.mxu0
  %v5294 = vadd.f32 0.0, %v5293
  %5295 = vmatprep.mubr.f32.mxu0 %v4836
  %5296 = vmatmul.mubr.f32.gmra.mxu0 %v4835
  %v5297 = vpop.f32.mrf.mxu0
  %v5298 = vadd.f32 0.0, %v5297
  %v5299 = vpop.f32.mrf.mxu0
  %v5300 = vadd.f32 0.0, %v5299
  %5301 = vmatprep.mubr.f32.mxu0 %v4838
  %5302 = vmatmul.mubr.f32.gmra.mxu0 %v4837
  %v5303 = vpop.f32.mrf.mxu0
  %v5304 = vadd.f32 0.0, %v5303
  %v5305 = vpop.f32.mrf.mxu0
  %v5306 = vadd.f32 0.0, %v5305
  %5307 = vmatprep.mubr.f32.mxu0 %v4840
  %5308 = vmatmul.mubr.f32.gmra.mxu0 %v4839
  %v5309 = vpop.f32.mrf.mxu0
  %v5310 = vadd.f32 0.0, %v5309
  %v5311 = vpop.f32.mrf.mxu0
  %v5312 = vadd.f32 0.0, %v5311
  %5313 = vmatprep.mubr.f32.mxu0 %v4842
  %5314 = vmatmul.mubr.f32.gmra.mxu0 %v4841
  %v5315 = vpop.f32.mrf.mxu0
  %v5316 = vadd.f32 0.0, %v5315
  %v5317 = vpop.f32.mrf.mxu0
  %v5318 = vadd.f32 0.0, %v5317
  %5319 = vmatprep.mubr.f32.mxu0 %v4844
  %5320 = vmatmul.mubr.f32.gmra.mxu0 %v4843
  %v5321 = vpop.f32.mrf.mxu0
  %v5322 = vadd.f32 0.0, %v5321
  %v5323 = vpop.f32.mrf.mxu0
  %v5324 = vadd.f32 0.0, %v5323
  %5325 = vmatprep.mubr.f32.mxu0 %v4846
  %5326 = vmatmul.mubr.f32.gmra.mxu0 %v4845
  %v5327 = vpop.f32.mrf.mxu0
  %v5328 = vadd.f32 0.0, %v5327
  %v5329 = vpop.f32.mrf.mxu0
  %v5330 = vadd.f32 0.0, %v5329
  %5331 = vmatprep.mubr.f32.mxu0 %v4848
  %5332 = vmatmul.mubr.f32.gmra.mxu0 %v4847
  %v5333 = vpop.f32.mrf.mxu0
  %v5334 = vadd.f32 0.0, %v5333
  %v5335 = vpop.f32.mrf.mxu0
  %v5336 = vadd.f32 0.0, %v5335
  %5337 = vmatprep.mubr.f32.mxu0 %v4850
  %5338 = vmatmul.mubr.f32.gmra.mxu0 %v4849
  %v5339 = vpop.f32.mrf.mxu0
  %v5340 = vadd.f32 0.0, %v5339
  %v5341 = vpop.f32.mrf.mxu0
  %v5342 = vadd.f32 0.0, %v5341
  %5343 = vmatprep.mubr.f32.mxu0 %v4852
  %5344 = vmatmul.mubr.f32.gmra.mxu0 %v4851
  %v5345 = vpop.f32.mrf.mxu0
  %v5346 = vadd.f32 0.0, %v5345
  %v5347 = vpop.f32.mrf.mxu0
  %v5348 = vadd.f32 0.0, %v5347
  %5349 = vmatprep.mubr.f32.mxu0 %v4854
  %5350 = vmatmul.mubr.f32.gmra.mxu0 %v4853
  %v5351 = vpop.f32.mrf.mxu0
  %v5352 = vadd.f32 0.0, %v5351
  %v5353 = vpop.f32.mrf.mxu0
  %v5354 = vadd.f32 0.0, %v5353
  %5355 = vmatprep.mubr.f32.mxu0 %v4856
  %5356 = vmatmul.mubr.f32.gmra.mxu0 %v4855
  %v5357 = vpop.f32.mrf.mxu0
  %v5358 = vadd.f32 0.0, %v5357
  %v5359 = vpop.f32.mrf.mxu0
  %v5360 = vadd.f32 0.0, %v5359
  %5361 = vmatprep.mubr.f32.mxu0 %v4858
  %5362 = vmatmul.mubr.f32.gmra.mxu0 %v4857
  %v5363 = vpop.f32.mrf.mxu0
  %v5364 = vadd.f32 0.0, %v5363
  %v5365 = vpop.f32.mrf.mxu0
  %v5366 = vadd.f32 0.0, %v5365
  %5367 = vmatprep.mubr.f32.mxu0 %v4860
  %5368 = vmatmul.mubr.f32.gmra.mxu0 %v4859
  %v5369 = vpop.f32.mrf.mxu0
  %v5370 = vadd.f32 0.0, %v5369
  %v5371 = vpop.f32.mrf.mxu0
  %v5372 = vadd.f32 0.0, %v5371
  %5373 = vmatprep.mubr.f32.mxu0 %v4862
  %5374 = vmatmul.mubr.f32.gmra.mxu0 %v4861
  %v5375 = vpop.f32.mrf.mxu0
  %v5376 = vadd.f32 0.0, %v5375
  %v5377 = vpop.f32.mrf.mxu0
  %v5378 = vadd.f32 0.0, %v5377
  %5379 = vmatprep.mubr.f32.mxu0 %v4864
  %5380 = vmatmul.mubr.f32.gmra.mxu0 %v4863
  %v5381 = vpop.f32.mrf.mxu0
  %v5382 = vadd.f32 0.0, %v5381
  %v5383 = vpop.f32.mrf.mxu0
  %v5384 = vadd.f32 0.0, %v5383
  %5385 = vmatprep.mubr.f32.mxu0 %v4866
  %5386 = vmatmul.mubr.f32.gmra.mxu0 %v4865
  %v5387 = vpop.f32.mrf.mxu0
  %v5388 = vadd.f32 0.0, %v5387
  %v5389 = vpop.f32.mrf.mxu0
  %v5390 = vadd.f32 0.0, %v5389
  %5391 = vmatprep.mubr.f32.mxu0 %v4868
  %5392 = vmatmul.mubr.f32.gmra.mxu0 %v4867
  %v5393 = vpop.f32.mrf.mxu0
  %v5394 = vadd.f32 0.0, %v5393
  %v5395 = vpop.f32.mrf.mxu0
  %v5396 = vadd.f32 0.0, %v5395
  %5397 = vmatprep.mubr.f32.mxu0 %v4870
  %5398 = vmatmul.mubr.f32.gmra.mxu0 %v4869
  %v5399 = vpop.f32.mrf.mxu0
  %v5400 = vadd.f32 0.0, %v5399
  %v5401 = vpop.f32.mrf.mxu0
  %v5402 = vadd.f32 0.0, %v5401
  %5403 = vmatprep.mubr.f32.mxu0 %v4872
  %5404 = vmatmul.mubr.f32.gmra.mxu0 %v4871
  %v5405 = vpop.f32.mrf.mxu0
  %v5406 = vadd.f32 0.0, %v5405
  %v5407 = vpop.f32.mrf.mxu0
  %v5408 = vadd.f32 0.0, %v5407
  %5409 = vdwg.mxu0
  %v5410 = vadd.f32 %v4331, %v5004
  %v5411 = vadd.f32 %v4333, %v5006
  %v5412 = vadd.f32 %v4337, %v5010
  %v5413 = vadd.f32 %v4339, %v5012
  %v5414 = vadd.f32 %v4343, %v5016
  %v5415 = vadd.f32 %v4345, %v5018
  %v5416 = vadd.f32 %v4349, %v5022
  %v5417 = vadd.f32 %v4351, %v5024
  %v5418 = vadd.f32 %v4355, %v5028
  %v5419 = vadd.f32 %v4357, %v5030
  %v5420 = vadd.f32 %v4361, %v5034
  %v5421 = vadd.f32 %v4363, %v5036
  %v5422 = vadd.f32 %v4367, %v5040
  %v5423 = vadd.f32 %v4369, %v5042
  %v5424 = vadd.f32 %v4373, %v5046
  %v5425 = vadd.f32 %v4375, %v5048
  %v5426 = vadd.f32 %v4379, %v5052
  %v5427 = vadd.f32 %v4381, %v5054
  %v5428 = vadd.f32 %v4385, %v5058
  %v5429 = vadd.f32 %v4387, %v5060
  %v5430 = vadd.f32 %v4391, %v5064
  %v5431 = vadd.f32 %v4393, %v5066
  %v5432 = vadd.f32 %v4397, %v5070
  %v5433 = vadd.f32 %v4399, %v5072
  %v5434 = vadd.f32 %v4403, %v5076
  %v5435 = vadd.f32 %v4405, %v5078
  %v5436 = vadd.f32 %v4409, %v5082
  %v5437 = vadd.f32 %v4411, %v5084
  %v5438 = vadd.f32 %v4415, %v5088
  %v5439 = vadd.f32 %v4417, %v5090
  %v5440 = vadd.f32 %v4421, %v5094
  %v5441 = vadd.f32 %v4423, %v5096
  %v5442 = vadd.f32 %v4427, %v5100
  %v5443 = vadd.f32 %v4429, %v5102
  %v5444 = vadd.f32 %v4433, %v5106
  %v5445 = vadd.f32 %v4435, %v5108
  %v5446 = vadd.f32 %v4439, %v5112
  %v5447 = vadd.f32 %v4441, %v5114
  %v5448 = vadd.f32 %v4445, %v5118
  %v5449 = vadd.f32 %v4447, %v5120
  %v5450 = vadd.f32 %v4451, %v5124
  %v5451 = vadd.f32 %v4453, %v5126
  %v5452 = vadd.f32 %v4457, %v5130
  %v5453 = vadd.f32 %v4459, %v5132
  %v5454 = vadd.f32 %v4463, %v5136
  %v5455 = vadd.f32 %v4465, %v5138
  %v5456 = vadd.f32 %v4469, %v5142
  %v5457 = vadd.f32 %v4471, %v5144
  %v5458 = vadd.f32 %v4475, %v5148
  %v5459 = vadd.f32 %v4477, %v5150
  %v5460 = vadd.f32 %v4481, %v5154
  %v5461 = vadd.f32 %v4483, %v5156
  %v5462 = vadd.f32 %v4487, %v5160
  %v5463 = vadd.f32 %v4489, %v5162
  %v5464 = vadd.f32 %v4493, %v5166
  %v5465 = vadd.f32 %v4495, %v5168
  %v5466 = vadd.f32 %v4499, %v5172
  %v5467 = vadd.f32 %v4501, %v5174
  %v5468 = vadd.f32 %v4505, %v5178
  %v5469 = vadd.f32 %v4507, %v5180
  %v5470 = vadd.f32 %v4511, %v5184
  %v5471 = vadd.f32 %v4513, %v5186
  %v5472 = vadd.f32 %v4517, %v5190
  %v5473 = vadd.f32 %v4519, %v5192
  %v5474 = vadd.f32 %v4523, %v5196
  %v5475 = vadd.f32 %v4525, %v5198
  %v5476 = vadd.f32 %v4529, %v5202
  %v5477 = vadd.f32 %v4531, %v5204
  %v5478 = vadd.f32 %v4535, %v5208
  %v5479 = vadd.f32 %v4537, %v5210
  %v5480 = vadd.f32 %v4541, %v5214
  %v5481 = vadd.f32 %v4543, %v5216
  %v5482 = vadd.f32 %v4547, %v5220
  %v5483 = vadd.f32 %v4549, %v5222
  %v5484 = vadd.f32 %v4553, %v5226
  %v5485 = vadd.f32 %v4555, %v5228
  %v5486 = vadd.f32 %v4559, %v5232
  %v5487 = vadd.f32 %v4561, %v5234
  %v5488 = vadd.f32 %v4565, %v5238
  %v5489 = vadd.f32 %v4567, %v5240
  %v5490 = vadd.f32 %v4571, %v5244
  %v5491 = vadd.f32 %v4573, %v5246
  %v5492 = vadd.f32 %v4577, %v5250
  %v5493 = vadd.f32 %v4579, %v5252
  %v5494 = vadd.f32 %v4583, %v5256
  %v5495 = vadd.f32 %v4585, %v5258
  %v5496 = vadd.f32 %v4589, %v5262
  %v5497 = vadd.f32 %v4591, %v5264
  %v5498 = vadd.f32 %v4595, %v5268
  %v5499 = vadd.f32 %v4597, %v5270
  %v5500 = vadd.f32 %v4601, %v5274
  %v5501 = vadd.f32 %v4603, %v5276
  %v5502 = vadd.f32 %v4607, %v5280
  %v5503 = vadd.f32 %v4609, %v5282
  %v5504 = vadd.f32 %v4613, %v5286
  %v5505 = vadd.f32 %v4615, %v5288
  %v5506 = vadd.f32 %v4619, %v5292
  %v5507 = vadd.f32 %v4621, %v5294
  %v5508 = vadd.f32 %v4625, %v5298
  %v5509 = vadd.f32 %v4627, %v5300
  %v5510 = vadd.f32 %v4631, %v5304
  %v5511 = vadd.f32 %v4633, %v5306
  %v5512 = vadd.f32 %v4637, %v5310
  %v5513 = vadd.f32 %v4639, %v5312
  %v5514 = vadd.f32 %v4643, %v5316
  %v5515 = vadd.f32 %v4645, %v5318
  %v5516 = vadd.f32 %v4649, %v5322
  %v5517 = vadd.f32 %v4651, %v5324
  %v5518 = vadd.f32 %v4655, %v5328
  %v5519 = vadd.f32 %v4657, %v5330
  %v5520 = vadd.f32 %v4661, %v5334
  %v5521 = vadd.f32 %v4663, %v5336
  %v5522 = vadd.f32 %v4667, %v5340
  %v5523 = vadd.f32 %v4669, %v5342
  %v5524 = vadd.f32 %v4673, %v5346
  %v5525 = vadd.f32 %v4675, %v5348
  %v5526 = vadd.f32 %v4679, %v5352
  %v5527 = vadd.f32 %v4681, %v5354
  %v5528 = vadd.f32 %v4685, %v5358
  %v5529 = vadd.f32 %v4687, %v5360
  %v5530 = vadd.f32 %v4691, %v5364
  %v5531 = vadd.f32 %v4693, %v5366
  %v5532 = vadd.f32 %v4697, %v5370
  %v5533 = vadd.f32 %v4699, %v5372
  %v5534 = vadd.f32 %v4703, %v5376
  %v5535 = vadd.f32 %v4705, %v5378
  %v5536 = vadd.f32 %v4709, %v5382
  %v5537 = vadd.f32 %v4711, %v5384
  %v5538 = vadd.f32 %v4715, %v5388
  %v5539 = vadd.f32 %v4717, %v5390
  %v5540 = vadd.f32 %v4721, %v5394
  %v5541 = vadd.f32 %v4723, %v5396
  %v5542 = vadd.f32 %v4727, %v5400
  %v5543 = vadd.f32 %v4729, %v5402
  %v5544 = vadd.f32 %v4733, %v5406
  %v5545 = vadd.f32 %v4735, %v5408
  %v5546 = vld [vmem:[%s4] sm:$0x3]
  %v5548 = vlaneseq
  %v5549 = vshrl.u32 %v5548, 7
  %v5550 = vsub.s32 0, %v5549
  %v5551 = vrot.slane %v5546, %v5550
  %v5552 = vlaneseq
  %v5553 = vshrl.u32 %v5552, 7
  %v5554 = vsub.s32 1, %v5553
  %v5555 = vrot.slane %v5546, %v5554
  %v5558 = vadd.f32 %v5410, %v5551
  %v5559 = vadd.f32 %v5411, %v5555
  %v5560 = vadd.f32 %v5412, %v5551
  %v5561 = vadd.f32 %v5413, %v5555
  %v5562 = vadd.f32 %v5414, %v5551
  %v5563 = vadd.f32 %v5415, %v5555
  %v5564 = vadd.f32 %v5416, %v5551
  %v5565 = vadd.f32 %v5417, %v5555
  %v5566 = vadd.f32 %v5418, %v5551
  %v5567 = vadd.f32 %v5419, %v5555
  %v5568 = vadd.f32 %v5420, %v5551
  %v5569 = vadd.f32 %v5421, %v5555
  %v5570 = vadd.f32 %v5422, %v5551
  %v5571 = vadd.f32 %v5423, %v5555
  %v5572 = vadd.f32 %v5424, %v5551
  %v5573 = vadd.f32 %v5425, %v5555
  %v5574 = vadd.f32 %v5426, %v5551
  %v5575 = vadd.f32 %v5427, %v5555
  %v5576 = vadd.f32 %v5428, %v5551
  %v5577 = vadd.f32 %v5429, %v5555
  %v5578 = vadd.f32 %v5430, %v5551
  %v5579 = vadd.f32 %v5431, %v5555
  %v5580 = vadd.f32 %v5432, %v5551
  %v5581 = vadd.f32 %v5433, %v5555
  %v5582 = vadd.f32 %v5434, %v5551
  %v5583 = vadd.f32 %v5435, %v5555
  %v5584 = vadd.f32 %v5436, %v5551
  %v5585 = vadd.f32 %v5437, %v5555
  %v5586 = vadd.f32 %v5438, %v5551
  %v5587 = vadd.f32 %v5439, %v5555
  %v5588 = vadd.f32 %v5440, %v5551
  %v5589 = vadd.f32 %v5441, %v5555
  %v5590 = vadd.f32 %v5442, %v5551
  %v5591 = vadd.f32 %v5443, %v5555
  %v5592 = vadd.f32 %v5444, %v5551
  %v5593 = vadd.f32 %v5445, %v5555
  %v5594 = vadd.f32 %v5446, %v5551
  %v5595 = vadd.f32 %v5447, %v5555
  %v5596 = vadd.f32 %v5448, %v5551
  %v5597 = vadd.f32 %v5449, %v5555
  %v5598 = vadd.f32 %v5450, %v5551
  %v5599 = vadd.f32 %v5451, %v5555
  %v5600 = vadd.f32 %v5452, %v5551
  %v5601 = vadd.f32 %v5453, %v5555
  %v5602 = vadd.f32 %v5454, %v5551
  %v5603 = vadd.f32 %v5455, %v5555
  %v5604 = vadd.f32 %v5456, %v5551
  %v5605 = vadd.f32 %v5457, %v5555
  %v5606 = vadd.f32 %v5458, %v5551
  %v5607 = vadd.f32 %v5459, %v5555
  %v5608 = vadd.f32 %v5460, %v5551
  %v5609 = vadd.f32 %v5461, %v5555
  %v5610 = vadd.f32 %v5462, %v5551
  %v5611 = vadd.f32 %v5463, %v5555
  %v5612 = vadd.f32 %v5464, %v5551
  %v5613 = vadd.f32 %v5465, %v5555
  %v5614 = vadd.f32 %v5466, %v5551
  %v5615 = vadd.f32 %v5467, %v5555
  %v5616 = vadd.f32 %v5468, %v5551
  %v5617 = vadd.f32 %v5469, %v5555
  %v5618 = vadd.f32 %v5470, %v5551
  %v5619 = vadd.f32 %v5471, %v5555
  %v5620 = vadd.f32 %v5472, %v5551
  %v5621 = vadd.f32 %v5473, %v5555
  %v5622 = vadd.f32 %v5474, %v5551
  %v5623 = vadd.f32 %v5475, %v5555
  %v5624 = vadd.f32 %v5476, %v5551
  %v5625 = vadd.f32 %v5477, %v5555
  %v5626 = vadd.f32 %v5478, %v5551
  %v5627 = vadd.f32 %v5479, %v5555
  %v5628 = vadd.f32 %v5480, %v5551
  %v5629 = vadd.f32 %v5481, %v5555
  %v5630 = vadd.f32 %v5482, %v5551
  %v5631 = vadd.f32 %v5483, %v5555
  %v5632 = vadd.f32 %v5484, %v5551
  %v5633 = vadd.f32 %v5485, %v5555
  %v5634 = vadd.f32 %v5486, %v5551
  %v5635 = vadd.f32 %v5487, %v5555
  %v5636 = vadd.f32 %v5488, %v5551
  %v5637 = vadd.f32 %v5489, %v5555
  %v5638 = vadd.f32 %v5490, %v5551
  %v5639 = vadd.f32 %v5491, %v5555
  %v5640 = vadd.f32 %v5492, %v5551
  %v5641 = vadd.f32 %v5493, %v5555
  %v5642 = vadd.f32 %v5494, %v5551
  %v5643 = vadd.f32 %v5495, %v5555
  %v5644 = vadd.f32 %v5496, %v5551
  %v5645 = vadd.f32 %v5497, %v5555
  %v5646 = vadd.f32 %v5498, %v5551
  %v5647 = vadd.f32 %v5499, %v5555
  %v5648 = vadd.f32 %v5500, %v5551
  %v5649 = vadd.f32 %v5501, %v5555
  %v5650 = vadd.f32 %v5502, %v5551
  %v5651 = vadd.f32 %v5503, %v5555
  %v5652 = vadd.f32 %v5504, %v5551
  %v5653 = vadd.f32 %v5505, %v5555
  %v5654 = vadd.f32 %v5506, %v5551
  %v5655 = vadd.f32 %v5507, %v5555
  %v5656 = vadd.f32 %v5508, %v5551
  %v5657 = vadd.f32 %v5509, %v5555
  %v5658 = vadd.f32 %v5510, %v5551
  %v5659 = vadd.f32 %v5511, %v5555
  %v5660 = vadd.f32 %v5512, %v5551
  %v5661 = vadd.f32 %v5513, %v5555
  %v5662 = vadd.f32 %v5514, %v5551
  %v5663 = vadd.f32 %v5515, %v5555
  %v5664 = vadd.f32 %v5516, %v5551
  %v5665 = vadd.f32 %v5517, %v5555
  %v5666 = vadd.f32 %v5518, %v5551
  %v5667 = vadd.f32 %v5519, %v5555
  %v5668 = vadd.f32 %v5520, %v5551
  %v5669 = vadd.f32 %v5521, %v5555
  %v5670 = vadd.f32 %v5522, %v5551
  %v5671 = vadd.f32 %v5523, %v5555
  %v5672 = vadd.f32 %v5524, %v5551
  %v5673 = vadd.f32 %v5525, %v5555
  %v5674 = vadd.f32 %v5526, %v5551
  %v5675 = vadd.f32 %v5527, %v5555
  %v5676 = vadd.f32 %v5528, %v5551
  %v5677 = vadd.f32 %v5529, %v5555
  %v5678 = vadd.f32 %v5530, %v5551
  %v5679 = vadd.f32 %v5531, %v5555
  %v5680 = vadd.f32 %v5532, %v5551
  %v5681 = vadd.f32 %v5533, %v5555
  %v5682 = vadd.f32 %v5534, %v5551
  %v5683 = vadd.f32 %v5535, %v5555
  %v5684 = vadd.f32 %v5536, %v5551
  %v5685 = vadd.f32 %v5537, %v5555
  %v5686 = vadd.f32 %v5538, %v5551
  %v5687 = vadd.f32 %v5539, %v5555
  %v5688 = vadd.f32 %v5540, %v5551
  %v5689 = vadd.f32 %v5541, %v5555
  %v5690 = vadd.f32 %v5542, %v5551
  %v5691 = vadd.f32 %v5543, %v5555
  %v5692 = vadd.f32 %v5544, %v5551
  %v5693 = vadd.f32 %v5545, %v5555
  %v5694 = vmax.f32 %v5558, 0.0
  %v5695 = vmax.f32 %v5559, 0.0
  %v5696 = vmax.f32 %v5560, 0.0
  %v5697 = vmax.f32 %v5561, 0.0
  %v5698 = vmax.f32 %v5562, 0.0
  %v5699 = vmax.f32 %v5563, 0.0
  %v5700 = vmax.f32 %v5564, 0.0
  %v5701 = vmax.f32 %v5565, 0.0
  %v5702 = vmax.f32 %v5566, 0.0
  %v5703 = vmax.f32 %v5567, 0.0
  %v5704 = vmax.f32 %v5568, 0.0
  %v5705 = vmax.f32 %v5569, 0.0
  %v5706 = vmax.f32 %v5570, 0.0
  %v5707 = vmax.f32 %v5571, 0.0
  %v5708 = vmax.f32 %v5572, 0.0
  %v5709 = vmax.f32 %v5573, 0.0
  %v5710 = vmax.f32 %v5574, 0.0
  %v5711 = vmax.f32 %v5575, 0.0
  %v5712 = vmax.f32 %v5576, 0.0
  %v5713 = vmax.f32 %v5577, 0.0
  %v5714 = vmax.f32 %v5578, 0.0
  %v5715 = vmax.f32 %v5579, 0.0
  %v5716 = vmax.f32 %v5580, 0.0
  %v5717 = vmax.f32 %v5581, 0.0
  %v5718 = vmax.f32 %v5582, 0.0
  %v5719 = vmax.f32 %v5583, 0.0
  %v5720 = vmax.f32 %v5584, 0.0
  %v5721 = vmax.f32 %v5585, 0.0
  %v5722 = vmax.f32 %v5586, 0.0
  %v5723 = vmax.f32 %v5587, 0.0
  %v5724 = vmax.f32 %v5588, 0.0
  %v5725 = vmax.f32 %v5589, 0.0
  %v5726 = vmax.f32 %v5590, 0.0
  %v5727 = vmax.f32 %v5591, 0.0
  %v5728 = vmax.f32 %v5592, 0.0
  %v5729 = vmax.f32 %v5593, 0.0
  %v5730 = vmax.f32 %v5594, 0.0
  %v5731 = vmax.f32 %v5595, 0.0
  %v5732 = vmax.f32 %v5596, 0.0
  %v5733 = vmax.f32 %v5597, 0.0
  %v5734 = vmax.f32 %v5598, 0.0
  %v5735 = vmax.f32 %v5599, 0.0
  %v5736 = vmax.f32 %v5600, 0.0
  %v5737 = vmax.f32 %v5601, 0.0
  %v5738 = vmax.f32 %v5602, 0.0
  %v5739 = vmax.f32 %v5603, 0.0
  %v5740 = vmax.f32 %v5604, 0.0
  %v5741 = vmax.f32 %v5605, 0.0
  %v5742 = vmax.f32 %v5606, 0.0
  %v5743 = vmax.f32 %v5607, 0.0
  %v5744 = vmax.f32 %v5608, 0.0
  %v5745 = vmax.f32 %v5609, 0.0
  %v5746 = vmax.f32 %v5610, 0.0
  %v5747 = vmax.f32 %v5611, 0.0
  %v5748 = vmax.f32 %v5612, 0.0
  %v5749 = vmax.f32 %v5613, 0.0
  %v5750 = vmax.f32 %v5614, 0.0
  %v5751 = vmax.f32 %v5615, 0.0
  %v5752 = vmax.f32 %v5616, 0.0
  %v5753 = vmax.f32 %v5617, 0.0
  %v5754 = vmax.f32 %v5618, 0.0
  %v5755 = vmax.f32 %v5619, 0.0
  %v5756 = vmax.f32 %v5620, 0.0
  %v5757 = vmax.f32 %v5621, 0.0
  %v5758 = vmax.f32 %v5622, 0.0
  %v5759 = vmax.f32 %v5623, 0.0
  %v5760 = vmax.f32 %v5624, 0.0
  %v5761 = vmax.f32 %v5625, 0.0
  %v5762 = vmax.f32 %v5626, 0.0
  %v5763 = vmax.f32 %v5627, 0.0
  %v5764 = vmax.f32 %v5628, 0.0
  %v5765 = vmax.f32 %v5629, 0.0
  %v5766 = vmax.f32 %v5630, 0.0
  %v5767 = vmax.f32 %v5631, 0.0
  %v5768 = vmax.f32 %v5632, 0.0
  %v5769 = vmax.f32 %v5633, 0.0
  %v5770 = vmax.f32 %v5634, 0.0
  %v5771 = vmax.f32 %v5635, 0.0
  %v5772 = vmax.f32 %v5636, 0.0
  %v5773 = vmax.f32 %v5637, 0.0
  %v5774 = vmax.f32 %v5638, 0.0
  %v5775 = vmax.f32 %v5639, 0.0
  %v5776 = vmax.f32 %v5640, 0.0
  %v5777 = vmax.f32 %v5641, 0.0
  %v5778 = vmax.f32 %v5642, 0.0
  %v5779 = vmax.f32 %v5643, 0.0
  %v5780 = vmax.f32 %v5644, 0.0
  %v5781 = vmax.f32 %v5645, 0.0
  %v5782 = vmax.f32 %v5646, 0.0
  %v5783 = vmax.f32 %v5647, 0.0
  %v5784 = vmax.f32 %v5648, 0.0
  %v5785 = vmax.f32 %v5649, 0.0
  %v5786 = vmax.f32 %v5650, 0.0
  %v5787 = vmax.f32 %v5651, 0.0
  %v5788 = vmax.f32 %v5652, 0.0
  %v5789 = vmax.f32 %v5653, 0.0
  %v5790 = vmax.f32 %v5654, 0.0
  %v5791 = vmax.f32 %v5655, 0.0
  %v5792 = vmax.f32 %v5656, 0.0
  %v5793 = vmax.f32 %v5657, 0.0
  %v5794 = vmax.f32 %v5658, 0.0
  %v5795 = vmax.f32 %v5659, 0.0
  %v5796 = vmax.f32 %v5660, 0.0
  %v5797 = vmax.f32 %v5661, 0.0
  %v5798 = vmax.f32 %v5662, 0.0
  %v5799 = vmax.f32 %v5663, 0.0
  %v5800 = vmax.f32 %v5664, 0.0
  %v5801 = vmax.f32 %v5665, 0.0
  %v5802 = vmax.f32 %v5666, 0.0
  %v5803 = vmax.f32 %v5667, 0.0
  %v5804 = vmax.f32 %v5668, 0.0
  %v5805 = vmax.f32 %v5669, 0.0
  %v5806 = vmax.f32 %v5670, 0.0
  %v5807 = vmax.f32 %v5671, 0.0
  %v5808 = vmax.f32 %v5672, 0.0
  %v5809 = vmax.f32 %v5673, 0.0
  %v5810 = vmax.f32 %v5674, 0.0
  %v5811 = vmax.f32 %v5675, 0.0
  %v5812 = vmax.f32 %v5676, 0.0
  %v5813 = vmax.f32 %v5677, 0.0
  %v5814 = vmax.f32 %v5678, 0.0
  %v5815 = vmax.f32 %v5679, 0.0
  %v5816 = vmax.f32 %v5680, 0.0
  %v5817 = vmax.f32 %v5681, 0.0
  %v5818 = vmax.f32 %v5682, 0.0
  %v5819 = vmax.f32 %v5683, 0.0
  %v5820 = vmax.f32 %v5684, 0.0
  %v5821 = vmax.f32 %v5685, 0.0
  %v5822 = vmax.f32 %v5686, 0.0
  %v5823 = vmax.f32 %v5687, 0.0
  %v5824 = vmax.f32 %v5688, 0.0
  %v5825 = vmax.f32 %v5689, 0.0
  %v5826 = vmax.f32 %v5690, 0.0
  %v5827 = vmax.f32 %v5691, 0.0
  %v5828 = vmax.f32 %v5692, 0.0
  %v5829 = vmax.f32 %v5693, 0.0
  %5830 = vst [vmem:[#allocation2 + $0x20] sm:$0xff] %v5694
  %5831 = vst [vmem:[#allocation2 + $0x28] sm:$0xff] %v5695
  %5832 = vst [vmem:[#allocation2 + $0x30] sm:$0xff] %v5696
  %5833 = vst [vmem:[#allocation2 + $0x38] sm:$0xff] %v5697
  %5834 = vst [vmem:[#allocation2 + $0x40] sm:$0xff] %v5698
  %5835 = vst [vmem:[#allocation2 + $0x48] sm:$0xff] %v5699
  %5836 = vst [vmem:[#allocation2 + $0x50] sm:$0xff] %v5700
  %5837 = vst [vmem:[#allocation2 + $0x58] sm:$0xff] %v5701
  %5838 = vst [vmem:[#allocation2 + $0x60] sm:$0xff] %v5702
  %5839 = vst [vmem:[#allocation2 + $0x68] sm:$0xff] %v5703
  %5840 = vst [vmem:[#allocation2 + $0x70] sm:$0xff] %v5704
  %5841 = vst [vmem:[#allocation2 + $0x78] sm:$0xff] %v5705
  %5842 = vst [vmem:[#allocation2 + $0x80] sm:$0xff] %v5706
  %5843 = vst [vmem:[#allocation2 + $0x88] sm:$0xff] %v5707
  %5844 = vst [vmem:[#allocation2 + $0x90] sm:$0xff] %v5708
  %5845 = vst [vmem:[#allocation2 + $0x98] sm:$0xff] %v5709
  %5846 = vst [vmem:[#allocation2 + $0xa0] sm:$0xff] %v5710
  %5847 = vst [vmem:[#allocation2 + $0xa8] sm:$0xff] %v5711
  %5848 = vst [vmem:[#allocation2 + $0xb0] sm:$0xff] %v5712
  %5849 = vst [vmem:[#allocation2 + $0xb8] sm:$0xff] %v5713
  %5850 = vst [vmem:[#allocation2 + $0xc0] sm:$0xff] %v5714
  %5851 = vst [vmem:[#allocation2 + $0xc8] sm:$0xff] %v5715
  %5852 = vst [vmem:[#allocation2 + $0xd0] sm:$0xff] %v5716
  %5853 = vst [vmem:[#allocation2 + $0xd8] sm:$0xff] %v5717
  %5854 = vst [vmem:[#allocation2 + $0xe0] sm:$0xff] %v5718
  %5855 = vst [vmem:[#allocation2 + $0xe8] sm:$0xff] %v5719
  %5856 = vst [vmem:[#allocation2 + $0xf0] sm:$0xff] %v5720
  %5857 = vst [vmem:[#allocation2 + $0xf8] sm:$0xff] %v5721
  %5858 = vst [vmem:[#allocation2 + $0x100] sm:$0xff] %v5722
  %5859 = vst [vmem:[#allocation2 + $0x108] sm:$0xff] %v5723
  %5860 = vst [vmem:[#allocation2 + $0x110] sm:$0xff] %v5724
  %5861 = vst [vmem:[#allocation2 + $0x118] sm:$0xff] %v5725
  %5862 = vst [vmem:[#allocation2 + $0x120] sm:$0xff] %v5726
  %5863 = vst [vmem:[#allocation2 + $0x128] sm:$0xff] %v5727
  %5864 = vst [vmem:[#allocation2 + $0x130] sm:$0xff] %v5728
  %5865 = vst [vmem:[#allocation2 + $0x138] sm:$0xff] %v5729
  %5866 = vst [vmem:[#allocation2 + $0x140] sm:$0xff] %v5730
  %5867 = vst [vmem:[#allocation2 + $0x148] sm:$0xff] %v5731
  %5868 = vst [vmem:[#allocation2 + $0x150] sm:$0xff] %v5732
  %5869 = vst [vmem:[#allocation2 + $0x158] sm:$0xff] %v5733
  %5870 = vst [vmem:[#allocation2 + $0x160] sm:$0xff] %v5734
  %5871 = vst [vmem:[#allocation2 + $0x168] sm:$0xff] %v5735
  %5872 = vst [vmem:[#allocation2 + $0x170] sm:$0xff] %v5736
  %5873 = vst [vmem:[#allocation2 + $0x178] sm:$0xff] %v5737
  %5874 = vst [vmem:[#allocation2 + $0x180] sm:$0xff] %v5738
  %5875 = vst [vmem:[#allocation2 + $0x188] sm:$0xff] %v5739
  %5876 = vst [vmem:[#allocation2 + $0x190] sm:$0xff] %v5740
  %5877 = vst [vmem:[#allocation2 + $0x198] sm:$0xff] %v5741
  %5878 = vst [vmem:[#allocation2 + $0x1a0] sm:$0xff] %v5742
  %5879 = vst [vmem:[#allocation2 + $0x1a8] sm:$0xff] %v5743
  %5880 = vst [vmem:[#allocation2 + $0x1b0] sm:$0xff] %v5744
  %5881 = vst [vmem:[#allocation2 + $0x1b8] sm:$0xff] %v5745
  %5882 = vst [vmem:[#allocation2 + $0x1c0] sm:$0xff] %v5746
  %5883 = vst [vmem:[#allocation2 + $0x1c8] sm:$0xff] %v5747
  %5884 = vst [vmem:[#allocation2 + $0x1d0] sm:$0xff] %v5748
  %5885 = vst [vmem:[#allocation2 + $0x1d8] sm:$0xff] %v5749
  %5886 = vst [vmem:[#allocation2 + $0x1e0] sm:$0xff] %v5750
  %5887 = vst [vmem:[#allocation2 + $0x1e8] sm:$0xff] %v5751
  %5888 = vst [vmem:[#allocation2 + $0x1f0] sm:$0xff] %v5752
  %5889 = vst [vmem:[#allocation2 + $0x1f8] sm:$0xff] %v5753
  %5890 = vst [vmem:[#allocation2 + $0x200] sm:$0xff] %v5754
  %5891 = vst [vmem:[#allocation2 + $0x208] sm:$0xff] %v5755
  %5892 = vst [vmem:[#allocation2 + $0x210] sm:$0xff] %v5756
  %5893 = vst [vmem:[#allocation2 + $0x218] sm:$0xff] %v5757
  %5894 = vst [vmem:[#allocation2 + $0x220] sm:$0xff] %v5758
  %5895 = vst [vmem:[#allocation2 + $0x228] sm:$0xff] %v5759
  %5896 = vst [vmem:[#allocation2 + $0x230] sm:$0xff] %v5760
  %5897 = vst [vmem:[#allocation2 + $0x238] sm:$0xff] %v5761
  %5898 = vst [vmem:[#allocation2 + $0x240] sm:$0xff] %v5762
  %5899 = vst [vmem:[#allocation2 + $0x248] sm:$0xff] %v5763
  %5900 = vst [vmem:[#allocation2 + $0x250] sm:$0xff] %v5764
  %5901 = vst [vmem:[#allocation2 + $0x258] sm:$0xff] %v5765
  %5902 = vst [vmem:[#allocation2 + $0x260] sm:$0xff] %v5766
  %5903 = vst [vmem:[#allocation2 + $0x268] sm:$0xff] %v5767
  %5904 = vst [vmem:[#allocation2 + $0x270] sm:$0xff] %v5768
  %5905 = vst [vmem:[#allocation2 + $0x278] sm:$0xff] %v5769
  %5906 = vst [vmem:[#allocation2 + $0x280] sm:$0xff] %v5770
  %5907 = vst [vmem:[#allocation2 + $0x288] sm:$0xff] %v5771
  %5908 = vst [vmem:[#allocation2 + $0x290] sm:$0xff] %v5772
  %5909 = vst [vmem:[#allocation2 + $0x298] sm:$0xff] %v5773
  %5910 = vst [vmem:[#allocation2 + $0x2a0] sm:$0xff] %v5774
  %5911 = vst [vmem:[#allocation2 + $0x2a8] sm:$0xff] %v5775
  %5912 = vst [vmem:[#allocation2 + $0x2b0] sm:$0xff] %v5776
  %5913 = vst [vmem:[#allocation2 + $0x2b8] sm:$0xff] %v5777
  %5914 = vst [vmem:[#allocation2 + $0x2c0] sm:$0xff] %v5778
  %5915 = vst [vmem:[#allocation2 + $0x2c8] sm:$0xff] %v5779
  %5916 = vst [vmem:[#allocation2 + $0x2d0] sm:$0xff] %v5780
  %5917 = vst [vmem:[#allocation2 + $0x2d8] sm:$0xff] %v5781
  %5918 = vst [vmem:[#allocation2 + $0x2e0] sm:$0xff] %v5782
  %5919 = vst [vmem:[#allocation2 + $0x2e8] sm:$0xff] %v5783
  %5920 = vst [vmem:[#allocation2 + $0x2f0] sm:$0xff] %v5784
  %5921 = vst [vmem:[#allocation2 + $0x2f8] sm:$0xff] %v5785
  %5922 = vst [vmem:[#allocation2 + $0x300] sm:$0xff] %v5786
  %5923 = vst [vmem:[#allocation2 + $0x308] sm:$0xff] %v5787
  %5924 = vst [vmem:[#allocation2 + $0x310] sm:$0xff] %v5788
  %5925 = vst [vmem:[#allocation2 + $0x318] sm:$0xff] %v5789
  %5926 = vst [vmem:[#allocation2 + $0x320] sm:$0xff] %v5790
  %5927 = vst [vmem:[#allocation2 + $0x328] sm:$0xff] %v5791
  %5928 = vst [vmem:[#allocation2 + $0x330] sm:$0xff] %v5792
  %5929 = vst [vmem:[#allocation2 + $0x338] sm:$0xff] %v5793
  %5930 = vst [vmem:[#allocation2 + $0x340] sm:$0xff] %v5794
  %5931 = vst [vmem:[#allocation2 + $0x348] sm:$0xff] %v5795
  %5932 = vst [vmem:[#allocation2 + $0x350] sm:$0xff] %v5796
  %5933 = vst [vmem:[#allocation2 + $0x358] sm:$0xff] %v5797
  %5934 = vst [vmem:[#allocation2 + $0x360] sm:$0xff] %v5798
  %5935 = vst [vmem:[#allocation2 + $0x368] sm:$0xff] %v5799
  %5936 = vst [vmem:[#allocation2 + $0x370] sm:$0xff] %v5800
  %5937 = vst [vmem:[#allocation2 + $0x378] sm:$0xff] %v5801
  %5938 = vst [vmem:[#allocation2 + $0x380] sm:$0xff] %v5802
  %5939 = vst [vmem:[#allocation2 + $0x388] sm:$0xff] %v5803
  %5940 = vst [vmem:[#allocation2 + $0x390] sm:$0xff] %v5804
  %5941 = vst [vmem:[#allocation2 + $0x398] sm:$0xff] %v5805
  %5942 = vst [vmem:[#allocation2 + $0x3a0] sm:$0xff] %v5806
  %5943 = vst [vmem:[#allocation2 + $0x3a8] sm:$0xff] %v5807
  %5944 = vst [vmem:[#allocation2 + $0x3b0] sm:$0xff] %v5808
  %5945 = vst [vmem:[#allocation2 + $0x3b8] sm:$0xff] %v5809
  %5946 = vst [vmem:[#allocation2 + $0x3c0] sm:$0xff] %v5810
  %5947 = vst [vmem:[#allocation2 + $0x3c8] sm:$0xff] %v5811
  %5948 = vst [vmem:[#allocation2 + $0x3d0] sm:$0xff] %v5812
  %5949 = vst [vmem:[#allocation2 + $0x3d8] sm:$0xff] %v5813
  %5950 = vst [vmem:[#allocation2 + $0x3e0] sm:$0xff] %v5814
  %5951 = vst [vmem:[#allocation2 + $0x3e8] sm:$0xff] %v5815
  %5952 = vst [vmem:[#allocation2 + $0x3f0] sm:$0xff] %v5816
  %5953 = vst [vmem:[#allocation2 + $0x3f8] sm:$0xff] %v5817
  %5954 = vst [vmem:[#allocation2 + $0x400] sm:$0xff] %v5818
  %5955 = vst [vmem:[#allocation2 + $0x408] sm:$0xff] %v5819
  %5956 = vst [vmem:[#allocation2 + $0x410] sm:$0xff] %v5820
  %5957 = vst [vmem:[#allocation2 + $0x418] sm:$0xff] %v5821
  %5958 = vst [vmem:[#allocation2 + $0x420] sm:$0xff] %v5822
  %5959 = vst [vmem:[#allocation2 + $0x428] sm:$0xff] %v5823
  %5960 = vst [vmem:[#allocation2 + $0x430] sm:$0xff] %v5824
  %5961 = vst [vmem:[#allocation2 + $0x438] sm:$0xff] %v5825
  %5962 = vst [vmem:[#allocation2 + $0x440] sm:$0xff] %v5826
  %5963 = vst [vmem:[#allocation2 + $0x448] sm:$0xff] %v5827
  %5964 = vst [vmem:[#allocation2 + $0x450] sm:$0xff] %v5828
  %5965 = vst [vmem:[#allocation2 + $0x458] sm:$0xff] %v5829
  %v5966 = vld [vmem:[#allocation2 + $0x20] sm:$0xff]
  %v5967 = vld [vmem:[#allocation2 + $0x28] sm:$0xff]
  %v5968 = vld [vmem:[#allocation2 + $0x30] sm:$0xff]
  %v5969 = vld [vmem:[#allocation2 + $0x38] sm:$0xff]
  %v5970 = vld [vmem:[#allocation2 + $0x40] sm:$0xff]
  %v5971 = vld [vmem:[#allocation2 + $0x48] sm:$0xff]
  %v5972 = vld [vmem:[#allocation2 + $0x50] sm:$0xff]
  %v5973 = vld [vmem:[#allocation2 + $0x58] sm:$0xff]
  %v5974 = vld [vmem:[#allocation2 + $0x60] sm:$0xff]
  %v5975 = vld [vmem:[#allocation2 + $0x68] sm:$0xff]
  %v5976 = vld [vmem:[#allocation2 + $0x70] sm:$0xff]
  %v5977 = vld [vmem:[#allocation2 + $0x78] sm:$0xff]
  %v5978 = vld [vmem:[#allocation2 + $0x80] sm:$0xff]
  %v5979 = vld [vmem:[#allocation2 + $0x88] sm:$0xff]
  %v5980 = vld [vmem:[#allocation2 + $0x90] sm:$0xff]
  %v5981 = vld [vmem:[#allocation2 + $0x98] sm:$0xff]
  %v5982 = vld [vmem:[#allocation2 + $0xa0] sm:$0xff]
  %v5983 = vld [vmem:[#allocation2 + $0xa8] sm:$0xff]
  %v5984 = vld [vmem:[#allocation2 + $0xb0] sm:$0xff]
  %v5985 = vld [vmem:[#allocation2 + $0xb8] sm:$0xff]
  %v5986 = vld [vmem:[#allocation2 + $0xc0] sm:$0xff]
  %v5987 = vld [vmem:[#allocation2 + $0xc8] sm:$0xff]
  %v5988 = vld [vmem:[#allocation2 + $0xd0] sm:$0xff]
  %v5989 = vld [vmem:[#allocation2 + $0xd8] sm:$0xff]
  %v5990 = vld [vmem:[#allocation2 + $0xe0] sm:$0xff]
  %v5991 = vld [vmem:[#allocation2 + $0xe8] sm:$0xff]
  %v5992 = vld [vmem:[#allocation2 + $0xf0] sm:$0xff]
  %v5993 = vld [vmem:[#allocation2 + $0xf8] sm:$0xff]
  %v5994 = vld [vmem:[#allocation2 + $0x100] sm:$0xff]
  %v5995 = vld [vmem:[#allocation2 + $0x108] sm:$0xff]
  %v5996 = vld [vmem:[#allocation2 + $0x110] sm:$0xff]
  %v5997 = vld [vmem:[#allocation2 + $0x118] sm:$0xff]
  %v5998 = vld [vmem:[#allocation2 + $0x120] sm:$0xff]
  %v5999 = vld [vmem:[#allocation2 + $0x128] sm:$0xff]
  %v6000 = vld [vmem:[#allocation2 + $0x130] sm:$0xff]
  %v6001 = vld [vmem:[#allocation2 + $0x138] sm:$0xff]
  %v6002 = vld [vmem:[#allocation2 + $0x140] sm:$0xff]
  %v6003 = vld [vmem:[#allocation2 + $0x148] sm:$0xff]
  %v6004 = vld [vmem:[#allocation2 + $0x150] sm:$0xff]
  %v6005 = vld [vmem:[#allocation2 + $0x158] sm:$0xff]
  %v6006 = vld [vmem:[#allocation2 + $0x160] sm:$0xff]
  %v6007 = vld [vmem:[#allocation2 + $0x168] sm:$0xff]
  %v6008 = vld [vmem:[#allocation2 + $0x170] sm:$0xff]
  %v6009 = vld [vmem:[#allocation2 + $0x178] sm:$0xff]
  %v6010 = vld [vmem:[#allocation2 + $0x180] sm:$0xff]
  %v6011 = vld [vmem:[#allocation2 + $0x188] sm:$0xff]
  %v6012 = vld [vmem:[#allocation2 + $0x190] sm:$0xff]
  %v6013 = vld [vmem:[#allocation2 + $0x198] sm:$0xff]
  %v6014 = vld [vmem:[#allocation2 + $0x1a0] sm:$0xff]
  %v6015 = vld [vmem:[#allocation2 + $0x1a8] sm:$0xff]
  %v6016 = vld [vmem:[#allocation2 + $0x1b0] sm:$0xff]
  %v6017 = vld [vmem:[#allocation2 + $0x1b8] sm:$0xff]
  %v6018 = vld [vmem:[#allocation2 + $0x1c0] sm:$0xff]
  %v6019 = vld [vmem:[#allocation2 + $0x1c8] sm:$0xff]
  %v6020 = vld [vmem:[#allocation2 + $0x1d0] sm:$0xff]
  %v6021 = vld [vmem:[#allocation2 + $0x1d8] sm:$0xff]
  %v6022 = vld [vmem:[#allocation2 + $0x1e0] sm:$0xff]
  %v6023 = vld [vmem:[#allocation2 + $0x1e8] sm:$0xff]
  %v6024 = vld [vmem:[#allocation2 + $0x1f0] sm:$0xff]
  %v6025 = vld [vmem:[#allocation2 + $0x1f8] sm:$0xff]
  %v6026 = vld [vmem:[#allocation2 + $0x200] sm:$0xff]
  %v6027 = vld [vmem:[#allocation2 + $0x208] sm:$0xff]
  %v6028 = vld [vmem:[#allocation2 + $0x210] sm:$0xff]
  %v6029 = vld [vmem:[#allocation2 + $0x218] sm:$0xff]
  %v6030 = vld [vmem:[#allocation2 + $0x220] sm:$0xff]
  %v6031 = vld [vmem:[#allocation2 + $0x228] sm:$0xff]
  %v6032 = vld [vmem:[#allocation2 + $0x230] sm:$0xff]
  %v6033 = vld [vmem:[#allocation2 + $0x238] sm:$0xff]
  %v6034 = vld [vmem:[#allocation2 + $0x240] sm:$0xff]
  %v6035 = vld [vmem:[#allocation2 + $0x248] sm:$0xff]
  %v6036 = vld [vmem:[#allocation2 + $0x250] sm:$0xff]
  %v6037 = vld [vmem:[#allocation2 + $0x258] sm:$0xff]
  %v6038 = vld [vmem:[#allocation2 + $0x260] sm:$0xff]
  %v6039 = vld [vmem:[#allocation2 + $0x268] sm:$0xff]
  %v6040 = vld [vmem:[#allocation2 + $0x270] sm:$0xff]
  %v6041 = vld [vmem:[#allocation2 + $0x278] sm:$0xff]
  %v6042 = vld [vmem:[#allocation2 + $0x280] sm:$0xff]
  %v6043 = vld [vmem:[#allocation2 + $0x288] sm:$0xff]
  %v6044 = vld [vmem:[#allocation2 + $0x290] sm:$0xff]
  %v6045 = vld [vmem:[#allocation2 + $0x298] sm:$0xff]
  %v6046 = vld [vmem:[#allocation2 + $0x2a0] sm:$0xff]
  %v6047 = vld [vmem:[#allocation2 + $0x2a8] sm:$0xff]
  %v6048 = vld [vmem:[#allocation2 + $0x2b0] sm:$0xff]
  %v6049 = vld [vmem:[#allocation2 + $0x2b8] sm:$0xff]
  %v6050 = vld [vmem:[#allocation2 + $0x2c0] sm:$0xff]
  %v6051 = vld [vmem:[#allocation2 + $0x2c8] sm:$0xff]
  %v6052 = vld [vmem:[#allocation2 + $0x2d0] sm:$0xff]
  %v6053 = vld [vmem:[#allocation2 + $0x2d8] sm:$0xff]
  %v6054 = vld [vmem:[#allocation2 + $0x2e0] sm:$0xff]
  %v6055 = vld [vmem:[#allocation2 + $0x2e8] sm:$0xff]
  %v6056 = vld [vmem:[#allocation2 + $0x2f0] sm:$0xff]
  %v6057 = vld [vmem:[#allocation2 + $0x2f8] sm:$0xff]
  %v6058 = vld [vmem:[#allocation2 + $0x300] sm:$0xff]
  %v6059 = vld [vmem:[#allocation2 + $0x308] sm:$0xff]
  %v6060 = vld [vmem:[#allocation2 + $0x310] sm:$0xff]
  %v6061 = vld [vmem:[#allocation2 + $0x318] sm:$0xff]
  %v6062 = vld [vmem:[#allocation2 + $0x320] sm:$0xff]
  %v6063 = vld [vmem:[#allocation2 + $0x328] sm:$0xff]
  %v6064 = vld [vmem:[#allocation2 + $0x330] sm:$0xff]
  %v6065 = vld [vmem:[#allocation2 + $0x338] sm:$0xff]
  %v6066 = vld [vmem:[#allocation2 + $0x340] sm:$0xff]
  %v6067 = vld [vmem:[#allocation2 + $0x348] sm:$0xff]
  %v6068 = vld [vmem:[#allocation2 + $0x350] sm:$0xff]
  %v6069 = vld [vmem:[#allocation2 + $0x358] sm:$0xff]
  %v6070 = vld [vmem:[#allocation2 + $0x360] sm:$0xff]
  %v6071 = vld [vmem:[#allocation2 + $0x368] sm:$0xff]
  %v6072 = vld [vmem:[#allocation2 + $0x370] sm:$0xff]
  %v6073 = vld [vmem:[#allocation2 + $0x378] sm:$0xff]
  %v6074 = vld [vmem:[#allocation2 + $0x380] sm:$0xff]
  %v6075 = vld [vmem:[#allocation2 + $0x388] sm:$0xff]
  %v6076 = vld [vmem:[#allocation2 + $0x390] sm:$0xff]
  %v6077 = vld [vmem:[#allocation2 + $0x398] sm:$0xff]
  %v6078 = vld [vmem:[#allocation2 + $0x3a0] sm:$0xff]
  %v6079 = vld [vmem:[#allocation2 + $0x3a8] sm:$0xff]
  %v6080 = vld [vmem:[#allocation2 + $0x3b0] sm:$0xff]
  %v6081 = vld [vmem:[#allocation2 + $0x3b8] sm:$0xff]
  %v6082 = vld [vmem:[#allocation2 + $0x3c0] sm:$0xff]
  %v6083 = vld [vmem:[#allocation2 + $0x3c8] sm:$0xff]
  %v6084 = vld [vmem:[#allocation2 + $0x3d0] sm:$0xff]
  %v6085 = vld [vmem:[#allocation2 + $0x3d8] sm:$0xff]
  %v6086 = vld [vmem:[#allocation2 + $0x3e0] sm:$0xff]
  %v6087 = vld [vmem:[#allocation2 + $0x3e8] sm:$0xff]
  %v6088 = vld [vmem:[#allocation2 + $0x3f0] sm:$0xff]
  %v6089 = vld [vmem:[#allocation2 + $0x3f8] sm:$0xff]
  %v6090 = vld [vmem:[#allocation2 + $0x400] sm:$0xff]
  %v6091 = vld [vmem:[#allocation2 + $0x408] sm:$0xff]
  %v6092 = vld [vmem:[#allocation2 + $0x410] sm:$0xff]
  %v6093 = vld [vmem:[#allocation2 + $0x418] sm:$0xff]
  %v6094 = vld [vmem:[%s5] sm:$0xff]
  %v6095 = vld [vmem:[%s5 + $0x8] sm:$0xff]
  %v6096 = vld [vmem:[%s5 + $0x10] sm:$0xff]
  %v6097 = vld [vmem:[%s5 + $0x18] sm:$0xff]
  %v6098 = vld [vmem:[%s5 + $0x20] sm:$0xff]
  %v6099 = vld [vmem:[%s5 + $0x28] sm:$0xff]
  %v6100 = vld [vmem:[%s5 + $0x30] sm:$0xff]
  %v6101 = vld [vmem:[%s5 + $0x38] sm:$0xff]
  %v6102 = vld [vmem:[%s5 + $0x40] sm:$0xff]
  %v6103 = vld [vmem:[%s5 + $0x48] sm:$0xff]
  %v6104 = vld [vmem:[%s5 + $0x50] sm:$0xff]
  %v6105 = vld [vmem:[%s5 + $0x58] sm:$0xff]
  %v6106 = vld [vmem:[%s5 + $0x60] sm:$0xff]
  %v6107 = vld [vmem:[%s5 + $0x68] sm:$0xff]
  %v6108 = vld [vmem:[%s5 + $0x70] sm:$0xff]
  %v6109 = vld [vmem:[%s5 + $0x78] sm:$0xff]
  %v6110 = vld [vmem:[%s5 + $0x80] sm:$0xff]
  %v6111 = vld [vmem:[%s5 + $0x88] sm:$0xff]
  %v6112 = vld [vmem:[%s5 + $0x90] sm:$0xff]
  %v6113 = vld [vmem:[%s5 + $0x98] sm:$0xff]
  %v6114 = vld [vmem:[%s5 + $0xa0] sm:$0xff]
  %v6115 = vld [vmem:[%s5 + $0xa8] sm:$0xff]
  %v6116 = vld [vmem:[%s5 + $0xb0] sm:$0xff]
  %v6117 = vld [vmem:[%s5 + $0xb8] sm:$0xff]
  %v6118 = vld [vmem:[%s5 + $0xc0] sm:$0xff]
  %v6119 = vld [vmem:[%s5 + $0xc8] sm:$0xff]
  %v6120 = vld [vmem:[%s5 + $0xd0] sm:$0xff]
  %v6121 = vld [vmem:[%s5 + $0xd8] sm:$0xff]
  %v6122 = vld [vmem:[%s5 + $0xe0] sm:$0xff]
  %v6123 = vld [vmem:[%s5 + $0xe8] sm:$0xff]
  %v6124 = vld [vmem:[%s5 + $0xf0] sm:$0xff]
  %v6125 = vld [vmem:[%s5 + $0xf8] sm:$0xff]
  %v6126 = vld [vmem:[#allocation2 + $0x420] sm:$0xff]
  %v6127 = vld [vmem:[#allocation2 + $0x428] sm:$0xff]
  %v6128 = vld [vmem:[#allocation2 + $0x430] sm:$0xff]
  %v6129 = vld [vmem:[#allocation2 + $0x438] sm:$0xff]
  %s6130 = scalar_lea.vmem %s5, 256
  %v6131 = vld [vmem:[%s6130] sm:$0xff]
  %v6132 = vld [vmem:[%s6130 + $0x8] sm:$0xff]
  %v6133 = vld [vmem:[%s6130 + $0x10] sm:$0xff]
  %v6134 = vld [vmem:[%s6130 + $0x18] sm:$0xff]
  %v6135 = vld [vmem:[%s6130 + $0x20] sm:$0xff]
  %v6136 = vld [vmem:[%s6130 + $0x28] sm:$0xff]
  %v6137 = vld [vmem:[%s6130 + $0x30] sm:$0xff]
  %v6138 = vld [vmem:[%s6130 + $0x38] sm:$0xff]
  %v6139 = vld [vmem:[%s6130 + $0x40] sm:$0xff]
  %v6140 = vld [vmem:[%s6130 + $0x48] sm:$0xff]
  %v6141 = vld [vmem:[%s6130 + $0x50] sm:$0xff]
  %v6142 = vld [vmem:[%s6130 + $0x58] sm:$0xff]
  %v6143 = vld [vmem:[%s6130 + $0x60] sm:$0xff]
  %v6144 = vld [vmem:[%s6130 + $0x68] sm:$0xff]
  %v6145 = vld [vmem:[%s6130 + $0x70] sm:$0xff]
  %v6146 = vld [vmem:[%s6130 + $0x78] sm:$0xff]
  %v6147 = vld [vmem:[%s6130 + $0x80] sm:$0xff]
  %v6148 = vld [vmem:[%s6130 + $0x88] sm:$0xff]
  %v6149 = vld [vmem:[%s6130 + $0x90] sm:$0xff]
  %v6150 = vld [vmem:[%s6130 + $0x98] sm:$0xff]
  %v6151 = vld [vmem:[%s6130 + $0xa0] sm:$0xff]
  %v6152 = vld [vmem:[%s6130 + $0xa8] sm:$0xff]
  %v6153 = vld [vmem:[%s6130 + $0xb0] sm:$0xff]
  %v6154 = vld [vmem:[%s6130 + $0xb8] sm:$0xff]
  %v6155 = vld [vmem:[%s6130 + $0xc0] sm:$0xff]
  %v6156 = vld [vmem:[%s6130 + $0xc8] sm:$0xff]
  %v6157 = vld [vmem:[%s6130 + $0xd0] sm:$0xff]
  %v6158 = vld [vmem:[%s6130 + $0xd8] sm:$0xff]
  %v6159 = vld [vmem:[%s6130 + $0xe0] sm:$0xff]
  %v6160 = vld [vmem:[%s6130 + $0xe8] sm:$0xff]
  %v6161 = vld [vmem:[%s6130 + $0xf0] sm:$0xff]
  %v6162 = vld [vmem:[%s6130 + $0xf8] sm:$0xff]
  %6163 = vmatprep.subr.mxu0 0.0
  %6164 = vmatpush1.msra.mxu0 %v6146
  %6165 = vmatprep.subr.mxu0 0.0
  %6166 = vmatpush1.msra.mxu0 %v6145
  %6167 = vmatprep.subr.mxu0 0.0
  %6168 = vmatpush1.msra.mxu0 %v6144
  %6169 = vmatprep.subr.mxu0 0.0
  %6170 = vmatpush1.msra.mxu0 %v6143
  %6171 = vmatprep.subr.mxu0 0.0
  %6172 = vmatpush1.msra.mxu0 %v6142
  %6173 = vmatprep.subr.mxu0 0.0
  %6174 = vmatpush1.msra.mxu0 %v6141
  %6175 = vmatprep.subr.mxu0 0.0
  %6176 = vmatpush1.msra.mxu0 %v6140
  %6177 = vmatprep.subr.mxu0 0.0
  %6178 = vmatpush1.msra.mxu0 %v6139
  %6179 = vmatprep.subr.mxu0 0.0
  %6180 = vmatpush1.msra.mxu0 %v6138
  %6181 = vmatprep.subr.mxu0 0.0
  %6182 = vmatpush1.msra.mxu0 %v6137
  %6183 = vmatprep.subr.mxu0 0.0
  %6184 = vmatpush1.msra.mxu0 %v6136
  %6185 = vmatprep.subr.mxu0 0.0
  %6186 = vmatpush1.msra.mxu0 %v6135
  %6187 = vmatprep.subr.mxu0 0.0
  %6188 = vmatpush1.msra.mxu0 %v6134
  %6189 = vmatprep.subr.mxu0 0.0
  %6190 = vmatpush1.msra.mxu0 %v6133
  %6191 = vmatprep.subr.mxu0 0.0
  %6192 = vmatpush1.msra.mxu0 %v6132
  %6193 = vmatprep.subr.mxu0 0.0
  %6194 = vmatpush1.msra.mxu0 %v6131
  %6195 = vmatprep.subr.mxu0 0.0
  %6196 = vmatpush2.msra.mxu0 %v6162
  %6197 = vmatprep.subr.mxu0 0.0
  %6198 = vmatpush2.msra.mxu0 %v6161
  %6199 = vmatprep.subr.mxu0 0.0
  %6200 = vmatpush2.msra.mxu0 %v6160
  %6201 = vmatprep.subr.mxu0 0.0
  %6202 = vmatpush2.msra.mxu0 %v6159
  %6203 = vmatprep.subr.mxu0 0.0
  %6204 = vmatpush2.msra.mxu0 %v6158
  %6205 = vmatprep.subr.mxu0 0.0
  %6206 = vmatpush2.msra.mxu0 %v6157
  %6207 = vmatprep.subr.mxu0 0.0
  %6208 = vmatpush2.msra.mxu0 %v6156
  %6209 = vmatprep.subr.mxu0 0.0
  %6210 = vmatpush2.msra.mxu0 %v6155
  %6211 = vmatprep.subr.mxu0 0.0
  %6212 = vmatpush2.msra.mxu0 %v6154
  %6213 = vmatprep.subr.mxu0 0.0
  %6214 = vmatpush2.msra.mxu0 %v6153
  %6215 = vmatprep.subr.mxu0 0.0
  %6216 = vmatpush2.msra.mxu0 %v6152
  %6217 = vmatprep.subr.mxu0 0.0
  %6218 = vmatpush2.msra.mxu0 %v6151
  %6219 = vmatprep.subr.mxu0 0.0
  %6220 = vmatpush2.msra.mxu0 %v6150
  %6221 = vmatprep.subr.mxu0 0.0
  %6222 = vmatpush2.msra.mxu0 %v6149
  %6223 = vmatprep.subr.mxu0 0.0
  %6224 = vmatpush2.msra.mxu0 %v6148
  %6225 = vmatprep.subr.mxu0 0.0
  %6226 = vmatpush2.msra.mxu0 %v6147
  %6227 = vmatprep.mubr.f32.mxu0 %v5971
  %6228 = vmatmul.mubr.f32.gmra.mxu0 %v5970
  %v6229 = vpop.f32.mrf.mxu0
  %v6230 = vadd.f32 0.0, %v6229
  %v6231 = vpop.f32.mrf.mxu0
  %6232 = vmatprep.mubr.f32.mxu0 %v5973
  %6233 = vmatmul.mubr.f32.gmra.mxu0 %v5972
  %v6234 = vpop.f32.mrf.mxu0
  %v6235 = vadd.f32 0.0, %v6234
  %v6236 = vpop.f32.mrf.mxu0
  %6237 = vmatprep.mubr.f32.mxu0 %v5975
  %6238 = vmatmul.mubr.f32.gmra.mxu0 %v5974
  %v6239 = vpop.f32.mrf.mxu0
  %v6240 = vadd.f32 0.0, %v6239
  %v6241 = vpop.f32.mrf.mxu0
  %6242 = vmatprep.mubr.f32.mxu0 %v5977
  %6243 = vmatmul.mubr.f32.gmra.mxu0 %v5976
  %v6244 = vpop.f32.mrf.mxu0
  %v6245 = vadd.f32 0.0, %v6244
  %v6246 = vpop.f32.mrf.mxu0
  %6247 = vmatprep.mubr.f32.mxu0 %v5979
  %6248 = vmatmul.mubr.f32.gmra.mxu0 %v5978
  %v6249 = vpop.f32.mrf.mxu0
  %v6250 = vadd.f32 0.0, %v6249
  %v6251 = vpop.f32.mrf.mxu0
  %6252 = vmatprep.mubr.f32.mxu0 %v5981
  %6253 = vmatmul.mubr.f32.gmra.mxu0 %v5980
  %v6254 = vpop.f32.mrf.mxu0
  %v6255 = vadd.f32 0.0, %v6254
  %v6256 = vpop.f32.mrf.mxu0
  %6257 = vmatprep.mubr.f32.mxu0 %v5983
  %6258 = vmatmul.mubr.f32.gmra.mxu0 %v5982
  %v6259 = vpop.f32.mrf.mxu0
  %v6260 = vadd.f32 0.0, %v6259
  %v6261 = vpop.f32.mrf.mxu0
  %6262 = vmatprep.mubr.f32.mxu0 %v5985
  %6263 = vmatmul.mubr.f32.gmra.mxu0 %v5984
  %v6264 = vpop.f32.mrf.mxu0
  %v6265 = vadd.f32 0.0, %v6264
  %v6266 = vpop.f32.mrf.mxu0
  %6267 = vmatprep.mubr.f32.mxu0 %v5987
  %6268 = vmatmul.mubr.f32.gmra.mxu0 %v5986
  %v6269 = vpop.f32.mrf.mxu0
  %v6270 = vadd.f32 0.0, %v6269
  %v6271 = vpop.f32.mrf.mxu0
  %6272 = vmatprep.mubr.f32.mxu0 %v5989
  %6273 = vmatmul.mubr.f32.gmra.mxu0 %v5988
  %v6274 = vpop.f32.mrf.mxu0
  %v6275 = vadd.f32 0.0, %v6274
  %v6276 = vpop.f32.mrf.mxu0
  %6277 = vmatprep.mubr.f32.mxu0 %v5991
  %6278 = vmatmul.mubr.f32.gmra.mxu0 %v5990
  %v6279 = vpop.f32.mrf.mxu0
  %v6280 = vadd.f32 0.0, %v6279
  %v6281 = vpop.f32.mrf.mxu0
  %6282 = vmatprep.mubr.f32.mxu0 %v5993
  %6283 = vmatmul.mubr.f32.gmra.mxu0 %v5992
  %v6284 = vpop.f32.mrf.mxu0
  %v6285 = vadd.f32 0.0, %v6284
  %v6286 = vpop.f32.mrf.mxu0
  %6287 = vmatprep.mubr.f32.mxu0 %v5995
  %6288 = vmatmul.mubr.f32.gmra.mxu0 %v5994
  %v6289 = vpop.f32.mrf.mxu0
  %v6290 = vadd.f32 0.0, %v6289
  %v6291 = vpop.f32.mrf.mxu0
  %6292 = vmatprep.mubr.f32.mxu0 %v5997
  %6293 = vmatmul.mubr.f32.gmra.mxu0 %v5996
  %v6294 = vpop.f32.mrf.mxu0
  %v6295 = vadd.f32 0.0, %v6294
  %v6296 = vpop.f32.mrf.mxu0
  %6297 = vmatprep.mubr.f32.mxu0 %v5999
  %6298 = vmatmul.mubr.f32.gmra.mxu0 %v5998
  %v6299 = vpop.f32.mrf.mxu0
  %v6300 = vadd.f32 0.0, %v6299
  %v6301 = vpop.f32.mrf.mxu0
  %6302 = vmatprep.mubr.f32.mxu0 %v6001
  %6303 = vmatmul.mubr.f32.gmra.mxu0 %v6000
  %v6304 = vpop.f32.mrf.mxu0
  %v6305 = vadd.f32 0.0, %v6304
  %v6306 = vpop.f32.mrf.mxu0
  %6307 = vmatprep.mubr.f32.mxu0 %v6003
  %6308 = vmatmul.mubr.f32.gmra.mxu0 %v6002
  %v6309 = vpop.f32.mrf.mxu0
  %v6310 = vadd.f32 0.0, %v6309
  %v6311 = vpop.f32.mrf.mxu0
  %6312 = vmatprep.mubr.f32.mxu0 %v6005
  %6313 = vmatmul.mubr.f32.gmra.mxu0 %v6004
  %v6314 = vpop.f32.mrf.mxu0
  %v6315 = vadd.f32 0.0, %v6314
  %v6316 = vpop.f32.mrf.mxu0
  %6317 = vmatprep.mubr.f32.mxu0 %v6007
  %6318 = vmatmul.mubr.f32.gmra.mxu0 %v6006
  %v6319 = vpop.f32.mrf.mxu0
  %v6320 = vadd.f32 0.0, %v6319
  %v6321 = vpop.f32.mrf.mxu0
  %6322 = vmatprep.mubr.f32.mxu0 %v6009
  %6323 = vmatmul.mubr.f32.gmra.mxu0 %v6008
  %v6324 = vpop.f32.mrf.mxu0
  %v6325 = vadd.f32 0.0, %v6324
  %v6326 = vpop.f32.mrf.mxu0
  %6327 = vmatprep.mubr.f32.mxu0 %v6011
  %6328 = vmatmul.mubr.f32.gmra.mxu0 %v6010
  %v6329 = vpop.f32.mrf.mxu0
  %v6330 = vadd.f32 0.0, %v6329
  %v6331 = vpop.f32.mrf.mxu0
  %6332 = vmatprep.mubr.f32.mxu0 %v6013
  %6333 = vmatmul.mubr.f32.gmra.mxu0 %v6012
  %v6334 = vpop.f32.mrf.mxu0
  %v6335 = vadd.f32 0.0, %v6334
  %v6336 = vpop.f32.mrf.mxu0
  %6337 = vmatprep.mubr.f32.mxu0 %v6015
  %6338 = vmatmul.mubr.f32.gmra.mxu0 %v6014
  %v6339 = vpop.f32.mrf.mxu0
  %v6340 = vadd.f32 0.0, %v6339
  %v6341 = vpop.f32.mrf.mxu0
  %6342 = vmatprep.mubr.f32.mxu0 %v6017
  %6343 = vmatmul.mubr.f32.gmra.mxu0 %v6016
  %v6344 = vpop.f32.mrf.mxu0
  %v6345 = vadd.f32 0.0, %v6344
  %v6346 = vpop.f32.mrf.mxu0
  %6347 = vmatprep.mubr.f32.mxu0 %v6019
  %6348 = vmatmul.mubr.f32.gmra.mxu0 %v6018
  %v6349 = vpop.f32.mrf.mxu0
  %v6350 = vadd.f32 0.0, %v6349
  %v6351 = vpop.f32.mrf.mxu0
  %6352 = vmatprep.mubr.f32.mxu0 %v6021
  %6353 = vmatmul.mubr.f32.gmra.mxu0 %v6020
  %v6354 = vpop.f32.mrf.mxu0
  %v6355 = vadd.f32 0.0, %v6354
  %v6356 = vpop.f32.mrf.mxu0
  %6357 = vmatprep.mubr.f32.mxu0 %v6023
  %6358 = vmatmul.mubr.f32.gmra.mxu0 %v6022
  %v6359 = vpop.f32.mrf.mxu0
  %v6360 = vadd.f32 0.0, %v6359
  %v6361 = vpop.f32.mrf.mxu0
  %6362 = vmatprep.mubr.f32.mxu0 %v6025
  %6363 = vmatmul.mubr.f32.gmra.mxu0 %v6024
  %v6364 = vpop.f32.mrf.mxu0
  %v6365 = vadd.f32 0.0, %v6364
  %v6366 = vpop.f32.mrf.mxu0
  %6367 = vmatprep.mubr.f32.mxu0 %v6027
  %6368 = vmatmul.mubr.f32.gmra.mxu0 %v6026
  %v6369 = vpop.f32.mrf.mxu0
  %v6370 = vadd.f32 0.0, %v6369
  %v6371 = vpop.f32.mrf.mxu0
  %6372 = vmatprep.mubr.f32.mxu0 %v6029
  %6373 = vmatmul.mubr.f32.gmra.mxu0 %v6028
  %v6374 = vpop.f32.mrf.mxu0
  %v6375 = vadd.f32 0.0, %v6374
  %v6376 = vpop.f32.mrf.mxu0
  %6377 = vmatprep.mubr.f32.mxu0 %v6031
  %6378 = vmatmul.mubr.f32.gmra.mxu0 %v6030
  %v6379 = vpop.f32.mrf.mxu0
  %v6380 = vadd.f32 0.0, %v6379
  %v6381 = vpop.f32.mrf.mxu0
  %6382 = vmatprep.mubr.f32.mxu0 %v6033
  %6383 = vmatmul.mubr.f32.gmra.mxu0 %v6032
  %v6384 = vpop.f32.mrf.mxu0
  %v6385 = vadd.f32 0.0, %v6384
  %v6386 = vpop.f32.mrf.mxu0
  %6387 = vmatprep.mubr.f32.mxu0 %v6035
  %6388 = vmatmul.mubr.f32.gmra.mxu0 %v6034
  %v6389 = vpop.f32.mrf.mxu0
  %v6390 = vadd.f32 0.0, %v6389
  %v6391 = vpop.f32.mrf.mxu0
  %6392 = vmatprep.mubr.f32.mxu0 %v6037
  %6393 = vmatmul.mubr.f32.gmra.mxu0 %v6036
  %v6394 = vpop.f32.mrf.mxu0
  %v6395 = vadd.f32 0.0, %v6394
  %v6396 = vpop.f32.mrf.mxu0
  %6397 = vmatprep.mubr.f32.mxu0 %v6039
  %6398 = vmatmul.mubr.f32.gmra.mxu0 %v6038
  %v6399 = vpop.f32.mrf.mxu0
  %v6400 = vadd.f32 0.0, %v6399
  %v6401 = vpop.f32.mrf.mxu0
  %6402 = vmatprep.mubr.f32.mxu0 %v6041
  %6403 = vmatmul.mubr.f32.gmra.mxu0 %v6040
  %v6404 = vpop.f32.mrf.mxu0
  %v6405 = vadd.f32 0.0, %v6404
  %v6406 = vpop.f32.mrf.mxu0
  %6407 = vmatprep.mubr.f32.mxu0 %v6043
  %6408 = vmatmul.mubr.f32.gmra.mxu0 %v6042
  %v6409 = vpop.f32.mrf.mxu0
  %v6410 = vadd.f32 0.0, %v6409
  %v6411 = vpop.f32.mrf.mxu0
  %6412 = vmatprep.mubr.f32.mxu0 %v6045
  %6413 = vmatmul.mubr.f32.gmra.mxu0 %v6044
  %v6414 = vpop.f32.mrf.mxu0
  %v6415 = vadd.f32 0.0, %v6414
  %v6416 = vpop.f32.mrf.mxu0
  %6417 = vmatprep.mubr.f32.mxu0 %v6047
  %6418 = vmatmul.mubr.f32.gmra.mxu0 %v6046
  %v6419 = vpop.f32.mrf.mxu0
  %v6420 = vadd.f32 0.0, %v6419
  %v6421 = vpop.f32.mrf.mxu0
  %6422 = vmatprep.mubr.f32.mxu0 %v6049
  %6423 = vmatmul.mubr.f32.gmra.mxu0 %v6048
  %v6424 = vpop.f32.mrf.mxu0
  %v6425 = vadd.f32 0.0, %v6424
  %v6426 = vpop.f32.mrf.mxu0
  %6427 = vmatprep.mubr.f32.mxu0 %v6051
  %6428 = vmatmul.mubr.f32.gmra.mxu0 %v6050
  %v6429 = vpop.f32.mrf.mxu0
  %v6430 = vadd.f32 0.0, %v6429
  %v6431 = vpop.f32.mrf.mxu0
  %6432 = vmatprep.mubr.f32.mxu0 %v6053
  %6433 = vmatmul.mubr.f32.gmra.mxu0 %v6052
  %v6434 = vpop.f32.mrf.mxu0
  %v6435 = vadd.f32 0.0, %v6434
  %v6436 = vpop.f32.mrf.mxu0
  %6437 = vmatprep.mubr.f32.mxu0 %v6055
  %6438 = vmatmul.mubr.f32.gmra.mxu0 %v6054
  %v6439 = vpop.f32.mrf.mxu0
  %v6440 = vadd.f32 0.0, %v6439
  %v6441 = vpop.f32.mrf.mxu0
  %6442 = vmatprep.mubr.f32.mxu0 %v6057
  %6443 = vmatmul.mubr.f32.gmra.mxu0 %v6056
  %v6444 = vpop.f32.mrf.mxu0
  %v6445 = vadd.f32 0.0, %v6444
  %v6446 = vpop.f32.mrf.mxu0
  %6447 = vmatprep.mubr.f32.mxu0 %v6059
  %6448 = vmatmul.mubr.f32.gmra.mxu0 %v6058
  %v6449 = vpop.f32.mrf.mxu0
  %v6450 = vadd.f32 0.0, %v6449
  %v6451 = vpop.f32.mrf.mxu0
  %6452 = vmatprep.mubr.f32.mxu0 %v6061
  %6453 = vmatmul.mubr.f32.gmra.mxu0 %v6060
  %v6454 = vpop.f32.mrf.mxu0
  %v6455 = vadd.f32 0.0, %v6454
  %v6456 = vpop.f32.mrf.mxu0
  %6457 = vmatprep.mubr.f32.mxu0 %v6063
  %6458 = vmatmul.mubr.f32.gmra.mxu0 %v6062
  %v6459 = vpop.f32.mrf.mxu0
  %v6460 = vadd.f32 0.0, %v6459
  %v6461 = vpop.f32.mrf.mxu0
  %6462 = vmatprep.mubr.f32.mxu0 %v6065
  %6463 = vmatmul.mubr.f32.gmra.mxu0 %v6064
  %v6464 = vpop.f32.mrf.mxu0
  %v6465 = vadd.f32 0.0, %v6464
  %v6466 = vpop.f32.mrf.mxu0
  %6467 = vmatprep.mubr.f32.mxu0 %v6067
  %6468 = vmatmul.mubr.f32.gmra.mxu0 %v6066
  %v6469 = vpop.f32.mrf.mxu0
  %v6470 = vadd.f32 0.0, %v6469
  %v6471 = vpop.f32.mrf.mxu0
  %6472 = vmatprep.mubr.f32.mxu0 %v6069
  %6473 = vmatmul.mubr.f32.gmra.mxu0 %v6068
  %v6474 = vpop.f32.mrf.mxu0
  %v6475 = vadd.f32 0.0, %v6474
  %v6476 = vpop.f32.mrf.mxu0
  %6477 = vmatprep.mubr.f32.mxu0 %v6071
  %6478 = vmatmul.mubr.f32.gmra.mxu0 %v6070
  %v6479 = vpop.f32.mrf.mxu0
  %v6480 = vadd.f32 0.0, %v6479
  %v6481 = vpop.f32.mrf.mxu0
  %6482 = vmatprep.mubr.f32.mxu0 %v6073
  %6483 = vmatmul.mubr.f32.gmra.mxu0 %v6072
  %v6484 = vpop.f32.mrf.mxu0
  %v6485 = vadd.f32 0.0, %v6484
  %v6486 = vpop.f32.mrf.mxu0
  %6487 = vmatprep.mubr.f32.mxu0 %v6075
  %6488 = vmatmul.mubr.f32.gmra.mxu0 %v6074
  %v6489 = vpop.f32.mrf.mxu0
  %v6490 = vadd.f32 0.0, %v6489
  %v6491 = vpop.f32.mrf.mxu0
  %6492 = vmatprep.mubr.f32.mxu0 %v6077
  %6493 = vmatmul.mubr.f32.gmra.mxu0 %v6076
  %v6494 = vpop.f32.mrf.mxu0
  %v6495 = vadd.f32 0.0, %v6494
  %v6496 = vpop.f32.mrf.mxu0
  %6497 = vmatprep.mubr.f32.mxu0 %v6079
  %6498 = vmatmul.mubr.f32.gmra.mxu0 %v6078
  %v6499 = vpop.f32.mrf.mxu0
  %v6500 = vadd.f32 0.0, %v6499
  %v6501 = vpop.f32.mrf.mxu0
  %6502 = vmatprep.mubr.f32.mxu0 %v6081
  %6503 = vmatmul.mubr.f32.gmra.mxu0 %v6080
  %v6504 = vpop.f32.mrf.mxu0
  %v6505 = vadd.f32 0.0, %v6504
  %v6506 = vpop.f32.mrf.mxu0
  %6507 = vmatprep.mubr.f32.mxu0 %v6083
  %6508 = vmatmul.mubr.f32.gmra.mxu0 %v6082
  %v6509 = vpop.f32.mrf.mxu0
  %v6510 = vadd.f32 0.0, %v6509
  %v6511 = vpop.f32.mrf.mxu0
  %6512 = vmatprep.mubr.f32.mxu0 %v6085
  %6513 = vmatmul.mubr.f32.gmra.mxu0 %v6084
  %v6514 = vpop.f32.mrf.mxu0
  %v6515 = vadd.f32 0.0, %v6514
  %v6516 = vpop.f32.mrf.mxu0
  %6517 = vmatprep.mubr.f32.mxu0 %v6087
  %6518 = vmatmul.mubr.f32.gmra.mxu0 %v6086
  %v6519 = vpop.f32.mrf.mxu0
  %v6520 = vadd.f32 0.0, %v6519
  %v6521 = vpop.f32.mrf.mxu0
  %6522 = vmatprep.mubr.f32.mxu0 %v6089
  %6523 = vmatmul.mubr.f32.gmra.mxu0 %v6088
  %v6524 = vpop.f32.mrf.mxu0
  %v6525 = vadd.f32 0.0, %v6524
  %v6526 = vpop.f32.mrf.mxu0
  %6527 = vmatprep.mubr.f32.mxu0 %v6091
  %6528 = vmatmul.mubr.f32.gmra.mxu0 %v6090
  %v6529 = vpop.f32.mrf.mxu0
  %v6530 = vadd.f32 0.0, %v6529
  %v6531 = vpop.f32.mrf.mxu0
  %6532 = vmatprep.mubr.f32.mxu0 %v6093
  %6533 = vmatmul.mubr.f32.gmra.mxu0 %v6092
  %v6534 = vpop.f32.mrf.mxu0
  %v6535 = vadd.f32 0.0, %v6534
  %v6536 = vpop.f32.mrf.mxu0
  %6537 = vmatprep.mubr.f32.mxu0 %v6127
  %6538 = vmatmul.mubr.f32.gmra.mxu0 %v6126
  %v6539 = vpop.f32.mrf.mxu0
  %v6540 = vadd.f32 0.0, %v6539
  %v6541 = vpop.f32.mrf.mxu0
  %6542 = vmatprep.mubr.f32.mxu0 %v6129
  %6543 = vmatmul.mubr.f32.gmra.mxu0 %v6128
  %v6544 = vpop.f32.mrf.mxu0
  %v6545 = vadd.f32 0.0, %v6544
  %v6546 = vpop.f32.mrf.mxu0
  %6547 = vdwg.mxu0
  %6548 = vmatprep.subr.mxu0 0.0
  %6549 = vmatpush1.msra.mxu0 %v6109
  %6550 = vmatprep.subr.mxu0 0.0
  %6551 = vmatpush1.msra.mxu0 %v6108
  %6552 = vmatprep.subr.mxu0 0.0
  %6553 = vmatpush1.msra.mxu0 %v6107
  %6554 = vmatprep.subr.mxu0 0.0
  %6555 = vmatpush1.msra.mxu0 %v6106
  %6556 = vmatprep.subr.mxu0 0.0
  %6557 = vmatpush1.msra.mxu0 %v6105
  %6558 = vmatprep.subr.mxu0 0.0
  %6559 = vmatpush1.msra.mxu0 %v6104
  %6560 = vmatprep.subr.mxu0 0.0
  %6561 = vmatpush1.msra.mxu0 %v6103
  %6562 = vmatprep.subr.mxu0 0.0
  %6563 = vmatpush1.msra.mxu0 %v6102
  %6564 = vmatprep.subr.mxu0 0.0
  %6565 = vmatpush1.msra.mxu0 %v6101
  %6566 = vmatprep.subr.mxu0 0.0
  %6567 = vmatpush1.msra.mxu0 %v6100
  %6568 = vmatprep.subr.mxu0 0.0
  %6569 = vmatpush1.msra.mxu0 %v6099
  %6570 = vmatprep.subr.mxu0 0.0
  %6571 = vmatpush1.msra.mxu0 %v6098
  %6572 = vmatprep.subr.mxu0 0.0
  %6573 = vmatpush1.msra.mxu0 %v6097
  %6574 = vmatprep.subr.mxu0 0.0
  %6575 = vmatpush1.msra.mxu0 %v6096
  %6576 = vmatprep.subr.mxu0 0.0
  %6577 = vmatpush1.msra.mxu0 %v6095
  %6578 = vmatprep.subr.mxu0 0.0
  %6579 = vmatpush1.msra.mxu0 %v6094
  %6580 = vmatprep.subr.mxu0 0.0
  %6581 = vmatpush2.msra.mxu0 %v6125
  %6582 = vmatprep.subr.mxu0 0.0
  %6583 = vmatpush2.msra.mxu0 %v6124
  %6584 = vmatprep.subr.mxu0 0.0
  %6585 = vmatpush2.msra.mxu0 %v6123
  %6586 = vmatprep.subr.mxu0 0.0
  %6587 = vmatpush2.msra.mxu0 %v6122
  %6588 = vmatprep.subr.mxu0 0.0
  %6589 = vmatpush2.msra.mxu0 %v6121
  %6590 = vmatprep.subr.mxu0 0.0
  %6591 = vmatpush2.msra.mxu0 %v6120
  %6592 = vmatprep.subr.mxu0 0.0
  %6593 = vmatpush2.msra.mxu0 %v6119
  %6594 = vmatprep.subr.mxu0 0.0
  %6595 = vmatpush2.msra.mxu0 %v6118
  %6596 = vmatprep.subr.mxu0 0.0
  %6597 = vmatpush2.msra.mxu0 %v6117
  %6598 = vmatprep.subr.mxu0 0.0
  %6599 = vmatpush2.msra.mxu0 %v6116
  %6600 = vmatprep.subr.mxu0 0.0
  %6601 = vmatpush2.msra.mxu0 %v6115
  %6602 = vmatprep.subr.mxu0 0.0
  %6603 = vmatpush2.msra.mxu0 %v6114
  %6604 = vmatprep.subr.mxu0 0.0
  %6605 = vmatpush2.msra.mxu0 %v6113
  %6606 = vmatprep.subr.mxu0 0.0
  %6607 = vmatpush2.msra.mxu0 %v6112
  %6608 = vmatprep.subr.mxu0 0.0
  %6609 = vmatpush2.msra.mxu0 %v6111
  %6610 = vmatprep.subr.mxu0 0.0
  %6611 = vmatpush2.msra.mxu0 %v6110
  %6612 = vmatprep.mubr.f32.mxu0 %v5967
  %6613 = vmatmul.mubr.f32.gmra.mxu0 %v5966
  %v6614 = vpop.f32.mrf.mxu0
  %v6615 = vadd.f32 %v6230, %v6614
  %v6616 = vpop.f32.mrf.mxu0
  %6617 = vmatprep.mubr.f32.mxu0 %v5969
  %6618 = vmatmul.mubr.f32.gmra.mxu0 %v5968
  %v6619 = vpop.f32.mrf.mxu0
  %v6620 = vadd.f32 %v6235, %v6619
  %v6621 = vpop.f32.mrf.mxu0
  %6622 = vmatprep.mubr.f32.mxu0 %v5971
  %6623 = vmatmul.mubr.f32.gmra.mxu0 %v5970
  %v6624 = vpop.f32.mrf.mxu0
  %v6625 = vadd.f32 %v6240, %v6624
  %v6626 = vpop.f32.mrf.mxu0
  %6627 = vmatprep.mubr.f32.mxu0 %v5973
  %6628 = vmatmul.mubr.f32.gmra.mxu0 %v5972
  %v6629 = vpop.f32.mrf.mxu0
  %v6630 = vadd.f32 %v6245, %v6629
  %v6631 = vpop.f32.mrf.mxu0
  %6632 = vmatprep.mubr.f32.mxu0 %v5975
  %6633 = vmatmul.mubr.f32.gmra.mxu0 %v5974
  %v6634 = vpop.f32.mrf.mxu0
  %v6635 = vadd.f32 %v6250, %v6634
  %v6636 = vpop.f32.mrf.mxu0
  %6637 = vmatprep.mubr.f32.mxu0 %v5977
  %6638 = vmatmul.mubr.f32.gmra.mxu0 %v5976
  %v6639 = vpop.f32.mrf.mxu0
  %v6640 = vadd.f32 %v6255, %v6639
  %v6641 = vpop.f32.mrf.mxu0
  %6642 = vmatprep.mubr.f32.mxu0 %v5979
  %6643 = vmatmul.mubr.f32.gmra.mxu0 %v5978
  %v6644 = vpop.f32.mrf.mxu0
  %v6645 = vadd.f32 %v6260, %v6644
  %v6646 = vpop.f32.mrf.mxu0
  %6647 = vmatprep.mubr.f32.mxu0 %v5981
  %6648 = vmatmul.mubr.f32.gmra.mxu0 %v5980
  %v6649 = vpop.f32.mrf.mxu0
  %v6650 = vadd.f32 %v6265, %v6649
  %v6651 = vpop.f32.mrf.mxu0
  %6652 = vmatprep.mubr.f32.mxu0 %v5983
  %6653 = vmatmul.mubr.f32.gmra.mxu0 %v5982
  %v6654 = vpop.f32.mrf.mxu0
  %v6655 = vadd.f32 %v6270, %v6654
  %v6656 = vpop.f32.mrf.mxu0
  %6657 = vmatprep.mubr.f32.mxu0 %v5985
  %6658 = vmatmul.mubr.f32.gmra.mxu0 %v5984
  %v6659 = vpop.f32.mrf.mxu0
  %v6660 = vadd.f32 %v6275, %v6659
  %v6661 = vpop.f32.mrf.mxu0
  %6662 = vmatprep.mubr.f32.mxu0 %v5987
  %6663 = vmatmul.mubr.f32.gmra.mxu0 %v5986
  %v6664 = vpop.f32.mrf.mxu0
  %v6665 = vadd.f32 %v6280, %v6664
  %v6666 = vpop.f32.mrf.mxu0
  %6667 = vmatprep.mubr.f32.mxu0 %v5989
  %6668 = vmatmul.mubr.f32.gmra.mxu0 %v5988
  %v6669 = vpop.f32.mrf.mxu0
  %v6670 = vadd.f32 %v6285, %v6669
  %v6671 = vpop.f32.mrf.mxu0
  %6672 = vmatprep.mubr.f32.mxu0 %v5991
  %6673 = vmatmul.mubr.f32.gmra.mxu0 %v5990
  %v6674 = vpop.f32.mrf.mxu0
  %v6675 = vadd.f32 %v6290, %v6674
  %v6676 = vpop.f32.mrf.mxu0
  %6677 = vmatprep.mubr.f32.mxu0 %v5993
  %6678 = vmatmul.mubr.f32.gmra.mxu0 %v5992
  %v6679 = vpop.f32.mrf.mxu0
  %v6680 = vadd.f32 %v6295, %v6679
  %v6681 = vpop.f32.mrf.mxu0
  %6682 = vmatprep.mubr.f32.mxu0 %v5995
  %6683 = vmatmul.mubr.f32.gmra.mxu0 %v5994
  %v6684 = vpop.f32.mrf.mxu0
  %v6685 = vadd.f32 %v6300, %v6684
  %v6686 = vpop.f32.mrf.mxu0
  %6687 = vmatprep.mubr.f32.mxu0 %v5997
  %6688 = vmatmul.mubr.f32.gmra.mxu0 %v5996
  %v6689 = vpop.f32.mrf.mxu0
  %v6690 = vadd.f32 %v6305, %v6689
  %v6691 = vpop.f32.mrf.mxu0
  %6692 = vmatprep.mubr.f32.mxu0 %v5999
  %6693 = vmatmul.mubr.f32.gmra.mxu0 %v5998
  %v6694 = vpop.f32.mrf.mxu0
  %v6695 = vadd.f32 %v6310, %v6694
  %v6696 = vpop.f32.mrf.mxu0
  %6697 = vmatprep.mubr.f32.mxu0 %v6001
  %6698 = vmatmul.mubr.f32.gmra.mxu0 %v6000
  %v6699 = vpop.f32.mrf.mxu0
  %v6700 = vadd.f32 %v6315, %v6699
  %v6701 = vpop.f32.mrf.mxu0
  %6702 = vmatprep.mubr.f32.mxu0 %v6003
  %6703 = vmatmul.mubr.f32.gmra.mxu0 %v6002
  %v6704 = vpop.f32.mrf.mxu0
  %v6705 = vadd.f32 %v6320, %v6704
  %v6706 = vpop.f32.mrf.mxu0
  %6707 = vmatprep.mubr.f32.mxu0 %v6005
  %6708 = vmatmul.mubr.f32.gmra.mxu0 %v6004
  %v6709 = vpop.f32.mrf.mxu0
  %v6710 = vadd.f32 %v6325, %v6709
  %v6711 = vpop.f32.mrf.mxu0
  %6712 = vmatprep.mubr.f32.mxu0 %v6007
  %6713 = vmatmul.mubr.f32.gmra.mxu0 %v6006
  %v6714 = vpop.f32.mrf.mxu0
  %v6715 = vadd.f32 %v6330, %v6714
  %v6716 = vpop.f32.mrf.mxu0
  %6717 = vmatprep.mubr.f32.mxu0 %v6009
  %6718 = vmatmul.mubr.f32.gmra.mxu0 %v6008
  %v6719 = vpop.f32.mrf.mxu0
  %v6720 = vadd.f32 %v6335, %v6719
  %v6721 = vpop.f32.mrf.mxu0
  %6722 = vmatprep.mubr.f32.mxu0 %v6011
  %6723 = vmatmul.mubr.f32.gmra.mxu0 %v6010
  %v6724 = vpop.f32.mrf.mxu0
  %v6725 = vadd.f32 %v6340, %v6724
  %v6726 = vpop.f32.mrf.mxu0
  %6727 = vmatprep.mubr.f32.mxu0 %v6013
  %6728 = vmatmul.mubr.f32.gmra.mxu0 %v6012
  %v6729 = vpop.f32.mrf.mxu0
  %v6730 = vadd.f32 %v6345, %v6729
  %v6731 = vpop.f32.mrf.mxu0
  %6732 = vmatprep.mubr.f32.mxu0 %v6015
  %6733 = vmatmul.mubr.f32.gmra.mxu0 %v6014
  %v6734 = vpop.f32.mrf.mxu0
  %v6735 = vadd.f32 %v6350, %v6734
  %v6736 = vpop.f32.mrf.mxu0
  %6737 = vmatprep.mubr.f32.mxu0 %v6017
  %6738 = vmatmul.mubr.f32.gmra.mxu0 %v6016
  %v6739 = vpop.f32.mrf.mxu0
  %v6740 = vadd.f32 %v6355, %v6739
  %v6741 = vpop.f32.mrf.mxu0
  %6742 = vmatprep.mubr.f32.mxu0 %v6019
  %6743 = vmatmul.mubr.f32.gmra.mxu0 %v6018
  %v6744 = vpop.f32.mrf.mxu0
  %v6745 = vadd.f32 %v6360, %v6744
  %v6746 = vpop.f32.mrf.mxu0
  %6747 = vmatprep.mubr.f32.mxu0 %v6021
  %6748 = vmatmul.mubr.f32.gmra.mxu0 %v6020
  %v6749 = vpop.f32.mrf.mxu0
  %v6750 = vadd.f32 %v6365, %v6749
  %v6751 = vpop.f32.mrf.mxu0
  %6752 = vmatprep.mubr.f32.mxu0 %v6023
  %6753 = vmatmul.mubr.f32.gmra.mxu0 %v6022
  %v6754 = vpop.f32.mrf.mxu0
  %v6755 = vadd.f32 %v6370, %v6754
  %v6756 = vpop.f32.mrf.mxu0
  %6757 = vmatprep.mubr.f32.mxu0 %v6025
  %6758 = vmatmul.mubr.f32.gmra.mxu0 %v6024
  %v6759 = vpop.f32.mrf.mxu0
  %v6760 = vadd.f32 %v6375, %v6759
  %v6761 = vpop.f32.mrf.mxu0
  %6762 = vmatprep.mubr.f32.mxu0 %v6027
  %6763 = vmatmul.mubr.f32.gmra.mxu0 %v6026
  %v6764 = vpop.f32.mrf.mxu0
  %v6765 = vadd.f32 %v6380, %v6764
  %v6766 = vpop.f32.mrf.mxu0
  %6767 = vmatprep.mubr.f32.mxu0 %v6029
  %6768 = vmatmul.mubr.f32.gmra.mxu0 %v6028
  %v6769 = vpop.f32.mrf.mxu0
  %v6770 = vadd.f32 %v6385, %v6769
  %v6771 = vpop.f32.mrf.mxu0
  %6772 = vmatprep.mubr.f32.mxu0 %v6031
  %6773 = vmatmul.mubr.f32.gmra.mxu0 %v6030
  %v6774 = vpop.f32.mrf.mxu0
  %v6775 = vadd.f32 %v6390, %v6774
  %v6776 = vpop.f32.mrf.mxu0
  %6777 = vmatprep.mubr.f32.mxu0 %v6033
  %6778 = vmatmul.mubr.f32.gmra.mxu0 %v6032
  %v6779 = vpop.f32.mrf.mxu0
  %v6780 = vadd.f32 %v6395, %v6779
  %v6781 = vpop.f32.mrf.mxu0
  %6782 = vmatprep.mubr.f32.mxu0 %v6035
  %6783 = vmatmul.mubr.f32.gmra.mxu0 %v6034
  %v6784 = vpop.f32.mrf.mxu0
  %v6785 = vadd.f32 %v6400, %v6784
  %v6786 = vpop.f32.mrf.mxu0
  %6787 = vmatprep.mubr.f32.mxu0 %v6037
  %6788 = vmatmul.mubr.f32.gmra.mxu0 %v6036
  %v6789 = vpop.f32.mrf.mxu0
  %v6790 = vadd.f32 %v6405, %v6789
  %v6791 = vpop.f32.mrf.mxu0
  %6792 = vmatprep.mubr.f32.mxu0 %v6039
  %6793 = vmatmul.mubr.f32.gmra.mxu0 %v6038
  %v6794 = vpop.f32.mrf.mxu0
  %v6795 = vadd.f32 %v6410, %v6794
  %v6796 = vpop.f32.mrf.mxu0
  %6797 = vmatprep.mubr.f32.mxu0 %v6041
  %6798 = vmatmul.mubr.f32.gmra.mxu0 %v6040
  %v6799 = vpop.f32.mrf.mxu0
  %v6800 = vadd.f32 %v6415, %v6799
  %v6801 = vpop.f32.mrf.mxu0
  %6802 = vmatprep.mubr.f32.mxu0 %v6043
  %6803 = vmatmul.mubr.f32.gmra.mxu0 %v6042
  %v6804 = vpop.f32.mrf.mxu0
  %v6805 = vadd.f32 %v6420, %v6804
  %v6806 = vpop.f32.mrf.mxu0
  %6807 = vmatprep.mubr.f32.mxu0 %v6045
  %6808 = vmatmul.mubr.f32.gmra.mxu0 %v6044
  %v6809 = vpop.f32.mrf.mxu0
  %v6810 = vadd.f32 %v6425, %v6809
  %v6811 = vpop.f32.mrf.mxu0
  %6812 = vmatprep.mubr.f32.mxu0 %v6047
  %6813 = vmatmul.mubr.f32.gmra.mxu0 %v6046
  %v6814 = vpop.f32.mrf.mxu0
  %v6815 = vadd.f32 %v6430, %v6814
  %v6816 = vpop.f32.mrf.mxu0
  %6817 = vmatprep.mubr.f32.mxu0 %v6049
  %6818 = vmatmul.mubr.f32.gmra.mxu0 %v6048
  %v6819 = vpop.f32.mrf.mxu0
  %v6820 = vadd.f32 %v6435, %v6819
  %v6821 = vpop.f32.mrf.mxu0
  %6822 = vmatprep.mubr.f32.mxu0 %v6051
  %6823 = vmatmul.mubr.f32.gmra.mxu0 %v6050
  %v6824 = vpop.f32.mrf.mxu0
  %v6825 = vadd.f32 %v6440, %v6824
  %v6826 = vpop.f32.mrf.mxu0
  %6827 = vmatprep.mubr.f32.mxu0 %v6053
  %6828 = vmatmul.mubr.f32.gmra.mxu0 %v6052
  %v6829 = vpop.f32.mrf.mxu0
  %v6830 = vadd.f32 %v6445, %v6829
  %v6831 = vpop.f32.mrf.mxu0
  %6832 = vmatprep.mubr.f32.mxu0 %v6055
  %6833 = vmatmul.mubr.f32.gmra.mxu0 %v6054
  %v6834 = vpop.f32.mrf.mxu0
  %v6835 = vadd.f32 %v6450, %v6834
  %v6836 = vpop.f32.mrf.mxu0
  %6837 = vmatprep.mubr.f32.mxu0 %v6057
  %6838 = vmatmul.mubr.f32.gmra.mxu0 %v6056
  %v6839 = vpop.f32.mrf.mxu0
  %v6840 = vadd.f32 %v6455, %v6839
  %v6841 = vpop.f32.mrf.mxu0
  %6842 = vmatprep.mubr.f32.mxu0 %v6059
  %6843 = vmatmul.mubr.f32.gmra.mxu0 %v6058
  %v6844 = vpop.f32.mrf.mxu0
  %v6845 = vadd.f32 %v6460, %v6844
  %v6846 = vpop.f32.mrf.mxu0
  %6847 = vmatprep.mubr.f32.mxu0 %v6061
  %6848 = vmatmul.mubr.f32.gmra.mxu0 %v6060
  %v6849 = vpop.f32.mrf.mxu0
  %v6850 = vadd.f32 %v6465, %v6849
  %v6851 = vpop.f32.mrf.mxu0
  %6852 = vmatprep.mubr.f32.mxu0 %v6063
  %6853 = vmatmul.mubr.f32.gmra.mxu0 %v6062
  %v6854 = vpop.f32.mrf.mxu0
  %v6855 = vadd.f32 %v6470, %v6854
  %v6856 = vpop.f32.mrf.mxu0
  %6857 = vmatprep.mubr.f32.mxu0 %v6065
  %6858 = vmatmul.mubr.f32.gmra.mxu0 %v6064
  %v6859 = vpop.f32.mrf.mxu0
  %v6860 = vadd.f32 %v6475, %v6859
  %v6861 = vpop.f32.mrf.mxu0
  %6862 = vmatprep.mubr.f32.mxu0 %v6067
  %6863 = vmatmul.mubr.f32.gmra.mxu0 %v6066
  %v6864 = vpop.f32.mrf.mxu0
  %v6865 = vadd.f32 %v6480, %v6864
  %v6866 = vpop.f32.mrf.mxu0
  %6867 = vmatprep.mubr.f32.mxu0 %v6069
  %6868 = vmatmul.mubr.f32.gmra.mxu0 %v6068
  %v6869 = vpop.f32.mrf.mxu0
  %v6870 = vadd.f32 %v6485, %v6869
  %v6871 = vpop.f32.mrf.mxu0
  %6872 = vmatprep.mubr.f32.mxu0 %v6071
  %6873 = vmatmul.mubr.f32.gmra.mxu0 %v6070
  %v6874 = vpop.f32.mrf.mxu0
  %v6875 = vadd.f32 %v6490, %v6874
  %v6876 = vpop.f32.mrf.mxu0
  %6877 = vmatprep.mubr.f32.mxu0 %v6073
  %6878 = vmatmul.mubr.f32.gmra.mxu0 %v6072
  %v6879 = vpop.f32.mrf.mxu0
  %v6880 = vadd.f32 %v6495, %v6879
  %v6881 = vpop.f32.mrf.mxu0
  %6882 = vmatprep.mubr.f32.mxu0 %v6075
  %6883 = vmatmul.mubr.f32.gmra.mxu0 %v6074
  %v6884 = vpop.f32.mrf.mxu0
  %v6885 = vadd.f32 %v6500, %v6884
  %v6886 = vpop.f32.mrf.mxu0
  %6887 = vmatprep.mubr.f32.mxu0 %v6077
  %6888 = vmatmul.mubr.f32.gmra.mxu0 %v6076
  %v6889 = vpop.f32.mrf.mxu0
  %v6890 = vadd.f32 %v6505, %v6889
  %v6891 = vpop.f32.mrf.mxu0
  %6892 = vmatprep.mubr.f32.mxu0 %v6079
  %6893 = vmatmul.mubr.f32.gmra.mxu0 %v6078
  %v6894 = vpop.f32.mrf.mxu0
  %v6895 = vadd.f32 %v6510, %v6894
  %v6896 = vpop.f32.mrf.mxu0
  %6897 = vmatprep.mubr.f32.mxu0 %v6081
  %6898 = vmatmul.mubr.f32.gmra.mxu0 %v6080
  %v6899 = vpop.f32.mrf.mxu0
  %v6900 = vadd.f32 %v6515, %v6899
  %v6901 = vpop.f32.mrf.mxu0
  %6902 = vmatprep.mubr.f32.mxu0 %v6083
  %6903 = vmatmul.mubr.f32.gmra.mxu0 %v6082
  %v6904 = vpop.f32.mrf.mxu0
  %v6905 = vadd.f32 %v6520, %v6904
  %v6906 = vpop.f32.mrf.mxu0
  %6907 = vmatprep.mubr.f32.mxu0 %v6085
  %6908 = vmatmul.mubr.f32.gmra.mxu0 %v6084
  %v6909 = vpop.f32.mrf.mxu0
  %v6910 = vadd.f32 %v6525, %v6909
  %v6911 = vpop.f32.mrf.mxu0
  %6912 = vmatprep.mubr.f32.mxu0 %v6087
  %6913 = vmatmul.mubr.f32.gmra.mxu0 %v6086
  %v6914 = vpop.f32.mrf.mxu0
  %v6915 = vadd.f32 %v6530, %v6914
  %v6916 = vpop.f32.mrf.mxu0
  %6917 = vmatprep.mubr.f32.mxu0 %v6089
  %6918 = vmatmul.mubr.f32.gmra.mxu0 %v6088
  %v6919 = vpop.f32.mrf.mxu0
  %v6920 = vadd.f32 %v6535, %v6919
  %v6921 = vpop.f32.mrf.mxu0
  %6922 = vmatprep.mubr.f32.mxu0 %v6091
  %6923 = vmatmul.mubr.f32.gmra.mxu0 %v6090
  %v6924 = vpop.f32.mrf.mxu0
  %v6925 = vadd.f32 %v6540, %v6924
  %v6926 = vpop.f32.mrf.mxu0
  %6927 = vmatprep.mubr.f32.mxu0 %v6093
  %6928 = vmatmul.mubr.f32.gmra.mxu0 %v6092
  %v6929 = vpop.f32.mrf.mxu0
  %v6930 = vadd.f32 %v6545, %v6929
  %v6931 = vpop.f32.mrf.mxu0
  %6932 = vdwg.mxu0
  %v6933 = vld [vmem:[#allocation2 + $0x60] sm:$0xff]
  %v6934 = vld [vmem:[#allocation2 + $0x68] sm:$0xff]
  %v6935 = vld [vmem:[#allocation2 + $0x70] sm:$0xff]
  %v6936 = vld [vmem:[#allocation2 + $0x78] sm:$0xff]
  %v6937 = vld [vmem:[#allocation2 + $0x80] sm:$0xff]
  %v6938 = vld [vmem:[#allocation2 + $0x88] sm:$0xff]
  %v6939 = vld [vmem:[#allocation2 + $0x90] sm:$0xff]
  %v6940 = vld [vmem:[#allocation2 + $0x98] sm:$0xff]
  %v6941 = vld [vmem:[#allocation2 + $0xa0] sm:$0xff]
  %v6942 = vld [vmem:[#allocation2 + $0xa8] sm:$0xff]
  %v6943 = vld [vmem:[#allocation2 + $0xb0] sm:$0xff]
  %v6944 = vld [vmem:[#allocation2 + $0xb8] sm:$0xff]
  %v6945 = vld [vmem:[#allocation2 + $0xc0] sm:$0xff]
  %v6946 = vld [vmem:[#allocation2 + $0xc8] sm:$0xff]
  %v6947 = vld [vmem:[#allocation2 + $0xd0] sm:$0xff]
  %v6948 = vld [vmem:[#allocation2 + $0xd8] sm:$0xff]
  %v6949 = vld [vmem:[#allocation2 + $0xe0] sm:$0xff]
  %v6950 = vld [vmem:[#allocation2 + $0xe8] sm:$0xff]
  %v6951 = vld [vmem:[#allocation2 + $0xf0] sm:$0xff]
  %v6952 = vld [vmem:[#allocation2 + $0xf8] sm:$0xff]
  %v6953 = vld [vmem:[#allocation2 + $0x100] sm:$0xff]
  %v6954 = vld [vmem:[#allocation2 + $0x108] sm:$0xff]
  %v6955 = vld [vmem:[#allocation2 + $0x110] sm:$0xff]
  %v6956 = vld [vmem:[#allocation2 + $0x118] sm:$0xff]
  %v6957 = vld [vmem:[#allocation2 + $0x120] sm:$0xff]
  %v6958 = vld [vmem:[#allocation2 + $0x128] sm:$0xff]
  %v6959 = vld [vmem:[#allocation2 + $0x130] sm:$0xff]
  %v6960 = vld [vmem:[#allocation2 + $0x138] sm:$0xff]
  %v6961 = vld [vmem:[#allocation2 + $0x140] sm:$0xff]
  %v6962 = vld [vmem:[#allocation2 + $0x148] sm:$0xff]
  %v6963 = vld [vmem:[#allocation2 + $0x150] sm:$0xff]
  %v6964 = vld [vmem:[#allocation2 + $0x158] sm:$0xff]
  %v6965 = vld [vmem:[#allocation2 + $0x160] sm:$0xff]
  %v6966 = vld [vmem:[#allocation2 + $0x168] sm:$0xff]
  %v6967 = vld [vmem:[#allocation2 + $0x170] sm:$0xff]
  %v6968 = vld [vmem:[#allocation2 + $0x178] sm:$0xff]
  %v6969 = vld [vmem:[#allocation2 + $0x180] sm:$0xff]
  %v6970 = vld [vmem:[#allocation2 + $0x188] sm:$0xff]
  %v6971 = vld [vmem:[#allocation2 + $0x190] sm:$0xff]
  %v6972 = vld [vmem:[#allocation2 + $0x198] sm:$0xff]
  %v6973 = vld [vmem:[#allocation2 + $0x1a0] sm:$0xff]
  %v6974 = vld [vmem:[#allocation2 + $0x1a8] sm:$0xff]
  %v6975 = vld [vmem:[#allocation2 + $0x1b0] sm:$0xff]
  %v6976 = vld [vmem:[#allocation2 + $0x1b8] sm:$0xff]
  %v6977 = vld [vmem:[#allocation2 + $0x1c0] sm:$0xff]
  %v6978 = vld [vmem:[#allocation2 + $0x1c8] sm:$0xff]
  %v6979 = vld [vmem:[#allocation2 + $0x1d0] sm:$0xff]
  %v6980 = vld [vmem:[#allocation2 + $0x1d8] sm:$0xff]
  %v6981 = vld [vmem:[#allocation2 + $0x1e0] sm:$0xff]
  %v6982 = vld [vmem:[#allocation2 + $0x1e8] sm:$0xff]
  %v6983 = vld [vmem:[#allocation2 + $0x1f0] sm:$0xff]
  %v6984 = vld [vmem:[#allocation2 + $0x1f8] sm:$0xff]
  %v6985 = vld [vmem:[#allocation2 + $0x200] sm:$0xff]
  %v6986 = vld [vmem:[#allocation2 + $0x208] sm:$0xff]
  %v6987 = vld [vmem:[#allocation2 + $0x210] sm:$0xff]
  %v6988 = vld [vmem:[#allocation2 + $0x218] sm:$0xff]
  %v6989 = vld [vmem:[#allocation2 + $0x220] sm:$0xff]
  %v6990 = vld [vmem:[#allocation2 + $0x228] sm:$0xff]
  %v6991 = vld [vmem:[#allocation2 + $0x230] sm:$0xff]
  %v6992 = vld [vmem:[#allocation2 + $0x238] sm:$0xff]
  %v6993 = vld [vmem:[#allocation2 + $0x240] sm:$0xff]
  %v6994 = vld [vmem:[#allocation2 + $0x248] sm:$0xff]
  %v6995 = vld [vmem:[#allocation2 + $0x250] sm:$0xff]
  %v6996 = vld [vmem:[#allocation2 + $0x258] sm:$0xff]
  %v6997 = vld [vmem:[#allocation2 + $0x260] sm:$0xff]
  %v6998 = vld [vmem:[#allocation2 + $0x268] sm:$0xff]
  %v6999 = vld [vmem:[#allocation2 + $0x270] sm:$0xff]
  %v7000 = vld [vmem:[#allocation2 + $0x278] sm:$0xff]
  %v7001 = vld [vmem:[#allocation2 + $0x280] sm:$0xff]
  %v7002 = vld [vmem:[#allocation2 + $0x288] sm:$0xff]
  %v7003 = vld [vmem:[#allocation2 + $0x290] sm:$0xff]
  %v7004 = vld [vmem:[#allocation2 + $0x298] sm:$0xff]
  %v7005 = vld [vmem:[#allocation2 + $0x2a0] sm:$0xff]
  %v7006 = vld [vmem:[#allocation2 + $0x2a8] sm:$0xff]
  %v7007 = vld [vmem:[#allocation2 + $0x2b0] sm:$0xff]
  %v7008 = vld [vmem:[#allocation2 + $0x2b8] sm:$0xff]
  %v7009 = vld [vmem:[#allocation2 + $0x2c0] sm:$0xff]
  %v7010 = vld [vmem:[#allocation2 + $0x2c8] sm:$0xff]
  %v7011 = vld [vmem:[#allocation2 + $0x2d0] sm:$0xff]
  %v7012 = vld [vmem:[#allocation2 + $0x2d8] sm:$0xff]
  %v7013 = vld [vmem:[#allocation2 + $0x2e0] sm:$0xff]
  %v7014 = vld [vmem:[#allocation2 + $0x2e8] sm:$0xff]
  %v7015 = vld [vmem:[#allocation2 + $0x2f0] sm:$0xff]
  %v7016 = vld [vmem:[#allocation2 + $0x2f8] sm:$0xff]
  %v7017 = vld [vmem:[#allocation2 + $0x300] sm:$0xff]
  %v7018 = vld [vmem:[#allocation2 + $0x308] sm:$0xff]
  %v7019 = vld [vmem:[#allocation2 + $0x310] sm:$0xff]
  %v7020 = vld [vmem:[#allocation2 + $0x318] sm:$0xff]
  %v7021 = vld [vmem:[#allocation2 + $0x320] sm:$0xff]
  %v7022 = vld [vmem:[#allocation2 + $0x328] sm:$0xff]
  %v7023 = vld [vmem:[#allocation2 + $0x330] sm:$0xff]
  %v7024 = vld [vmem:[#allocation2 + $0x338] sm:$0xff]
  %v7025 = vld [vmem:[#allocation2 + $0x340] sm:$0xff]
  %v7026 = vld [vmem:[#allocation2 + $0x348] sm:$0xff]
  %v7027 = vld [vmem:[#allocation2 + $0x350] sm:$0xff]
  %v7028 = vld [vmem:[#allocation2 + $0x358] sm:$0xff]
  %v7029 = vld [vmem:[#allocation2 + $0x360] sm:$0xff]
  %v7030 = vld [vmem:[#allocation2 + $0x368] sm:$0xff]
  %v7031 = vld [vmem:[#allocation2 + $0x370] sm:$0xff]
  %v7032 = vld [vmem:[#allocation2 + $0x378] sm:$0xff]
  %v7033 = vld [vmem:[#allocation2 + $0x380] sm:$0xff]
  %v7034 = vld [vmem:[#allocation2 + $0x388] sm:$0xff]
  %v7035 = vld [vmem:[#allocation2 + $0x390] sm:$0xff]
  %v7036 = vld [vmem:[#allocation2 + $0x398] sm:$0xff]
  %v7037 = vld [vmem:[#allocation2 + $0x3a0] sm:$0xff]
  %v7038 = vld [vmem:[#allocation2 + $0x3a8] sm:$0xff]
  %v7039 = vld [vmem:[#allocation2 + $0x3b0] sm:$0xff]
  %v7040 = vld [vmem:[#allocation2 + $0x3b8] sm:$0xff]
  %v7041 = vld [vmem:[#allocation2 + $0x3c0] sm:$0xff]
  %v7042 = vld [vmem:[#allocation2 + $0x3c8] sm:$0xff]
  %v7043 = vld [vmem:[#allocation2 + $0x3d0] sm:$0xff]
  %v7044 = vld [vmem:[#allocation2 + $0x3d8] sm:$0xff]
  %v7045 = vld [vmem:[#allocation2 + $0x3e0] sm:$0xff]
  %v7046 = vld [vmem:[#allocation2 + $0x3e8] sm:$0xff]
  %v7047 = vld [vmem:[#allocation2 + $0x3f0] sm:$0xff]
  %v7048 = vld [vmem:[#allocation2 + $0x3f8] sm:$0xff]
  %v7049 = vld [vmem:[#allocation2 + $0x400] sm:$0xff]
  %v7050 = vld [vmem:[#allocation2 + $0x408] sm:$0xff]
  %v7051 = vld [vmem:[#allocation2 + $0x410] sm:$0xff]
  %v7052 = vld [vmem:[#allocation2 + $0x418] sm:$0xff]
  %v7053 = vld [vmem:[#allocation2 + $0x420] sm:$0xff]
  %v7054 = vld [vmem:[#allocation2 + $0x428] sm:$0xff]
  %v7055 = vld [vmem:[#allocation2 + $0x430] sm:$0xff]
  %v7056 = vld [vmem:[#allocation2 + $0x438] sm:$0xff]
  %v7057 = vld [vmem:[#allocation2 + $0x440] sm:$0xff]
  %v7058 = vld [vmem:[#allocation2 + $0x448] sm:$0xff]
  %v7059 = vld [vmem:[#allocation2 + $0x450] sm:$0xff]
  %v7060 = vld [vmem:[#allocation2 + $0x458] sm:$0xff]
  %s7061 = scalar_lea.vmem %s5, 512
  %v7062 = vld [vmem:[%s7061] sm:$0xff]
  %v7063 = vld [vmem:[%s7061 + $0x8] sm:$0xff]
  %v7064 = vld [vmem:[%s7061 + $0x10] sm:$0xff]
  %v7065 = vld [vmem:[%s7061 + $0x18] sm:$0xff]
  %v7066 = vld [vmem:[%s7061 + $0x20] sm:$0xff]
  %v7067 = vld [vmem:[%s7061 + $0x28] sm:$0xff]
  %v7068 = vld [vmem:[%s7061 + $0x30] sm:$0xff]
  %v7069 = vld [vmem:[%s7061 + $0x38] sm:$0xff]
  %v7070 = vld [vmem:[%s7061 + $0x40] sm:$0xff]
  %v7071 = vld [vmem:[%s7061 + $0x48] sm:$0xff]
  %v7072 = vld [vmem:[%s7061 + $0x50] sm:$0xff]
  %v7073 = vld [vmem:[%s7061 + $0x58] sm:$0xff]
  %v7074 = vld [vmem:[%s7061 + $0x60] sm:$0xff]
  %v7075 = vld [vmem:[%s7061 + $0x68] sm:$0xff]
  %v7076 = vld [vmem:[%s7061 + $0x70] sm:$0xff]
  %v7077 = vld [vmem:[%s7061 + $0x78] sm:$0xff]
  %v7078 = vld [vmem:[%s7061 + $0x80] sm:$0xff]
  %v7079 = vld [vmem:[%s7061 + $0x88] sm:$0xff]
  %v7080 = vld [vmem:[%s7061 + $0x90] sm:$0xff]
  %v7081 = vld [vmem:[%s7061 + $0x98] sm:$0xff]
  %v7082 = vld [vmem:[%s7061 + $0xa0] sm:$0xff]
  %v7083 = vld [vmem:[%s7061 + $0xa8] sm:$0xff]
  %v7084 = vld [vmem:[%s7061 + $0xb0] sm:$0xff]
  %v7085 = vld [vmem:[%s7061 + $0xb8] sm:$0xff]
  %v7086 = vld [vmem:[%s7061 + $0xc0] sm:$0xff]
  %v7087 = vld [vmem:[%s7061 + $0xc8] sm:$0xff]
  %v7088 = vld [vmem:[%s7061 + $0xd0] sm:$0xff]
  %v7089 = vld [vmem:[%s7061 + $0xd8] sm:$0xff]
  %v7090 = vld [vmem:[%s7061 + $0xe0] sm:$0xff]
  %v7091 = vld [vmem:[%s7061 + $0xe8] sm:$0xff]
  %v7092 = vld [vmem:[%s7061 + $0xf0] sm:$0xff]
  %v7093 = vld [vmem:[%s7061 + $0xf8] sm:$0xff]
  %7094 = vmatprep.subr.mxu0 0.0
  %7095 = vmatpush1.msra.mxu0 %v7077
  %7096 = vmatprep.subr.mxu0 0.0
  %7097 = vmatpush1.msra.mxu0 %v7076
  %7098 = vmatprep.subr.mxu0 0.0
  %7099 = vmatpush1.msra.mxu0 %v7075
  %7100 = vmatprep.subr.mxu0 0.0
  %7101 = vmatpush1.msra.mxu0 %v7074
  %7102 = vmatprep.subr.mxu0 0.0
  %7103 = vmatpush1.msra.mxu0 %v7073
  %7104 = vmatprep.subr.mxu0 0.0
  %7105 = vmatpush1.msra.mxu0 %v7072
  %7106 = vmatprep.subr.mxu0 0.0
  %7107 = vmatpush1.msra.mxu0 %v7071
  %7108 = vmatprep.subr.mxu0 0.0
  %7109 = vmatpush1.msra.mxu0 %v7070
  %7110 = vmatprep.subr.mxu0 0.0
  %7111 = vmatpush1.msra.mxu0 %v7069
  %7112 = vmatprep.subr.mxu0 0.0
  %7113 = vmatpush1.msra.mxu0 %v7068
  %7114 = vmatprep.subr.mxu0 0.0
  %7115 = vmatpush1.msra.mxu0 %v7067
  %7116 = vmatprep.subr.mxu0 0.0
  %7117 = vmatpush1.msra.mxu0 %v7066
  %7118 = vmatprep.subr.mxu0 0.0
  %7119 = vmatpush1.msra.mxu0 %v7065
  %7120 = vmatprep.subr.mxu0 0.0
  %7121 = vmatpush1.msra.mxu0 %v7064
  %7122 = vmatprep.subr.mxu0 0.0
  %7123 = vmatpush1.msra.mxu0 %v7063
  %7124 = vmatprep.subr.mxu0 0.0
  %7125 = vmatpush1.msra.mxu0 %v7062
  %7126 = vmatprep.subr.mxu0 0.0
  %7127 = vmatpush2.msra.mxu0 %v7093
  %7128 = vmatprep.subr.mxu0 0.0
  %7129 = vmatpush2.msra.mxu0 %v7092
  %7130 = vmatprep.subr.mxu0 0.0
  %7131 = vmatpush2.msra.mxu0 %v7091
  %7132 = vmatprep.subr.mxu0 0.0
  %7133 = vmatpush2.msra.mxu0 %v7090
  %7134 = vmatprep.subr.mxu0 0.0
  %7135 = vmatpush2.msra.mxu0 %v7089
  %7136 = vmatprep.subr.mxu0 0.0
  %7137 = vmatpush2.msra.mxu0 %v7088
  %7138 = vmatprep.subr.mxu0 0.0
  %7139 = vmatpush2.msra.mxu0 %v7087
  %7140 = vmatprep.subr.mxu0 0.0
  %7141 = vmatpush2.msra.mxu0 %v7086
  %7142 = vmatprep.subr.mxu0 0.0
  %7143 = vmatpush2.msra.mxu0 %v7085
  %7144 = vmatprep.subr.mxu0 0.0
  %7145 = vmatpush2.msra.mxu0 %v7084
  %7146 = vmatprep.subr.mxu0 0.0
  %7147 = vmatpush2.msra.mxu0 %v7083
  %7148 = vmatprep.subr.mxu0 0.0
  %7149 = vmatpush2.msra.mxu0 %v7082
  %7150 = vmatprep.subr.mxu0 0.0
  %7151 = vmatpush2.msra.mxu0 %v7081
  %7152 = vmatprep.subr.mxu0 0.0
  %7153 = vmatpush2.msra.mxu0 %v7080
  %7154 = vmatprep.subr.mxu0 0.0
  %7155 = vmatpush2.msra.mxu0 %v7079
  %7156 = vmatprep.subr.mxu0 0.0
  %7157 = vmatpush2.msra.mxu0 %v7078
  %7158 = vmatprep.mubr.f32.mxu0 %v6934
  %7159 = vmatmul.mubr.f32.gmra.mxu0 %v6933
  %v7160 = vpop.f32.mrf.mxu0
  %v7161 = vadd.f32 0.0, %v7160
  %v7162 = vpop.f32.mrf.mxu0
  %7163 = vmatprep.mubr.f32.mxu0 %v6936
  %7164 = vmatmul.mubr.f32.gmra.mxu0 %v6935
  %v7165 = vpop.f32.mrf.mxu0
  %v7166 = vadd.f32 0.0, %v7165
  %v7167 = vpop.f32.mrf.mxu0
  %7168 = vmatprep.mubr.f32.mxu0 %v6938
  %7169 = vmatmul.mubr.f32.gmra.mxu0 %v6937
  %v7170 = vpop.f32.mrf.mxu0
  %v7171 = vadd.f32 0.0, %v7170
  %v7172 = vpop.f32.mrf.mxu0
  %7173 = vmatprep.mubr.f32.mxu0 %v6940
  %7174 = vmatmul.mubr.f32.gmra.mxu0 %v6939
  %v7175 = vpop.f32.mrf.mxu0
  %v7176 = vadd.f32 0.0, %v7175
  %v7177 = vpop.f32.mrf.mxu0
  %7178 = vmatprep.mubr.f32.mxu0 %v6942
  %7179 = vmatmul.mubr.f32.gmra.mxu0 %v6941
  %v7180 = vpop.f32.mrf.mxu0
  %v7181 = vadd.f32 0.0, %v7180
  %v7182 = vpop.f32.mrf.mxu0
  %7183 = vmatprep.mubr.f32.mxu0 %v6944
  %7184 = vmatmul.mubr.f32.gmra.mxu0 %v6943
  %v7185 = vpop.f32.mrf.mxu0
  %v7186 = vadd.f32 0.0, %v7185
  %v7187 = vpop.f32.mrf.mxu0
  %7188 = vmatprep.mubr.f32.mxu0 %v6946
  %7189 = vmatmul.mubr.f32.gmra.mxu0 %v6945
  %v7190 = vpop.f32.mrf.mxu0
  %v7191 = vadd.f32 0.0, %v7190
  %v7192 = vpop.f32.mrf.mxu0
  %7193 = vmatprep.mubr.f32.mxu0 %v6948
  %7194 = vmatmul.mubr.f32.gmra.mxu0 %v6947
  %v7195 = vpop.f32.mrf.mxu0
  %v7196 = vadd.f32 0.0, %v7195
  %v7197 = vpop.f32.mrf.mxu0
  %7198 = vmatprep.mubr.f32.mxu0 %v6950
  %7199 = vmatmul.mubr.f32.gmra.mxu0 %v6949
  %v7200 = vpop.f32.mrf.mxu0
  %v7201 = vadd.f32 0.0, %v7200
  %v7202 = vpop.f32.mrf.mxu0
  %7203 = vmatprep.mubr.f32.mxu0 %v6952
  %7204 = vmatmul.mubr.f32.gmra.mxu0 %v6951
  %v7205 = vpop.f32.mrf.mxu0
  %v7206 = vadd.f32 0.0, %v7205
  %v7207 = vpop.f32.mrf.mxu0
  %7208 = vmatprep.mubr.f32.mxu0 %v6954
  %7209 = vmatmul.mubr.f32.gmra.mxu0 %v6953
  %v7210 = vpop.f32.mrf.mxu0
  %v7211 = vadd.f32 0.0, %v7210
  %v7212 = vpop.f32.mrf.mxu0
  %7213 = vmatprep.mubr.f32.mxu0 %v6956
  %7214 = vmatmul.mubr.f32.gmra.mxu0 %v6955
  %v7215 = vpop.f32.mrf.mxu0
  %v7216 = vadd.f32 0.0, %v7215
  %v7217 = vpop.f32.mrf.mxu0
  %7218 = vmatprep.mubr.f32.mxu0 %v6958
  %7219 = vmatmul.mubr.f32.gmra.mxu0 %v6957
  %v7220 = vpop.f32.mrf.mxu0
  %v7221 = vadd.f32 0.0, %v7220
  %v7222 = vpop.f32.mrf.mxu0
  %7223 = vmatprep.mubr.f32.mxu0 %v6960
  %7224 = vmatmul.mubr.f32.gmra.mxu0 %v6959
  %v7225 = vpop.f32.mrf.mxu0
  %v7226 = vadd.f32 0.0, %v7225
  %v7227 = vpop.f32.mrf.mxu0
  %7228 = vmatprep.mubr.f32.mxu0 %v6962
  %7229 = vmatmul.mubr.f32.gmra.mxu0 %v6961
  %v7230 = vpop.f32.mrf.mxu0
  %v7231 = vadd.f32 0.0, %v7230
  %v7232 = vpop.f32.mrf.mxu0
  %7233 = vmatprep.mubr.f32.mxu0 %v6964
  %7234 = vmatmul.mubr.f32.gmra.mxu0 %v6963
  %v7235 = vpop.f32.mrf.mxu0
  %v7236 = vadd.f32 0.0, %v7235
  %v7237 = vpop.f32.mrf.mxu0
  %7238 = vmatprep.mubr.f32.mxu0 %v6966
  %7239 = vmatmul.mubr.f32.gmra.mxu0 %v6965
  %v7240 = vpop.f32.mrf.mxu0
  %v7241 = vadd.f32 0.0, %v7240
  %v7242 = vpop.f32.mrf.mxu0
  %7243 = vmatprep.mubr.f32.mxu0 %v6968
  %7244 = vmatmul.mubr.f32.gmra.mxu0 %v6967
  %v7245 = vpop.f32.mrf.mxu0
  %v7246 = vadd.f32 0.0, %v7245
  %v7247 = vpop.f32.mrf.mxu0
  %7248 = vmatprep.mubr.f32.mxu0 %v6970
  %7249 = vmatmul.mubr.f32.gmra.mxu0 %v6969
  %v7250 = vpop.f32.mrf.mxu0
  %v7251 = vadd.f32 0.0, %v7250
  %v7252 = vpop.f32.mrf.mxu0
  %7253 = vmatprep.mubr.f32.mxu0 %v6972
  %7254 = vmatmul.mubr.f32.gmra.mxu0 %v6971
  %v7255 = vpop.f32.mrf.mxu0
  %v7256 = vadd.f32 0.0, %v7255
  %v7257 = vpop.f32.mrf.mxu0
  %7258 = vmatprep.mubr.f32.mxu0 %v6974
  %7259 = vmatmul.mubr.f32.gmra.mxu0 %v6973
  %v7260 = vpop.f32.mrf.mxu0
  %v7261 = vadd.f32 0.0, %v7260
  %v7262 = vpop.f32.mrf.mxu0
  %7263 = vmatprep.mubr.f32.mxu0 %v6976
  %7264 = vmatmul.mubr.f32.gmra.mxu0 %v6975
  %v7265 = vpop.f32.mrf.mxu0
  %v7266 = vadd.f32 0.0, %v7265
  %v7267 = vpop.f32.mrf.mxu0
  %7268 = vmatprep.mubr.f32.mxu0 %v6978
  %7269 = vmatmul.mubr.f32.gmra.mxu0 %v6977
  %v7270 = vpop.f32.mrf.mxu0
  %v7271 = vadd.f32 0.0, %v7270
  %v7272 = vpop.f32.mrf.mxu0
  %7273 = vmatprep.mubr.f32.mxu0 %v6980
  %7274 = vmatmul.mubr.f32.gmra.mxu0 %v6979
  %v7275 = vpop.f32.mrf.mxu0
  %v7276 = vadd.f32 0.0, %v7275
  %v7277 = vpop.f32.mrf.mxu0
  %7278 = vmatprep.mubr.f32.mxu0 %v6982
  %7279 = vmatmul.mubr.f32.gmra.mxu0 %v6981
  %v7280 = vpop.f32.mrf.mxu0
  %v7281 = vadd.f32 0.0, %v7280
  %v7282 = vpop.f32.mrf.mxu0
  %7283 = vmatprep.mubr.f32.mxu0 %v6984
  %7284 = vmatmul.mubr.f32.gmra.mxu0 %v6983
  %v7285 = vpop.f32.mrf.mxu0
  %v7286 = vadd.f32 0.0, %v7285
  %v7287 = vpop.f32.mrf.mxu0
  %7288 = vmatprep.mubr.f32.mxu0 %v6986
  %7289 = vmatmul.mubr.f32.gmra.mxu0 %v6985
  %v7290 = vpop.f32.mrf.mxu0
  %v7291 = vadd.f32 0.0, %v7290
  %v7292 = vpop.f32.mrf.mxu0
  %7293 = vmatprep.mubr.f32.mxu0 %v6988
  %7294 = vmatmul.mubr.f32.gmra.mxu0 %v6987
  %v7295 = vpop.f32.mrf.mxu0
  %v7296 = vadd.f32 0.0, %v7295
  %v7297 = vpop.f32.mrf.mxu0
  %7298 = vmatprep.mubr.f32.mxu0 %v6990
  %7299 = vmatmul.mubr.f32.gmra.mxu0 %v6989
  %v7300 = vpop.f32.mrf.mxu0
  %v7301 = vadd.f32 0.0, %v7300
  %v7302 = vpop.f32.mrf.mxu0
  %7303 = vmatprep.mubr.f32.mxu0 %v6992
  %7304 = vmatmul.mubr.f32.gmra.mxu0 %v6991
  %v7305 = vpop.f32.mrf.mxu0
  %v7306 = vadd.f32 0.0, %v7305
  %v7307 = vpop.f32.mrf.mxu0
  %7308 = vmatprep.mubr.f32.mxu0 %v6994
  %7309 = vmatmul.mubr.f32.gmra.mxu0 %v6993
  %v7310 = vpop.f32.mrf.mxu0
  %v7311 = vadd.f32 0.0, %v7310
  %v7312 = vpop.f32.mrf.mxu0
  %7313 = vmatprep.mubr.f32.mxu0 %v6996
  %7314 = vmatmul.mubr.f32.gmra.mxu0 %v6995
  %v7315 = vpop.f32.mrf.mxu0
  %v7316 = vadd.f32 0.0, %v7315
  %v7317 = vpop.f32.mrf.mxu0
  %7318 = vmatprep.mubr.f32.mxu0 %v6998
  %7319 = vmatmul.mubr.f32.gmra.mxu0 %v6997
  %v7320 = vpop.f32.mrf.mxu0
  %v7321 = vadd.f32 0.0, %v7320
  %v7322 = vpop.f32.mrf.mxu0
  %7323 = vmatprep.mubr.f32.mxu0 %v7000
  %7324 = vmatmul.mubr.f32.gmra.mxu0 %v6999
  %v7325 = vpop.f32.mrf.mxu0
  %v7326 = vadd.f32 0.0, %v7325
  %v7327 = vpop.f32.mrf.mxu0
  %7328 = vmatprep.mubr.f32.mxu0 %v7002
  %7329 = vmatmul.mubr.f32.gmra.mxu0 %v7001
  %v7330 = vpop.f32.mrf.mxu0
  %v7331 = vadd.f32 0.0, %v7330
  %v7332 = vpop.f32.mrf.mxu0
  %7333 = vmatprep.mubr.f32.mxu0 %v7004
  %7334 = vmatmul.mubr.f32.gmra.mxu0 %v7003
  %v7335 = vpop.f32.mrf.mxu0
  %v7336 = vadd.f32 0.0, %v7335
  %v7337 = vpop.f32.mrf.mxu0
  %7338 = vmatprep.mubr.f32.mxu0 %v7006
  %7339 = vmatmul.mubr.f32.gmra.mxu0 %v7005
  %v7340 = vpop.f32.mrf.mxu0
  %v7341 = vadd.f32 0.0, %v7340
  %v7342 = vpop.f32.mrf.mxu0
  %7343 = vmatprep.mubr.f32.mxu0 %v7008
  %7344 = vmatmul.mubr.f32.gmra.mxu0 %v7007
  %v7345 = vpop.f32.mrf.mxu0
  %v7346 = vadd.f32 0.0, %v7345
  %v7347 = vpop.f32.mrf.mxu0
  %7348 = vmatprep.mubr.f32.mxu0 %v7010
  %7349 = vmatmul.mubr.f32.gmra.mxu0 %v7009
  %v7350 = vpop.f32.mrf.mxu0
  %v7351 = vadd.f32 0.0, %v7350
  %v7352 = vpop.f32.mrf.mxu0
  %7353 = vmatprep.mubr.f32.mxu0 %v7012
  %7354 = vmatmul.mubr.f32.gmra.mxu0 %v7011
  %v7355 = vpop.f32.mrf.mxu0
  %v7356 = vadd.f32 0.0, %v7355
  %v7357 = vpop.f32.mrf.mxu0
  %7358 = vmatprep.mubr.f32.mxu0 %v7014
  %7359 = vmatmul.mubr.f32.gmra.mxu0 %v7013
  %v7360 = vpop.f32.mrf.mxu0
  %v7361 = vadd.f32 0.0, %v7360
  %v7362 = vpop.f32.mrf.mxu0
  %7363 = vmatprep.mubr.f32.mxu0 %v7016
  %7364 = vmatmul.mubr.f32.gmra.mxu0 %v7015
  %v7365 = vpop.f32.mrf.mxu0
  %v7366 = vadd.f32 0.0, %v7365
  %v7367 = vpop.f32.mrf.mxu0
  %7368 = vmatprep.mubr.f32.mxu0 %v7018
  %7369 = vmatmul.mubr.f32.gmra.mxu0 %v7017
  %v7370 = vpop.f32.mrf.mxu0
  %v7371 = vadd.f32 0.0, %v7370
  %v7372 = vpop.f32.mrf.mxu0
  %7373 = vmatprep.mubr.f32.mxu0 %v7020
  %7374 = vmatmul.mubr.f32.gmra.mxu0 %v7019
  %v7375 = vpop.f32.mrf.mxu0
  %v7376 = vadd.f32 0.0, %v7375
  %v7377 = vpop.f32.mrf.mxu0
  %7378 = vmatprep.mubr.f32.mxu0 %v7022
  %7379 = vmatmul.mubr.f32.gmra.mxu0 %v7021
  %v7380 = vpop.f32.mrf.mxu0
  %v7381 = vadd.f32 0.0, %v7380
  %v7382 = vpop.f32.mrf.mxu0
  %7383 = vmatprep.mubr.f32.mxu0 %v7024
  %7384 = vmatmul.mubr.f32.gmra.mxu0 %v7023
  %v7385 = vpop.f32.mrf.mxu0
  %v7386 = vadd.f32 0.0, %v7385
  %v7387 = vpop.f32.mrf.mxu0
  %7388 = vmatprep.mubr.f32.mxu0 %v7026
  %7389 = vmatmul.mubr.f32.gmra.mxu0 %v7025
  %v7390 = vpop.f32.mrf.mxu0
  %v7391 = vadd.f32 0.0, %v7390
  %v7392 = vpop.f32.mrf.mxu0
  %7393 = vmatprep.mubr.f32.mxu0 %v7028
  %7394 = vmatmul.mubr.f32.gmra.mxu0 %v7027
  %v7395 = vpop.f32.mrf.mxu0
  %v7396 = vadd.f32 0.0, %v7395
  %v7397 = vpop.f32.mrf.mxu0
  %7398 = vmatprep.mubr.f32.mxu0 %v7030
  %7399 = vmatmul.mubr.f32.gmra.mxu0 %v7029
  %v7400 = vpop.f32.mrf.mxu0
  %v7401 = vadd.f32 0.0, %v7400
  %v7402 = vpop.f32.mrf.mxu0
  %7403 = vmatprep.mubr.f32.mxu0 %v7032
  %7404 = vmatmul.mubr.f32.gmra.mxu0 %v7031
  %v7405 = vpop.f32.mrf.mxu0
  %v7406 = vadd.f32 0.0, %v7405
  %v7407 = vpop.f32.mrf.mxu0
  %7408 = vmatprep.mubr.f32.mxu0 %v7034
  %7409 = vmatmul.mubr.f32.gmra.mxu0 %v7033
  %v7410 = vpop.f32.mrf.mxu0
  %v7411 = vadd.f32 0.0, %v7410
  %v7412 = vpop.f32.mrf.mxu0
  %7413 = vmatprep.mubr.f32.mxu0 %v7036
  %7414 = vmatmul.mubr.f32.gmra.mxu0 %v7035
  %v7415 = vpop.f32.mrf.mxu0
  %v7416 = vadd.f32 0.0, %v7415
  %v7417 = vpop.f32.mrf.mxu0
  %7418 = vmatprep.mubr.f32.mxu0 %v7038
  %7419 = vmatmul.mubr.f32.gmra.mxu0 %v7037
  %v7420 = vpop.f32.mrf.mxu0
  %v7421 = vadd.f32 0.0, %v7420
  %v7422 = vpop.f32.mrf.mxu0
  %7423 = vmatprep.mubr.f32.mxu0 %v7040
  %7424 = vmatmul.mubr.f32.gmra.mxu0 %v7039
  %v7425 = vpop.f32.mrf.mxu0
  %v7426 = vadd.f32 0.0, %v7425
  %v7427 = vpop.f32.mrf.mxu0
  %7428 = vmatprep.mubr.f32.mxu0 %v7042
  %7429 = vmatmul.mubr.f32.gmra.mxu0 %v7041
  %v7430 = vpop.f32.mrf.mxu0
  %v7431 = vadd.f32 0.0, %v7430
  %v7432 = vpop.f32.mrf.mxu0
  %7433 = vmatprep.mubr.f32.mxu0 %v7044
  %7434 = vmatmul.mubr.f32.gmra.mxu0 %v7043
  %v7435 = vpop.f32.mrf.mxu0
  %v7436 = vadd.f32 0.0, %v7435
  %v7437 = vpop.f32.mrf.mxu0
  %7438 = vmatprep.mubr.f32.mxu0 %v7046
  %7439 = vmatmul.mubr.f32.gmra.mxu0 %v7045
  %v7440 = vpop.f32.mrf.mxu0
  %v7441 = vadd.f32 0.0, %v7440
  %v7442 = vpop.f32.mrf.mxu0
  %7443 = vmatprep.mubr.f32.mxu0 %v7048
  %7444 = vmatmul.mubr.f32.gmra.mxu0 %v7047
  %v7445 = vpop.f32.mrf.mxu0
  %v7446 = vadd.f32 0.0, %v7445
  %v7447 = vpop.f32.mrf.mxu0
  %7448 = vmatprep.mubr.f32.mxu0 %v7050
  %7449 = vmatmul.mubr.f32.gmra.mxu0 %v7049
  %v7450 = vpop.f32.mrf.mxu0
  %v7451 = vadd.f32 0.0, %v7450
  %v7452 = vpop.f32.mrf.mxu0
  %7453 = vmatprep.mubr.f32.mxu0 %v7052
  %7454 = vmatmul.mubr.f32.gmra.mxu0 %v7051
  %v7455 = vpop.f32.mrf.mxu0
  %v7456 = vadd.f32 0.0, %v7455
  %v7457 = vpop.f32.mrf.mxu0
  %7458 = vmatprep.mubr.f32.mxu0 %v7054
  %7459 = vmatmul.mubr.f32.gmra.mxu0 %v7053
  %v7460 = vpop.f32.mrf.mxu0
  %v7461 = vadd.f32 0.0, %v7460
  %v7462 = vpop.f32.mrf.mxu0
  %7463 = vmatprep.mubr.f32.mxu0 %v7056
  %7464 = vmatmul.mubr.f32.gmra.mxu0 %v7055
  %v7465 = vpop.f32.mrf.mxu0
  %v7466 = vadd.f32 0.0, %v7465
  %v7467 = vpop.f32.mrf.mxu0
  %7468 = vmatprep.mubr.f32.mxu0 %v7058
  %7469 = vmatmul.mubr.f32.gmra.mxu0 %v7057
  %v7470 = vpop.f32.mrf.mxu0
  %v7471 = vadd.f32 0.0, %v7470
  %v7472 = vpop.f32.mrf.mxu0
  %7473 = vmatprep.mubr.f32.mxu0 %v7060
  %7474 = vmatmul.mubr.f32.gmra.mxu0 %v7059
  %v7475 = vpop.f32.mrf.mxu0
  %v7476 = vadd.f32 0.0, %v7475
  %v7477 = vpop.f32.mrf.mxu0
  %7478 = vdwg.mxu0
  %v7479 = vadd.f32 %v6615, %v7161
  %v7480 = vadd.f32 %v6620, %v7166
  %v7481 = vadd.f32 %v6625, %v7171
  %v7482 = vadd.f32 %v6630, %v7176
  %v7483 = vadd.f32 %v6635, %v7181
  %v7484 = vadd.f32 %v6640, %v7186
  %v7485 = vadd.f32 %v6645, %v7191
  %v7486 = vadd.f32 %v6650, %v7196
  %v7487 = vadd.f32 %v6655, %v7201
  %v7488 = vadd.f32 %v6660, %v7206
  %v7489 = vadd.f32 %v6665, %v7211
  %v7490 = vadd.f32 %v6670, %v7216
  %v7491 = vadd.f32 %v6675, %v7221
  %v7492 = vadd.f32 %v6680, %v7226
  %v7493 = vadd.f32 %v6685, %v7231
  %v7494 = vadd.f32 %v6690, %v7236
  %v7495 = vadd.f32 %v6695, %v7241
  %v7496 = vadd.f32 %v6700, %v7246
  %v7497 = vadd.f32 %v6705, %v7251
  %v7498 = vadd.f32 %v6710, %v7256
  %v7499 = vadd.f32 %v6715, %v7261
  %v7500 = vadd.f32 %v6720, %v7266
  %v7501 = vadd.f32 %v6725, %v7271
  %v7502 = vadd.f32 %v6730, %v7276
  %v7503 = vadd.f32 %v6735, %v7281
  %v7504 = vadd.f32 %v6740, %v7286
  %v7505 = vadd.f32 %v6745, %v7291
  %v7506 = vadd.f32 %v6750, %v7296
  %v7507 = vadd.f32 %v6755, %v7301
  %v7508 = vadd.f32 %v6760, %v7306
  %v7509 = vadd.f32 %v6765, %v7311
  %v7510 = vadd.f32 %v6770, %v7316
  %v7511 = vadd.f32 %v6775, %v7321
  %v7512 = vadd.f32 %v6780, %v7326
  %v7513 = vadd.f32 %v6785, %v7331
  %v7514 = vadd.f32 %v6790, %v7336
  %v7515 = vadd.f32 %v6795, %v7341
  %v7516 = vadd.f32 %v6800, %v7346
  %v7517 = vadd.f32 %v6805, %v7351
  %v7518 = vadd.f32 %v6810, %v7356
  %v7519 = vadd.f32 %v6815, %v7361
  %v7520 = vadd.f32 %v6820, %v7366
  %v7521 = vadd.f32 %v6825, %v7371
  %v7522 = vadd.f32 %v6830, %v7376
  %v7523 = vadd.f32 %v6835, %v7381
  %v7524 = vadd.f32 %v6840, %v7386
  %v7525 = vadd.f32 %v6845, %v7391
  %v7526 = vadd.f32 %v6850, %v7396
  %v7527 = vadd.f32 %v6855, %v7401
  %v7528 = vadd.f32 %v6860, %v7406
  %v7529 = vadd.f32 %v6865, %v7411
  %v7530 = vadd.f32 %v6870, %v7416
  %v7531 = vadd.f32 %v6875, %v7421
  %v7532 = vadd.f32 %v6880, %v7426
  %v7533 = vadd.f32 %v6885, %v7431
  %v7534 = vadd.f32 %v6890, %v7436
  %v7535 = vadd.f32 %v6895, %v7441
  %v7536 = vadd.f32 %v6900, %v7446
  %v7537 = vadd.f32 %v6905, %v7451
  %v7538 = vadd.f32 %v6910, %v7456
  %v7539 = vadd.f32 %v6915, %v7461
  %v7540 = vadd.f32 %v6920, %v7466
  %v7541 = vadd.f32 %v6925, %v7471
  %v7542 = vadd.f32 %v6930, %v7476
  %v7543 = vld [vmem:[%s6] sm:$0x1]
  %v7545 = vlaneseq
  %v7546 = vshrl.u32 %v7545, 7
  %v7547 = vsub.s32 0, %v7546
  %v7548 = vrot.slane %v7543, %v7547
  %v7550 = vadd.f32 %v7479, %v7548
  %v7551 = vadd.f32 %v7480, %v7548
  %v7552 = vadd.f32 %v7481, %v7548
  %v7553 = vadd.f32 %v7482, %v7548
  %v7554 = vadd.f32 %v7483, %v7548
  %v7555 = vadd.f32 %v7484, %v7548
  %v7556 = vadd.f32 %v7485, %v7548
  %v7557 = vadd.f32 %v7486, %v7548
  %v7558 = vadd.f32 %v7487, %v7548
  %v7559 = vadd.f32 %v7488, %v7548
  %v7560 = vadd.f32 %v7489, %v7548
  %v7561 = vadd.f32 %v7490, %v7548
  %v7562 = vadd.f32 %v7491, %v7548
  %v7563 = vadd.f32 %v7492, %v7548
  %v7564 = vadd.f32 %v7493, %v7548
  %v7565 = vadd.f32 %v7494, %v7548
  %v7566 = vadd.f32 %v7495, %v7548
  %v7567 = vadd.f32 %v7496, %v7548
  %v7568 = vadd.f32 %v7497, %v7548
  %v7569 = vadd.f32 %v7498, %v7548
  %v7570 = vadd.f32 %v7499, %v7548
  %v7571 = vadd.f32 %v7500, %v7548
  %v7572 = vadd.f32 %v7501, %v7548
  %v7573 = vadd.f32 %v7502, %v7548
  %v7574 = vadd.f32 %v7503, %v7548
  %v7575 = vadd.f32 %v7504, %v7548
  %v7576 = vadd.f32 %v7505, %v7548
  %v7577 = vadd.f32 %v7506, %v7548
  %v7578 = vadd.f32 %v7507, %v7548
  %v7579 = vadd.f32 %v7508, %v7548
  %v7580 = vadd.f32 %v7509, %v7548
  %v7581 = vadd.f32 %v7510, %v7548
  %v7582 = vadd.f32 %v7511, %v7548
  %v7583 = vadd.f32 %v7512, %v7548
  %v7584 = vadd.f32 %v7513, %v7548
  %v7585 = vadd.f32 %v7514, %v7548
  %v7586 = vadd.f32 %v7515, %v7548
  %v7587 = vadd.f32 %v7516, %v7548
  %v7588 = vadd.f32 %v7517, %v7548
  %v7589 = vadd.f32 %v7518, %v7548
  %v7590 = vadd.f32 %v7519, %v7548
  %v7591 = vadd.f32 %v7520, %v7548
  %v7592 = vadd.f32 %v7521, %v7548
  %v7593 = vadd.f32 %v7522, %v7548
  %v7594 = vadd.f32 %v7523, %v7548
  %v7595 = vadd.f32 %v7524, %v7548
  %v7596 = vadd.f32 %v7525, %v7548
  %v7597 = vadd.f32 %v7526, %v7548
  %v7598 = vadd.f32 %v7527, %v7548
  %v7599 = vadd.f32 %v7528, %v7548
  %v7600 = vadd.f32 %v7529, %v7548
  %v7601 = vadd.f32 %v7530, %v7548
  %v7602 = vadd.f32 %v7531, %v7548
  %v7603 = vadd.f32 %v7532, %v7548
  %v7604 = vadd.f32 %v7533, %v7548
  %v7605 = vadd.f32 %v7534, %v7548
  %v7606 = vadd.f32 %v7535, %v7548
  %v7607 = vadd.f32 %v7536, %v7548
  %v7608 = vadd.f32 %v7537, %v7548
  %v7609 = vadd.f32 %v7538, %v7548
  %v7610 = vadd.f32 %v7539, %v7548
  %v7611 = vadd.f32 %v7540, %v7548
  %v7612 = vadd.f32 %v7541, %v7548
  %v7613 = vadd.f32 %v7542, %v7548
  %v7614 = vmax.f32 %v7550, 0.0
  %v7615 = vmax.f32 %v7551, 0.0
  %v7616 = vmax.f32 %v7552, 0.0
  %v7617 = vmax.f32 %v7553, 0.0
  %v7618 = vmax.f32 %v7554, 0.0
  %v7619 = vmax.f32 %v7555, 0.0
  %v7620 = vmax.f32 %v7556, 0.0
  %v7621 = vmax.f32 %v7557, 0.0
  %v7622 = vmax.f32 %v7558, 0.0
  %v7623 = vmax.f32 %v7559, 0.0
  %v7624 = vmax.f32 %v7560, 0.0
  %v7625 = vmax.f32 %v7561, 0.0
  %v7626 = vmax.f32 %v7562, 0.0
  %v7627 = vmax.f32 %v7563, 0.0
  %v7628 = vmax.f32 %v7564, 0.0
  %v7629 = vmax.f32 %v7565, 0.0
  %v7630 = vmax.f32 %v7566, 0.0
  %v7631 = vmax.f32 %v7567, 0.0
  %v7632 = vmax.f32 %v7568, 0.0
  %v7633 = vmax.f32 %v7569, 0.0
  %v7634 = vmax.f32 %v7570, 0.0
  %v7635 = vmax.f32 %v7571, 0.0
  %v7636 = vmax.f32 %v7572, 0.0
  %v7637 = vmax.f32 %v7573, 0.0
  %v7638 = vmax.f32 %v7574, 0.0
  %v7639 = vmax.f32 %v7575, 0.0
  %v7640 = vmax.f32 %v7576, 0.0
  %v7641 = vmax.f32 %v7577, 0.0
  %v7642 = vmax.f32 %v7578, 0.0
  %v7643 = vmax.f32 %v7579, 0.0
  %v7644 = vmax.f32 %v7580, 0.0
  %v7645 = vmax.f32 %v7581, 0.0
  %v7646 = vmax.f32 %v7582, 0.0
  %v7647 = vmax.f32 %v7583, 0.0
  %v7648 = vmax.f32 %v7584, 0.0
  %v7649 = vmax.f32 %v7585, 0.0
  %v7650 = vmax.f32 %v7586, 0.0
  %v7651 = vmax.f32 %v7587, 0.0
  %v7652 = vmax.f32 %v7588, 0.0
  %v7653 = vmax.f32 %v7589, 0.0
  %v7654 = vmax.f32 %v7590, 0.0
  %v7655 = vmax.f32 %v7591, 0.0
  %v7656 = vmax.f32 %v7592, 0.0
  %v7657 = vmax.f32 %v7593, 0.0
  %v7658 = vmax.f32 %v7594, 0.0
  %v7659 = vmax.f32 %v7595, 0.0
  %v7660 = vmax.f32 %v7596, 0.0
  %v7661 = vmax.f32 %v7597, 0.0
  %v7662 = vmax.f32 %v7598, 0.0
  %v7663 = vmax.f32 %v7599, 0.0
  %v7664 = vmax.f32 %v7600, 0.0
  %v7665 = vmax.f32 %v7601, 0.0
  %v7666 = vmax.f32 %v7602, 0.0
  %v7667 = vmax.f32 %v7603, 0.0
  %v7668 = vmax.f32 %v7604, 0.0
  %v7669 = vmax.f32 %v7605, 0.0
  %v7670 = vmax.f32 %v7606, 0.0
  %v7671 = vmax.f32 %v7607, 0.0
  %v7672 = vmax.f32 %v7608, 0.0
  %v7673 = vmax.f32 %v7609, 0.0
  %v7674 = vmax.f32 %v7610, 0.0
  %v7675 = vmax.f32 %v7611, 0.0
  %v7676 = vmax.f32 %v7612, 0.0
  %v7677 = vmax.f32 %v7613, 0.0
  %v7678 = vld [vmem:[%s7] sm:$0xff]
  %v7679 = vld [vmem:[%s7 + $0x8] sm:$0xff]
  %v7680 = vld [vmem:[%s7 + $0x10] sm:$0xff]
  %v7681 = vld [vmem:[%s7 + $0x18] sm:$0xff]
  %vm7682 = vcmask 261120
  %v7684 = vsel %vm7682, %v7614, 0
  %v7687 = vsel %vm7682, %v7615, 0
  %v7690 = vsel %vm7682, %v7616, 0
  %v7693 = vsel %vm7682, %v7617, 0
  %v7696 = vsel %vm7682, %v7618, 0
  %v7699 = vsel %vm7682, %v7619, 0
  %v7702 = vsel %vm7682, %v7620, 0
  %v7705 = vsel %vm7682, %v7621, 0
  %v7708 = vsel %vm7682, %v7622, 0
  %v7711 = vsel %vm7682, %v7623, 0
  %v7714 = vsel %vm7682, %v7624, 0
  %v7717 = vsel %vm7682, %v7625, 0
  %v7720 = vsel %vm7682, %v7626, 0
  %v7723 = vsel %vm7682, %v7627, 0
  %v7726 = vsel %vm7682, %v7628, 0
  %v7729 = vsel %vm7682, %v7629, 0
  %v7732 = vsel %vm7682, %v7630, 0
  %v7735 = vsel %vm7682, %v7631, 0
  %v7738 = vsel %vm7682, %v7632, 0
  %v7741 = vsel %vm7682, %v7633, 0
  %v7744 = vsel %vm7682, %v7634, 0
  %v7747 = vsel %vm7682, %v7635, 0
  %v7750 = vsel %vm7682, %v7636, 0
  %v7753 = vsel %vm7682, %v7637, 0
  %v7756 = vsel %vm7682, %v7638, 0
  %v7759 = vsel %vm7682, %v7639, 0
  %v7762 = vsel %vm7682, %v7640, 0
  %v7765 = vsel %vm7682, %v7641, 0
  %v7768 = vsel %vm7682, %v7642, 0
  %v7771 = vsel %vm7682, %v7643, 0
  %v7774 = vsel %vm7682, %v7644, 0
  %v7777 = vsel %vm7682, %v7645, 0
  %v7780 = vsel %vm7682, %v7646, 0
  %v7783 = vsel %vm7682, %v7647, 0
  %v7786 = vsel %vm7682, %v7648, 0
  %v7789 = vsel %vm7682, %v7649, 0
  %v7792 = vsel %vm7682, %v7650, 0
  %v7795 = vsel %vm7682, %v7651, 0
  %v7798 = vsel %vm7682, %v7652, 0
  %v7801 = vsel %vm7682, %v7653, 0
  %v7804 = vsel %vm7682, %v7654, 0
  %v7807 = vsel %vm7682, %v7655, 0
  %v7810 = vsel %vm7682, %v7656, 0
  %v7813 = vsel %vm7682, %v7657, 0
  %v7816 = vsel %vm7682, %v7658, 0
  %v7819 = vsel %vm7682, %v7659, 0
  %v7822 = vsel %vm7682, %v7660, 0
  %v7825 = vsel %vm7682, %v7661, 0
  %v7828 = vsel %vm7682, %v7662, 0
  %v7831 = vsel %vm7682, %v7663, 0
  %v7834 = vsel %vm7682, %v7664, 0
  %v7837 = vsel %vm7682, %v7665, 0
  %v7840 = vsel %vm7682, %v7666, 0
  %v7843 = vsel %vm7682, %v7667, 0
  %v7846 = vsel %vm7682, %v7668, 0
  %v7849 = vsel %vm7682, %v7669, 0
  %v7852 = vsel %vm7682, %v7670, 0
  %v7855 = vsel %vm7682, %v7671, 0
  %v7858 = vsel %vm7682, %v7672, 0
  %v7861 = vsel %vm7682, %v7673, 0
  %v7864 = vsel %vm7682, %v7674, 0
  %v7867 = vsel %vm7682, %v7675, 0
  %v7870 = vsel %vm7682, %v7676, 0
  %v7873 = vsel %vm7682, %v7677, 0
  %7875 = vmatprep.subr.mxu0 0.0
  %7876 = vmatpush1.msra.mxu0 0.0
  %7877 = vmatprep.subr.mxu0 0.0
  %7878 = vmatpush1.msra.mxu0 0.0
  %7879 = vmatprep.subr.mxu0 0.0
  %7880 = vmatpush1.msra.mxu0 0.0
  %7881 = vmatprep.subr.mxu0 0.0
  %7882 = vmatpush1.msra.mxu0 0.0
  %7883 = vmatprep.subr.mxu0 0.0
  %7884 = vmatpush1.msra.mxu0 0.0
  %7885 = vmatprep.subr.mxu0 0.0
  %7886 = vmatpush1.msra.mxu0 0.0
  %7887 = vmatprep.subr.mxu0 0.0
  %7888 = vmatpush1.msra.mxu0 0.0
  %7889 = vmatprep.subr.mxu0 0.0
  %7890 = vmatpush1.msra.mxu0 0.0
  %7891 = vmatprep.subr.mxu0 0.0
  %7892 = vmatpush1.msra.mxu0 0.0
  %7893 = vmatprep.subr.mxu0 0.0
  %7894 = vmatpush1.msra.mxu0 0.0
  %7895 = vmatprep.subr.mxu0 0.0
  %7896 = vmatpush1.msra.mxu0 0.0
  %7897 = vmatprep.subr.mxu0 0.0
  %7898 = vmatpush1.msra.mxu0 0.0
  %7899 = vmatprep.subr.mxu0 0.0
  %7900 = vmatpush1.msra.mxu0 %v7681
  %7901 = vmatprep.subr.mxu0 0.0
  %7902 = vmatpush1.msra.mxu0 %v7680
  %7903 = vmatprep.subr.mxu0 0.0
  %7904 = vmatpush1.msra.mxu0 %v7679
  %7905 = vmatprep.subr.mxu0 0.0
  %7906 = vmatpush1.msra.mxu0 %v7678
  %7907 = vmatprep.subr.mxu0 0.0
  %7908 = vmatpush2.msra.mxu0 0.0
  %7909 = vmatprep.subr.mxu0 0.0
  %7910 = vmatpush2.msra.mxu0 0.0
  %7911 = vmatprep.subr.mxu0 0.0
  %7912 = vmatpush2.msra.mxu0 0.0
  %7913 = vmatprep.subr.mxu0 0.0
  %7914 = vmatpush2.msra.mxu0 0.0
  %7915 = vmatprep.subr.mxu0 0.0
  %7916 = vmatpush2.msra.mxu0 0.0
  %7917 = vmatprep.subr.mxu0 0.0
  %7918 = vmatpush2.msra.mxu0 0.0
  %7919 = vmatprep.subr.mxu0 0.0
  %7920 = vmatpush2.msra.mxu0 0.0
  %7921 = vmatprep.subr.mxu0 0.0
  %7922 = vmatpush2.msra.mxu0 0.0
  %7923 = vmatprep.subr.mxu0 0.0
  %7924 = vmatpush2.msra.mxu0 0.0
  %7925 = vmatprep.subr.mxu0 0.0
  %7926 = vmatpush2.msra.mxu0 0.0
  %7927 = vmatprep.subr.mxu0 0.0
  %7928 = vmatpush2.msra.mxu0 0.0
  %7929 = vmatprep.subr.mxu0 0.0
  %7930 = vmatpush2.msra.mxu0 0.0
  %7931 = vmatprep.subr.mxu0 0.0
  %7932 = vmatpush2.msra.mxu0 0.0
  %7933 = vmatprep.subr.mxu0 0.0
  %7934 = vmatpush2.msra.mxu0 0.0
  %7935 = vmatprep.subr.mxu0 0.0
  %7936 = vmatpush2.msra.mxu0 0.0
  %7937 = vmatprep.subr.mxu0 0.0
  %7938 = vmatpush2.msra.mxu0 0.0
  %7939 = vmatprep.mubr.f32.mxu0 0.0
  %7940 = vmatmul.mubr.f32.gmra.mxu0 %v7684
  %v7941 = vpop.f32.mrf.mxu0
  %v7942 = vadd.f32 0.0, %v7941
  %v7943 = vpop.f32.mrf.mxu0
  %7944 = vmatprep.mubr.f32.mxu0 0.0
  %7945 = vmatmul.mubr.f32.gmra.mxu0 %v7687
  %v7946 = vpop.f32.mrf.mxu0
  %v7947 = vadd.f32 0.0, %v7946
  %v7948 = vpop.f32.mrf.mxu0
  %7949 = vmatprep.mubr.f32.mxu0 0.0
  %7950 = vmatmul.mubr.f32.gmra.mxu0 %v7690
  %v7951 = vpop.f32.mrf.mxu0
  %v7952 = vadd.f32 0.0, %v7951
  %v7953 = vpop.f32.mrf.mxu0
  %7954 = vmatprep.mubr.f32.mxu0 0.0
  %7955 = vmatmul.mubr.f32.gmra.mxu0 %v7693
  %v7956 = vpop.f32.mrf.mxu0
  %v7957 = vadd.f32 0.0, %v7956
  %v7958 = vpop.f32.mrf.mxu0
  %7959 = vmatprep.mubr.f32.mxu0 0.0
  %7960 = vmatmul.mubr.f32.gmra.mxu0 %v7696
  %v7961 = vpop.f32.mrf.mxu0
  %v7962 = vadd.f32 0.0, %v7961
  %v7963 = vpop.f32.mrf.mxu0
  %7964 = vmatprep.mubr.f32.mxu0 0.0
  %7965 = vmatmul.mubr.f32.gmra.mxu0 %v7699
  %v7966 = vpop.f32.mrf.mxu0
  %v7967 = vadd.f32 0.0, %v7966
  %v7968 = vpop.f32.mrf.mxu0
  %7969 = vmatprep.mubr.f32.mxu0 0.0
  %7970 = vmatmul.mubr.f32.gmra.mxu0 %v7702
  %v7971 = vpop.f32.mrf.mxu0
  %v7972 = vadd.f32 0.0, %v7971
  %v7973 = vpop.f32.mrf.mxu0
  %7974 = vmatprep.mubr.f32.mxu0 0.0
  %7975 = vmatmul.mubr.f32.gmra.mxu0 %v7705
  %v7976 = vpop.f32.mrf.mxu0
  %v7977 = vadd.f32 0.0, %v7976
  %v7978 = vpop.f32.mrf.mxu0
  %7979 = vmatprep.mubr.f32.mxu0 0.0
  %7980 = vmatmul.mubr.f32.gmra.mxu0 %v7708
  %v7981 = vpop.f32.mrf.mxu0
  %v7982 = vadd.f32 0.0, %v7981
  %v7983 = vpop.f32.mrf.mxu0
  %7984 = vmatprep.mubr.f32.mxu0 0.0
  %7985 = vmatmul.mubr.f32.gmra.mxu0 %v7711
  %v7986 = vpop.f32.mrf.mxu0
  %v7987 = vadd.f32 0.0, %v7986
  %v7988 = vpop.f32.mrf.mxu0
  %7989 = vmatprep.mubr.f32.mxu0 0.0
  %7990 = vmatmul.mubr.f32.gmra.mxu0 %v7714
  %v7991 = vpop.f32.mrf.mxu0
  %v7992 = vadd.f32 0.0, %v7991
  %v7993 = vpop.f32.mrf.mxu0
  %7994 = vmatprep.mubr.f32.mxu0 0.0
  %7995 = vmatmul.mubr.f32.gmra.mxu0 %v7717
  %v7996 = vpop.f32.mrf.mxu0
  %v7997 = vadd.f32 0.0, %v7996
  %v7998 = vpop.f32.mrf.mxu0
  %7999 = vmatprep.mubr.f32.mxu0 0.0
  %8000 = vmatmul.mubr.f32.gmra.mxu0 %v7720
  %v8001 = vpop.f32.mrf.mxu0
  %v8002 = vadd.f32 0.0, %v8001
  %v8003 = vpop.f32.mrf.mxu0
  %8004 = vmatprep.mubr.f32.mxu0 0.0
  %8005 = vmatmul.mubr.f32.gmra.mxu0 %v7723
  %v8006 = vpop.f32.mrf.mxu0
  %v8007 = vadd.f32 0.0, %v8006
  %v8008 = vpop.f32.mrf.mxu0
  %8009 = vmatprep.mubr.f32.mxu0 0.0
  %8010 = vmatmul.mubr.f32.gmra.mxu0 %v7726
  %v8011 = vpop.f32.mrf.mxu0
  %v8012 = vadd.f32 0.0, %v8011
  %v8013 = vpop.f32.mrf.mxu0
  %8014 = vmatprep.mubr.f32.mxu0 0.0
  %8015 = vmatmul.mubr.f32.gmra.mxu0 %v7729
  %v8016 = vpop.f32.mrf.mxu0
  %v8017 = vadd.f32 0.0, %v8016
  %v8018 = vpop.f32.mrf.mxu0
  %8019 = vmatprep.mubr.f32.mxu0 0.0
  %8020 = vmatmul.mubr.f32.gmra.mxu0 %v7732
  %v8021 = vpop.f32.mrf.mxu0
  %v8022 = vadd.f32 0.0, %v8021
  %v8023 = vpop.f32.mrf.mxu0
  %8024 = vmatprep.mubr.f32.mxu0 0.0
  %8025 = vmatmul.mubr.f32.gmra.mxu0 %v7735
  %v8026 = vpop.f32.mrf.mxu0
  %v8027 = vadd.f32 0.0, %v8026
  %v8028 = vpop.f32.mrf.mxu0
  %8029 = vmatprep.mubr.f32.mxu0 0.0
  %8030 = vmatmul.mubr.f32.gmra.mxu0 %v7738
  %v8031 = vpop.f32.mrf.mxu0
  %v8032 = vadd.f32 0.0, %v8031
  %v8033 = vpop.f32.mrf.mxu0
  %8034 = vmatprep.mubr.f32.mxu0 0.0
  %8035 = vmatmul.mubr.f32.gmra.mxu0 %v7741
  %v8036 = vpop.f32.mrf.mxu0
  %v8037 = vadd.f32 0.0, %v8036
  %v8038 = vpop.f32.mrf.mxu0
  %8039 = vmatprep.mubr.f32.mxu0 0.0
  %8040 = vmatmul.mubr.f32.gmra.mxu0 %v7744
  %v8041 = vpop.f32.mrf.mxu0
  %v8042 = vadd.f32 0.0, %v8041
  %v8043 = vpop.f32.mrf.mxu0
  %8044 = vmatprep.mubr.f32.mxu0 0.0
  %8045 = vmatmul.mubr.f32.gmra.mxu0 %v7747
  %v8046 = vpop.f32.mrf.mxu0
  %v8047 = vadd.f32 0.0, %v8046
  %v8048 = vpop.f32.mrf.mxu0
  %8049 = vmatprep.mubr.f32.mxu0 0.0
  %8050 = vmatmul.mubr.f32.gmra.mxu0 %v7750
  %v8051 = vpop.f32.mrf.mxu0
  %v8052 = vadd.f32 0.0, %v8051
  %v8053 = vpop.f32.mrf.mxu0
  %8054 = vmatprep.mubr.f32.mxu0 0.0
  %8055 = vmatmul.mubr.f32.gmra.mxu0 %v7753
  %v8056 = vpop.f32.mrf.mxu0
  %v8057 = vadd.f32 0.0, %v8056
  %v8058 = vpop.f32.mrf.mxu0
  %8059 = vmatprep.mubr.f32.mxu0 0.0
  %8060 = vmatmul.mubr.f32.gmra.mxu0 %v7756
  %v8061 = vpop.f32.mrf.mxu0
  %v8062 = vadd.f32 0.0, %v8061
  %v8063 = vpop.f32.mrf.mxu0
  %8064 = vmatprep.mubr.f32.mxu0 0.0
  %8065 = vmatmul.mubr.f32.gmra.mxu0 %v7759
  %v8066 = vpop.f32.mrf.mxu0
  %v8067 = vadd.f32 0.0, %v8066
  %v8068 = vpop.f32.mrf.mxu0
  %8069 = vmatprep.mubr.f32.mxu0 0.0
  %8070 = vmatmul.mubr.f32.gmra.mxu0 %v7762
  %v8071 = vpop.f32.mrf.mxu0
  %v8072 = vadd.f32 0.0, %v8071
  %v8073 = vpop.f32.mrf.mxu0
  %8074 = vmatprep.mubr.f32.mxu0 0.0
  %8075 = vmatmul.mubr.f32.gmra.mxu0 %v7765
  %v8076 = vpop.f32.mrf.mxu0
  %v8077 = vadd.f32 0.0, %v8076
  %v8078 = vpop.f32.mrf.mxu0
  %8079 = vmatprep.mubr.f32.mxu0 0.0
  %8080 = vmatmul.mubr.f32.gmra.mxu0 %v7768
  %v8081 = vpop.f32.mrf.mxu0
  %v8082 = vadd.f32 0.0, %v8081
  %v8083 = vpop.f32.mrf.mxu0
  %8084 = vmatprep.mubr.f32.mxu0 0.0
  %8085 = vmatmul.mubr.f32.gmra.mxu0 %v7771
  %v8086 = vpop.f32.mrf.mxu0
  %v8087 = vadd.f32 0.0, %v8086
  %v8088 = vpop.f32.mrf.mxu0
  %8089 = vmatprep.mubr.f32.mxu0 0.0
  %8090 = vmatmul.mubr.f32.gmra.mxu0 %v7774
  %v8091 = vpop.f32.mrf.mxu0
  %v8092 = vadd.f32 0.0, %v8091
  %v8093 = vpop.f32.mrf.mxu0
  %8094 = vmatprep.mubr.f32.mxu0 0.0
  %8095 = vmatmul.mubr.f32.gmra.mxu0 %v7777
  %v8096 = vpop.f32.mrf.mxu0
  %v8097 = vadd.f32 0.0, %v8096
  %v8098 = vpop.f32.mrf.mxu0
  %8099 = vmatprep.mubr.f32.mxu0 0.0
  %8100 = vmatmul.mubr.f32.gmra.mxu0 %v7780
  %v8101 = vpop.f32.mrf.mxu0
  %v8102 = vadd.f32 0.0, %v8101
  %v8103 = vpop.f32.mrf.mxu0
  %8104 = vmatprep.mubr.f32.mxu0 0.0
  %8105 = vmatmul.mubr.f32.gmra.mxu0 %v7783
  %v8106 = vpop.f32.mrf.mxu0
  %v8107 = vadd.f32 0.0, %v8106
  %v8108 = vpop.f32.mrf.mxu0
  %8109 = vmatprep.mubr.f32.mxu0 0.0
  %8110 = vmatmul.mubr.f32.gmra.mxu0 %v7786
  %v8111 = vpop.f32.mrf.mxu0
  %v8112 = vadd.f32 0.0, %v8111
  %v8113 = vpop.f32.mrf.mxu0
  %8114 = vmatprep.mubr.f32.mxu0 0.0
  %8115 = vmatmul.mubr.f32.gmra.mxu0 %v7789
  %v8116 = vpop.f32.mrf.mxu0
  %v8117 = vadd.f32 0.0, %v8116
  %v8118 = vpop.f32.mrf.mxu0
  %8119 = vmatprep.mubr.f32.mxu0 0.0
  %8120 = vmatmul.mubr.f32.gmra.mxu0 %v7792
  %v8121 = vpop.f32.mrf.mxu0
  %v8122 = vadd.f32 0.0, %v8121
  %v8123 = vpop.f32.mrf.mxu0
  %8124 = vmatprep.mubr.f32.mxu0 0.0
  %8125 = vmatmul.mubr.f32.gmra.mxu0 %v7795
  %v8126 = vpop.f32.mrf.mxu0
  %v8127 = vadd.f32 0.0, %v8126
  %v8128 = vpop.f32.mrf.mxu0
  %8129 = vmatprep.mubr.f32.mxu0 0.0
  %8130 = vmatmul.mubr.f32.gmra.mxu0 %v7798
  %v8131 = vpop.f32.mrf.mxu0
  %v8132 = vadd.f32 0.0, %v8131
  %v8133 = vpop.f32.mrf.mxu0
  %8134 = vmatprep.mubr.f32.mxu0 0.0
  %8135 = vmatmul.mubr.f32.gmra.mxu0 %v7801
  %v8136 = vpop.f32.mrf.mxu0
  %v8137 = vadd.f32 0.0, %v8136
  %v8138 = vpop.f32.mrf.mxu0
  %8139 = vmatprep.mubr.f32.mxu0 0.0
  %8140 = vmatmul.mubr.f32.gmra.mxu0 %v7804
  %v8141 = vpop.f32.mrf.mxu0
  %v8142 = vadd.f32 0.0, %v8141
  %v8143 = vpop.f32.mrf.mxu0
  %8144 = vmatprep.mubr.f32.mxu0 0.0
  %8145 = vmatmul.mubr.f32.gmra.mxu0 %v7807
  %v8146 = vpop.f32.mrf.mxu0
  %v8147 = vadd.f32 0.0, %v8146
  %v8148 = vpop.f32.mrf.mxu0
  %8149 = vmatprep.mubr.f32.mxu0 0.0
  %8150 = vmatmul.mubr.f32.gmra.mxu0 %v7810
  %v8151 = vpop.f32.mrf.mxu0
  %v8152 = vadd.f32 0.0, %v8151
  %v8153 = vpop.f32.mrf.mxu0
  %8154 = vmatprep.mubr.f32.mxu0 0.0
  %8155 = vmatmul.mubr.f32.gmra.mxu0 %v7813
  %v8156 = vpop.f32.mrf.mxu0
  %v8157 = vadd.f32 0.0, %v8156
  %v8158 = vpop.f32.mrf.mxu0
  %8159 = vmatprep.mubr.f32.mxu0 0.0
  %8160 = vmatmul.mubr.f32.gmra.mxu0 %v7816
  %v8161 = vpop.f32.mrf.mxu0
  %v8162 = vadd.f32 0.0, %v8161
  %v8163 = vpop.f32.mrf.mxu0
  %8164 = vmatprep.mubr.f32.mxu0 0.0
  %8165 = vmatmul.mubr.f32.gmra.mxu0 %v7819
  %v8166 = vpop.f32.mrf.mxu0
  %v8167 = vadd.f32 0.0, %v8166
  %v8168 = vpop.f32.mrf.mxu0
  %8169 = vmatprep.mubr.f32.mxu0 0.0
  %8170 = vmatmul.mubr.f32.gmra.mxu0 %v7822
  %v8171 = vpop.f32.mrf.mxu0
  %v8172 = vadd.f32 0.0, %v8171
  %v8173 = vpop.f32.mrf.mxu0
  %8174 = vmatprep.mubr.f32.mxu0 0.0
  %8175 = vmatmul.mubr.f32.gmra.mxu0 %v7825
  %v8176 = vpop.f32.mrf.mxu0
  %v8177 = vadd.f32 0.0, %v8176
  %v8178 = vpop.f32.mrf.mxu0
  %8179 = vmatprep.mubr.f32.mxu0 0.0
  %8180 = vmatmul.mubr.f32.gmra.mxu0 %v7828
  %v8181 = vpop.f32.mrf.mxu0
  %v8182 = vadd.f32 0.0, %v8181
  %v8183 = vpop.f32.mrf.mxu0
  %8184 = vmatprep.mubr.f32.mxu0 0.0
  %8185 = vmatmul.mubr.f32.gmra.mxu0 %v7831
  %v8186 = vpop.f32.mrf.mxu0
  %v8187 = vadd.f32 0.0, %v8186
  %v8188 = vpop.f32.mrf.mxu0
  %8189 = vmatprep.mubr.f32.mxu0 0.0
  %8190 = vmatmul.mubr.f32.gmra.mxu0 %v7834
  %v8191 = vpop.f32.mrf.mxu0
  %v8192 = vadd.f32 0.0, %v8191
  %v8193 = vpop.f32.mrf.mxu0
  %8194 = vmatprep.mubr.f32.mxu0 0.0
  %8195 = vmatmul.mubr.f32.gmra.mxu0 %v7837
  %v8196 = vpop.f32.mrf.mxu0
  %v8197 = vadd.f32 0.0, %v8196
  %v8198 = vpop.f32.mrf.mxu0
  %8199 = vmatprep.mubr.f32.mxu0 0.0
  %8200 = vmatmul.mubr.f32.gmra.mxu0 %v7840
  %v8201 = vpop.f32.mrf.mxu0
  %v8202 = vadd.f32 0.0, %v8201
  %v8203 = vpop.f32.mrf.mxu0
  %8204 = vmatprep.mubr.f32.mxu0 0.0
  %8205 = vmatmul.mubr.f32.gmra.mxu0 %v7843
  %v8206 = vpop.f32.mrf.mxu0
  %v8207 = vadd.f32 0.0, %v8206
  %v8208 = vpop.f32.mrf.mxu0
  %8209 = vmatprep.mubr.f32.mxu0 0.0
  %8210 = vmatmul.mubr.f32.gmra.mxu0 %v7846
  %v8211 = vpop.f32.mrf.mxu0
  %v8212 = vadd.f32 0.0, %v8211
  %v8213 = vpop.f32.mrf.mxu0
  %8214 = vmatprep.mubr.f32.mxu0 0.0
  %8215 = vmatmul.mubr.f32.gmra.mxu0 %v7849
  %v8216 = vpop.f32.mrf.mxu0
  %v8217 = vadd.f32 0.0, %v8216
  %v8218 = vpop.f32.mrf.mxu0
  %8219 = vmatprep.mubr.f32.mxu0 0.0
  %8220 = vmatmul.mubr.f32.gmra.mxu0 %v7852
  %v8221 = vpop.f32.mrf.mxu0
  %v8222 = vadd.f32 0.0, %v8221
  %v8223 = vpop.f32.mrf.mxu0
  %8224 = vmatprep.mubr.f32.mxu0 0.0
  %8225 = vmatmul.mubr.f32.gmra.mxu0 %v7855
  %v8226 = vpop.f32.mrf.mxu0
  %v8227 = vadd.f32 0.0, %v8226
  %v8228 = vpop.f32.mrf.mxu0
  %8229 = vmatprep.mubr.f32.mxu0 0.0
  %8230 = vmatmul.mubr.f32.gmra.mxu0 %v7858
  %v8231 = vpop.f32.mrf.mxu0
  %v8232 = vadd.f32 0.0, %v8231
  %v8233 = vpop.f32.mrf.mxu0
  %8234 = vmatprep.mubr.f32.mxu0 0.0
  %8235 = vmatmul.mubr.f32.gmra.mxu0 %v7861
  %v8236 = vpop.f32.mrf.mxu0
  %v8237 = vadd.f32 0.0, %v8236
  %v8238 = vpop.f32.mrf.mxu0
  %8239 = vmatprep.mubr.f32.mxu0 0.0
  %8240 = vmatmul.mubr.f32.gmra.mxu0 %v7864
  %v8241 = vpop.f32.mrf.mxu0
  %v8242 = vadd.f32 0.0, %v8241
  %v8243 = vpop.f32.mrf.mxu0
  %8244 = vmatprep.mubr.f32.mxu0 0.0
  %8245 = vmatmul.mubr.f32.gmra.mxu0 %v7867
  %v8246 = vpop.f32.mrf.mxu0
  %v8247 = vadd.f32 0.0, %v8246
  %v8248 = vpop.f32.mrf.mxu0
  %8249 = vmatprep.mubr.f32.mxu0 0.0
  %8250 = vmatmul.mubr.f32.gmra.mxu0 %v7870
  %v8251 = vpop.f32.mrf.mxu0
  %v8252 = vadd.f32 0.0, %v8251
  %v8253 = vpop.f32.mrf.mxu0
  %8254 = vmatprep.mubr.f32.mxu0 0.0
  %8255 = vmatmul.mubr.f32.gmra.mxu0 %v7873
  %v8256 = vpop.f32.mrf.mxu0
  %v8257 = vadd.f32 0.0, %v8256
  %v8258 = vpop.f32.mrf.mxu0
  %8259 = vdwg.mxu0
  %v8260 = vld [vmem:[%s9] sm:$0xff]
  %v8261 = vld [vmem:[%s9 + $0x8] sm:$0xff]
  %v8262 = vld [vmem:[%s9 + $0x10] sm:$0xff]
  %v8263 = vld [vmem:[%s9 + $0x18] sm:$0xff]
  %v8264 = vld [vmem:[%s9 + $0x20] sm:$0xff]
  %v8265 = vld [vmem:[%s9 + $0x28] sm:$0xff]
  %v8266 = vld [vmem:[%s9 + $0x30] sm:$0xff]
  %v8267 = vld [vmem:[%s9 + $0x38] sm:$0xff]
  %v8268 = vld [vmem:[%s9 + $0x40] sm:$0xff]
  %v8269 = vld [vmem:[%s9 + $0x48] sm:$0xff]
  %v8270 = vld [vmem:[%s9 + $0x50] sm:$0xff]
  %v8271 = vld [vmem:[%s9 + $0x58] sm:$0xff]
  %v8272 = vld [vmem:[%s9 + $0x60] sm:$0xff]
  %v8273 = vld [vmem:[%s9 + $0x68] sm:$0xff]
  %v8274 = vld [vmem:[%s9 + $0x70] sm:$0xff]
  %v8275 = vld [vmem:[%s9 + $0x78] sm:$0xff]
  %v8276 = vld [vmem:[%s9 + $0x80] sm:$0xff]
  %v8277 = vld [vmem:[%s9 + $0x88] sm:$0xff]
  %v8278 = vld [vmem:[%s9 + $0x90] sm:$0xff]
  %v8279 = vld [vmem:[%s9 + $0x98] sm:$0xff]
  %v8280 = vld [vmem:[%s9 + $0xa0] sm:$0xff]
  %v8281 = vld [vmem:[%s9 + $0xa8] sm:$0xff]
  %v8282 = vld [vmem:[%s9 + $0xb0] sm:$0xff]
  %v8283 = vld [vmem:[%s9 + $0xb8] sm:$0xff]
  %v8284 = vld [vmem:[%s9 + $0xc0] sm:$0xff]
  %v8285 = vld [vmem:[%s9 + $0xc8] sm:$0xff]
  %v8286 = vld [vmem:[%s9 + $0xd0] sm:$0xff]
  %v8287 = vld [vmem:[%s9 + $0xd8] sm:$0xff]
  %v8288 = vld [vmem:[%s9 + $0xe0] sm:$0xff]
  %v8289 = vld [vmem:[%s9 + $0xe8] sm:$0xff]
  %v8290 = vld [vmem:[%s9 + $0xf0] sm:$0xff]
  %v8291 = vld [vmem:[%s9 + $0xf8] sm:$0xff]
  %v8292 = vld [vmem:[%s9 + $0x100] sm:$0xff]
  %v8293 = vld [vmem:[%s9 + $0x108] sm:$0xff]
  %v8294 = vld [vmem:[%s9 + $0x110] sm:$0xff]
  %v8295 = vld [vmem:[%s9 + $0x118] sm:$0xff]
  %v8296 = vld [vmem:[%s9 + $0x120] sm:$0xff]
  %v8297 = vld [vmem:[%s9 + $0x128] sm:$0xff]
  %v8298 = vld [vmem:[%s9 + $0x130] sm:$0xff]
  %v8299 = vld [vmem:[%s9 + $0x138] sm:$0xff]
  %v8300 = vld [vmem:[%s9 + $0x140] sm:$0xff]
  %v8301 = vld [vmem:[%s9 + $0x148] sm:$0xff]
  %v8302 = vld [vmem:[%s9 + $0x150] sm:$0xff]
  %v8303 = vld [vmem:[%s9 + $0x158] sm:$0xff]
  %v8304 = vld [vmem:[%s9 + $0x160] sm:$0xff]
  %v8305 = vld [vmem:[%s9 + $0x168] sm:$0xff]
  %v8306 = vld [vmem:[%s9 + $0x170] sm:$0xff]
  %v8307 = vld [vmem:[%s9 + $0x178] sm:$0xff]
  %v8308 = vld [vmem:[%s9 + $0x180] sm:$0xff]
  %v8309 = vld [vmem:[%s9 + $0x188] sm:$0xff]
  %v8310 = vld [vmem:[%s9 + $0x190] sm:$0xff]
  %v8311 = vld [vmem:[%s9 + $0x198] sm:$0xff]
  %v8312 = vld [vmem:[%s9 + $0x1a0] sm:$0xff]
  %v8313 = vld [vmem:[%s9 + $0x1a8] sm:$0xff]
  %v8314 = vld [vmem:[%s9 + $0x1b0] sm:$0xff]
  %v8315 = vld [vmem:[%s9 + $0x1b8] sm:$0xff]
  %v8316 = vld [vmem:[%s9 + $0x1c0] sm:$0xff]
  %v8317 = vld [vmem:[%s9 + $0x1c8] sm:$0xff]
  %v8318 = vld [vmem:[%s9 + $0x1d0] sm:$0xff]
  %v8319 = vld [vmem:[%s9 + $0x1d8] sm:$0xff]
  %v8320 = vld [vmem:[%s9 + $0x1e0] sm:$0xff]
  %v8321 = vld [vmem:[%s9 + $0x1e8] sm:$0xff]
  %v8322 = vld [vmem:[%s9 + $0x1f0] sm:$0xff]
  %v8323 = vld [vmem:[%s9 + $0x1f8] sm:$0xff]
  %v8324 = vmul.f32 %v7942, %v8260
  %v8325 = vmul.f32 %v7947, %v8261
  %v8326 = vmul.f32 %v7952, %v8262
  %v8327 = vmul.f32 %v7957, %v8263
  %v8328 = vmul.f32 %v7962, %v8264
  %v8329 = vmul.f32 %v7967, %v8265
  %v8330 = vmul.f32 %v7972, %v8266
  %v8331 = vmul.f32 %v7977, %v8267
  %v8332 = vmul.f32 %v7982, %v8268
  %v8333 = vmul.f32 %v7987, %v8269
  %v8334 = vmul.f32 %v7992, %v8270
  %v8335 = vmul.f32 %v7997, %v8271
  %v8336 = vmul.f32 %v8002, %v8272
  %v8337 = vmul.f32 %v8007, %v8273
  %v8338 = vmul.f32 %v8012, %v8274
  %v8339 = vmul.f32 %v8017, %v8275
  %v8340 = vmul.f32 %v8022, %v8276
  %v8341 = vmul.f32 %v8027, %v8277
  %v8342 = vmul.f32 %v8032, %v8278
  %v8343 = vmul.f32 %v8037, %v8279
  %v8344 = vmul.f32 %v8042, %v8280
  %v8345 = vmul.f32 %v8047, %v8281
  %v8346 = vmul.f32 %v8052, %v8282
  %v8347 = vmul.f32 %v8057, %v8283
  %v8348 = vmul.f32 %v8062, %v8284
  %v8349 = vmul.f32 %v8067, %v8285
  %v8350 = vmul.f32 %v8072, %v8286
  %v8351 = vmul.f32 %v8077, %v8287
  %v8352 = vmul.f32 %v8082, %v8288
  %v8353 = vmul.f32 %v8087, %v8289
  %v8354 = vmul.f32 %v8092, %v8290
  %v8355 = vmul.f32 %v8097, %v8291
  %v8356 = vmul.f32 %v8102, %v8292
  %v8357 = vmul.f32 %v8107, %v8293
  %v8358 = vmul.f32 %v8112, %v8294
  %v8359 = vmul.f32 %v8117, %v8295
  %v8360 = vmul.f32 %v8122, %v8296
  %v8361 = vmul.f32 %v8127, %v8297
  %v8362 = vmul.f32 %v8132, %v8298
  %v8363 = vmul.f32 %v8137, %v8299
  %v8364 = vmul.f32 %v8142, %v8300
  %v8365 = vmul.f32 %v8147, %v8301
  %v8366 = vmul.f32 %v8152, %v8302
  %v8367 = vmul.f32 %v8157, %v8303
  %v8368 = vmul.f32 %v8162, %v8304
  %v8369 = vmul.f32 %v8167, %v8305
  %v8370 = vmul.f32 %v8172, %v8306
  %v8371 = vmul.f32 %v8177, %v8307
  %v8372 = vmul.f32 %v8182, %v8308
  %v8373 = vmul.f32 %v8187, %v8309
  %v8374 = vmul.f32 %v8192, %v8310
  %v8375 = vmul.f32 %v8197, %v8311
  %v8376 = vmul.f32 %v8202, %v8312
  %v8377 = vmul.f32 %v8207, %v8313
  %v8378 = vmul.f32 %v8212, %v8314
  %v8379 = vmul.f32 %v8217, %v8315
  %v8380 = vmul.f32 %v8222, %v8316
  %v8381 = vmul.f32 %v8227, %v8317
  %v8382 = vmul.f32 %v8232, %v8318
  %v8383 = vmul.f32 %v8237, %v8319
  %v8384 = vmul.f32 %v8242, %v8320
  %v8385 = vmul.f32 %v8247, %v8321
  %v8386 = vmul.f32 %v8252, %v8322
  %v8387 = vmul.f32 %v8257, %v8323
  %v8388 = vadd.f32 %v8324, %v8356
  %v8389 = vadd.f32 %v8325, %v8357
  %v8390 = vadd.f32 %v8326, %v8358
  %v8391 = vadd.f32 %v8327, %v8359
  %v8392 = vadd.f32 %v8328, %v8360
  %v8393 = vadd.f32 %v8329, %v8361
  %v8394 = vadd.f32 %v8330, %v8362
  %v8395 = vadd.f32 %v8331, %v8363
  %v8396 = vadd.f32 %v8332, %v8364
  %v8397 = vadd.f32 %v8333, %v8365
  %v8398 = vadd.f32 %v8334, %v8366
  %v8399 = vadd.f32 %v8335, %v8367
  %v8400 = vadd.f32 %v8336, %v8368
  %v8401 = vadd.f32 %v8337, %v8369
  %v8402 = vadd.f32 %v8338, %v8370
  %v8403 = vadd.f32 %v8339, %v8371
  %v8404 = vadd.f32 %v8340, %v8372
  %v8405 = vadd.f32 %v8341, %v8373
  %v8406 = vadd.f32 %v8342, %v8374
  %v8407 = vadd.f32 %v8343, %v8375
  %v8408 = vadd.f32 %v8344, %v8376
  %v8409 = vadd.f32 %v8345, %v8377
  %v8410 = vadd.f32 %v8346, %v8378
  %v8411 = vadd.f32 %v8347, %v8379
  %v8412 = vadd.f32 %v8348, %v8380
  %v8413 = vadd.f32 %v8349, %v8381
  %v8414 = vadd.f32 %v8350, %v8382
  %v8415 = vadd.f32 %v8351, %v8383
  %v8416 = vadd.f32 %v8352, %v8384
  %v8417 = vadd.f32 %v8353, %v8385
  %v8418 = vadd.f32 %v8354, %v8386
  %v8419 = vadd.f32 %v8355, %v8387
  %v8420 = vadd.f32 %v8388, %v8404
  %v8421 = vadd.f32 %v8389, %v8405
  %v8422 = vadd.f32 %v8390, %v8406
  %v8423 = vadd.f32 %v8391, %v8407
  %v8424 = vadd.f32 %v8392, %v8408
  %v8425 = vadd.f32 %v8393, %v8409
  %v8426 = vadd.f32 %v8394, %v8410
  %v8427 = vadd.f32 %v8395, %v8411
  %v8428 = vadd.f32 %v8396, %v8412
  %v8429 = vadd.f32 %v8397, %v8413
  %v8430 = vadd.f32 %v8398, %v8414
  %v8431 = vadd.f32 %v8399, %v8415
  %v8432 = vadd.f32 %v8400, %v8416
  %v8433 = vadd.f32 %v8401, %v8417
  %v8434 = vadd.f32 %v8402, %v8418
  %v8435 = vadd.f32 %v8403, %v8419
  %v8436 = vadd.f32 %v8420, %v8428
  %v8437 = vadd.f32 %v8421, %v8429
  %v8438 = vadd.f32 %v8422, %v8430
  %v8439 = vadd.f32 %v8423, %v8431
  %v8440 = vadd.f32 %v8424, %v8432
  %v8441 = vadd.f32 %v8425, %v8433
  %v8442 = vadd.f32 %v8426, %v8434
  %v8443 = vadd.f32 %v8427, %v8435
  %v8444 = vadd.f32 %v8436, %v8440
  %v8445 = vadd.f32 %v8437, %v8441
  %v8446 = vadd.f32 %v8438, %v8442
  %v8447 = vadd.f32 %v8439, %v8443
  %v8448 = vadd.f32 %v8444, %v8446
  %v8449 = vadd.f32 %v8445, %v8447
  %v8450 = vld [vmem:[%s10] sm:$0xff]
  %v8451 = vld [vmem:[%s10 + $0x8] sm:$0xff]
  %v8452 = vld [vmem:[%s10 + $0x10] sm:$0xff]
  %v8453 = vld [vmem:[%s10 + $0x18] sm:$0xff]
  %v8454 = vld [vmem:[%s10 + $0x20] sm:$0xff]
  %v8455 = vld [vmem:[%s10 + $0x28] sm:$0xff]
  %v8456 = vld [vmem:[%s10 + $0x30] sm:$0xff]
  %v8457 = vld [vmem:[%s10 + $0x38] sm:$0xff]
  %v8458 = vld [vmem:[%s10 + $0x40] sm:$0xff]
  %v8459 = vld [vmem:[%s10 + $0x48] sm:$0xff]
  %v8460 = vld [vmem:[%s10 + $0x50] sm:$0xff]
  %v8461 = vld [vmem:[%s10 + $0x58] sm:$0xff]
  %v8462 = vld [vmem:[%s10 + $0x60] sm:$0xff]
  %v8463 = vld [vmem:[%s10 + $0x68] sm:$0xff]
  %v8464 = vld [vmem:[%s10 + $0x70] sm:$0xff]
  %v8465 = vld [vmem:[%s10 + $0x78] sm:$0xff]
  %v8466 = vld [vmem:[%s8] sm:$0x1]
  %v8468 = vlaneseq
  %v8469 = vshrl.u32 %v8468, 7
  %v8470 = vsub.s32 0, %v8469
  %v8471 = vrot.slane %v8466, %v8470
  %8473 = vmatprep.subr.mxu0 0.0
  %8474 = vmatpush1.msra.mxu0 %v8465
  %8475 = vmatprep.subr.mxu0 0.0
  %8476 = vmatpush1.msra.mxu0 %v8464
  %8477 = vmatprep.subr.mxu0 0.0
  %8478 = vmatpush1.msra.mxu0 %v8463
  %8479 = vmatprep.subr.mxu0 0.0
  %8480 = vmatpush1.msra.mxu0 %v8462
  %8481 = vmatprep.subr.mxu0 0.0
  %8482 = vmatpush1.msra.mxu0 %v8461
  %8483 = vmatprep.subr.mxu0 0.0
  %8484 = vmatpush1.msra.mxu0 %v8460
  %8485 = vmatprep.subr.mxu0 0.0
  %8486 = vmatpush1.msra.mxu0 %v8459
  %8487 = vmatprep.subr.mxu0 0.0
  %8488 = vmatpush1.msra.mxu0 %v8458
  %8489 = vmatprep.subr.mxu0 0.0
  %8490 = vmatpush1.msra.mxu0 %v8457
  %8491 = vmatprep.subr.mxu0 0.0
  %8492 = vmatpush1.msra.mxu0 %v8456
  %8493 = vmatprep.subr.mxu0 0.0
  %8494 = vmatpush1.msra.mxu0 %v8455
  %8495 = vmatprep.subr.mxu0 0.0
  %8496 = vmatpush1.msra.mxu0 %v8454
  %8497 = vmatprep.subr.mxu0 0.0
  %8498 = vmatpush1.msra.mxu0 %v8453
  %8499 = vmatprep.subr.mxu0 0.0
  %8500 = vmatpush1.msra.mxu0 %v8452
  %8501 = vmatprep.subr.mxu0 0.0
  %8502 = vmatpush1.msra.mxu0 %v8451
  %8503 = vmatprep.subr.mxu0 0.0
  %8504 = vmatpush1.msra.mxu0 %v8450
  %8505 = vmatprep.subr.mxu0 0.0
  %8506 = vmatpush2.msra.mxu0 0.0
  %8507 = vmatprep.subr.mxu0 0.0
  %8508 = vmatpush2.msra.mxu0 0.0
  %8509 = vmatprep.subr.mxu0 0.0
  %8510 = vmatpush2.msra.mxu0 0.0
  %8511 = vmatprep.subr.mxu0 0.0
  %8512 = vmatpush2.msra.mxu0 0.0
  %8513 = vmatprep.subr.mxu0 0.0
  %8514 = vmatpush2.msra.mxu0 0.0
  %8515 = vmatprep.subr.mxu0 0.0
  %8516 = vmatpush2.msra.mxu0 0.0
  %8517 = vmatprep.subr.mxu0 0.0
  %8518 = vmatpush2.msra.mxu0 0.0
  %8519 = vmatprep.subr.mxu0 0.0
  %8520 = vmatpush2.msra.mxu0 0.0
  %8521 = vmatprep.subr.mxu0 0.0
  %8522 = vmatpush2.msra.mxu0 0.0
  %8523 = vmatprep.subr.mxu0 0.0
  %8524 = vmatpush2.msra.mxu0 0.0
  %8525 = vmatprep.subr.mxu0 0.0
  %8526 = vmatpush2.msra.mxu0 0.0
  %8527 = vmatprep.subr.mxu0 0.0
  %8528 = vmatpush2.msra.mxu0 0.0
  %8529 = vmatprep.subr.mxu0 0.0
  %8530 = vmatpush2.msra.mxu0 0.0
  %8531 = vmatprep.subr.mxu0 0.0
  %8532 = vmatpush2.msra.mxu0 0.0
  %8533 = vmatprep.subr.mxu0 0.0
  %8534 = vmatpush2.msra.mxu0 0.0
  %8535 = vmatprep.subr.mxu0 0.0
  %8536 = vmatpush2.msra.mxu0 0.0
  %8537 = vmatprep.mubr.f32.mxu0 0.0
  %8538 = vmatmul.mubr.f32.gmra.mxu0 %v8448
  %v8539 = vpop.f32.mrf.mxu0
  %v8540 = vadd.f32 %v8471, %v8539
  %v8541 = vpop.f32.mrf.mxu0
  %8542 = vmatprep.mubr.f32.mxu0 0.0
  %8543 = vmatmul.mubr.f32.gmra.mxu0 %v8449
  %v8544 = vpop.f32.mrf.mxu0
  %v8545 = vadd.f32 %v8471, %v8544
  %v8546 = vpop.f32.mrf.mxu0
  %8547 = vdwg.mxu0
  %vm8548 = vcmask 31744
  %v8549 = vsel %vm8548, %v8540, -inf
  %8550 = vmax.xlane.f32.xlu0 %v8549
  %v8551 = vpop.xlane.xlu0 %8550
  %v8552 = vsel %vm8548, %v8545, -inf
  %8553 = vmax.xlane.f32.xlu0 %v8552
  %v8554 = vpop.xlane.xlu0 %8553
  %v8555 = vsub.f32 %v8540, %v8551
  %v8556 = vsub.f32 %v8545, %v8554
  %v8557 = vmul.f32 %v8555, 1.442695
  %v8558 = vpow.pop %v8557
  %v8559 = vmul.f32 %v8556, 1.442695
  %v8560 = vpow.pop %v8559
  %v8561 = vsel %vm8548, %v8558, 0.0
  %8562 = vadd.xlane.f32.xlu0 %v8561
  %v8563 = vpop.xlane.xlu0 %8562
  %v8564 = vsel %vm8548, %v8560, 0.0
  %8565 = vadd.xlane.f32.xlu0 %v8564
  %v8566 = vpop.xlane.xlu0 %8565
  %v8567 = vrcp.pop %v8563
  %v8568 = vrcp.pop %v8566
  %v8569 = vmul.f32 %v8558, %v8567
  %v8570 = vmul.f32 %v8560, %v8568
  %8571 = vst.msk [vmem:[%s11] sm:$0xff] %vm8548, %v8569
  %8572 = vst.msk [vmem:[%s11 + $0x8] sm:$0xff] %vm8548, %v8570
  // Predicated region
  $region46: #{chow_forward.1} parent=0 // pred_check
    _
  $region47: #{chow_forward.1} parent=0 // pred_check_branch
    %8574 = sbr.rel (0) target = $region49
  $region48: #{chow_forward.1} parent=0 // pred_region
    _
  $region49: #{chow_forward.1} parent=0 // pred_fallthru
    _
  // Predicated region
  $region50: #{chow_forward.1} parent=0 // pred_check
    _
  $region51: #{chow_forward.1} parent=0 // pred_check_branch
    %8576 = sbr.rel (0) target = $region53
  $region52: #{chow_forward.1} parent=0 // pred_region
    _
  $region53: #{chow_forward.1} parent=0 // pred_fallthru
    _

</llo_original>
